<compile_context>
chip_gen: v7x
topology: tpu7x:2x2x1
jax: 0.10.0
libtpu: 0.0.40
codegen_flags: <defaults>
</compile_context>

<pallas_src>
import jax
import jax.numpy as jnp
from jax import lax
from jax.experimental import pallas as pl
from jax.experimental.pallas import tpu as pltpu

BN_EPS = 1e-5
LEAKY_SLOPE = 0.1
C_IN, KH, KW = 256, 9, 9
K_TOTAL = C_IN * KH * KW          # 20736
HIDDEN = 128
N_DISC = 100
HEAD_OUT = 128                    # 100 disc + 1 mu + 1 var, padded lane-dense
N_SPLITS = 2                      # channel halves -> one per v7x TensorCore
C_HALF = HIDDEN // N_SPLITS       # 64


def qhead_kernel(x_ref, w1_ref, gamma_ref, beta_ref, wh_ref, out_ref):
    """One 64-channel half of conv1 + BN + leaky_relu + partial fused heads."""
    # conv1 (9x9 valid conv on 9x9 input, no bias) == dense matmul on the MXU.
    # bf16 x bf16 inputs, f32 accumulation, full-K in a single pass.
    h = jnp.dot(x_ref[...], w1_ref[...],
                preferred_element_type=jnp.float32)            # (N, 64) f32

    # BatchNorm2d in training mode: biased batch mean/var per channel.
    # Stats are over the full batch (whole batch is in this block); the grid
    # only splits channels, so this matches PyTorch training semantics exactly.
    mean = jnp.mean(h, axis=0, keepdims=True)
    var_b = jnp.mean((h - mean) ** 2, axis=0, keepdims=True)
    hn = (h - mean) * lax.rsqrt(var_b + BN_EPS)
    hn = hn * gamma_ref[...] + beta_ref[...]
    # leaky_relu(0.1)
    hn = jnp.where(hn > 0, hn, LEAKY_SLOPE * hn)

    # Partial fused 1x1-conv heads for this channel half (lane-dense 128-wide
    # output). The two partials are summed (+ bias) in the wrapper.
    out_ref[...] = jnp.dot(hn, wh_ref[...],
                           preferred_element_type=jnp.float32)


def prepare_qhead_params(params):
    """One-time conversion of PyTorch-layout params to kernel layout/dtypes."""
    w1, gamma, beta, wd, bd, wm, bm, wv, bv = params
    # conv1 weight: pre-transposed (K, 128), split into two 64-channel halves
    # -> (2, K, 64) bf16 for the HBM-bound stream.
    w1t = jnp.asarray(w1.reshape(HIDDEN, K_TOTAL).T, dtype=jnp.bfloat16)
    w1h = w1t.reshape(K_TOTAL, N_SPLITS, C_HALF).transpose(1, 0, 2)
    # Fuse the three 1x1-conv heads into one (128, 128) lane-dense matrix,
    # split along the hidden axis into two (64, 128) halves.
    wh = jnp.concatenate([wd.reshape(N_DISC, HIDDEN),
                          wm.reshape(1, HIDDEN),
                          wv.reshape(1, HIDDEN)], axis=0).T        # (128, 102)
    wh = jnp.pad(wh, ((0, 0), (0, HEAD_OUT - wh.shape[1])))        # (128, 128)
    wh = wh.reshape(N_SPLITS, C_HALF, HEAD_OUT).astype(jnp.float32)
    bh = jnp.concatenate([bd, bm, bv])
    bh = jnp.pad(bh, (0, HEAD_OUT - bh.shape[0])).reshape(1, HEAD_OUT)
    return (jnp.asarray(w1h, dtype=jnp.bfloat16),
            gamma.reshape(N_SPLITS, 1, C_HALF).astype(jnp.float32),
            beta.reshape(N_SPLITS, 1, C_HALF).astype(jnp.float32),
            wh,
            bh.astype(jnp.float32))


@jax.jit
def qhead_forward(x, kparams):
    """x: (N, 256, 9, 9) NCHW f32. kparams: from prepare_qhead_params."""
    n = x.shape[0]
    w1h, gamma, beta, wh, bh = kparams
    # Row-major over (C,H,W) == PyTorch layout; cast to bf16 once here.
    x_flat = x.reshape(n, K_TOTAL).astype(jnp.bfloat16)

    out_part = pl.pallas_call(
        qhead_kernel,
        out_shape=jax.ShapeDtypeStruct((N_SPLITS, n, HEAD_OUT), jnp.float32),
        grid_spec=pltpu.PrefetchScalarGridSpec(
            num_scalar_prefetch=0,
            grid=(N_SPLITS,),
            in_specs=[
                pl.BlockSpec((n, K_TOTAL), lambda c: (0, 0)),          # x slab
                pl.BlockSpec((None, K_TOTAL, C_HALF), lambda c: (c, 0, 0)),
                pl.BlockSpec((None, 1, C_HALF), lambda c: (c, 0, 0)),  # gamma
                pl.BlockSpec((None, 1, C_HALF), lambda c: (c, 0, 0)),  # beta
                pl.BlockSpec((None, C_HALF, HEAD_OUT), lambda c: (c, 0, 0)),
            ],
            out_specs=pl.BlockSpec((None, n, HEAD_OUT), lambda c: (c, 0, 0)),
        ),
        compiler_params=pltpu.CompilerParams(
            dimension_semantics=("parallel",)),
    )(x_flat, w1h, gamma, beta, wh)

    # Combine the two channel-half partial head outputs, add the fused bias.
    out = out_part.sum(axis=0) + bh
    disc = out[:, :N_DISC]                 # (N, 100)
    mu = out[:, N_DISC]                    # (N,)
    var = jnp.exp(out[:, N_DISC + 1])      # (N,)
    return disc, mu, var


def reference_forward(x, params, bf16_matmul=False):
    """Pure-JAX reference of the PyTorch forward (training-mode BN)."""
    n = x.shape[0]
    w1, gamma, beta, wd, bd, wm, bm, wv, bv = params
    xf = x.reshape(n, K_TOTAL)
    w1m = w1.reshape(HIDDEN, K_TOTAL)
    if bf16_matmul:
        h = jnp.dot(xf.astype(jnp.bfloat16), w1m.T.astype(jnp.bfloat16),
                    preferred_element_type=jnp.float32)
    else:
        h = xf @ w1m.T
    mean = h.mean(axis=0, keepdims=True)
    var_b = ((h - mean) ** 2).mean(axis=0, keepdims=True)
    hn = (h - mean) / jnp.sqrt(var_b + BN_EPS) * gamma[None, :] + beta[None, :]
    hn = jnp.where(hn > 0, hn, LEAKY_SLOPE * hn)
    disc = hn @ wd.reshape(N_DISC, HIDDEN).T + bd[None, :]
    mu = hn @ wm.reshape(1, HIDDEN).T + bm[None, :]
    var = jnp.exp(hn @ wv.reshape(1, HIDDEN).T + bv[None, :])
    return disc, mu[:, 0], var[:, 0]


def init_params(key):
    ks = jax.random.split(key, 9)
    w1 = 0.02 * jax.random.normal(ks[0], (HIDDEN, C_IN, KH, KW), jnp.float32)
    gamma = 1.0 + 0.1 * jax.random.normal(ks[1], (HIDDEN,), jnp.float32)
    beta = 0.1 * jax.random.normal(ks[2], (HIDDEN,), jnp.float32)
    wd = 0.05 * jax.random.normal(ks[3], (N_DISC, HIDDEN, 1, 1), jnp.float32)
    bd = 0.05 * jax.random.normal(ks[4], (N_DISC,), jnp.float32)
    wm = 0.05 * jax.random.normal(ks[5], (1, HIDDEN, 1, 1), jnp.float32)
    bm = 0.05 * jax.random.normal(ks[6], (1,), jnp.float32)
    wv = 0.05 * jax.random.normal(ks[7], (1, HIDDEN, 1, 1), jnp.float32)
    bv = 0.05 * jax.random.normal(ks[8], (1,), jnp.float32)
    return (w1, gamma, beta, wd, bd, wm, bm, wv, bv)


if __name__ == "__main__":
    key = jax.random.PRNGKey(0)
    kx, kp = jax.random.split(key)
    # batch=2; channels (256) and spatial (9x9) are fixed by the module.
    x = jax.random.normal(kx, (2, C_IN, KH, KW), jnp.float32)
    params = init_params(kp)
    kparams = prepare_qhead_params(params)   # one-time layout/dtype conversion

    disc, mu, var = qhead_forward(x, kparams)
    jax.block_until_ready((disc, mu, var))

    assert disc.shape == (2, N_DISC) and mu.shape == (2,) and var.shape == (2,)

    # Tight check vs. a reference that mirrors the kernel's bf16-weight matmul.
    rd, rm, rv = reference_forward(x, params, bf16_matmul=True)
    assert jnp.allclose(disc, rd, atol=1e-3, rtol=1e-3)
    assert jnp.allclose(mu, rm, atol=1e-3, rtol=1e-3)
    assert jnp.allclose(var, rv, atol=1e-3, rtol=1e-3)

    # Loose check vs. the exact f32 PyTorch-semantics reference.
    fd, fm, fv = reference_forward(x, params, bf16_matmul=False)
    assert jnp.allclose(disc, fd, atol=2e-2, rtol=2e-2)
    assert jnp.allclose(mu, fm, atol=2e-2, rtol=2e-2)
    assert jnp.allclose(var, fv, atol=2e-2, rtol=2e-2)

    print("KERNEL_OK")
</pallas_src>

<mosaic_0001>
module attributes {stable_mosaic.version = 11 : i64} {
  func.func @qhead_kernel(%arg0: i32, %arg1: memref<2x20736xbf16, #tpu.memory_space<vmem>>, %arg2: memref<1x20736x64xbf16, #tpu.memory_space<vmem>>, %arg3: memref<1x1x64xf32, #tpu.memory_space<vmem>>, %arg4: memref<1x1x64xf32, #tpu.memory_space<vmem>>, %arg5: memref<1x64x128xf32, #tpu.memory_space<vmem>>, %arg6: memref<1x2x128xf32, #tpu.memory_space<vmem>>) attributes {dimension_semantics = [#tpu.dimension_semantics<parallel>], iteration_bounds = array<i64: 2>, scalar_prefetch = 0 : i64, scratch_operands = 0 : i64, tpu.core_type = #tpu.core_type<tc>, window_params = [{pipeline_mode = #tpu.pipeline_mode<synchronous>, transform_indices = @transform_0, window_bounds = array<i64: 2, 20736>}, {transform_indices = @transform_1, window_bounds = array<i64: 1, 20736, 64>}, {transform_indices = @transform_2, window_bounds = array<i64: 1, 1, 64>}, {transform_indices = @transform_3, window_bounds = array<i64: 1, 1, 64>}, {transform_indices = @transform_4, window_bounds = array<i64: 1, 64, 128>}, {transform_indices = @transform_5, window_bounds = array<i64: 1, 2, 128>}]} {
    %c0 = arith.constant 0 : index
    %c0_0 = arith.constant 0 : index
    %0 = vector.load %arg1[%c0, %c0_0] : memref<2x20736xbf16, #tpu.memory_space<vmem>>, vector<2x20736xbf16>
    %c0_1 = arith.constant 0 : index
    %c0_2 = arith.constant 0 : index
    %c0_3 = arith.constant 0 : index
    %1 = vector.load %arg2[%c0_1, %c0_2, %c0_3] : memref<1x20736x64xbf16, #tpu.memory_space<vmem>>, vector<1x20736x64xbf16>
    %2 = vector.shape_cast %1 : vector<1x20736x64xbf16> to vector<20736x64xbf16>
    %cst = arith.constant dense<0.000000e+00> : vector<2x64xf32>
    %3 = tpu.matmul %0, %2, %cst {dimension_numbers = #tpu.dot_dimension_numbers<[1], [0], [0], [1], [0, 0, 1, 1], [], []>} : vector<2x20736xbf16>, vector<20736x64xbf16>, vector<2x64xf32> -> vector<2x64xf32>
    %cst_4 = arith.constant dense<0.000000e+00> : vector<64xf32>
    %4 = vector.multi_reduction <add>, %3, %cst_4 [0] : vector<2x64xf32> to vector<64xf32>
    %5 = vector.shape_cast %4 : vector<64xf32> to vector<1x64xf32>
    %cst_5 = arith.constant 2.000000e+00 : f32
    %6 = vector.broadcast %cst_5 : f32 to vector<1x64xf32>
    %7 = arith.divf %5, %6 : vector<1x64xf32>
    %8 = vector.broadcast %7 : vector<1x64xf32> to vector<2x64xf32>
    %9 = arith.subf %3, %8 : vector<2x64xf32>
    %10 = arith.mulf %9, %9 : vector<2x64xf32>
    %cst_6 = arith.constant dense<0.000000e+00> : vector<64xf32>
    %11 = vector.multi_reduction <add>, %10, %cst_6 [0] : vector<2x64xf32> to vector<64xf32>
    %12 = vector.shape_cast %11 : vector<64xf32> to vector<1x64xf32>
    %cst_7 = arith.constant 2.000000e+00 : f32
    %13 = vector.broadcast %cst_7 : f32 to vector<1x64xf32>
    %14 = arith.divf %12, %13 : vector<1x64xf32>
    %15 = vector.broadcast %7 : vector<1x64xf32> to vector<2x64xf32>
    %16 = arith.subf %3, %15 : vector<2x64xf32>
    %cst_8 = arith.constant 9.99999974E-6 : f32
    %17 = vector.broadcast %cst_8 : f32 to vector<1x64xf32>
    %18 = arith.addf %14, %17 : vector<1x64xf32>
    %19 = math.rsqrt %18 : vector<1x64xf32>
    %20 = vector.broadcast %19 : vector<1x64xf32> to vector<2x64xf32>
    %21 = arith.mulf %16, %20 : vector<2x64xf32>
    %c0_9 = arith.constant 0 : index
    %c0_10 = arith.constant 0 : index
    %c0_11 = arith.constant 0 : index
    %22 = vector.load %arg3[%c0_9, %c0_10, %c0_11] : memref<1x1x64xf32, #tpu.memory_space<vmem>>, vector<1x1x64xf32>
    %23 = vector.shape_cast %22 : vector<1x1x64xf32> to vector<1x64xf32>
    %24 = vector.broadcast %23 : vector<1x64xf32> to vector<2x64xf32>
    %25 = arith.mulf %21, %24 : vector<2x64xf32>
    %c0_12 = arith.constant 0 : index
    %c0_13 = arith.constant 0 : index
    %c0_14 = arith.constant 0 : index
    %26 = vector.load %arg4[%c0_12, %c0_13, %c0_14] : memref<1x1x64xf32, #tpu.memory_space<vmem>>, vector<1x1x64xf32>
    %27 = vector.shape_cast %26 : vector<1x1x64xf32> to vector<1x64xf32>
    %28 = vector.broadcast %27 : vector<1x64xf32> to vector<2x64xf32>
    %29 = arith.addf %25, %28 : vector<2x64xf32>
    %cst_15 = arith.constant 0.000000e+00 : f32
    %30 = vector.broadcast %cst_15 : f32 to vector<2x64xf32>
    %31 = arith.cmpf ogt, %29, %30 : vector<2x64xf32>
    %cst_16 = arith.constant 1.000000e-01 : f32
    %32 = vector.broadcast %cst_16 : f32 to vector<2x64xf32>
    %33 = arith.mulf %32, %29 : vector<2x64xf32>
    %34 = arith.select %31, %29, %33 : vector<2x64xi1>, vector<2x64xf32>
    %c0_17 = arith.constant 0 : index
    %c0_18 = arith.constant 0 : index
    %c0_19 = arith.constant 0 : index
    %35 = vector.load %arg5[%c0_17, %c0_18, %c0_19] : memref<1x64x128xf32, #tpu.memory_space<vmem>>, vector<1x64x128xf32>
    %36 = vector.shape_cast %35 : vector<1x64x128xf32> to vector<64x128xf32>
    %cst_20 = arith.constant dense<0.000000e+00> : vector<2x128xf32>
    %37 = tpu.matmul %34, %36, %cst_20 {dimension_numbers = #tpu.dot_dimension_numbers<[1], [0], [0], [1], [0, 0, 1, 1], [], []>} : vector<2x64xf32>, vector<64x128xf32>, vector<2x128xf32> -> vector<2x128xf32>
    %c0_21 = arith.constant 0 : index
    %c0_22 = arith.constant 0 : index
    %c0_23 = arith.constant 0 : index
    %38 = vector.load %arg6[%c0_21, %c0_22, %c0_23] : memref<1x2x128xf32, #tpu.memory_space<vmem>>, vector<1x2x128xf32>
    %39 = vector.shape_cast %38 : vector<1x2x128xf32> to vector<2x128xf32>
    %40 = vector.shape_cast %37 : vector<2x128xf32> to vector<1x2x128xf32>
    tpu.vector_store %arg6[%c0_21, %c0_22, %c0_23], %40 {strides = array<i32>} : memref<1x2x128xf32, #tpu.memory_space<vmem>>, vector<1x2x128xf32>,
    return
  }
  func.func @transform_0(%arg0: i32) -> (i32, i32) {
    %c0_i32 = arith.constant 0 : i32
    %c0_i32_0 = arith.constant 0 : i32
    %c0_i32_1 = arith.constant 0 : i32
    return %c0_i32, %c0_i32_0 : i32, i32
  }
  func.func @transform_1(%arg0: i32) -> (i32, i32, i32) {
    %c0_i32 = arith.constant 0 : i32
    %c0_i32_0 = arith.constant 0 : i32
    %c0_i32_1 = arith.constant 0 : i32
    return %arg0, %c0_i32, %c0_i32_0 : i32, i32, i32
  }
  func.func @transform_2(%arg0: i32) -> (i32, i32, i32) {
    %c0_i32 = arith.constant 0 : i32
    %c0_i32_0 = arith.constant 0 : i32
    %c0_i32_1 = arith.constant 0 : i32
    return %arg0, %c0_i32, %c0_i32_0 : i32, i32, i32
  }
  func.func @transform_3(%arg0: i32) -> (i32, i32, i32) {
    %c0_i32 = arith.constant 0 : i32
    %c0_i32_0 = arith.constant 0 : i32
    %c0_i32_1 = arith.constant 0 : i32
    return %arg0, %c0_i32, %c0_i32_0 : i32, i32, i32
  }
  func.func @transform_4(%arg0: i32) -> (i32, i32, i32) {
    %c0_i32 = arith.constant 0 : i32
    %c0_i32_0 = arith.constant 0 : i32
    %c0_i32_1 = arith.constant 0 : i32
    return %arg0, %c0_i32, %c0_i32_0 : i32, i32, i32
  }
  func.func @transform_5(%arg0: i32) -> (i32, i32, i32) {
    %c0_i32 = arith.constant 0 : i32
    %c0_i32_0 = arith.constant 0 : i32
    %c0_i32_1 = arith.constant 0 : i32
    return %arg0, %c0_i32, %c0_i32_0 : i32, i32, i32
  }
}

</mosaic_0001>

<llo_original>
// kernel: qhead_forward.1
$region0: #{qhead_forward.1}
  #allocation0 [shape = 'u32[]', space=smem, size = 0x4, offset = 0x4, fixed_abs, tag = 'smem constant byte address 0x4 - core index']
  #allocation1 [shape = 'u32[144,128]{1,0:T(1,128)}', space=vmem, size = 0x12000, scoped, tag = 'internal scratch']
  %s0 = inlined_call_operand.vmem [shape: bf16[2,20736], index: 0, kind: input, shape index: {}]
  %s1 = inlined_call_operand.vmem [shape: bf16[2,20736,64], index: 1, kind: input, shape index: {}]
  %s2 = inlined_call_operand.vmem [shape: f32[2,1,64], index: 2, kind: input, shape index: {}]
  %s3 = inlined_call_operand.vmem [shape: f32[2,1,64], index: 3, kind: input, shape index: {}]
  %s4 = inlined_call_operand.vmem [shape: f32[2,64,128], index: 4, kind: input, shape index: {}]
  %s5 = inlined_call_operand.vmem [shape: f32[2,2,128], index: 5, kind: output, shape index: {}]
  %s6 = sld [smem:[#allocation0]]
  $region53: #{qhead_forward.1} parent=0
    _
  %s8 = ssub.s32 1, %s6
  %s9 = scalar_select 0, %s8, %s6
  loop: start=0, step=1, limit=4
  $region2: #{qhead_forward.1} parent=0 // loop_pre_header
    _
  $region3: #{qhead_forward.1} parent=0 // loop_header
    %s11 = sphi 0, %s15
    %p12 = scmp.ge.s32.totalorder %s11, 4
    %s19 = sphi 0, %s19
    %s21 = sphi 0, %s19
    %s22 = sphi 0, %s21
    %s36 = sphi 0, %s22
    %s42 = sphi 0, %s44
    %s45 = sphi 0, %s42
    %s46 = sphi 0, %s45
    %s62 = sphi 0, %s46
    %s68 = sphi 0, %s70
    %s71 = sphi 0, %s68
    %s72 = sphi 0, %s71
    %s88 = sphi 0, %s72
    %s94 = sphi 0, %s96
    %s97 = sphi 0, %s94
    %s98 = sphi 0, %s97
    %s114 = sphi 0, %s98
    %s120 = sphi 0, %s122
    %s123 = sphi 0, %s120
    %s124 = sphi 0, %s123
    %s140 = sphi 0, %s124
    %s146 = sphi 0, %s148
    %s149 = sphi 0, %s146
    %s150 = sphi 0, %s149
    %s166 = sphi 0, %s150
  $region4: #{qhead_forward.1} parent=0 // loop_header_branch
    %14 = sbr.rel (%p12) target = $region8
  $region5: #{qhead_forward.1} parent=0 // loop_body
    %s16 = ssub.s32 %s11, 1
    %s17 = ssub.s32 %s11, 2
    %s18 = sadd.s32 %s11, 1
    %s20 = sadd.s32 %s19, 1
    %p23 = scmp.eq.s32.totalorder %s11, 1
    %p24 = scmp.ne.s32.totalorder %s19, %s21
    %p25 = scmp.eq.s32.totalorder %s11, 0
    %p26 = por %p24, %p25
    %p27 = scmp.ne.s32.totalorder %s19, %s21
    %p28 = scmp.eq.s32.totalorder %s16, 1
    %p29 = por %p27, %p28
    %p30 = scmp.ne.s32.totalorder %s21, %s22
    %p31 = scmp.eq.s32.totalorder %s16, 0
    %p32 = por %p30, %p31
    %p33 = scmp.ne.s32.totalorder %s21, %s22
    %p34 = scmp.eq.s32.totalorder %s17, 1
    %p35 = por %p33, %p34
    %p37 = scmp.ne.s32.totalorder %s22, %s36
    %p38 = scmp.eq.s32.totalorder %s17, 0
    %p39 = por %p37, %p38
    %s40 = ssub.s32 %s11, %s18
    %p41 = scmp.eq.s32.totalorder %s40, 0
    %s43 = sadd.s32 %s42, 1
    %s44 = scalar_select %p41, %s42, %s43
    %p47 = pneg %p41
    %p48 = scmp.eq.s32.totalorder %s11, 1
    %p49 = por %p47, %p48
    %p50 = scmp.ne.s32.totalorder %s42, %s45
    %p51 = scmp.eq.s32.totalorder %s11, 0
    %p52 = por %p50, %p51
    %p53 = scmp.ne.s32.totalorder %s42, %s45
    %p54 = scmp.eq.s32.totalorder %s16, 1
    %p55 = por %p53, %p54
    %p56 = scmp.ne.s32.totalorder %s45, %s46
    %p57 = scmp.eq.s32.totalorder %s16, 0
    %p58 = por %p56, %p57
    %p59 = scmp.ne.s32.totalorder %s45, %s46
    %p60 = scmp.eq.s32.totalorder %s17, 1
    %p61 = por %p59, %p60
    %p63 = scmp.ne.s32.totalorder %s46, %s62
    %p64 = scmp.eq.s32.totalorder %s17, 0
    %p65 = por %p63, %p64
    %s66 = ssub.s32 %s11, %s18
    %p67 = scmp.eq.s32.totalorder %s66, 0
    %s69 = sadd.s32 %s68, 1
    %s70 = scalar_select %p67, %s68, %s69
    %p73 = pneg %p67
    %p74 = scmp.eq.s32.totalorder %s11, 1
    %p75 = por %p73, %p74
    %p76 = scmp.ne.s32.totalorder %s68, %s71
    %p77 = scmp.eq.s32.totalorder %s11, 0
    %p78 = por %p76, %p77
    %p79 = scmp.ne.s32.totalorder %s68, %s71
    %p80 = scmp.eq.s32.totalorder %s16, 1
    %p81 = por %p79, %p80
    %p82 = scmp.ne.s32.totalorder %s71, %s72
    %p83 = scmp.eq.s32.totalorder %s16, 0
    %p84 = por %p82, %p83
    %p85 = scmp.ne.s32.totalorder %s71, %s72
    %p86 = scmp.eq.s32.totalorder %s17, 1
    %p87 = por %p85, %p86
    %p89 = scmp.ne.s32.totalorder %s72, %s88
    %p90 = scmp.eq.s32.totalorder %s17, 0
    %p91 = por %p89, %p90
    %s92 = ssub.s32 %s11, %s18
    %p93 = scmp.eq.s32.totalorder %s92, 0
    %s95 = sadd.s32 %s94, 1
    %s96 = scalar_select %p93, %s94, %s95
    %p99 = pneg %p93
    %p100 = scmp.eq.s32.totalorder %s11, 1
    %p101 = por %p99, %p100
    %p102 = scmp.ne.s32.totalorder %s94, %s97
    %p103 = scmp.eq.s32.totalorder %s11, 0
    %p104 = por %p102, %p103
    %p105 = scmp.ne.s32.totalorder %s94, %s97
    %p106 = scmp.eq.s32.totalorder %s16, 1
    %p107 = por %p105, %p106
    %p108 = scmp.ne.s32.totalorder %s97, %s98
    %p109 = scmp.eq.s32.totalorder %s16, 0
    %p110 = por %p108, %p109
    %p111 = scmp.ne.s32.totalorder %s97, %s98
    %p112 = scmp.eq.s32.totalorder %s17, 1
    %p113 = por %p111, %p112
    %p115 = scmp.ne.s32.totalorder %s98, %s114
    %p116 = scmp.eq.s32.totalorder %s17, 0
    %p117 = por %p115, %p116
    %s118 = ssub.s32 %s11, %s18
    %p119 = scmp.eq.s32.totalorder %s118, 0
    %s121 = sadd.s32 %s120, 1
    %s122 = scalar_select %p119, %s120, %s121
    %p125 = pneg %p119
    %p126 = scmp.eq.s32.totalorder %s11, 1
    %p127 = por %p125, %p126
    %p128 = scmp.ne.s32.totalorder %s120, %s123
    %p129 = scmp.eq.s32.totalorder %s11, 0
    %p130 = por %p128, %p129
    %p131 = scmp.ne.s32.totalorder %s120, %s123
    %p132 = scmp.eq.s32.totalorder %s16, 1
    %p133 = por %p131, %p132
    %p134 = scmp.ne.s32.totalorder %s123, %s124
    %p135 = scmp.eq.s32.totalorder %s16, 0
    %p136 = por %p134, %p135
    %p137 = scmp.ne.s32.totalorder %s123, %s124
    %p138 = scmp.eq.s32.totalorder %s17, 1
    %p139 = por %p137, %p138
    %p141 = scmp.ne.s32.totalorder %s124, %s140
    %p142 = scmp.eq.s32.totalorder %s17, 0
    %p143 = por %p141, %p142
    %s144 = ssub.s32 %s11, %s18
    %p145 = scmp.eq.s32.totalorder %s144, 0
    %s147 = sadd.s32 %s146, 1
    %s148 = scalar_select %p145, %s146, %s147
    %p151 = pneg %p145
    %p152 = scmp.eq.s32.totalorder %s11, 1
    %p153 = por %p151, %p152
    %p154 = scmp.ne.s32.totalorder %s146, %s149
    %p155 = scmp.eq.s32.totalorder %s11, 0
    %p156 = por %p154, %p155
    %p157 = scmp.ne.s32.totalorder %s146, %s149
    %p158 = scmp.eq.s32.totalorder %s16, 1
    %p159 = por %p157, %p158
    %p160 = scmp.ne.s32.totalorder %s149, %s150
    %p161 = scmp.eq.s32.totalorder %s16, 0
    %p162 = por %p160, %p161
    %p163 = scmp.ne.s32.totalorder %s149, %s150
    %p164 = scmp.eq.s32.totalorder %s17, 1
    %p165 = por %p163, %p164
    %p167 = scmp.ne.s32.totalorder %s150, %s166
    %p168 = scmp.eq.s32.totalorder %s17, 0
    %p169 = por %p167, %p168
    %p170 = scmp.le.s32.totalorder 1, %s11
    %p171 = scmp.lt.s32.totalorder %s11, 3
    %p172 = pnand %p170, %p171
    %p173 = pneg %p172
    // Predicated region
    $region9: #{qhead_forward.1} parent=5 // pred_check
      _
    $region10: #{qhead_forward.1} parent=5 // pred_check_branch
      %175 = sbr.rel (%p172) target = $region12
    $region11: #{qhead_forward.1} parent=5 // pred_region
      %s176 = ssub.s32 %s11, 1
      // Predicated region
      $region13: #{qhead_forward.1} parent=11 // pred_check
        %p177 = pneg %p32
      $region14: #{qhead_forward.1} parent=11 // pred_check_branch
        %179 = sbr.rel (%p177) target = $region16
      $region15: #{qhead_forward.1} parent=11 // pred_region
        _
      $region16: #{qhead_forward.1} parent=11 // pred_fallthru
        _
    $region12: #{qhead_forward.1} parent=5 // pred_fallthru
      _
    %p180 = scmp.lt.s32.totalorder %s11, 2
    // Predicated region
    $region17: #{qhead_forward.1} parent=5 // pred_check
      %p181 = pneg %p180
    $region18: #{qhead_forward.1} parent=5 // pred_check_branch
      %183 = sbr.rel (%p181) target = $region20
    $region19: #{qhead_forward.1} parent=5 // pred_region
      // Predicated region
      $region21: #{qhead_forward.1} parent=19 // pred_check
        %p184 = pneg %p52
      $region22: #{qhead_forward.1} parent=19 // pred_check_branch
        %186 = sbr.rel (%p184) target = $region24
      $region23: #{qhead_forward.1} parent=19 // pred_region
        %p187 = scmp.lt.s32.totalorder %s11, 1
        %s188 = scalar_select %p187, %s11, 1
        %s189 = smul.addr %s188, 2592
        %s190 = smul.addr %s189, 4
        %s191 = scalar_lea.vmem %s1, %s190
      $region24: #{qhead_forward.1} parent=19 // pred_fallthru
        _
      // Predicated region
      $region25: #{qhead_forward.1} parent=19 // pred_check
        %p192 = pneg %p78
      $region26: #{qhead_forward.1} parent=19 // pred_check_branch
        %194 = sbr.rel (%p192) target = $region28
      $region27: #{qhead_forward.1} parent=19 // pred_region
        %p195 = scmp.lt.s32.totalorder %s11, 1
        %s196 = scalar_select %p195, %s11, 1
        %s197 = scalar_lea.vmem %s2, %s196
      $region28: #{qhead_forward.1} parent=19 // pred_fallthru
        _
      // Predicated region
      $region29: #{qhead_forward.1} parent=19 // pred_check
        %p198 = pneg %p104
      $region30: #{qhead_forward.1} parent=19 // pred_check_branch
        %200 = sbr.rel (%p198) target = $region32
      $region31: #{qhead_forward.1} parent=19 // pred_region
        %p201 = scmp.lt.s32.totalorder %s11, 1
        %s202 = scalar_select %p201, %s11, 1
        %s203 = scalar_lea.vmem %s3, %s202
      $region32: #{qhead_forward.1} parent=19 // pred_fallthru
        _
      // Predicated region
      $region33: #{qhead_forward.1} parent=19 // pred_check
        %p204 = pneg %p130
      $region34: #{qhead_forward.1} parent=19 // pred_check_branch
        %206 = sbr.rel (%p204) target = $region36
      $region35: #{qhead_forward.1} parent=19 // pred_region
        %p207 = scmp.lt.s32.totalorder %s11, 1
        %s208 = scalar_select %p207, %s11, 1
        %s209 = smul.addr %s208, 8
        %s210 = smul.addr %s209, 8
        %s211 = scalar_lea.vmem %s4, %s210
      $region36: #{qhead_forward.1} parent=19 // pred_fallthru
        _
    $region20: #{qhead_forward.1} parent=5 // pred_fallthru
      _
    %p212 = scmp.le.s32.totalorder 1, %s11
    %p213 = scmp.lt.s32.totalorder %s11, 3
    %p214 = pnand %p212, %p213
    %p215 = pneg %p214
    // Predicated region
    $region37: #{qhead_forward.1} parent=5 // pred_check
      _
    $region38: #{qhead_forward.1} parent=5 // pred_check_branch
      %217 = sbr.rel (%p214) target = $region40
    $region39: #{qhead_forward.1} parent=5 // pred_region
      %s218 = ssub.s32 %s11, 1
      %p219 = pneg %p32
      %p220 = pneg %p29
      %p221 = scmp.lt.s32.totalorder %s16, 1
      %s222 = scalar_select %p221, %s16, 1
      %s223 = smul.addr %s222, 2592
      %s224 = smul.addr %s223, 4
      %s225 = scalar_lea.vmem %s1, %s224
      %p226 = pneg %p58
      %p227 = pneg %p55
      %p228 = scmp.lt.s32.totalorder %s16, 1
      %s229 = scalar_select %p228, %s16, 1
      %s230 = scalar_lea.vmem %s2, %s229
      %p231 = pneg %p84
      %p232 = pneg %p81
      %p233 = scmp.lt.s32.totalorder %s16, 1
      %s234 = scalar_select %p233, %s16, 1
      %s235 = scalar_lea.vmem %s3, %s234
      %p236 = pneg %p110
      %p237 = pneg %p107
      %p238 = scmp.lt.s32.totalorder %s16, 1
      %s239 = scalar_select %p238, %s16, 1
      %s240 = smul.addr %s239, 8
      %s241 = smul.addr %s240, 8
      %s242 = scalar_lea.vmem %s4, %s241
      %p243 = pneg %p136
      %p244 = pneg %p133
      %p245 = pneg %p162
      %p246 = pneg %p159
      %p247 = scmp.lt.s32.totalorder %s16, 1
      %s248 = scalar_select %p247, %s16, 1
      %s249 = smul.addr %s248, 2
      %s250 = scalar_lea.vmem %s5, %s249
      %p251 = scmp.lt.s32.totalorder %s16, 1
      %s252 = scalar_select %p251, %s16, 1
      %s253 = smul.addr %s252, 2592
      %s254 = smul.addr %s253, 4
      %s255 = scalar_lea.vmem %s1, %s254
      %p256 = scmp.lt.s32.totalorder %s16, 1
      %s257 = scalar_select %p256, %s16, 1
      %s258 = scalar_lea.vmem %s2, %s257
      %p259 = scmp.lt.s32.totalorder %s16, 1
      %s260 = scalar_select %p259, %s16, 1
      %s261 = scalar_lea.vmem %s3, %s260
      %p262 = scmp.lt.s32.totalorder %s16, 1
      %s263 = scalar_select %p262, %s16, 1
      %s264 = smul.addr %s263, 8
      %s265 = smul.addr %s264, 8
      %s266 = scalar_lea.vmem %s4, %s265
      %p267 = scmp.lt.s32.totalorder %s16, 1
      %s268 = scalar_select %p267, %s16, 1
      %s269 = smul.addr %s268, 2
      %s270 = scalar_lea.vmem %s5, %s269
      %v272 = vld [vmem:[%s0] sm:$0xff]
      %v273 = vld [vmem:[%s0 + $0x8] sm:$0xff]
      %v274 = vld [vmem:[%s0 + $0x10] sm:$0xff]
      %v275 = vld [vmem:[%s0 + $0x18] sm:$0xff]
      %v276 = vld [vmem:[%s0 + $0x20] sm:$0xff]
      %v277 = vld [vmem:[%s0 + $0x28] sm:$0xff]
      %v278 = vld [vmem:[%s0 + $0x30] sm:$0xff]
      %v279 = vld [vmem:[%s0 + $0x38] sm:$0xff]
      %v280 = vld [vmem:[%s0 + $0x40] sm:$0xff]
      %v281 = vld [vmem:[%s0 + $0x48] sm:$0xff]
      %v282 = vld [vmem:[%s0 + $0x50] sm:$0xff]
      %v283 = vld [vmem:[%s0 + $0x58] sm:$0xff]
      %v284 = vld [vmem:[%s0 + $0x60] sm:$0xff]
      %v285 = vld [vmem:[%s0 + $0x68] sm:$0xff]
      %v286 = vld [vmem:[%s0 + $0x70] sm:$0xff]
      %v287 = vld [vmem:[%s0 + $0x78] sm:$0xff]
      %v288 = vld [vmem:[%s0 + $0x80] sm:$0xff]
      %v289 = vld [vmem:[%s0 + $0x88] sm:$0xff]
      %v290 = vld [vmem:[%s0 + $0x90] sm:$0xff]
      %v291 = vld [vmem:[%s0 + $0x98] sm:$0xff]
      %v292 = vld [vmem:[%s0 + $0xa0] sm:$0x3]
      %v293 = vld [vmem:[%s255] sm:$0xf]
      %v294 = vld [vmem:[%s255 + $0x4] sm:$0xf]
      %v295 = vld [vmem:[%s255 + $0x8] sm:$0xf]
      %v296 = vld [vmem:[%s255 + $0xc] sm:$0xf]
      %v297 = vld [vmem:[%s255 + $0x10] sm:$0xf]
      %v298 = vld [vmem:[%s255 + $0x14] sm:$0xf]
      %v299 = vld [vmem:[%s255 + $0x18] sm:$0xf]
      %v300 = vld [vmem:[%s255 + $0x1c] sm:$0xf]
      %v301 = vld [vmem:[%s255 + $0x20] sm:$0xf]
      %v302 = vld [vmem:[%s255 + $0x24] sm:$0xf]
      %v303 = vld [vmem:[%s255 + $0x28] sm:$0xf]
      %v304 = vld [vmem:[%s255 + $0x2c] sm:$0xf]
      %v305 = vld [vmem:[%s255 + $0x30] sm:$0xf]
      %v306 = vld [vmem:[%s255 + $0x34] sm:$0xf]
      %v307 = vld [vmem:[%s255 + $0x38] sm:$0xf]
      %v308 = vld [vmem:[%s255 + $0x3c] sm:$0xf]
      %v309 = vld [vmem:[%s255 + $0x40] sm:$0xf]
      %v310 = vld [vmem:[%s255 + $0x44] sm:$0xf]
      %v311 = vld [vmem:[%s255 + $0x48] sm:$0xf]
      %v312 = vld [vmem:[%s255 + $0x4c] sm:$0xf]
      %v313 = vld [vmem:[%s255 + $0x50] sm:$0xf]
      %v314 = vld [vmem:[%s255 + $0x54] sm:$0xf]
      %v315 = vld [vmem:[%s255 + $0x58] sm:$0xf]
      %v316 = vld [vmem:[%s255 + $0x5c] sm:$0xf]
      %v317 = vld [vmem:[%s255 + $0x60] sm:$0xf]
      %v318 = vld [vmem:[%s255 + $0x64] sm:$0xf]
      %v319 = vld [vmem:[%s255 + $0x68] sm:$0xf]
      %v320 = vld [vmem:[%s255 + $0x6c] sm:$0xf]
      %v321 = vld [vmem:[%s255 + $0x70] sm:$0xf]
      %v322 = vld [vmem:[%s255 + $0x74] sm:$0xf]
      %v323 = vld [vmem:[%s255 + $0x78] sm:$0xf]
      %v324 = vld [vmem:[%s255 + $0x7c] sm:$0xf]
      %v325 = vld [vmem:[%s255 + $0x80] sm:$0xf]
      %v326 = vld [vmem:[%s255 + $0x84] sm:$0xf]
      %v327 = vld [vmem:[%s255 + $0x88] sm:$0xf]
      %v328 = vld [vmem:[%s255 + $0x8c] sm:$0xf]
      %v329 = vld [vmem:[%s255 + $0x90] sm:$0xf]
      %v330 = vld [vmem:[%s255 + $0x94] sm:$0xf]
      %v331 = vld [vmem:[%s255 + $0x98] sm:$0xf]
      %v332 = vld [vmem:[%s255 + $0x9c] sm:$0xf]
      %v333 = vld [vmem:[%s255 + $0xa0] sm:$0xf]
      %v334 = vld [vmem:[%s255 + $0xa4] sm:$0xf]
      %v335 = vld [vmem:[%s255 + $0xa8] sm:$0xf]
      %v336 = vld [vmem:[%s255 + $0xac] sm:$0xf]
      %v337 = vld [vmem:[%s255 + $0xb0] sm:$0xf]
      %v338 = vld [vmem:[%s255 + $0xb4] sm:$0xf]
      %v339 = vld [vmem:[%s255 + $0xb8] sm:$0xf]
      %v340 = vld [vmem:[%s255 + $0xbc] sm:$0xf]
      %v341 = vld [vmem:[%s255 + $0xc0] sm:$0xf]
      %v342 = vld [vmem:[%s255 + $0xc4] sm:$0xf]
      %v343 = vld [vmem:[%s255 + $0xc8] sm:$0xf]
      %v344 = vld [vmem:[%s255 + $0xcc] sm:$0xf]
      %v345 = vld [vmem:[%s255 + $0xd0] sm:$0xf]
      %v346 = vld [vmem:[%s255 + $0xd4] sm:$0xf]
      %v347 = vld [vmem:[%s255 + $0xd8] sm:$0xf]
      %v348 = vld [vmem:[%s255 + $0xdc] sm:$0xf]
      %v349 = vld [vmem:[%s255 + $0xe0] sm:$0xf]
      %v350 = vld [vmem:[%s255 + $0xe4] sm:$0xf]
      %v351 = vld [vmem:[%s255 + $0xe8] sm:$0xf]
      %v352 = vld [vmem:[%s255 + $0xec] sm:$0xf]
      %v353 = vld [vmem:[%s255 + $0xf0] sm:$0xf]
      %v354 = vld [vmem:[%s255 + $0xf4] sm:$0xf]
      %v355 = vld [vmem:[%s255 + $0xf8] sm:$0xf]
      %v356 = vld [vmem:[%s255 + $0xfc] sm:$0xf]
      %v357 = vld [vmem:[%s255 + $0x100] sm:$0xf]
      %v358 = vld [vmem:[%s255 + $0x104] sm:$0xf]
      %v359 = vld [vmem:[%s255 + $0x108] sm:$0xf]
      %v360 = vld [vmem:[%s255 + $0x10c] sm:$0xf]
      %v361 = vld [vmem:[%s255 + $0x110] sm:$0xf]
      %v362 = vld [vmem:[%s255 + $0x114] sm:$0xf]
      %v363 = vld [vmem:[%s255 + $0x118] sm:$0xf]
      %v364 = vld [vmem:[%s255 + $0x11c] sm:$0xf]
      %v365 = vld [vmem:[%s255 + $0x120] sm:$0xf]
      %v366 = vld [vmem:[%s255 + $0x124] sm:$0xf]
      %v367 = vld [vmem:[%s255 + $0x128] sm:$0xf]
      %v368 = vld [vmem:[%s255 + $0x12c] sm:$0xf]
      %v369 = vld [vmem:[%s255 + $0x130] sm:$0xf]
      %v370 = vld [vmem:[%s255 + $0x134] sm:$0xf]
      %v371 = vld [vmem:[%s255 + $0x138] sm:$0xf]
      %v372 = vld [vmem:[%s255 + $0x13c] sm:$0xf]
      %v373 = vld [vmem:[%s255 + $0x140] sm:$0xf]
      %v374 = vld [vmem:[%s255 + $0x144] sm:$0xf]
      %v375 = vld [vmem:[%s255 + $0x148] sm:$0xf]
      %v376 = vld [vmem:[%s255 + $0x14c] sm:$0xf]
      %v377 = vld [vmem:[%s255 + $0x150] sm:$0xf]
      %v378 = vld [vmem:[%s255 + $0x154] sm:$0xf]
      %v379 = vld [vmem:[%s255 + $0x158] sm:$0xf]
      %v380 = vld [vmem:[%s255 + $0x15c] sm:$0xf]
      %v381 = vld [vmem:[%s255 + $0x160] sm:$0xf]
      %v382 = vld [vmem:[%s255 + $0x164] sm:$0xf]
      %v383 = vld [vmem:[%s255 + $0x168] sm:$0xf]
      %v384 = vld [vmem:[%s255 + $0x16c] sm:$0xf]
      %v385 = vld [vmem:[%s255 + $0x170] sm:$0xf]
      %v386 = vld [vmem:[%s255 + $0x174] sm:$0xf]
      %v387 = vld [vmem:[%s255 + $0x178] sm:$0xf]
      %v388 = vld [vmem:[%s255 + $0x17c] sm:$0xf]
      %v389 = vld [vmem:[%s255 + $0x180] sm:$0xf]
      %v390 = vld [vmem:[%s255 + $0x184] sm:$0xf]
      %v391 = vld [vmem:[%s255 + $0x188] sm:$0xf]
      %v392 = vld [vmem:[%s255 + $0x18c] sm:$0xf]
      %v393 = vld [vmem:[%s255 + $0x190] sm:$0xf]
      %v394 = vld [vmem:[%s255 + $0x194] sm:$0xf]
      %v395 = vld [vmem:[%s255 + $0x198] sm:$0xf]
      %v396 = vld [vmem:[%s255 + $0x19c] sm:$0xf]
      %v397 = vld [vmem:[%s255 + $0x1a0] sm:$0xf]
      %v398 = vld [vmem:[%s255 + $0x1a4] sm:$0xf]
      %v399 = vld [vmem:[%s255 + $0x1a8] sm:$0xf]
      %v400 = vld [vmem:[%s255 + $0x1ac] sm:$0xf]
      %v401 = vld [vmem:[%s255 + $0x1b0] sm:$0xf]
      %v402 = vld [vmem:[%s255 + $0x1b4] sm:$0xf]
      %v403 = vld [vmem:[%s255 + $0x1b8] sm:$0xf]
      %v404 = vld [vmem:[%s255 + $0x1bc] sm:$0xf]
      %v405 = vld [vmem:[%s255 + $0x1c0] sm:$0xf]
      %v406 = vld [vmem:[%s255 + $0x1c4] sm:$0xf]
      %v407 = vld [vmem:[%s255 + $0x1c8] sm:$0xf]
      %v408 = vld [vmem:[%s255 + $0x1cc] sm:$0xf]
      %v409 = vld [vmem:[%s255 + $0x1d0] sm:$0xf]
      %v410 = vld [vmem:[%s255 + $0x1d4] sm:$0xf]
      %v411 = vld [vmem:[%s255 + $0x1d8] sm:$0xf]
      %v412 = vld [vmem:[%s255 + $0x1dc] sm:$0xf]
      %v413 = vld [vmem:[%s255 + $0x1e0] sm:$0xf]
      %v414 = vld [vmem:[%s255 + $0x1e4] sm:$0xf]
      %v415 = vld [vmem:[%s255 + $0x1e8] sm:$0xf]
      %v416 = vld [vmem:[%s255 + $0x1ec] sm:$0xf]
      %v417 = vld [vmem:[%s255 + $0x1f0] sm:$0xf]
      %v418 = vld [vmem:[%s255 + $0x1f4] sm:$0xf]
      %v419 = vld [vmem:[%s255 + $0x1f8] sm:$0xf]
      %v420 = vld [vmem:[%s255 + $0x1fc] sm:$0xf]
      %v421 = vld [vmem:[%s255 + $0x200] sm:$0xf]
      %v422 = vld [vmem:[%s255 + $0x204] sm:$0xf]
      %v423 = vld [vmem:[%s255 + $0x208] sm:$0xf]
      %v424 = vld [vmem:[%s255 + $0x20c] sm:$0xf]
      %v425 = vld [vmem:[%s255 + $0x210] sm:$0xf]
      %v426 = vld [vmem:[%s255 + $0x214] sm:$0xf]
      %v427 = vld [vmem:[%s255 + $0x218] sm:$0xf]
      %v428 = vld [vmem:[%s255 + $0x21c] sm:$0xf]
      %v429 = vld [vmem:[%s255 + $0x220] sm:$0xf]
      %v430 = vld [vmem:[%s255 + $0x224] sm:$0xf]
      %v431 = vld [vmem:[%s255 + $0x228] sm:$0xf]
      %v432 = vld [vmem:[%s255 + $0x22c] sm:$0xf]
      %v433 = vld [vmem:[%s255 + $0x230] sm:$0xf]
      %v434 = vld [vmem:[%s255 + $0x234] sm:$0xf]
      %v435 = vld [vmem:[%s255 + $0x238] sm:$0xf]
      %v436 = vld [vmem:[%s255 + $0x23c] sm:$0xf]
      %v437 = vld [vmem:[%s255 + $0x240] sm:$0xf]
      %v438 = vld [vmem:[%s255 + $0x244] sm:$0xf]
      %v439 = vld [vmem:[%s255 + $0x248] sm:$0xf]
      %v440 = vld [vmem:[%s255 + $0x24c] sm:$0xf]
      %v441 = vld [vmem:[%s255 + $0x250] sm:$0xf]
      %v442 = vld [vmem:[%s255 + $0x254] sm:$0xf]
      %v443 = vld [vmem:[%s255 + $0x258] sm:$0xf]
      %v444 = vld [vmem:[%s255 + $0x25c] sm:$0xf]
      %v445 = vld [vmem:[%s255 + $0x260] sm:$0xf]
      %v446 = vld [vmem:[%s255 + $0x264] sm:$0xf]
      %v447 = vld [vmem:[%s255 + $0x268] sm:$0xf]
      %v448 = vld [vmem:[%s255 + $0x26c] sm:$0xf]
      %v449 = vld [vmem:[%s255 + $0x270] sm:$0xf]
      %v450 = vld [vmem:[%s255 + $0x274] sm:$0xf]
      %v451 = vld [vmem:[%s255 + $0x278] sm:$0xf]
      %v452 = vld [vmem:[%s255 + $0x27c] sm:$0xf]
      %v453 = vld [vmem:[%s255 + $0x280] sm:$0xf]
      %v454 = vld [vmem:[%s255 + $0x284] sm:$0xf]
      %v455 = vld [vmem:[%s255 + $0x288] sm:$0xf]
      %v456 = vld [vmem:[%s255 + $0x28c] sm:$0xf]
      %v457 = vld [vmem:[%s255 + $0x290] sm:$0xf]
      %v458 = vld [vmem:[%s255 + $0x294] sm:$0xf]
      %v459 = vld [vmem:[%s255 + $0x298] sm:$0xf]
      %v460 = vld [vmem:[%s255 + $0x29c] sm:$0xf]
      %v461 = vld [vmem:[%s255 + $0x2a0] sm:$0xf]
      %v462 = vld [vmem:[%s255 + $0x2a4] sm:$0xf]
      %v463 = vld [vmem:[%s255 + $0x2a8] sm:$0xf]
      %v464 = vld [vmem:[%s255 + $0x2ac] sm:$0xf]
      %v465 = vld [vmem:[%s255 + $0x2b0] sm:$0xf]
      %v466 = vld [vmem:[%s255 + $0x2b4] sm:$0xf]
      %v467 = vld [vmem:[%s255 + $0x2b8] sm:$0xf]
      %v468 = vld [vmem:[%s255 + $0x2bc] sm:$0xf]
      %v469 = vld [vmem:[%s255 + $0x2c0] sm:$0xf]
      %v470 = vld [vmem:[%s255 + $0x2c4] sm:$0xf]
      %v471 = vld [vmem:[%s255 + $0x2c8] sm:$0xf]
      %v472 = vld [vmem:[%s255 + $0x2cc] sm:$0xf]
      %v473 = vld [vmem:[%s255 + $0x2d0] sm:$0xf]
      %v474 = vld [vmem:[%s255 + $0x2d4] sm:$0xf]
      %v475 = vld [vmem:[%s255 + $0x2d8] sm:$0xf]
      %v476 = vld [vmem:[%s255 + $0x2dc] sm:$0xf]
      %v477 = vld [vmem:[%s255 + $0x2e0] sm:$0xf]
      %v478 = vld [vmem:[%s255 + $0x2e4] sm:$0xf]
      %v479 = vld [vmem:[%s255 + $0x2e8] sm:$0xf]
      %v480 = vld [vmem:[%s255 + $0x2ec] sm:$0xf]
      %v481 = vld [vmem:[%s255 + $0x2f0] sm:$0xf]
      %v482 = vld [vmem:[%s255 + $0x2f4] sm:$0xf]
      %v483 = vld [vmem:[%s255 + $0x2f8] sm:$0xf]
      %v484 = vld [vmem:[%s255 + $0x2fc] sm:$0xf]
      %v485 = vld [vmem:[%s255 + $0x300] sm:$0xf]
      %v486 = vld [vmem:[%s255 + $0x304] sm:$0xf]
      %v487 = vld [vmem:[%s255 + $0x308] sm:$0xf]
      %v488 = vld [vmem:[%s255 + $0x30c] sm:$0xf]
      %v489 = vld [vmem:[%s255 + $0x310] sm:$0xf]
      %v490 = vld [vmem:[%s255 + $0x314] sm:$0xf]
      %v491 = vld [vmem:[%s255 + $0x318] sm:$0xf]
      %v492 = vld [vmem:[%s255 + $0x31c] sm:$0xf]
      %v493 = vld [vmem:[%s255 + $0x320] sm:$0xf]
      %v494 = vld [vmem:[%s255 + $0x324] sm:$0xf]
      %v495 = vld [vmem:[%s255 + $0x328] sm:$0xf]
      %v496 = vld [vmem:[%s255 + $0x32c] sm:$0xf]
      %v497 = vld [vmem:[%s255 + $0x330] sm:$0xf]
      %v498 = vld [vmem:[%s255 + $0x334] sm:$0xf]
      %v499 = vld [vmem:[%s255 + $0x338] sm:$0xf]
      %v500 = vld [vmem:[%s255 + $0x33c] sm:$0xf]
      %v501 = vld [vmem:[%s255 + $0x340] sm:$0xf]
      %v502 = vld [vmem:[%s255 + $0x344] sm:$0xf]
      %v503 = vld [vmem:[%s255 + $0x348] sm:$0xf]
      %v504 = vld [vmem:[%s255 + $0x34c] sm:$0xf]
      %v505 = vld [vmem:[%s255 + $0x350] sm:$0xf]
      %v506 = vld [vmem:[%s255 + $0x354] sm:$0xf]
      %v507 = vld [vmem:[%s255 + $0x358] sm:$0xf]
      %v508 = vld [vmem:[%s255 + $0x35c] sm:$0xf]
      %v509 = vld [vmem:[%s255 + $0x360] sm:$0xf]
      %v510 = vld [vmem:[%s255 + $0x364] sm:$0xf]
      %v511 = vld [vmem:[%s255 + $0x368] sm:$0xf]
      %v512 = vld [vmem:[%s255 + $0x36c] sm:$0xf]
      %v513 = vld [vmem:[%s255 + $0x370] sm:$0xf]
      %v514 = vld [vmem:[%s255 + $0x374] sm:$0xf]
      %v515 = vld [vmem:[%s255 + $0x378] sm:$0xf]
      %v516 = vld [vmem:[%s255 + $0x37c] sm:$0xf]
      %v517 = vld [vmem:[%s255 + $0x380] sm:$0xf]
      %v518 = vld [vmem:[%s255 + $0x384] sm:$0xf]
      %v519 = vld [vmem:[%s255 + $0x388] sm:$0xf]
      %v520 = vld [vmem:[%s255 + $0x38c] sm:$0xf]
      %v521 = vld [vmem:[%s255 + $0x390] sm:$0xf]
      %v522 = vld [vmem:[%s255 + $0x394] sm:$0xf]
      %v523 = vld [vmem:[%s255 + $0x398] sm:$0xf]
      %v524 = vld [vmem:[%s255 + $0x39c] sm:$0xf]
      %v525 = vld [vmem:[%s255 + $0x3a0] sm:$0xf]
      %v526 = vld [vmem:[%s255 + $0x3a4] sm:$0xf]
      %v527 = vld [vmem:[%s255 + $0x3a8] sm:$0xf]
      %v528 = vld [vmem:[%s255 + $0x3ac] sm:$0xf]
      %v529 = vld [vmem:[%s255 + $0x3b0] sm:$0xf]
      %v530 = vld [vmem:[%s255 + $0x3b4] sm:$0xf]
      %v531 = vld [vmem:[%s255 + $0x3b8] sm:$0xf]
      %v532 = vld [vmem:[%s255 + $0x3bc] sm:$0xf]
      %v533 = vld [vmem:[%s255 + $0x3c0] sm:$0xf]
      %v534 = vld [vmem:[%s255 + $0x3c4] sm:$0xf]
      %v535 = vld [vmem:[%s255 + $0x3c8] sm:$0xf]
      %v536 = vld [vmem:[%s255 + $0x3cc] sm:$0xf]
      %v537 = vld [vmem:[%s255 + $0x3d0] sm:$0xf]
      %v538 = vld [vmem:[%s255 + $0x3d4] sm:$0xf]
      %v539 = vld [vmem:[%s255 + $0x3d8] sm:$0xf]
      %v540 = vld [vmem:[%s255 + $0x3dc] sm:$0xf]
      %v541 = vld [vmem:[%s255 + $0x3e0] sm:$0xf]
      %v542 = vld [vmem:[%s255 + $0x3e4] sm:$0xf]
      %v543 = vld [vmem:[%s255 + $0x3e8] sm:$0xf]
      %v544 = vld [vmem:[%s255 + $0x3ec] sm:$0xf]
      %v545 = vld [vmem:[%s255 + $0x3f0] sm:$0xf]
      %v546 = vld [vmem:[%s255 + $0x3f4] sm:$0xf]
      %v547 = vld [vmem:[%s255 + $0x3f8] sm:$0xf]
      %v548 = vld [vmem:[%s255 + $0x3fc] sm:$0xf]
      %v549 = vld [vmem:[%s255 + $0x400] sm:$0xf]
      %v550 = vld [vmem:[%s255 + $0x404] sm:$0xf]
      %v551 = vld [vmem:[%s255 + $0x408] sm:$0xf]
      %v552 = vld [vmem:[%s255 + $0x40c] sm:$0xf]
      %v553 = vld [vmem:[%s255 + $0x410] sm:$0xf]
      %v554 = vld [vmem:[%s255 + $0x414] sm:$0xf]
      %v555 = vld [vmem:[%s255 + $0x418] sm:$0xf]
      %v556 = vld [vmem:[%s255 + $0x41c] sm:$0xf]
      %v557 = vld [vmem:[%s255 + $0x420] sm:$0xf]
      %v558 = vld [vmem:[%s255 + $0x424] sm:$0xf]
      %v559 = vld [vmem:[%s255 + $0x428] sm:$0xf]
      %v560 = vld [vmem:[%s255 + $0x42c] sm:$0xf]
      %v561 = vld [vmem:[%s255 + $0x430] sm:$0xf]
      %v562 = vld [vmem:[%s255 + $0x434] sm:$0xf]
      %v563 = vld [vmem:[%s255 + $0x438] sm:$0xf]
      %v564 = vld [vmem:[%s255 + $0x43c] sm:$0xf]
      %v565 = vld [vmem:[%s255 + $0x440] sm:$0xf]
      %v566 = vld [vmem:[%s255 + $0x444] sm:$0xf]
      %v567 = vld [vmem:[%s255 + $0x448] sm:$0xf]
      %v568 = vld [vmem:[%s255 + $0x44c] sm:$0xf]
      %v569 = vld [vmem:[%s255 + $0x450] sm:$0xf]
      %v570 = vld [vmem:[%s255 + $0x454] sm:$0xf]
      %v571 = vld [vmem:[%s255 + $0x458] sm:$0xf]
      %v572 = vld [vmem:[%s255 + $0x45c] sm:$0xf]
      %v573 = vld [vmem:[%s255 + $0x460] sm:$0xf]
      %v574 = vld [vmem:[%s255 + $0x464] sm:$0xf]
      %v575 = vld [vmem:[%s255 + $0x468] sm:$0xf]
      %v576 = vld [vmem:[%s255 + $0x46c] sm:$0xf]
      %v577 = vld [vmem:[%s255 + $0x470] sm:$0xf]
      %v578 = vld [vmem:[%s255 + $0x474] sm:$0xf]
      %v579 = vld [vmem:[%s255 + $0x478] sm:$0xf]
      %v580 = vld [vmem:[%s255 + $0x47c] sm:$0xf]
      %v581 = vld [vmem:[%s255 + $0x480] sm:$0xf]
      %v582 = vld [vmem:[%s255 + $0x484] sm:$0xf]
      %v583 = vld [vmem:[%s255 + $0x488] sm:$0xf]
      %v584 = vld [vmem:[%s255 + $0x48c] sm:$0xf]
      %v585 = vld [vmem:[%s255 + $0x490] sm:$0xf]
      %v586 = vld [vmem:[%s255 + $0x494] sm:$0xf]
      %v587 = vld [vmem:[%s255 + $0x498] sm:$0xf]
      %v588 = vld [vmem:[%s255 + $0x49c] sm:$0xf]
      %v589 = vld [vmem:[%s255 + $0x4a0] sm:$0xf]
      %v590 = vld [vmem:[%s255 + $0x4a4] sm:$0xf]
      %v591 = vld [vmem:[%s255 + $0x4a8] sm:$0xf]
      %v592 = vld [vmem:[%s255 + $0x4ac] sm:$0xf]
      %v593 = vld [vmem:[%s255 + $0x4b0] sm:$0xf]
      %v594 = vld [vmem:[%s255 + $0x4b4] sm:$0xf]
      %v595 = vld [vmem:[%s255 + $0x4b8] sm:$0xf]
      %v596 = vld [vmem:[%s255 + $0x4bc] sm:$0xf]
      %v597 = vld [vmem:[%s255 + $0x4c0] sm:$0xf]
      %v598 = vld [vmem:[%s255 + $0x4c4] sm:$0xf]
      %v599 = vld [vmem:[%s255 + $0x4c8] sm:$0xf]
      %v600 = vld [vmem:[%s255 + $0x4cc] sm:$0xf]
      %v601 = vld [vmem:[%s255 + $0x4d0] sm:$0xf]
      %v602 = vld [vmem:[%s255 + $0x4d4] sm:$0xf]
      %v603 = vld [vmem:[%s255 + $0x4d8] sm:$0xf]
      %v604 = vld [vmem:[%s255 + $0x4dc] sm:$0xf]
      %v605 = vld [vmem:[%s255 + $0x4e0] sm:$0xf]
      %v606 = vld [vmem:[%s255 + $0x4e4] sm:$0xf]
      %v607 = vld [vmem:[%s255 + $0x4e8] sm:$0xf]
      %v608 = vld [vmem:[%s255 + $0x4ec] sm:$0xf]
      %v609 = vld [vmem:[%s255 + $0x4f0] sm:$0xf]
      %v610 = vld [vmem:[%s255 + $0x4f4] sm:$0xf]
      %v611 = vld [vmem:[%s255 + $0x4f8] sm:$0xf]
      %v612 = vld [vmem:[%s255 + $0x4fc] sm:$0xf]
      %v613 = vld [vmem:[%s255 + $0x500] sm:$0xf]
      %v614 = vld [vmem:[%s255 + $0x504] sm:$0xf]
      %v615 = vld [vmem:[%s255 + $0x508] sm:$0xf]
      %v616 = vld [vmem:[%s255 + $0x50c] sm:$0xf]
      %v617 = vld [vmem:[%s255 + $0x510] sm:$0xf]
      %v618 = vld [vmem:[%s255 + $0x514] sm:$0xf]
      %v619 = vld [vmem:[%s255 + $0x518] sm:$0xf]
      %v620 = vld [vmem:[%s255 + $0x51c] sm:$0xf]
      %v621 = vld [vmem:[%s255 + $0x520] sm:$0xf]
      %v622 = vld [vmem:[%s255 + $0x524] sm:$0xf]
      %v623 = vld [vmem:[%s255 + $0x528] sm:$0xf]
      %v624 = vld [vmem:[%s255 + $0x52c] sm:$0xf]
      %v625 = vld [vmem:[%s255 + $0x530] sm:$0xf]
      %v626 = vld [vmem:[%s255 + $0x534] sm:$0xf]
      %v627 = vld [vmem:[%s255 + $0x538] sm:$0xf]
      %v628 = vld [vmem:[%s255 + $0x53c] sm:$0xf]
      %v629 = vld [vmem:[%s255 + $0x540] sm:$0xf]
      %v630 = vld [vmem:[%s255 + $0x544] sm:$0xf]
      %v631 = vld [vmem:[%s255 + $0x548] sm:$0xf]
      %v632 = vld [vmem:[%s255 + $0x54c] sm:$0xf]
      %v633 = vld [vmem:[%s255 + $0x550] sm:$0xf]
      %v634 = vld [vmem:[%s255 + $0x554] sm:$0xf]
      %v635 = vld [vmem:[%s255 + $0x558] sm:$0xf]
      %v636 = vld [vmem:[%s255 + $0x55c] sm:$0xf]
      %v637 = vld [vmem:[%s255 + $0x560] sm:$0xf]
      %v638 = vld [vmem:[%s255 + $0x564] sm:$0xf]
      %v639 = vld [vmem:[%s255 + $0x568] sm:$0xf]
      %v640 = vld [vmem:[%s255 + $0x56c] sm:$0xf]
      %v641 = vld [vmem:[%s255 + $0x570] sm:$0xf]
      %v642 = vld [vmem:[%s255 + $0x574] sm:$0xf]
      %v643 = vld [vmem:[%s255 + $0x578] sm:$0xf]
      %v644 = vld [vmem:[%s255 + $0x57c] sm:$0xf]
      %v645 = vld [vmem:[%s255 + $0x580] sm:$0xf]
      %v646 = vld [vmem:[%s255 + $0x584] sm:$0xf]
      %v647 = vld [vmem:[%s255 + $0x588] sm:$0xf]
      %v648 = vld [vmem:[%s255 + $0x58c] sm:$0xf]
      %v649 = vld [vmem:[%s255 + $0x590] sm:$0xf]
      %v650 = vld [vmem:[%s255 + $0x594] sm:$0xf]
      %v651 = vld [vmem:[%s255 + $0x598] sm:$0xf]
      %v652 = vld [vmem:[%s255 + $0x59c] sm:$0xf]
      %v653 = vld [vmem:[%s255 + $0x5a0] sm:$0xf]
      %v654 = vld [vmem:[%s255 + $0x5a4] sm:$0xf]
      %v655 = vld [vmem:[%s255 + $0x5a8] sm:$0xf]
      %v656 = vld [vmem:[%s255 + $0x5ac] sm:$0xf]
      %v657 = vld [vmem:[%s255 + $0x5b0] sm:$0xf]
      %v658 = vld [vmem:[%s255 + $0x5b4] sm:$0xf]
      %v659 = vld [vmem:[%s255 + $0x5b8] sm:$0xf]
      %v660 = vld [vmem:[%s255 + $0x5bc] sm:$0xf]
      %v661 = vld [vmem:[%s255 + $0x5c0] sm:$0xf]
      %v662 = vld [vmem:[%s255 + $0x5c4] sm:$0xf]
      %v663 = vld [vmem:[%s255 + $0x5c8] sm:$0xf]
      %v664 = vld [vmem:[%s255 + $0x5cc] sm:$0xf]
      %v665 = vld [vmem:[%s255 + $0x5d0] sm:$0xf]
      %v666 = vld [vmem:[%s255 + $0x5d4] sm:$0xf]
      %v667 = vld [vmem:[%s255 + $0x5d8] sm:$0xf]
      %v668 = vld [vmem:[%s255 + $0x5dc] sm:$0xf]
      %v669 = vld [vmem:[%s255 + $0x5e0] sm:$0xf]
      %v670 = vld [vmem:[%s255 + $0x5e4] sm:$0xf]
      %v671 = vld [vmem:[%s255 + $0x5e8] sm:$0xf]
      %v672 = vld [vmem:[%s255 + $0x5ec] sm:$0xf]
      %v673 = vld [vmem:[%s255 + $0x5f0] sm:$0xf]
      %v674 = vld [vmem:[%s255 + $0x5f4] sm:$0xf]
      %v675 = vld [vmem:[%s255 + $0x5f8] sm:$0xf]
      %v676 = vld [vmem:[%s255 + $0x5fc] sm:$0xf]
      %v677 = vld [vmem:[%s255 + $0x600] sm:$0xf]
      %v678 = vld [vmem:[%s255 + $0x604] sm:$0xf]
      %v679 = vld [vmem:[%s255 + $0x608] sm:$0xf]
      %v680 = vld [vmem:[%s255 + $0x60c] sm:$0xf]
      %v681 = vld [vmem:[%s255 + $0x610] sm:$0xf]
      %v682 = vld [vmem:[%s255 + $0x614] sm:$0xf]
      %v683 = vld [vmem:[%s255 + $0x618] sm:$0xf]
      %v684 = vld [vmem:[%s255 + $0x61c] sm:$0xf]
      %v685 = vld [vmem:[%s255 + $0x620] sm:$0xf]
      %v686 = vld [vmem:[%s255 + $0x624] sm:$0xf]
      %v687 = vld [vmem:[%s255 + $0x628] sm:$0xf]
      %v688 = vld [vmem:[%s255 + $0x62c] sm:$0xf]
      %v689 = vld [vmem:[%s255 + $0x630] sm:$0xf]
      %v690 = vld [vmem:[%s255 + $0x634] sm:$0xf]
      %v691 = vld [vmem:[%s255 + $0x638] sm:$0xf]
      %v692 = vld [vmem:[%s255 + $0x63c] sm:$0xf]
      %v693 = vld [vmem:[%s255 + $0x640] sm:$0xf]
      %v694 = vld [vmem:[%s255 + $0x644] sm:$0xf]
      %v695 = vld [vmem:[%s255 + $0x648] sm:$0xf]
      %v696 = vld [vmem:[%s255 + $0x64c] sm:$0xf]
      %v697 = vld [vmem:[%s255 + $0x650] sm:$0xf]
      %v698 = vld [vmem:[%s255 + $0x654] sm:$0xf]
      %v699 = vld [vmem:[%s255 + $0x658] sm:$0xf]
      %v700 = vld [vmem:[%s255 + $0x65c] sm:$0xf]
      %v701 = vld [vmem:[%s255 + $0x660] sm:$0xf]
      %v702 = vld [vmem:[%s255 + $0x664] sm:$0xf]
      %v703 = vld [vmem:[%s255 + $0x668] sm:$0xf]
      %v704 = vld [vmem:[%s255 + $0x66c] sm:$0xf]
      %v705 = vld [vmem:[%s255 + $0x670] sm:$0xf]
      %v706 = vld [vmem:[%s255 + $0x674] sm:$0xf]
      %v707 = vld [vmem:[%s255 + $0x678] sm:$0xf]
      %v708 = vld [vmem:[%s255 + $0x67c] sm:$0xf]
      %v709 = vld [vmem:[%s255 + $0x680] sm:$0xf]
      %v710 = vld [vmem:[%s255 + $0x684] sm:$0xf]
      %v711 = vld [vmem:[%s255 + $0x688] sm:$0xf]
      %v712 = vld [vmem:[%s255 + $0x68c] sm:$0xf]
      %v713 = vld [vmem:[%s255 + $0x690] sm:$0xf]
      %v714 = vld [vmem:[%s255 + $0x694] sm:$0xf]
      %v715 = vld [vmem:[%s255 + $0x698] sm:$0xf]
      %v716 = vld [vmem:[%s255 + $0x69c] sm:$0xf]
      %v717 = vld [vmem:[%s255 + $0x6a0] sm:$0xf]
      %v718 = vld [vmem:[%s255 + $0x6a4] sm:$0xf]
      %v719 = vld [vmem:[%s255 + $0x6a8] sm:$0xf]
      %v720 = vld [vmem:[%s255 + $0x6ac] sm:$0xf]
      %v721 = vld [vmem:[%s255 + $0x6b0] sm:$0xf]
      %v722 = vld [vmem:[%s255 + $0x6b4] sm:$0xf]
      %v723 = vld [vmem:[%s255 + $0x6b8] sm:$0xf]
      %v724 = vld [vmem:[%s255 + $0x6bc] sm:$0xf]
      %v725 = vld [vmem:[%s255 + $0x6c0] sm:$0xf]
      %v726 = vld [vmem:[%s255 + $0x6c4] sm:$0xf]
      %v727 = vld [vmem:[%s255 + $0x6c8] sm:$0xf]
      %v728 = vld [vmem:[%s255 + $0x6cc] sm:$0xf]
      %v729 = vld [vmem:[%s255 + $0x6d0] sm:$0xf]
      %v730 = vld [vmem:[%s255 + $0x6d4] sm:$0xf]
      %v731 = vld [vmem:[%s255 + $0x6d8] sm:$0xf]
      %v732 = vld [vmem:[%s255 + $0x6dc] sm:$0xf]
      %v733 = vld [vmem:[%s255 + $0x6e0] sm:$0xf]
      %v734 = vld [vmem:[%s255 + $0x6e4] sm:$0xf]
      %v735 = vld [vmem:[%s255 + $0x6e8] sm:$0xf]
      %v736 = vld [vmem:[%s255 + $0x6ec] sm:$0xf]
      %v737 = vld [vmem:[%s255 + $0x6f0] sm:$0xf]
      %v738 = vld [vmem:[%s255 + $0x6f4] sm:$0xf]
      %v739 = vld [vmem:[%s255 + $0x6f8] sm:$0xf]
      %v740 = vld [vmem:[%s255 + $0x6fc] sm:$0xf]
      %v741 = vld [vmem:[%s255 + $0x700] sm:$0xf]
      %v742 = vld [vmem:[%s255 + $0x704] sm:$0xf]
      %v743 = vld [vmem:[%s255 + $0x708] sm:$0xf]
      %v744 = vld [vmem:[%s255 + $0x70c] sm:$0xf]
      %v745 = vld [vmem:[%s255 + $0x710] sm:$0xf]
      %v746 = vld [vmem:[%s255 + $0x714] sm:$0xf]
      %v747 = vld [vmem:[%s255 + $0x718] sm:$0xf]
      %v748 = vld [vmem:[%s255 + $0x71c] sm:$0xf]
      %v749 = vld [vmem:[%s255 + $0x720] sm:$0xf]
      %v750 = vld [vmem:[%s255 + $0x724] sm:$0xf]
      %v751 = vld [vmem:[%s255 + $0x728] sm:$0xf]
      %v752 = vld [vmem:[%s255 + $0x72c] sm:$0xf]
      %v753 = vld [vmem:[%s255 + $0x730] sm:$0xf]
      %v754 = vld [vmem:[%s255 + $0x734] sm:$0xf]
      %v755 = vld [vmem:[%s255 + $0x738] sm:$0xf]
      %v756 = vld [vmem:[%s255 + $0x73c] sm:$0xf]
      %v757 = vld [vmem:[%s255 + $0x740] sm:$0xf]
      %v758 = vld [vmem:[%s255 + $0x744] sm:$0xf]
      %v759 = vld [vmem:[%s255 + $0x748] sm:$0xf]
      %v760 = vld [vmem:[%s255 + $0x74c] sm:$0xf]
      %v761 = vld [vmem:[%s255 + $0x750] sm:$0xf]
      %v762 = vld [vmem:[%s255 + $0x754] sm:$0xf]
      %v763 = vld [vmem:[%s255 + $0x758] sm:$0xf]
      %v764 = vld [vmem:[%s255 + $0x75c] sm:$0xf]
      %v765 = vld [vmem:[%s255 + $0x760] sm:$0xf]
      %v766 = vld [vmem:[%s255 + $0x764] sm:$0xf]
      %v767 = vld [vmem:[%s255 + $0x768] sm:$0xf]
      %v768 = vld [vmem:[%s255 + $0x76c] sm:$0xf]
      %v769 = vld [vmem:[%s255 + $0x770] sm:$0xf]
      %v770 = vld [vmem:[%s255 + $0x774] sm:$0xf]
      %v771 = vld [vmem:[%s255 + $0x778] sm:$0xf]
      %v772 = vld [vmem:[%s255 + $0x77c] sm:$0xf]
      %v773 = vld [vmem:[%s255 + $0x780] sm:$0xf]
      %v774 = vld [vmem:[%s255 + $0x784] sm:$0xf]
      %v775 = vld [vmem:[%s255 + $0x788] sm:$0xf]
      %v776 = vld [vmem:[%s255 + $0x78c] sm:$0xf]
      %v777 = vld [vmem:[%s255 + $0x790] sm:$0xf]
      %v778 = vld [vmem:[%s255 + $0x794] sm:$0xf]
      %v779 = vld [vmem:[%s255 + $0x798] sm:$0xf]
      %v780 = vld [vmem:[%s255 + $0x79c] sm:$0xf]
      %v781 = vld [vmem:[%s255 + $0x7a0] sm:$0xf]
      %v782 = vld [vmem:[%s255 + $0x7a4] sm:$0xf]
      %v783 = vld [vmem:[%s255 + $0x7a8] sm:$0xf]
      %v784 = vld [vmem:[%s255 + $0x7ac] sm:$0xf]
      %v785 = vld [vmem:[%s255 + $0x7b0] sm:$0xf]
      %v786 = vld [vmem:[%s255 + $0x7b4] sm:$0xf]
      %v787 = vld [vmem:[%s255 + $0x7b8] sm:$0xf]
      %v788 = vld [vmem:[%s255 + $0x7bc] sm:$0xf]
      %v789 = vld [vmem:[%s255 + $0x7c0] sm:$0xf]
      %v790 = vld [vmem:[%s255 + $0x7c4] sm:$0xf]
      %v791 = vld [vmem:[%s255 + $0x7c8] sm:$0xf]
      %v792 = vld [vmem:[%s255 + $0x7cc] sm:$0xf]
      %v793 = vld [vmem:[%s255 + $0x7d0] sm:$0xf]
      %v794 = vld [vmem:[%s255 + $0x7d4] sm:$0xf]
      %v795 = vld [vmem:[%s255 + $0x7d8] sm:$0xf]
      %v796 = vld [vmem:[%s255 + $0x7dc] sm:$0xf]
      %v797 = vld [vmem:[%s255 + $0x7e0] sm:$0xf]
      %v798 = vld [vmem:[%s255 + $0x7e4] sm:$0xf]
      %v799 = vld [vmem:[%s255 + $0x7e8] sm:$0xf]
      %v800 = vld [vmem:[%s255 + $0x7ec] sm:$0xf]
      %v801 = vld [vmem:[%s255 + $0x7f0] sm:$0xf]
      %v802 = vld [vmem:[%s255 + $0x7f4] sm:$0xf]
      %v803 = vld [vmem:[%s255 + $0x7f8] sm:$0xf]
      %v804 = vld [vmem:[%s255 + $0x7fc] sm:$0xf]
      %v805 = vld [vmem:[%s255 + $0x800] sm:$0xf]
      %v806 = vld [vmem:[%s255 + $0x804] sm:$0xf]
      %v807 = vld [vmem:[%s255 + $0x808] sm:$0xf]
      %v808 = vld [vmem:[%s255 + $0x80c] sm:$0xf]
      %v809 = vld [vmem:[%s255 + $0x810] sm:$0xf]
      %v810 = vld [vmem:[%s255 + $0x814] sm:$0xf]
      %v811 = vld [vmem:[%s255 + $0x818] sm:$0xf]
      %v812 = vld [vmem:[%s255 + $0x81c] sm:$0xf]
      %v813 = vld [vmem:[%s255 + $0x820] sm:$0xf]
      %v814 = vld [vmem:[%s255 + $0x824] sm:$0xf]
      %v815 = vld [vmem:[%s255 + $0x828] sm:$0xf]
      %v816 = vld [vmem:[%s255 + $0x82c] sm:$0xf]
      %v817 = vld [vmem:[%s255 + $0x830] sm:$0xf]
      %v818 = vld [vmem:[%s255 + $0x834] sm:$0xf]
      %v819 = vld [vmem:[%s255 + $0x838] sm:$0xf]
      %v820 = vld [vmem:[%s255 + $0x83c] sm:$0xf]
      %v821 = vld [vmem:[%s255 + $0x840] sm:$0xf]
      %v822 = vld [vmem:[%s255 + $0x844] sm:$0xf]
      %v823 = vld [vmem:[%s255 + $0x848] sm:$0xf]
      %v824 = vld [vmem:[%s255 + $0x84c] sm:$0xf]
      %v825 = vld [vmem:[%s255 + $0x850] sm:$0xf]
      %v826 = vld [vmem:[%s255 + $0x854] sm:$0xf]
      %v827 = vld [vmem:[%s255 + $0x858] sm:$0xf]
      %v828 = vld [vmem:[%s255 + $0x85c] sm:$0xf]
      %v829 = vld [vmem:[%s255 + $0x860] sm:$0xf]
      %v830 = vld [vmem:[%s255 + $0x864] sm:$0xf]
      %v831 = vld [vmem:[%s255 + $0x868] sm:$0xf]
      %v832 = vld [vmem:[%s255 + $0x86c] sm:$0xf]
      %v833 = vld [vmem:[%s255 + $0x870] sm:$0xf]
      %v834 = vld [vmem:[%s255 + $0x874] sm:$0xf]
      %v835 = vld [vmem:[%s255 + $0x878] sm:$0xf]
      %v836 = vld [vmem:[%s255 + $0x87c] sm:$0xf]
      %v837 = vld [vmem:[%s255 + $0x880] sm:$0xf]
      %v838 = vld [vmem:[%s255 + $0x884] sm:$0xf]
      %v839 = vld [vmem:[%s255 + $0x888] sm:$0xf]
      %v840 = vld [vmem:[%s255 + $0x88c] sm:$0xf]
      %v841 = vld [vmem:[%s255 + $0x890] sm:$0xf]
      %v842 = vld [vmem:[%s255 + $0x894] sm:$0xf]
      %v843 = vld [vmem:[%s255 + $0x898] sm:$0xf]
      %v844 = vld [vmem:[%s255 + $0x89c] sm:$0xf]
      %v845 = vld [vmem:[%s255 + $0x8a0] sm:$0xf]
      %v846 = vld [vmem:[%s255 + $0x8a4] sm:$0xf]
      %v847 = vld [vmem:[%s255 + $0x8a8] sm:$0xf]
      %v848 = vld [vmem:[%s255 + $0x8ac] sm:$0xf]
      %v849 = vld [vmem:[%s255 + $0x8b0] sm:$0xf]
      %v850 = vld [vmem:[%s255 + $0x8b4] sm:$0xf]
      %v851 = vld [vmem:[%s255 + $0x8b8] sm:$0xf]
      %v852 = vld [vmem:[%s255 + $0x8bc] sm:$0xf]
      %v853 = vld [vmem:[%s255 + $0x8c0] sm:$0xf]
      %v854 = vld [vmem:[%s255 + $0x8c4] sm:$0xf]
      %v855 = vld [vmem:[%s255 + $0x8c8] sm:$0xf]
      %v856 = vld [vmem:[%s255 + $0x8cc] sm:$0xf]
      %v857 = vld [vmem:[%s255 + $0x8d0] sm:$0xf]
      %v858 = vld [vmem:[%s255 + $0x8d4] sm:$0xf]
      %v859 = vld [vmem:[%s255 + $0x8d8] sm:$0xf]
      %v860 = vld [vmem:[%s255 + $0x8dc] sm:$0xf]
      %v861 = vld [vmem:[%s255 + $0x8e0] sm:$0xf]
      %v862 = vld [vmem:[%s255 + $0x8e4] sm:$0xf]
      %v863 = vld [vmem:[%s255 + $0x8e8] sm:$0xf]
      %v864 = vld [vmem:[%s255 + $0x8ec] sm:$0xf]
      %v865 = vld [vmem:[%s255 + $0x8f0] sm:$0xf]
      %v866 = vld [vmem:[%s255 + $0x8f4] sm:$0xf]
      %v867 = vld [vmem:[%s255 + $0x8f8] sm:$0xf]
      %v868 = vld [vmem:[%s255 + $0x8fc] sm:$0xf]
      %v869 = vld [vmem:[%s255 + $0x900] sm:$0xf]
      %v870 = vld [vmem:[%s255 + $0x904] sm:$0xf]
      %v871 = vld [vmem:[%s255 + $0x908] sm:$0xf]
      %v872 = vld [vmem:[%s255 + $0x90c] sm:$0xf]
      %v873 = vld [vmem:[%s255 + $0x910] sm:$0xf]
      %v874 = vld [vmem:[%s255 + $0x914] sm:$0xf]
      %v875 = vld [vmem:[%s255 + $0x918] sm:$0xf]
      %v876 = vld [vmem:[%s255 + $0x91c] sm:$0xf]
      %v877 = vld [vmem:[%s255 + $0x920] sm:$0xf]
      %v878 = vld [vmem:[%s255 + $0x924] sm:$0xf]
      %v879 = vld [vmem:[%s255 + $0x928] sm:$0xf]
      %v880 = vld [vmem:[%s255 + $0x92c] sm:$0xf]
      %v881 = vld [vmem:[%s255 + $0x930] sm:$0xf]
      %v882 = vld [vmem:[%s255 + $0x934] sm:$0xf]
      %v883 = vld [vmem:[%s255 + $0x938] sm:$0xf]
      %v884 = vld [vmem:[%s255 + $0x93c] sm:$0xf]
      %v885 = vld [vmem:[%s255 + $0x940] sm:$0xf]
      %v886 = vld [vmem:[%s255 + $0x944] sm:$0xf]
      %v887 = vld [vmem:[%s255 + $0x948] sm:$0xf]
      %v888 = vld [vmem:[%s255 + $0x94c] sm:$0xf]
      %v889 = vld [vmem:[%s255 + $0x950] sm:$0xf]
      %v890 = vld [vmem:[%s255 + $0x954] sm:$0xf]
      %v891 = vld [vmem:[%s255 + $0x958] sm:$0xf]
      %v892 = vld [vmem:[%s255 + $0x95c] sm:$0xf]
      %v893 = vld [vmem:[%s255 + $0x960] sm:$0xf]
      %v894 = vld [vmem:[%s255 + $0x964] sm:$0xf]
      %v895 = vld [vmem:[%s255 + $0x968] sm:$0xf]
      %v896 = vld [vmem:[%s255 + $0x96c] sm:$0xf]
      %v897 = vld [vmem:[%s255 + $0x970] sm:$0xf]
      %v898 = vld [vmem:[%s255 + $0x974] sm:$0xf]
      %v899 = vld [vmem:[%s255 + $0x978] sm:$0xf]
      %v900 = vld [vmem:[%s255 + $0x97c] sm:$0xf]
      %v901 = vld [vmem:[%s255 + $0x980] sm:$0xf]
      %v902 = vld [vmem:[%s255 + $0x984] sm:$0xf]
      %v903 = vld [vmem:[%s255 + $0x988] sm:$0xf]
      %v904 = vld [vmem:[%s255 + $0x98c] sm:$0xf]
      %v905 = vld [vmem:[%s255 + $0x990] sm:$0xf]
      %v906 = vld [vmem:[%s255 + $0x994] sm:$0xf]
      %v907 = vld [vmem:[%s255 + $0x998] sm:$0xf]
      %v908 = vld [vmem:[%s255 + $0x99c] sm:$0xf]
      %v909 = vld [vmem:[%s255 + $0x9a0] sm:$0xf]
      %v910 = vld [vmem:[%s255 + $0x9a4] sm:$0xf]
      %v911 = vld [vmem:[%s255 + $0x9a8] sm:$0xf]
      %v912 = vld [vmem:[%s255 + $0x9ac] sm:$0xf]
      %v913 = vld [vmem:[%s255 + $0x9b0] sm:$0xf]
      %v914 = vld [vmem:[%s255 + $0x9b4] sm:$0xf]
      %v915 = vld [vmem:[%s255 + $0x9b8] sm:$0xf]
      %v916 = vld [vmem:[%s255 + $0x9bc] sm:$0xf]
      %v917 = vld [vmem:[%s255 + $0x9c0] sm:$0xf]
      %v918 = vld [vmem:[%s255 + $0x9c4] sm:$0xf]
      %v919 = vld [vmem:[%s255 + $0x9c8] sm:$0xf]
      %v920 = vld [vmem:[%s255 + $0x9cc] sm:$0xf]
      %v921 = vld [vmem:[%s255 + $0x9d0] sm:$0xf]
      %v922 = vld [vmem:[%s255 + $0x9d4] sm:$0xf]
      %v923 = vld [vmem:[%s255 + $0x9d8] sm:$0xf]
      %v924 = vld [vmem:[%s255 + $0x9dc] sm:$0xf]
      %v925 = vld [vmem:[%s255 + $0x9e0] sm:$0xf]
      %v926 = vld [vmem:[%s255 + $0x9e4] sm:$0xf]
      %v927 = vld [vmem:[%s255 + $0x9e8] sm:$0xf]
      %v928 = vld [vmem:[%s255 + $0x9ec] sm:$0xf]
      %v929 = vld [vmem:[%s255 + $0x9f0] sm:$0xf]
      %v930 = vld [vmem:[%s255 + $0x9f4] sm:$0xf]
      %v931 = vld [vmem:[%s255 + $0x9f8] sm:$0xf]
      %v932 = vld [vmem:[%s255 + $0x9fc] sm:$0xf]
      %v933 = vld [vmem:[%s255 + $0xa00] sm:$0xf]
      %v934 = vld [vmem:[%s255 + $0xa04] sm:$0xf]
      %v935 = vld [vmem:[%s255 + $0xa08] sm:$0xf]
      %v936 = vld [vmem:[%s255 + $0xa0c] sm:$0xf]
      %v937 = vld [vmem:[%s255 + $0xa10] sm:$0xf]
      %v938 = vld [vmem:[%s255 + $0xa14] sm:$0xf]
      %v939 = vld [vmem:[%s255 + $0xa18] sm:$0xf]
      %v940 = vld [vmem:[%s255 + $0xa1c] sm:$0xf]
      %v941 = vld [vmem:[%s255 + $0xa20] sm:$0xf]
      %v942 = vld [vmem:[%s255 + $0xa24] sm:$0xf]
      %v943 = vld [vmem:[%s255 + $0xa28] sm:$0xf]
      %v944 = vld [vmem:[%s255 + $0xa2c] sm:$0xf]
      %v945 = vld [vmem:[%s255 + $0xa30] sm:$0xf]
      %v946 = vld [vmem:[%s255 + $0xa34] sm:$0xf]
      %v947 = vld [vmem:[%s255 + $0xa38] sm:$0xf]
      %v948 = vld [vmem:[%s255 + $0xa3c] sm:$0xf]
      %v949 = vld [vmem:[%s255 + $0xa40] sm:$0xf]
      %v950 = vld [vmem:[%s255 + $0xa44] sm:$0xf]
      %v951 = vld [vmem:[%s255 + $0xa48] sm:$0xf]
      %v952 = vld [vmem:[%s255 + $0xa4c] sm:$0xf]
      %v953 = vld [vmem:[%s255 + $0xa50] sm:$0xf]
      %v954 = vld [vmem:[%s255 + $0xa54] sm:$0xf]
      %v955 = vld [vmem:[%s255 + $0xa58] sm:$0xf]
      %v956 = vld [vmem:[%s255 + $0xa5c] sm:$0xf]
      %v957 = vld [vmem:[%s255 + $0xa60] sm:$0xf]
      %v958 = vld [vmem:[%s255 + $0xa64] sm:$0xf]
      %v959 = vld [vmem:[%s255 + $0xa68] sm:$0xf]
      %v960 = vld [vmem:[%s255 + $0xa6c] sm:$0xf]
      %v961 = vld [vmem:[%s255 + $0xa70] sm:$0xf]
      %v962 = vld [vmem:[%s255 + $0xa74] sm:$0xf]
      %v963 = vld [vmem:[%s255 + $0xa78] sm:$0xf]
      %v964 = vld [vmem:[%s255 + $0xa7c] sm:$0xf]
      %v965 = vld [vmem:[%s255 + $0xa80] sm:$0xf]
      %v966 = vld [vmem:[%s255 + $0xa84] sm:$0xf]
      %v967 = vld [vmem:[%s255 + $0xa88] sm:$0xf]
      %v968 = vld [vmem:[%s255 + $0xa8c] sm:$0xf]
      %v969 = vld [vmem:[%s255 + $0xa90] sm:$0xf]
      %v970 = vld [vmem:[%s255 + $0xa94] sm:$0xf]
      %v971 = vld [vmem:[%s255 + $0xa98] sm:$0xf]
      %v972 = vld [vmem:[%s255 + $0xa9c] sm:$0xf]
      %v973 = vld [vmem:[%s255 + $0xaa0] sm:$0xf]
      %v974 = vld [vmem:[%s255 + $0xaa4] sm:$0xf]
      %v975 = vld [vmem:[%s255 + $0xaa8] sm:$0xf]
      %v976 = vld [vmem:[%s255 + $0xaac] sm:$0xf]
      %v977 = vld [vmem:[%s255 + $0xab0] sm:$0xf]
      %v978 = vld [vmem:[%s255 + $0xab4] sm:$0xf]
      %v979 = vld [vmem:[%s255 + $0xab8] sm:$0xf]
      %v980 = vld [vmem:[%s255 + $0xabc] sm:$0xf]
      %v981 = vld [vmem:[%s255 + $0xac0] sm:$0xf]
      %v982 = vld [vmem:[%s255 + $0xac4] sm:$0xf]
      %v983 = vld [vmem:[%s255 + $0xac8] sm:$0xf]
      %v984 = vld [vmem:[%s255 + $0xacc] sm:$0xf]
      %v985 = vld [vmem:[%s255 + $0xad0] sm:$0xf]
      %v986 = vld [vmem:[%s255 + $0xad4] sm:$0xf]
      %v987 = vld [vmem:[%s255 + $0xad8] sm:$0xf]
      %v988 = vld [vmem:[%s255 + $0xadc] sm:$0xf]
      %v989 = vld [vmem:[%s255 + $0xae0] sm:$0xf]
      %v990 = vld [vmem:[%s255 + $0xae4] sm:$0xf]
      %v991 = vld [vmem:[%s255 + $0xae8] sm:$0xf]
      %v992 = vld [vmem:[%s255 + $0xaec] sm:$0xf]
      %v993 = vld [vmem:[%s255 + $0xaf0] sm:$0xf]
      %v994 = vld [vmem:[%s255 + $0xaf4] sm:$0xf]
      %v995 = vld [vmem:[%s255 + $0xaf8] sm:$0xf]
      %v996 = vld [vmem:[%s255 + $0xafc] sm:$0xf]
      %v997 = vld [vmem:[%s255 + $0xb00] sm:$0xf]
      %v998 = vld [vmem:[%s255 + $0xb04] sm:$0xf]
      %v999 = vld [vmem:[%s255 + $0xb08] sm:$0xf]
      %v1000 = vld [vmem:[%s255 + $0xb0c] sm:$0xf]
      %v1001 = vld [vmem:[%s255 + $0xb10] sm:$0xf]
      %v1002 = vld [vmem:[%s255 + $0xb14] sm:$0xf]
      %v1003 = vld [vmem:[%s255 + $0xb18] sm:$0xf]
      %v1004 = vld [vmem:[%s255 + $0xb1c] sm:$0xf]
      %v1005 = vld [vmem:[%s255 + $0xb20] sm:$0xf]
      %v1006 = vld [vmem:[%s255 + $0xb24] sm:$0xf]
      %v1007 = vld [vmem:[%s255 + $0xb28] sm:$0xf]
      %v1008 = vld [vmem:[%s255 + $0xb2c] sm:$0xf]
      %v1009 = vld [vmem:[%s255 + $0xb30] sm:$0xf]
      %v1010 = vld [vmem:[%s255 + $0xb34] sm:$0xf]
      %v1011 = vld [vmem:[%s255 + $0xb38] sm:$0xf]
      %v1012 = vld [vmem:[%s255 + $0xb3c] sm:$0xf]
      %v1013 = vld [vmem:[%s255 + $0xb40] sm:$0xf]
      %v1014 = vld [vmem:[%s255 + $0xb44] sm:$0xf]
      %v1015 = vld [vmem:[%s255 + $0xb48] sm:$0xf]
      %v1016 = vld [vmem:[%s255 + $0xb4c] sm:$0xf]
      %v1017 = vld [vmem:[%s255 + $0xb50] sm:$0xf]
      %v1018 = vld [vmem:[%s255 + $0xb54] sm:$0xf]
      %v1019 = vld [vmem:[%s255 + $0xb58] sm:$0xf]
      %v1020 = vld [vmem:[%s255 + $0xb5c] sm:$0xf]
      %v1021 = vld [vmem:[%s255 + $0xb60] sm:$0xf]
      %v1022 = vld [vmem:[%s255 + $0xb64] sm:$0xf]
      %v1023 = vld [vmem:[%s255 + $0xb68] sm:$0xf]
      %v1024 = vld [vmem:[%s255 + $0xb6c] sm:$0xf]
      %v1025 = vld [vmem:[%s255 + $0xb70] sm:$0xf]
      %v1026 = vld [vmem:[%s255 + $0xb74] sm:$0xf]
      %v1027 = vld [vmem:[%s255 + $0xb78] sm:$0xf]
      %v1028 = vld [vmem:[%s255 + $0xb7c] sm:$0xf]
      %v1029 = vld [vmem:[%s255 + $0xb80] sm:$0xf]
      %v1030 = vld [vmem:[%s255 + $0xb84] sm:$0xf]
      %v1031 = vld [vmem:[%s255 + $0xb88] sm:$0xf]
      %v1032 = vld [vmem:[%s255 + $0xb8c] sm:$0xf]
      %v1033 = vld [vmem:[%s255 + $0xb90] sm:$0xf]
      %v1034 = vld [vmem:[%s255 + $0xb94] sm:$0xf]
      %v1035 = vld [vmem:[%s255 + $0xb98] sm:$0xf]
      %v1036 = vld [vmem:[%s255 + $0xb9c] sm:$0xf]
      %v1037 = vld [vmem:[%s255 + $0xba0] sm:$0xf]
      %v1038 = vld [vmem:[%s255 + $0xba4] sm:$0xf]
      %v1039 = vld [vmem:[%s255 + $0xba8] sm:$0xf]
      %v1040 = vld [vmem:[%s255 + $0xbac] sm:$0xf]
      %v1041 = vld [vmem:[%s255 + $0xbb0] sm:$0xf]
      %v1042 = vld [vmem:[%s255 + $0xbb4] sm:$0xf]
      %v1043 = vld [vmem:[%s255 + $0xbb8] sm:$0xf]
      %v1044 = vld [vmem:[%s255 + $0xbbc] sm:$0xf]
      %v1045 = vld [vmem:[%s255 + $0xbc0] sm:$0xf]
      %v1046 = vld [vmem:[%s255 + $0xbc4] sm:$0xf]
      %v1047 = vld [vmem:[%s255 + $0xbc8] sm:$0xf]
      %v1048 = vld [vmem:[%s255 + $0xbcc] sm:$0xf]
      %v1049 = vld [vmem:[%s255 + $0xbd0] sm:$0xf]
      %v1050 = vld [vmem:[%s255 + $0xbd4] sm:$0xf]
      %v1051 = vld [vmem:[%s255 + $0xbd8] sm:$0xf]
      %v1052 = vld [vmem:[%s255 + $0xbdc] sm:$0xf]
      %v1053 = vld [vmem:[%s255 + $0xbe0] sm:$0xf]
      %v1054 = vld [vmem:[%s255 + $0xbe4] sm:$0xf]
      %v1055 = vld [vmem:[%s255 + $0xbe8] sm:$0xf]
      %v1056 = vld [vmem:[%s255 + $0xbec] sm:$0xf]
      %v1057 = vld [vmem:[%s255 + $0xbf0] sm:$0xf]
      %v1058 = vld [vmem:[%s255 + $0xbf4] sm:$0xf]
      %v1059 = vld [vmem:[%s255 + $0xbf8] sm:$0xf]
      %v1060 = vld [vmem:[%s255 + $0xbfc] sm:$0xf]
      %v1061 = vld [vmem:[%s255 + $0xc00] sm:$0xf]
      %v1062 = vld [vmem:[%s255 + $0xc04] sm:$0xf]
      %v1063 = vld [vmem:[%s255 + $0xc08] sm:$0xf]
      %v1064 = vld [vmem:[%s255 + $0xc0c] sm:$0xf]
      %v1065 = vld [vmem:[%s255 + $0xc10] sm:$0xf]
      %v1066 = vld [vmem:[%s255 + $0xc14] sm:$0xf]
      %v1067 = vld [vmem:[%s255 + $0xc18] sm:$0xf]
      %v1068 = vld [vmem:[%s255 + $0xc1c] sm:$0xf]
      %v1069 = vld [vmem:[%s255 + $0xc20] sm:$0xf]
      %v1070 = vld [vmem:[%s255 + $0xc24] sm:$0xf]
      %v1071 = vld [vmem:[%s255 + $0xc28] sm:$0xf]
      %v1072 = vld [vmem:[%s255 + $0xc2c] sm:$0xf]
      %v1073 = vld [vmem:[%s255 + $0xc30] sm:$0xf]
      %v1074 = vld [vmem:[%s255 + $0xc34] sm:$0xf]
      %v1075 = vld [vmem:[%s255 + $0xc38] sm:$0xf]
      %v1076 = vld [vmem:[%s255 + $0xc3c] sm:$0xf]
      %v1077 = vld [vmem:[%s255 + $0xc40] sm:$0xf]
      %v1078 = vld [vmem:[%s255 + $0xc44] sm:$0xf]
      %v1079 = vld [vmem:[%s255 + $0xc48] sm:$0xf]
      %v1080 = vld [vmem:[%s255 + $0xc4c] sm:$0xf]
      %v1081 = vld [vmem:[%s255 + $0xc50] sm:$0xf]
      %v1082 = vld [vmem:[%s255 + $0xc54] sm:$0xf]
      %v1083 = vld [vmem:[%s255 + $0xc58] sm:$0xf]
      %v1084 = vld [vmem:[%s255 + $0xc5c] sm:$0xf]
      %v1085 = vld [vmem:[%s255 + $0xc60] sm:$0xf]
      %v1086 = vld [vmem:[%s255 + $0xc64] sm:$0xf]
      %v1087 = vld [vmem:[%s255 + $0xc68] sm:$0xf]
      %v1088 = vld [vmem:[%s255 + $0xc6c] sm:$0xf]
      %v1089 = vld [vmem:[%s255 + $0xc70] sm:$0xf]
      %v1090 = vld [vmem:[%s255 + $0xc74] sm:$0xf]
      %v1091 = vld [vmem:[%s255 + $0xc78] sm:$0xf]
      %v1092 = vld [vmem:[%s255 + $0xc7c] sm:$0xf]
      %v1093 = vld [vmem:[%s255 + $0xc80] sm:$0xf]
      %v1094 = vld [vmem:[%s255 + $0xc84] sm:$0xf]
      %v1095 = vld [vmem:[%s255 + $0xc88] sm:$0xf]
      %v1096 = vld [vmem:[%s255 + $0xc8c] sm:$0xf]
      %v1097 = vld [vmem:[%s255 + $0xc90] sm:$0xf]
      %v1098 = vld [vmem:[%s255 + $0xc94] sm:$0xf]
      %v1099 = vld [vmem:[%s255 + $0xc98] sm:$0xf]
      %v1100 = vld [vmem:[%s255 + $0xc9c] sm:$0xf]
      %v1101 = vld [vmem:[%s255 + $0xca0] sm:$0xf]
      %v1102 = vld [vmem:[%s255 + $0xca4] sm:$0xf]
      %v1103 = vld [vmem:[%s255 + $0xca8] sm:$0xf]
      %v1104 = vld [vmem:[%s255 + $0xcac] sm:$0xf]
      %v1105 = vld [vmem:[%s255 + $0xcb0] sm:$0xf]
      %v1106 = vld [vmem:[%s255 + $0xcb4] sm:$0xf]
      %v1107 = vld [vmem:[%s255 + $0xcb8] sm:$0xf]
      %v1108 = vld [vmem:[%s255 + $0xcbc] sm:$0xf]
      %v1109 = vld [vmem:[%s255 + $0xcc0] sm:$0xf]
      %v1110 = vld [vmem:[%s255 + $0xcc4] sm:$0xf]
      %v1111 = vld [vmem:[%s255 + $0xcc8] sm:$0xf]
      %v1112 = vld [vmem:[%s255 + $0xccc] sm:$0xf]
      %v1113 = vld [vmem:[%s255 + $0xcd0] sm:$0xf]
      %v1114 = vld [vmem:[%s255 + $0xcd4] sm:$0xf]
      %v1115 = vld [vmem:[%s255 + $0xcd8] sm:$0xf]
      %v1116 = vld [vmem:[%s255 + $0xcdc] sm:$0xf]
      %v1117 = vld [vmem:[%s255 + $0xce0] sm:$0xf]
      %v1118 = vld [vmem:[%s255 + $0xce4] sm:$0xf]
      %v1119 = vld [vmem:[%s255 + $0xce8] sm:$0xf]
      %v1120 = vld [vmem:[%s255 + $0xcec] sm:$0xf]
      %v1121 = vld [vmem:[%s255 + $0xcf0] sm:$0xf]
      %v1122 = vld [vmem:[%s255 + $0xcf4] sm:$0xf]
      %v1123 = vld [vmem:[%s255 + $0xcf8] sm:$0xf]
      %v1124 = vld [vmem:[%s255 + $0xcfc] sm:$0xf]
      %v1125 = vld [vmem:[%s255 + $0xd00] sm:$0xf]
      %v1126 = vld [vmem:[%s255 + $0xd04] sm:$0xf]
      %v1127 = vld [vmem:[%s255 + $0xd08] sm:$0xf]
      %v1128 = vld [vmem:[%s255 + $0xd0c] sm:$0xf]
      %v1129 = vld [vmem:[%s255 + $0xd10] sm:$0xf]
      %v1130 = vld [vmem:[%s255 + $0xd14] sm:$0xf]
      %v1131 = vld [vmem:[%s255 + $0xd18] sm:$0xf]
      %v1132 = vld [vmem:[%s255 + $0xd1c] sm:$0xf]
      %v1133 = vld [vmem:[%s255 + $0xd20] sm:$0xf]
      %v1134 = vld [vmem:[%s255 + $0xd24] sm:$0xf]
      %v1135 = vld [vmem:[%s255 + $0xd28] sm:$0xf]
      %v1136 = vld [vmem:[%s255 + $0xd2c] sm:$0xf]
      %v1137 = vld [vmem:[%s255 + $0xd30] sm:$0xf]
      %v1138 = vld [vmem:[%s255 + $0xd34] sm:$0xf]
      %v1139 = vld [vmem:[%s255 + $0xd38] sm:$0xf]
      %v1140 = vld [vmem:[%s255 + $0xd3c] sm:$0xf]
      %v1141 = vld [vmem:[%s255 + $0xd40] sm:$0xf]
      %v1142 = vld [vmem:[%s255 + $0xd44] sm:$0xf]
      %v1143 = vld [vmem:[%s255 + $0xd48] sm:$0xf]
      %v1144 = vld [vmem:[%s255 + $0xd4c] sm:$0xf]
      %v1145 = vld [vmem:[%s255 + $0xd50] sm:$0xf]
      %v1146 = vld [vmem:[%s255 + $0xd54] sm:$0xf]
      %v1147 = vld [vmem:[%s255 + $0xd58] sm:$0xf]
      %v1148 = vld [vmem:[%s255 + $0xd5c] sm:$0xf]
      %v1149 = vld [vmem:[%s255 + $0xd60] sm:$0xf]
      %v1150 = vld [vmem:[%s255 + $0xd64] sm:$0xf]
      %v1151 = vld [vmem:[%s255 + $0xd68] sm:$0xf]
      %v1152 = vld [vmem:[%s255 + $0xd6c] sm:$0xf]
      %v1153 = vld [vmem:[%s255 + $0xd70] sm:$0xf]
      %v1154 = vld [vmem:[%s255 + $0xd74] sm:$0xf]
      %v1155 = vld [vmem:[%s255 + $0xd78] sm:$0xf]
      %v1156 = vld [vmem:[%s255 + $0xd7c] sm:$0xf]
      %v1157 = vld [vmem:[%s255 + $0xd80] sm:$0xf]
      %v1158 = vld [vmem:[%s255 + $0xd84] sm:$0xf]
      %v1159 = vld [vmem:[%s255 + $0xd88] sm:$0xf]
      %v1160 = vld [vmem:[%s255 + $0xd8c] sm:$0xf]
      %v1161 = vld [vmem:[%s255 + $0xd90] sm:$0xf]
      %v1162 = vld [vmem:[%s255 + $0xd94] sm:$0xf]
      %v1163 = vld [vmem:[%s255 + $0xd98] sm:$0xf]
      %v1164 = vld [vmem:[%s255 + $0xd9c] sm:$0xf]
      %v1165 = vld [vmem:[%s255 + $0xda0] sm:$0xf]
      %v1166 = vld [vmem:[%s255 + $0xda4] sm:$0xf]
      %v1167 = vld [vmem:[%s255 + $0xda8] sm:$0xf]
      %v1168 = vld [vmem:[%s255 + $0xdac] sm:$0xf]
      %v1169 = vld [vmem:[%s255 + $0xdb0] sm:$0xf]
      %v1170 = vld [vmem:[%s255 + $0xdb4] sm:$0xf]
      %v1171 = vld [vmem:[%s255 + $0xdb8] sm:$0xf]
      %v1172 = vld [vmem:[%s255 + $0xdbc] sm:$0xf]
      %v1173 = vld [vmem:[%s255 + $0xdc0] sm:$0xf]
      %v1174 = vld [vmem:[%s255 + $0xdc4] sm:$0xf]
      %v1175 = vld [vmem:[%s255 + $0xdc8] sm:$0xf]
      %v1176 = vld [vmem:[%s255 + $0xdcc] sm:$0xf]
      %v1177 = vld [vmem:[%s255 + $0xdd0] sm:$0xf]
      %v1178 = vld [vmem:[%s255 + $0xdd4] sm:$0xf]
      %v1179 = vld [vmem:[%s255 + $0xdd8] sm:$0xf]
      %v1180 = vld [vmem:[%s255 + $0xddc] sm:$0xf]
      %v1181 = vld [vmem:[%s255 + $0xde0] sm:$0xf]
      %v1182 = vld [vmem:[%s255 + $0xde4] sm:$0xf]
      %v1183 = vld [vmem:[%s255 + $0xde8] sm:$0xf]
      %v1184 = vld [vmem:[%s255 + $0xdec] sm:$0xf]
      %v1185 = vld [vmem:[%s255 + $0xdf0] sm:$0xf]
      %v1186 = vld [vmem:[%s255 + $0xdf4] sm:$0xf]
      %v1187 = vld [vmem:[%s255 + $0xdf8] sm:$0xf]
      %v1188 = vld [vmem:[%s255 + $0xdfc] sm:$0xf]
      %v1189 = vld [vmem:[%s255 + $0xe00] sm:$0xf]
      %v1190 = vld [vmem:[%s255 + $0xe04] sm:$0xf]
      %v1191 = vld [vmem:[%s255 + $0xe08] sm:$0xf]
      %v1192 = vld [vmem:[%s255 + $0xe0c] sm:$0xf]
      %v1193 = vld [vmem:[%s255 + $0xe10] sm:$0xf]
      %v1194 = vld [vmem:[%s255 + $0xe14] sm:$0xf]
      %v1195 = vld [vmem:[%s255 + $0xe18] sm:$0xf]
      %v1196 = vld [vmem:[%s255 + $0xe1c] sm:$0xf]
      %v1197 = vld [vmem:[%s255 + $0xe20] sm:$0xf]
      %v1198 = vld [vmem:[%s255 + $0xe24] sm:$0xf]
      %v1199 = vld [vmem:[%s255 + $0xe28] sm:$0xf]
      %v1200 = vld [vmem:[%s255 + $0xe2c] sm:$0xf]
      %v1201 = vld [vmem:[%s255 + $0xe30] sm:$0xf]
      %v1202 = vld [vmem:[%s255 + $0xe34] sm:$0xf]
      %v1203 = vld [vmem:[%s255 + $0xe38] sm:$0xf]
      %v1204 = vld [vmem:[%s255 + $0xe3c] sm:$0xf]
      %v1205 = vld [vmem:[%s255 + $0xe40] sm:$0xf]
      %v1206 = vld [vmem:[%s255 + $0xe44] sm:$0xf]
      %v1207 = vld [vmem:[%s255 + $0xe48] sm:$0xf]
      %v1208 = vld [vmem:[%s255 + $0xe4c] sm:$0xf]
      %v1209 = vld [vmem:[%s255 + $0xe50] sm:$0xf]
      %v1210 = vld [vmem:[%s255 + $0xe54] sm:$0xf]
      %v1211 = vld [vmem:[%s255 + $0xe58] sm:$0xf]
      %v1212 = vld [vmem:[%s255 + $0xe5c] sm:$0xf]
      %v1213 = vld [vmem:[%s255 + $0xe60] sm:$0xf]
      %v1214 = vld [vmem:[%s255 + $0xe64] sm:$0xf]
      %v1215 = vld [vmem:[%s255 + $0xe68] sm:$0xf]
      %v1216 = vld [vmem:[%s255 + $0xe6c] sm:$0xf]
      %v1217 = vld [vmem:[%s255 + $0xe70] sm:$0xf]
      %v1218 = vld [vmem:[%s255 + $0xe74] sm:$0xf]
      %v1219 = vld [vmem:[%s255 + $0xe78] sm:$0xf]
      %v1220 = vld [vmem:[%s255 + $0xe7c] sm:$0xf]
      %v1221 = vld [vmem:[%s255 + $0xe80] sm:$0xf]
      %v1222 = vld [vmem:[%s255 + $0xe84] sm:$0xf]
      %v1223 = vld [vmem:[%s255 + $0xe88] sm:$0xf]
      %v1224 = vld [vmem:[%s255 + $0xe8c] sm:$0xf]
      %v1225 = vld [vmem:[%s255 + $0xe90] sm:$0xf]
      %v1226 = vld [vmem:[%s255 + $0xe94] sm:$0xf]
      %v1227 = vld [vmem:[%s255 + $0xe98] sm:$0xf]
      %v1228 = vld [vmem:[%s255 + $0xe9c] sm:$0xf]
      %v1229 = vld [vmem:[%s255 + $0xea0] sm:$0xf]
      %v1230 = vld [vmem:[%s255 + $0xea4] sm:$0xf]
      %v1231 = vld [vmem:[%s255 + $0xea8] sm:$0xf]
      %v1232 = vld [vmem:[%s255 + $0xeac] sm:$0xf]
      %v1233 = vld [vmem:[%s255 + $0xeb0] sm:$0xf]
      %v1234 = vld [vmem:[%s255 + $0xeb4] sm:$0xf]
      %v1235 = vld [vmem:[%s255 + $0xeb8] sm:$0xf]
      %v1236 = vld [vmem:[%s255 + $0xebc] sm:$0xf]
      %v1237 = vld [vmem:[%s255 + $0xec0] sm:$0xf]
      %v1238 = vld [vmem:[%s255 + $0xec4] sm:$0xf]
      %v1239 = vld [vmem:[%s255 + $0xec8] sm:$0xf]
      %v1240 = vld [vmem:[%s255 + $0xecc] sm:$0xf]
      %v1241 = vld [vmem:[%s255 + $0xed0] sm:$0xf]
      %v1242 = vld [vmem:[%s255 + $0xed4] sm:$0xf]
      %v1243 = vld [vmem:[%s255 + $0xed8] sm:$0xf]
      %v1244 = vld [vmem:[%s255 + $0xedc] sm:$0xf]
      %v1245 = vld [vmem:[%s255 + $0xee0] sm:$0xf]
      %v1246 = vld [vmem:[%s255 + $0xee4] sm:$0xf]
      %v1247 = vld [vmem:[%s255 + $0xee8] sm:$0xf]
      %v1248 = vld [vmem:[%s255 + $0xeec] sm:$0xf]
      %v1249 = vld [vmem:[%s255 + $0xef0] sm:$0xf]
      %v1250 = vld [vmem:[%s255 + $0xef4] sm:$0xf]
      %v1251 = vld [vmem:[%s255 + $0xef8] sm:$0xf]
      %v1252 = vld [vmem:[%s255 + $0xefc] sm:$0xf]
      %v1253 = vld [vmem:[%s255 + $0xf00] sm:$0xf]
      %v1254 = vld [vmem:[%s255 + $0xf04] sm:$0xf]
      %v1255 = vld [vmem:[%s255 + $0xf08] sm:$0xf]
      %v1256 = vld [vmem:[%s255 + $0xf0c] sm:$0xf]
      %v1257 = vld [vmem:[%s255 + $0xf10] sm:$0xf]
      %v1258 = vld [vmem:[%s255 + $0xf14] sm:$0xf]
      %v1259 = vld [vmem:[%s255 + $0xf18] sm:$0xf]
      %v1260 = vld [vmem:[%s255 + $0xf1c] sm:$0xf]
      %v1261 = vld [vmem:[%s255 + $0xf20] sm:$0xf]
      %v1262 = vld [vmem:[%s255 + $0xf24] sm:$0xf]
      %v1263 = vld [vmem:[%s255 + $0xf28] sm:$0xf]
      %v1264 = vld [vmem:[%s255 + $0xf2c] sm:$0xf]
      %v1265 = vld [vmem:[%s255 + $0xf30] sm:$0xf]
      %v1266 = vld [vmem:[%s255 + $0xf34] sm:$0xf]
      %v1267 = vld [vmem:[%s255 + $0xf38] sm:$0xf]
      %v1268 = vld [vmem:[%s255 + $0xf3c] sm:$0xf]
      %v1269 = vld [vmem:[%s255 + $0xf40] sm:$0xf]
      %v1270 = vld [vmem:[%s255 + $0xf44] sm:$0xf]
      %v1271 = vld [vmem:[%s255 + $0xf48] sm:$0xf]
      %v1272 = vld [vmem:[%s255 + $0xf4c] sm:$0xf]
      %v1273 = vld [vmem:[%s255 + $0xf50] sm:$0xf]
      %v1274 = vld [vmem:[%s255 + $0xf54] sm:$0xf]
      %v1275 = vld [vmem:[%s255 + $0xf58] sm:$0xf]
      %v1276 = vld [vmem:[%s255 + $0xf5c] sm:$0xf]
      %v1277 = vld [vmem:[%s255 + $0xf60] sm:$0xf]
      %v1278 = vld [vmem:[%s255 + $0xf64] sm:$0xf]
      %v1279 = vld [vmem:[%s255 + $0xf68] sm:$0xf]
      %v1280 = vld [vmem:[%s255 + $0xf6c] sm:$0xf]
      %v1281 = vld [vmem:[%s255 + $0xf70] sm:$0xf]
      %v1282 = vld [vmem:[%s255 + $0xf74] sm:$0xf]
      %v1283 = vld [vmem:[%s255 + $0xf78] sm:$0xf]
      %v1284 = vld [vmem:[%s255 + $0xf7c] sm:$0xf]
      %v1285 = vld [vmem:[%s255 + $0xf80] sm:$0xf]
      %v1286 = vld [vmem:[%s255 + $0xf84] sm:$0xf]
      %v1287 = vld [vmem:[%s255 + $0xf88] sm:$0xf]
      %v1288 = vld [vmem:[%s255 + $0xf8c] sm:$0xf]
      %v1289 = vld [vmem:[%s255 + $0xf90] sm:$0xf]
      %v1290 = vld [vmem:[%s255 + $0xf94] sm:$0xf]
      %v1291 = vld [vmem:[%s255 + $0xf98] sm:$0xf]
      %v1292 = vld [vmem:[%s255 + $0xf9c] sm:$0xf]
      %v1293 = vld [vmem:[%s255 + $0xfa0] sm:$0xf]
      %v1294 = vld [vmem:[%s255 + $0xfa4] sm:$0xf]
      %v1295 = vld [vmem:[%s255 + $0xfa8] sm:$0xf]
      %v1296 = vld [vmem:[%s255 + $0xfac] sm:$0xf]
      %v1297 = vld [vmem:[%s255 + $0xfb0] sm:$0xf]
      %v1298 = vld [vmem:[%s255 + $0xfb4] sm:$0xf]
      %v1299 = vld [vmem:[%s255 + $0xfb8] sm:$0xf]
      %v1300 = vld [vmem:[%s255 + $0xfbc] sm:$0xf]
      %v1301 = vld [vmem:[%s255 + $0xfc0] sm:$0xf]
      %v1302 = vld [vmem:[%s255 + $0xfc4] sm:$0xf]
      %v1303 = vld [vmem:[%s255 + $0xfc8] sm:$0xf]
      %v1304 = vld [vmem:[%s255 + $0xfcc] sm:$0xf]
      %v1305 = vld [vmem:[%s255 + $0xfd0] sm:$0xf]
      %v1306 = vld [vmem:[%s255 + $0xfd4] sm:$0xf]
      %v1307 = vld [vmem:[%s255 + $0xfd8] sm:$0xf]
      %v1308 = vld [vmem:[%s255 + $0xfdc] sm:$0xf]
      %v1309 = vld [vmem:[%s255 + $0xfe0] sm:$0xf]
      %v1310 = vld [vmem:[%s255 + $0xfe4] sm:$0xf]
      %v1311 = vld [vmem:[%s255 + $0xfe8] sm:$0xf]
      %v1312 = vld [vmem:[%s255 + $0xfec] sm:$0xf]
      %v1313 = vld [vmem:[%s255 + $0xff0] sm:$0xf]
      %v1314 = vld [vmem:[%s255 + $0xff4] sm:$0xf]
      %v1315 = vld [vmem:[%s255 + $0xff8] sm:$0xf]
      %v1316 = vld [vmem:[%s255 + $0xffc] sm:$0xf]
      %v1317 = vld [vmem:[%s255 + $0x1000] sm:$0xf]
      %v1318 = vld [vmem:[%s255 + $0x1004] sm:$0xf]
      %v1319 = vld [vmem:[%s255 + $0x1008] sm:$0xf]
      %v1320 = vld [vmem:[%s255 + $0x100c] sm:$0xf]
      %v1321 = vld [vmem:[%s255 + $0x1010] sm:$0xf]
      %v1322 = vld [vmem:[%s255 + $0x1014] sm:$0xf]
      %v1323 = vld [vmem:[%s255 + $0x1018] sm:$0xf]
      %v1324 = vld [vmem:[%s255 + $0x101c] sm:$0xf]
      %v1325 = vld [vmem:[%s255 + $0x1020] sm:$0xf]
      %v1326 = vld [vmem:[%s255 + $0x1024] sm:$0xf]
      %v1327 = vld [vmem:[%s255 + $0x1028] sm:$0xf]
      %v1328 = vld [vmem:[%s255 + $0x102c] sm:$0xf]
      %v1329 = vld [vmem:[%s255 + $0x1030] sm:$0xf]
      %v1330 = vld [vmem:[%s255 + $0x1034] sm:$0xf]
      %v1331 = vld [vmem:[%s255 + $0x1038] sm:$0xf]
      %v1332 = vld [vmem:[%s255 + $0x103c] sm:$0xf]
      %v1333 = vld [vmem:[%s255 + $0x1040] sm:$0xf]
      %v1334 = vld [vmem:[%s255 + $0x1044] sm:$0xf]
      %v1335 = vld [vmem:[%s255 + $0x1048] sm:$0xf]
      %v1336 = vld [vmem:[%s255 + $0x104c] sm:$0xf]
      %v1337 = vld [vmem:[%s255 + $0x1050] sm:$0xf]
      %v1338 = vld [vmem:[%s255 + $0x1054] sm:$0xf]
      %v1339 = vld [vmem:[%s255 + $0x1058] sm:$0xf]
      %v1340 = vld [vmem:[%s255 + $0x105c] sm:$0xf]
      %v1341 = vld [vmem:[%s255 + $0x1060] sm:$0xf]
      %v1342 = vld [vmem:[%s255 + $0x1064] sm:$0xf]
      %v1343 = vld [vmem:[%s255 + $0x1068] sm:$0xf]
      %v1344 = vld [vmem:[%s255 + $0x106c] sm:$0xf]
      %v1345 = vld [vmem:[%s255 + $0x1070] sm:$0xf]
      %v1346 = vld [vmem:[%s255 + $0x1074] sm:$0xf]
      %v1347 = vld [vmem:[%s255 + $0x1078] sm:$0xf]
      %v1348 = vld [vmem:[%s255 + $0x107c] sm:$0xf]
      %v1349 = vld [vmem:[%s255 + $0x1080] sm:$0xf]
      %v1350 = vld [vmem:[%s255 + $0x1084] sm:$0xf]
      %v1351 = vld [vmem:[%s255 + $0x1088] sm:$0xf]
      %v1352 = vld [vmem:[%s255 + $0x108c] sm:$0xf]
      %v1353 = vld [vmem:[%s255 + $0x1090] sm:$0xf]
      %v1354 = vld [vmem:[%s255 + $0x1094] sm:$0xf]
      %v1355 = vld [vmem:[%s255 + $0x1098] sm:$0xf]
      %v1356 = vld [vmem:[%s255 + $0x109c] sm:$0xf]
      %v1357 = vld [vmem:[%s255 + $0x10a0] sm:$0xf]
      %v1358 = vld [vmem:[%s255 + $0x10a4] sm:$0xf]
      %v1359 = vld [vmem:[%s255 + $0x10a8] sm:$0xf]
      %v1360 = vld [vmem:[%s255 + $0x10ac] sm:$0xf]
      %v1361 = vld [vmem:[%s255 + $0x10b0] sm:$0xf]
      %v1362 = vld [vmem:[%s255 + $0x10b4] sm:$0xf]
      %v1363 = vld [vmem:[%s255 + $0x10b8] sm:$0xf]
      %v1364 = vld [vmem:[%s255 + $0x10bc] sm:$0xf]
      %v1365 = vld [vmem:[%s255 + $0x10c0] sm:$0xf]
      %v1366 = vld [vmem:[%s255 + $0x10c4] sm:$0xf]
      %v1367 = vld [vmem:[%s255 + $0x10c8] sm:$0xf]
      %v1368 = vld [vmem:[%s255 + $0x10cc] sm:$0xf]
      %v1369 = vld [vmem:[%s255 + $0x10d0] sm:$0xf]
      %v1370 = vld [vmem:[%s255 + $0x10d4] sm:$0xf]
      %v1371 = vld [vmem:[%s255 + $0x10d8] sm:$0xf]
      %v1372 = vld [vmem:[%s255 + $0x10dc] sm:$0xf]
      %v1373 = vld [vmem:[%s255 + $0x10e0] sm:$0xf]
      %v1374 = vld [vmem:[%s255 + $0x10e4] sm:$0xf]
      %v1375 = vld [vmem:[%s255 + $0x10e8] sm:$0xf]
      %v1376 = vld [vmem:[%s255 + $0x10ec] sm:$0xf]
      %v1377 = vld [vmem:[%s255 + $0x10f0] sm:$0xf]
      %v1378 = vld [vmem:[%s255 + $0x10f4] sm:$0xf]
      %v1379 = vld [vmem:[%s255 + $0x10f8] sm:$0xf]
      %v1380 = vld [vmem:[%s255 + $0x10fc] sm:$0xf]
      %v1381 = vld [vmem:[%s255 + $0x1100] sm:$0xf]
      %v1382 = vld [vmem:[%s255 + $0x1104] sm:$0xf]
      %v1383 = vld [vmem:[%s255 + $0x1108] sm:$0xf]
      %v1384 = vld [vmem:[%s255 + $0x110c] sm:$0xf]
      %v1385 = vld [vmem:[%s255 + $0x1110] sm:$0xf]
      %v1386 = vld [vmem:[%s255 + $0x1114] sm:$0xf]
      %v1387 = vld [vmem:[%s255 + $0x1118] sm:$0xf]
      %v1388 = vld [vmem:[%s255 + $0x111c] sm:$0xf]
      %v1389 = vld [vmem:[%s255 + $0x1120] sm:$0xf]
      %v1390 = vld [vmem:[%s255 + $0x1124] sm:$0xf]
      %v1391 = vld [vmem:[%s255 + $0x1128] sm:$0xf]
      %v1392 = vld [vmem:[%s255 + $0x112c] sm:$0xf]
      %v1393 = vld [vmem:[%s255 + $0x1130] sm:$0xf]
      %v1394 = vld [vmem:[%s255 + $0x1134] sm:$0xf]
      %v1395 = vld [vmem:[%s255 + $0x1138] sm:$0xf]
      %v1396 = vld [vmem:[%s255 + $0x113c] sm:$0xf]
      %v1397 = vld [vmem:[%s255 + $0x1140] sm:$0xf]
      %v1398 = vld [vmem:[%s255 + $0x1144] sm:$0xf]
      %v1399 = vld [vmem:[%s255 + $0x1148] sm:$0xf]
      %v1400 = vld [vmem:[%s255 + $0x114c] sm:$0xf]
      %v1401 = vld [vmem:[%s255 + $0x1150] sm:$0xf]
      %v1402 = vld [vmem:[%s255 + $0x1154] sm:$0xf]
      %v1403 = vld [vmem:[%s255 + $0x1158] sm:$0xf]
      %v1404 = vld [vmem:[%s255 + $0x115c] sm:$0xf]
      %v1405 = vld [vmem:[%s255 + $0x1160] sm:$0xf]
      %v1406 = vld [vmem:[%s255 + $0x1164] sm:$0xf]
      %v1407 = vld [vmem:[%s255 + $0x1168] sm:$0xf]
      %v1408 = vld [vmem:[%s255 + $0x116c] sm:$0xf]
      %v1409 = vld [vmem:[%s255 + $0x1170] sm:$0xf]
      %v1410 = vld [vmem:[%s255 + $0x1174] sm:$0xf]
      %v1411 = vld [vmem:[%s255 + $0x1178] sm:$0xf]
      %v1412 = vld [vmem:[%s255 + $0x117c] sm:$0xf]
      %v1413 = vld [vmem:[%s255 + $0x1180] sm:$0xf]
      %v1414 = vld [vmem:[%s255 + $0x1184] sm:$0xf]
      %v1415 = vld [vmem:[%s255 + $0x1188] sm:$0xf]
      %v1416 = vld [vmem:[%s255 + $0x118c] sm:$0xf]
      %v1417 = vld [vmem:[%s255 + $0x1190] sm:$0xf]
      %v1418 = vld [vmem:[%s255 + $0x1194] sm:$0xf]
      %v1419 = vld [vmem:[%s255 + $0x1198] sm:$0xf]
      %v1420 = vld [vmem:[%s255 + $0x119c] sm:$0xf]
      %v1421 = vld [vmem:[%s255 + $0x11a0] sm:$0xf]
      %v1422 = vld [vmem:[%s255 + $0x11a4] sm:$0xf]
      %v1423 = vld [vmem:[%s255 + $0x11a8] sm:$0xf]
      %v1424 = vld [vmem:[%s255 + $0x11ac] sm:$0xf]
      %v1425 = vld [vmem:[%s255 + $0x11b0] sm:$0xf]
      %v1426 = vld [vmem:[%s255 + $0x11b4] sm:$0xf]
      %v1427 = vld [vmem:[%s255 + $0x11b8] sm:$0xf]
      %v1428 = vld [vmem:[%s255 + $0x11bc] sm:$0xf]
      %v1429 = vld [vmem:[%s255 + $0x11c0] sm:$0xf]
      %v1430 = vld [vmem:[%s255 + $0x11c4] sm:$0xf]
      %v1431 = vld [vmem:[%s255 + $0x11c8] sm:$0xf]
      %v1432 = vld [vmem:[%s255 + $0x11cc] sm:$0xf]
      %v1433 = vld [vmem:[%s255 + $0x11d0] sm:$0xf]
      %v1434 = vld [vmem:[%s255 + $0x11d4] sm:$0xf]
      %v1435 = vld [vmem:[%s255 + $0x11d8] sm:$0xf]
      %v1436 = vld [vmem:[%s255 + $0x11dc] sm:$0xf]
      %v1437 = vld [vmem:[%s255 + $0x11e0] sm:$0xf]
      %v1438 = vld [vmem:[%s255 + $0x11e4] sm:$0xf]
      %v1439 = vld [vmem:[%s255 + $0x11e8] sm:$0xf]
      %v1440 = vld [vmem:[%s255 + $0x11ec] sm:$0xf]
      %v1441 = vld [vmem:[%s255 + $0x11f0] sm:$0xf]
      %v1442 = vld [vmem:[%s255 + $0x11f4] sm:$0xf]
      %v1443 = vld [vmem:[%s255 + $0x11f8] sm:$0xf]
      %v1444 = vld [vmem:[%s255 + $0x11fc] sm:$0xf]
      %v1445 = vld [vmem:[%s255 + $0x1200] sm:$0xf]
      %v1446 = vld [vmem:[%s255 + $0x1204] sm:$0xf]
      %v1447 = vld [vmem:[%s255 + $0x1208] sm:$0xf]
      %v1448 = vld [vmem:[%s255 + $0x120c] sm:$0xf]
      %v1449 = vld [vmem:[%s255 + $0x1210] sm:$0xf]
      %v1450 = vld [vmem:[%s255 + $0x1214] sm:$0xf]
      %v1451 = vld [vmem:[%s255 + $0x1218] sm:$0xf]
      %v1452 = vld [vmem:[%s255 + $0x121c] sm:$0xf]
      %v1453 = vld [vmem:[%s255 + $0x1220] sm:$0xf]
      %v1454 = vld [vmem:[%s255 + $0x1224] sm:$0xf]
      %v1455 = vld [vmem:[%s255 + $0x1228] sm:$0xf]
      %v1456 = vld [vmem:[%s255 + $0x122c] sm:$0xf]
      %v1457 = vld [vmem:[%s255 + $0x1230] sm:$0xf]
      %v1458 = vld [vmem:[%s255 + $0x1234] sm:$0xf]
      %v1459 = vld [vmem:[%s255 + $0x1238] sm:$0xf]
      %v1460 = vld [vmem:[%s255 + $0x123c] sm:$0xf]
      %v1461 = vld [vmem:[%s255 + $0x1240] sm:$0xf]
      %v1462 = vld [vmem:[%s255 + $0x1244] sm:$0xf]
      %v1463 = vld [vmem:[%s255 + $0x1248] sm:$0xf]
      %v1464 = vld [vmem:[%s255 + $0x124c] sm:$0xf]
      %v1465 = vld [vmem:[%s255 + $0x1250] sm:$0xf]
      %v1466 = vld [vmem:[%s255 + $0x1254] sm:$0xf]
      %v1467 = vld [vmem:[%s255 + $0x1258] sm:$0xf]
      %v1468 = vld [vmem:[%s255 + $0x125c] sm:$0xf]
      %v1469 = vld [vmem:[%s255 + $0x1260] sm:$0xf]
      %v1470 = vld [vmem:[%s255 + $0x1264] sm:$0xf]
      %v1471 = vld [vmem:[%s255 + $0x1268] sm:$0xf]
      %v1472 = vld [vmem:[%s255 + $0x126c] sm:$0xf]
      %v1473 = vld [vmem:[%s255 + $0x1270] sm:$0xf]
      %v1474 = vld [vmem:[%s255 + $0x1274] sm:$0xf]
      %v1475 = vld [vmem:[%s255 + $0x1278] sm:$0xf]
      %v1476 = vld [vmem:[%s255 + $0x127c] sm:$0xf]
      %v1477 = vld [vmem:[%s255 + $0x1280] sm:$0xf]
      %v1478 = vld [vmem:[%s255 + $0x1284] sm:$0xf]
      %v1479 = vld [vmem:[%s255 + $0x1288] sm:$0xf]
      %v1480 = vld [vmem:[%s255 + $0x128c] sm:$0xf]
      %v1481 = vld [vmem:[%s255 + $0x1290] sm:$0xf]
      %v1482 = vld [vmem:[%s255 + $0x1294] sm:$0xf]
      %v1483 = vld [vmem:[%s255 + $0x1298] sm:$0xf]
      %v1484 = vld [vmem:[%s255 + $0x129c] sm:$0xf]
      %v1485 = vld [vmem:[%s255 + $0x12a0] sm:$0xf]
      %v1486 = vld [vmem:[%s255 + $0x12a4] sm:$0xf]
      %v1487 = vld [vmem:[%s255 + $0x12a8] sm:$0xf]
      %v1488 = vld [vmem:[%s255 + $0x12ac] sm:$0xf]
      %v1489 = vld [vmem:[%s255 + $0x12b0] sm:$0xf]
      %v1490 = vld [vmem:[%s255 + $0x12b4] sm:$0xf]
      %v1491 = vld [vmem:[%s255 + $0x12b8] sm:$0xf]
      %v1492 = vld [vmem:[%s255 + $0x12bc] sm:$0xf]
      %v1493 = vld [vmem:[%s255 + $0x12c0] sm:$0xf]
      %v1494 = vld [vmem:[%s255 + $0x12c4] sm:$0xf]
      %v1495 = vld [vmem:[%s255 + $0x12c8] sm:$0xf]
      %v1496 = vld [vmem:[%s255 + $0x12cc] sm:$0xf]
      %v1497 = vld [vmem:[%s255 + $0x12d0] sm:$0xf]
      %v1498 = vld [vmem:[%s255 + $0x12d4] sm:$0xf]
      %v1499 = vld [vmem:[%s255 + $0x12d8] sm:$0xf]
      %v1500 = vld [vmem:[%s255 + $0x12dc] sm:$0xf]
      %v1501 = vld [vmem:[%s255 + $0x12e0] sm:$0xf]
      %v1502 = vld [vmem:[%s255 + $0x12e4] sm:$0xf]
      %v1503 = vld [vmem:[%s255 + $0x12e8] sm:$0xf]
      %v1504 = vld [vmem:[%s255 + $0x12ec] sm:$0xf]
      %v1505 = vld [vmem:[%s255 + $0x12f0] sm:$0xf]
      %v1506 = vld [vmem:[%s255 + $0x12f4] sm:$0xf]
      %v1507 = vld [vmem:[%s255 + $0x12f8] sm:$0xf]
      %v1508 = vld [vmem:[%s255 + $0x12fc] sm:$0xf]
      %v1509 = vld [vmem:[%s255 + $0x1300] sm:$0xf]
      %v1510 = vld [vmem:[%s255 + $0x1304] sm:$0xf]
      %v1511 = vld [vmem:[%s255 + $0x1308] sm:$0xf]
      %v1512 = vld [vmem:[%s255 + $0x130c] sm:$0xf]
      %v1513 = vld [vmem:[%s255 + $0x1310] sm:$0xf]
      %v1514 = vld [vmem:[%s255 + $0x1314] sm:$0xf]
      %v1515 = vld [vmem:[%s255 + $0x1318] sm:$0xf]
      %v1516 = vld [vmem:[%s255 + $0x131c] sm:$0xf]
      %v1517 = vld [vmem:[%s255 + $0x1320] sm:$0xf]
      %v1518 = vld [vmem:[%s255 + $0x1324] sm:$0xf]
      %v1519 = vld [vmem:[%s255 + $0x1328] sm:$0xf]
      %v1520 = vld [vmem:[%s255 + $0x132c] sm:$0xf]
      %v1521 = vld [vmem:[%s255 + $0x1330] sm:$0xf]
      %v1522 = vld [vmem:[%s255 + $0x1334] sm:$0xf]
      %v1523 = vld [vmem:[%s255 + $0x1338] sm:$0xf]
      %v1524 = vld [vmem:[%s255 + $0x133c] sm:$0xf]
      %v1525 = vld [vmem:[%s255 + $0x1340] sm:$0xf]
      %v1526 = vld [vmem:[%s255 + $0x1344] sm:$0xf]
      %v1527 = vld [vmem:[%s255 + $0x1348] sm:$0xf]
      %v1528 = vld [vmem:[%s255 + $0x134c] sm:$0xf]
      %v1529 = vld [vmem:[%s255 + $0x1350] sm:$0xf]
      %v1530 = vld [vmem:[%s255 + $0x1354] sm:$0xf]
      %v1531 = vld [vmem:[%s255 + $0x1358] sm:$0xf]
      %v1532 = vld [vmem:[%s255 + $0x135c] sm:$0xf]
      %v1533 = vld [vmem:[%s255 + $0x1360] sm:$0xf]
      %v1534 = vld [vmem:[%s255 + $0x1364] sm:$0xf]
      %v1535 = vld [vmem:[%s255 + $0x1368] sm:$0xf]
      %v1536 = vld [vmem:[%s255 + $0x136c] sm:$0xf]
      %v1537 = vld [vmem:[%s255 + $0x1370] sm:$0xf]
      %v1538 = vld [vmem:[%s255 + $0x1374] sm:$0xf]
      %v1539 = vld [vmem:[%s255 + $0x1378] sm:$0xf]
      %v1540 = vld [vmem:[%s255 + $0x137c] sm:$0xf]
      %v1541 = vld [vmem:[%s255 + $0x1380] sm:$0xf]
      %v1542 = vld [vmem:[%s255 + $0x1384] sm:$0xf]
      %v1543 = vld [vmem:[%s255 + $0x1388] sm:$0xf]
      %v1544 = vld [vmem:[%s255 + $0x138c] sm:$0xf]
      %v1545 = vld [vmem:[%s255 + $0x1390] sm:$0xf]
      %v1546 = vld [vmem:[%s255 + $0x1394] sm:$0xf]
      %v1547 = vld [vmem:[%s255 + $0x1398] sm:$0xf]
      %v1548 = vld [vmem:[%s255 + $0x139c] sm:$0xf]
      %v1549 = vld [vmem:[%s255 + $0x13a0] sm:$0xf]
      %v1550 = vld [vmem:[%s255 + $0x13a4] sm:$0xf]
      %v1551 = vld [vmem:[%s255 + $0x13a8] sm:$0xf]
      %v1552 = vld [vmem:[%s255 + $0x13ac] sm:$0xf]
      %v1553 = vld [vmem:[%s255 + $0x13b0] sm:$0xf]
      %v1554 = vld [vmem:[%s255 + $0x13b4] sm:$0xf]
      %v1555 = vld [vmem:[%s255 + $0x13b8] sm:$0xf]
      %v1556 = vld [vmem:[%s255 + $0x13bc] sm:$0xf]
      %v1557 = vld [vmem:[%s255 + $0x13c0] sm:$0xf]
      %v1558 = vld [vmem:[%s255 + $0x13c4] sm:$0xf]
      %v1559 = vld [vmem:[%s255 + $0x13c8] sm:$0xf]
      %v1560 = vld [vmem:[%s255 + $0x13cc] sm:$0xf]
      %v1561 = vld [vmem:[%s255 + $0x13d0] sm:$0xf]
      %v1562 = vld [vmem:[%s255 + $0x13d4] sm:$0xf]
      %v1563 = vld [vmem:[%s255 + $0x13d8] sm:$0xf]
      %v1564 = vld [vmem:[%s255 + $0x13dc] sm:$0xf]
      %v1565 = vld [vmem:[%s255 + $0x13e0] sm:$0xf]
      %v1566 = vld [vmem:[%s255 + $0x13e4] sm:$0xf]
      %v1567 = vld [vmem:[%s255 + $0x13e8] sm:$0xf]
      %v1568 = vld [vmem:[%s255 + $0x13ec] sm:$0xf]
      %v1569 = vld [vmem:[%s255 + $0x13f0] sm:$0xf]
      %v1570 = vld [vmem:[%s255 + $0x13f4] sm:$0xf]
      %v1571 = vld [vmem:[%s255 + $0x13f8] sm:$0xf]
      %v1572 = vld [vmem:[%s255 + $0x13fc] sm:$0xf]
      %v1573 = vld [vmem:[%s255 + $0x1400] sm:$0xf]
      %v1574 = vld [vmem:[%s255 + $0x1404] sm:$0xf]
      %v1575 = vld [vmem:[%s255 + $0x1408] sm:$0xf]
      %v1576 = vld [vmem:[%s255 + $0x140c] sm:$0xf]
      %v1577 = vld [vmem:[%s255 + $0x1410] sm:$0xf]
      %v1578 = vld [vmem:[%s255 + $0x1414] sm:$0xf]
      %v1579 = vld [vmem:[%s255 + $0x1418] sm:$0xf]
      %v1580 = vld [vmem:[%s255 + $0x141c] sm:$0xf]
      %v1581 = vld [vmem:[%s255 + $0x1420] sm:$0xf]
      %v1582 = vld [vmem:[%s255 + $0x1424] sm:$0xf]
      %v1583 = vld [vmem:[%s255 + $0x1428] sm:$0xf]
      %v1584 = vld [vmem:[%s255 + $0x142c] sm:$0xf]
      %v1585 = vld [vmem:[%s255 + $0x1430] sm:$0xf]
      %v1586 = vld [vmem:[%s255 + $0x1434] sm:$0xf]
      %v1587 = vld [vmem:[%s255 + $0x1438] sm:$0xf]
      %v1588 = vld [vmem:[%s255 + $0x143c] sm:$0xf]
      %v1589 = vld [vmem:[%s255 + $0x1440] sm:$0xf]
      %v1590 = vld [vmem:[%s255 + $0x1444] sm:$0xf]
      %v1591 = vld [vmem:[%s255 + $0x1448] sm:$0xf]
      %v1592 = vld [vmem:[%s255 + $0x144c] sm:$0xf]
      %v1593 = vld [vmem:[%s255 + $0x1450] sm:$0xf]
      %v1594 = vld [vmem:[%s255 + $0x1454] sm:$0xf]
      %v1595 = vld [vmem:[%s255 + $0x1458] sm:$0xf]
      %v1596 = vld [vmem:[%s255 + $0x145c] sm:$0xf]
      %v1597 = vld [vmem:[%s255 + $0x1460] sm:$0xf]
      %v1598 = vld [vmem:[%s255 + $0x1464] sm:$0xf]
      %v1599 = vld [vmem:[%s255 + $0x1468] sm:$0xf]
      %v1600 = vld [vmem:[%s255 + $0x146c] sm:$0xf]
      %v1601 = vld [vmem:[%s255 + $0x1470] sm:$0xf]
      %v1602 = vld [vmem:[%s255 + $0x1474] sm:$0xf]
      %v1603 = vld [vmem:[%s255 + $0x1478] sm:$0xf]
      %v1604 = vld [vmem:[%s255 + $0x147c] sm:$0xf]
      %v1605 = vld [vmem:[%s255 + $0x1480] sm:$0xf]
      %v1606 = vld [vmem:[%s255 + $0x1484] sm:$0xf]
      %v1607 = vld [vmem:[%s255 + $0x1488] sm:$0xf]
      %v1608 = vld [vmem:[%s255 + $0x148c] sm:$0xf]
      %v1609 = vld [vmem:[%s255 + $0x1490] sm:$0xf]
      %v1610 = vld [vmem:[%s255 + $0x1494] sm:$0xf]
      %v1611 = vld [vmem:[%s255 + $0x1498] sm:$0xf]
      %v1612 = vld [vmem:[%s255 + $0x149c] sm:$0xf]
      %v1613 = vld [vmem:[%s255 + $0x14a0] sm:$0xf]
      %v1614 = vld [vmem:[%s255 + $0x14a4] sm:$0xf]
      %v1615 = vld [vmem:[%s255 + $0x14a8] sm:$0xf]
      %v1616 = vld [vmem:[%s255 + $0x14ac] sm:$0xf]
      %v1617 = vld [vmem:[%s255 + $0x14b0] sm:$0xf]
      %v1618 = vld [vmem:[%s255 + $0x14b4] sm:$0xf]
      %v1619 = vld [vmem:[%s255 + $0x14b8] sm:$0xf]
      %v1620 = vld [vmem:[%s255 + $0x14bc] sm:$0xf]
      %v1621 = vld [vmem:[%s255 + $0x14c0] sm:$0xf]
      %v1622 = vld [vmem:[%s255 + $0x14c4] sm:$0xf]
      %v1623 = vld [vmem:[%s255 + $0x14c8] sm:$0xf]
      %v1624 = vld [vmem:[%s255 + $0x14cc] sm:$0xf]
      %v1625 = vld [vmem:[%s255 + $0x14d0] sm:$0xf]
      %v1626 = vld [vmem:[%s255 + $0x14d4] sm:$0xf]
      %v1627 = vld [vmem:[%s255 + $0x14d8] sm:$0xf]
      %v1628 = vld [vmem:[%s255 + $0x14dc] sm:$0xf]
      %v1629 = vld [vmem:[%s255 + $0x14e0] sm:$0xf]
      %v1630 = vld [vmem:[%s255 + $0x14e4] sm:$0xf]
      %v1631 = vld [vmem:[%s255 + $0x14e8] sm:$0xf]
      %v1632 = vld [vmem:[%s255 + $0x14ec] sm:$0xf]
      %v1633 = vld [vmem:[%s255 + $0x14f0] sm:$0xf]
      %v1634 = vld [vmem:[%s255 + $0x14f4] sm:$0xf]
      %v1635 = vld [vmem:[%s255 + $0x14f8] sm:$0xf]
      %v1636 = vld [vmem:[%s255 + $0x14fc] sm:$0xf]
      %v1637 = vld [vmem:[%s255 + $0x1500] sm:$0xf]
      %v1638 = vld [vmem:[%s255 + $0x1504] sm:$0xf]
      %v1639 = vld [vmem:[%s255 + $0x1508] sm:$0xf]
      %v1640 = vld [vmem:[%s255 + $0x150c] sm:$0xf]
      %v1641 = vld [vmem:[%s255 + $0x1510] sm:$0xf]
      %v1642 = vld [vmem:[%s255 + $0x1514] sm:$0xf]
      %v1643 = vld [vmem:[%s255 + $0x1518] sm:$0xf]
      %v1644 = vld [vmem:[%s255 + $0x151c] sm:$0xf]
      %v1645 = vld [vmem:[%s255 + $0x1520] sm:$0xf]
      %v1646 = vld [vmem:[%s255 + $0x1524] sm:$0xf]
      %v1647 = vld [vmem:[%s255 + $0x1528] sm:$0xf]
      %v1648 = vld [vmem:[%s255 + $0x152c] sm:$0xf]
      %v1649 = vld [vmem:[%s255 + $0x1530] sm:$0xf]
      %v1650 = vld [vmem:[%s255 + $0x1534] sm:$0xf]
      %v1651 = vld [vmem:[%s255 + $0x1538] sm:$0xf]
      %v1652 = vld [vmem:[%s255 + $0x153c] sm:$0xf]
      %v1653 = vld [vmem:[%s255 + $0x1540] sm:$0xf]
      %v1654 = vld [vmem:[%s255 + $0x1544] sm:$0xf]
      %v1655 = vld [vmem:[%s255 + $0x1548] sm:$0xf]
      %v1656 = vld [vmem:[%s255 + $0x154c] sm:$0xf]
      %v1657 = vld [vmem:[%s255 + $0x1550] sm:$0xf]
      %v1658 = vld [vmem:[%s255 + $0x1554] sm:$0xf]
      %v1659 = vld [vmem:[%s255 + $0x1558] sm:$0xf]
      %v1660 = vld [vmem:[%s255 + $0x155c] sm:$0xf]
      %v1661 = vld [vmem:[%s255 + $0x1560] sm:$0xf]
      %v1662 = vld [vmem:[%s255 + $0x1564] sm:$0xf]
      %v1663 = vld [vmem:[%s255 + $0x1568] sm:$0xf]
      %v1664 = vld [vmem:[%s255 + $0x156c] sm:$0xf]
      %v1665 = vld [vmem:[%s255 + $0x1570] sm:$0xf]
      %v1666 = vld [vmem:[%s255 + $0x1574] sm:$0xf]
      %v1667 = vld [vmem:[%s255 + $0x1578] sm:$0xf]
      %v1668 = vld [vmem:[%s255 + $0x157c] sm:$0xf]
      %v1669 = vld [vmem:[%s255 + $0x1580] sm:$0xf]
      %v1670 = vld [vmem:[%s255 + $0x1584] sm:$0xf]
      %v1671 = vld [vmem:[%s255 + $0x1588] sm:$0xf]
      %v1672 = vld [vmem:[%s255 + $0x158c] sm:$0xf]
      %v1673 = vld [vmem:[%s255 + $0x1590] sm:$0xf]
      %v1674 = vld [vmem:[%s255 + $0x1594] sm:$0xf]
      %v1675 = vld [vmem:[%s255 + $0x1598] sm:$0xf]
      %v1676 = vld [vmem:[%s255 + $0x159c] sm:$0xf]
      %v1677 = vld [vmem:[%s255 + $0x15a0] sm:$0xf]
      %v1678 = vld [vmem:[%s255 + $0x15a4] sm:$0xf]
      %v1679 = vld [vmem:[%s255 + $0x15a8] sm:$0xf]
      %v1680 = vld [vmem:[%s255 + $0x15ac] sm:$0xf]
      %v1681 = vld [vmem:[%s255 + $0x15b0] sm:$0xf]
      %v1682 = vld [vmem:[%s255 + $0x15b4] sm:$0xf]
      %v1683 = vld [vmem:[%s255 + $0x15b8] sm:$0xf]
      %v1684 = vld [vmem:[%s255 + $0x15bc] sm:$0xf]
      %v1685 = vld [vmem:[%s255 + $0x15c0] sm:$0xf]
      %v1686 = vld [vmem:[%s255 + $0x15c4] sm:$0xf]
      %v1687 = vld [vmem:[%s255 + $0x15c8] sm:$0xf]
      %v1688 = vld [vmem:[%s255 + $0x15cc] sm:$0xf]
      %v1689 = vld [vmem:[%s255 + $0x15d0] sm:$0xf]
      %v1690 = vld [vmem:[%s255 + $0x15d4] sm:$0xf]
      %v1691 = vld [vmem:[%s255 + $0x15d8] sm:$0xf]
      %v1692 = vld [vmem:[%s255 + $0x15dc] sm:$0xf]
      %v1693 = vld [vmem:[%s255 + $0x15e0] sm:$0xf]
      %v1694 = vld [vmem:[%s255 + $0x15e4] sm:$0xf]
      %v1695 = vld [vmem:[%s255 + $0x15e8] sm:$0xf]
      %v1696 = vld [vmem:[%s255 + $0x15ec] sm:$0xf]
      %v1697 = vld [vmem:[%s255 + $0x15f0] sm:$0xf]
      %v1698 = vld [vmem:[%s255 + $0x15f4] sm:$0xf]
      %v1699 = vld [vmem:[%s255 + $0x15f8] sm:$0xf]
      %v1700 = vld [vmem:[%s255 + $0x15fc] sm:$0xf]
      %v1701 = vld [vmem:[%s255 + $0x1600] sm:$0xf]
      %v1702 = vld [vmem:[%s255 + $0x1604] sm:$0xf]
      %v1703 = vld [vmem:[%s255 + $0x1608] sm:$0xf]
      %v1704 = vld [vmem:[%s255 + $0x160c] sm:$0xf]
      %v1705 = vld [vmem:[%s255 + $0x1610] sm:$0xf]
      %v1706 = vld [vmem:[%s255 + $0x1614] sm:$0xf]
      %v1707 = vld [vmem:[%s255 + $0x1618] sm:$0xf]
      %v1708 = vld [vmem:[%s255 + $0x161c] sm:$0xf]
      %v1709 = vld [vmem:[%s255 + $0x1620] sm:$0xf]
      %v1710 = vld [vmem:[%s255 + $0x1624] sm:$0xf]
      %v1711 = vld [vmem:[%s255 + $0x1628] sm:$0xf]
      %v1712 = vld [vmem:[%s255 + $0x162c] sm:$0xf]
      %v1713 = vld [vmem:[%s255 + $0x1630] sm:$0xf]
      %v1714 = vld [vmem:[%s255 + $0x1634] sm:$0xf]
      %v1715 = vld [vmem:[%s255 + $0x1638] sm:$0xf]
      %v1716 = vld [vmem:[%s255 + $0x163c] sm:$0xf]
      %v1717 = vld [vmem:[%s255 + $0x1640] sm:$0xf]
      %v1718 = vld [vmem:[%s255 + $0x1644] sm:$0xf]
      %v1719 = vld [vmem:[%s255 + $0x1648] sm:$0xf]
      %v1720 = vld [vmem:[%s255 + $0x164c] sm:$0xf]
      %v1721 = vld [vmem:[%s255 + $0x1650] sm:$0xf]
      %v1722 = vld [vmem:[%s255 + $0x1654] sm:$0xf]
      %v1723 = vld [vmem:[%s255 + $0x1658] sm:$0xf]
      %v1724 = vld [vmem:[%s255 + $0x165c] sm:$0xf]
      %v1725 = vld [vmem:[%s255 + $0x1660] sm:$0xf]
      %v1726 = vld [vmem:[%s255 + $0x1664] sm:$0xf]
      %v1727 = vld [vmem:[%s255 + $0x1668] sm:$0xf]
      %v1728 = vld [vmem:[%s255 + $0x166c] sm:$0xf]
      %v1729 = vld [vmem:[%s255 + $0x1670] sm:$0xf]
      %v1730 = vld [vmem:[%s255 + $0x1674] sm:$0xf]
      %v1731 = vld [vmem:[%s255 + $0x1678] sm:$0xf]
      %v1732 = vld [vmem:[%s255 + $0x167c] sm:$0xf]
      %v1733 = vld [vmem:[%s255 + $0x1680] sm:$0xf]
      %v1734 = vld [vmem:[%s255 + $0x1684] sm:$0xf]
      %v1735 = vld [vmem:[%s255 + $0x1688] sm:$0xf]
      %v1736 = vld [vmem:[%s255 + $0x168c] sm:$0xf]
      %v1737 = vld [vmem:[%s255 + $0x1690] sm:$0xf]
      %v1738 = vld [vmem:[%s255 + $0x1694] sm:$0xf]
      %v1739 = vld [vmem:[%s255 + $0x1698] sm:$0xf]
      %v1740 = vld [vmem:[%s255 + $0x169c] sm:$0xf]
      %v1741 = vld [vmem:[%s255 + $0x16a0] sm:$0xf]
      %v1742 = vld [vmem:[%s255 + $0x16a4] sm:$0xf]
      %v1743 = vld [vmem:[%s255 + $0x16a8] sm:$0xf]
      %v1744 = vld [vmem:[%s255 + $0x16ac] sm:$0xf]
      %v1745 = vld [vmem:[%s255 + $0x16b0] sm:$0xf]
      %v1746 = vld [vmem:[%s255 + $0x16b4] sm:$0xf]
      %v1747 = vld [vmem:[%s255 + $0x16b8] sm:$0xf]
      %v1748 = vld [vmem:[%s255 + $0x16bc] sm:$0xf]
      %v1749 = vld [vmem:[%s255 + $0x16c0] sm:$0xf]
      %v1750 = vld [vmem:[%s255 + $0x16c4] sm:$0xf]
      %v1751 = vld [vmem:[%s255 + $0x16c8] sm:$0xf]
      %v1752 = vld [vmem:[%s255 + $0x16cc] sm:$0xf]
      %v1753 = vld [vmem:[%s255 + $0x16d0] sm:$0xf]
      %v1754 = vld [vmem:[%s255 + $0x16d4] sm:$0xf]
      %v1755 = vld [vmem:[%s255 + $0x16d8] sm:$0xf]
      %v1756 = vld [vmem:[%s255 + $0x16dc] sm:$0xf]
      %v1757 = vld [vmem:[%s255 + $0x16e0] sm:$0xf]
      %v1758 = vld [vmem:[%s255 + $0x16e4] sm:$0xf]
      %v1759 = vld [vmem:[%s255 + $0x16e8] sm:$0xf]
      %v1760 = vld [vmem:[%s255 + $0x16ec] sm:$0xf]
      %v1761 = vld [vmem:[%s255 + $0x16f0] sm:$0xf]
      %v1762 = vld [vmem:[%s255 + $0x16f4] sm:$0xf]
      %v1763 = vld [vmem:[%s255 + $0x16f8] sm:$0xf]
      %v1764 = vld [vmem:[%s255 + $0x16fc] sm:$0xf]
      %v1765 = vld [vmem:[%s255 + $0x1700] sm:$0xf]
      %v1766 = vld [vmem:[%s255 + $0x1704] sm:$0xf]
      %v1767 = vld [vmem:[%s255 + $0x1708] sm:$0xf]
      %v1768 = vld [vmem:[%s255 + $0x170c] sm:$0xf]
      %v1769 = vld [vmem:[%s255 + $0x1710] sm:$0xf]
      %v1770 = vld [vmem:[%s255 + $0x1714] sm:$0xf]
      %v1771 = vld [vmem:[%s255 + $0x1718] sm:$0xf]
      %v1772 = vld [vmem:[%s255 + $0x171c] sm:$0xf]
      %v1773 = vld [vmem:[%s255 + $0x1720] sm:$0xf]
      %v1774 = vld [vmem:[%s255 + $0x1724] sm:$0xf]
      %v1775 = vld [vmem:[%s255 + $0x1728] sm:$0xf]
      %v1776 = vld [vmem:[%s255 + $0x172c] sm:$0xf]
      %v1777 = vld [vmem:[%s255 + $0x1730] sm:$0xf]
      %v1778 = vld [vmem:[%s255 + $0x1734] sm:$0xf]
      %v1779 = vld [vmem:[%s255 + $0x1738] sm:$0xf]
      %v1780 = vld [vmem:[%s255 + $0x173c] sm:$0xf]
      %v1781 = vld [vmem:[%s255 + $0x1740] sm:$0xf]
      %v1782 = vld [vmem:[%s255 + $0x1744] sm:$0xf]
      %v1783 = vld [vmem:[%s255 + $0x1748] sm:$0xf]
      %v1784 = vld [vmem:[%s255 + $0x174c] sm:$0xf]
      %v1785 = vld [vmem:[%s255 + $0x1750] sm:$0xf]
      %v1786 = vld [vmem:[%s255 + $0x1754] sm:$0xf]
      %v1787 = vld [vmem:[%s255 + $0x1758] sm:$0xf]
      %v1788 = vld [vmem:[%s255 + $0x175c] sm:$0xf]
      %v1789 = vld [vmem:[%s255 + $0x1760] sm:$0xf]
      %v1790 = vld [vmem:[%s255 + $0x1764] sm:$0xf]
      %v1791 = vld [vmem:[%s255 + $0x1768] sm:$0xf]
      %v1792 = vld [vmem:[%s255 + $0x176c] sm:$0xf]
      %v1793 = vld [vmem:[%s255 + $0x1770] sm:$0xf]
      %v1794 = vld [vmem:[%s255 + $0x1774] sm:$0xf]
      %v1795 = vld [vmem:[%s255 + $0x1778] sm:$0xf]
      %v1796 = vld [vmem:[%s255 + $0x177c] sm:$0xf]
      %v1797 = vld [vmem:[%s255 + $0x1780] sm:$0xf]
      %v1798 = vld [vmem:[%s255 + $0x1784] sm:$0xf]
      %v1799 = vld [vmem:[%s255 + $0x1788] sm:$0xf]
      %v1800 = vld [vmem:[%s255 + $0x178c] sm:$0xf]
      %v1801 = vld [vmem:[%s255 + $0x1790] sm:$0xf]
      %v1802 = vld [vmem:[%s255 + $0x1794] sm:$0xf]
      %v1803 = vld [vmem:[%s255 + $0x1798] sm:$0xf]
      %v1804 = vld [vmem:[%s255 + $0x179c] sm:$0xf]
      %v1805 = vld [vmem:[%s255 + $0x17a0] sm:$0xf]
      %v1806 = vld [vmem:[%s255 + $0x17a4] sm:$0xf]
      %v1807 = vld [vmem:[%s255 + $0x17a8] sm:$0xf]
      %v1808 = vld [vmem:[%s255 + $0x17ac] sm:$0xf]
      %v1809 = vld [vmem:[%s255 + $0x17b0] sm:$0xf]
      %v1810 = vld [vmem:[%s255 + $0x17b4] sm:$0xf]
      %v1811 = vld [vmem:[%s255 + $0x17b8] sm:$0xf]
      %v1812 = vld [vmem:[%s255 + $0x17bc] sm:$0xf]
      %v1813 = vld [vmem:[%s255 + $0x17c0] sm:$0xf]
      %v1814 = vld [vmem:[%s255 + $0x17c4] sm:$0xf]
      %v1815 = vld [vmem:[%s255 + $0x17c8] sm:$0xf]
      %v1816 = vld [vmem:[%s255 + $0x17cc] sm:$0xf]
      %v1817 = vld [vmem:[%s255 + $0x17d0] sm:$0xf]
      %v1818 = vld [vmem:[%s255 + $0x17d4] sm:$0xf]
      %v1819 = vld [vmem:[%s255 + $0x17d8] sm:$0xf]
      %v1820 = vld [vmem:[%s255 + $0x17dc] sm:$0xf]
      %v1821 = vld [vmem:[%s255 + $0x17e0] sm:$0xf]
      %v1822 = vld [vmem:[%s255 + $0x17e4] sm:$0xf]
      %v1823 = vld [vmem:[%s255 + $0x17e8] sm:$0xf]
      %v1824 = vld [vmem:[%s255 + $0x17ec] sm:$0xf]
      %v1825 = vld [vmem:[%s255 + $0x17f0] sm:$0xf]
      %v1826 = vld [vmem:[%s255 + $0x17f4] sm:$0xf]
      %v1827 = vld [vmem:[%s255 + $0x17f8] sm:$0xf]
      %v1828 = vld [vmem:[%s255 + $0x17fc] sm:$0xf]
      %v1829 = vld [vmem:[%s255 + $0x1800] sm:$0xf]
      %v1830 = vld [vmem:[%s255 + $0x1804] sm:$0xf]
      %v1831 = vld [vmem:[%s255 + $0x1808] sm:$0xf]
      %v1832 = vld [vmem:[%s255 + $0x180c] sm:$0xf]
      %v1833 = vld [vmem:[%s255 + $0x1810] sm:$0xf]
      %v1834 = vld [vmem:[%s255 + $0x1814] sm:$0xf]
      %v1835 = vld [vmem:[%s255 + $0x1818] sm:$0xf]
      %v1836 = vld [vmem:[%s255 + $0x181c] sm:$0xf]
      %v1837 = vld [vmem:[%s255 + $0x1820] sm:$0xf]
      %v1838 = vld [vmem:[%s255 + $0x1824] sm:$0xf]
      %v1839 = vld [vmem:[%s255 + $0x1828] sm:$0xf]
      %v1840 = vld [vmem:[%s255 + $0x182c] sm:$0xf]
      %v1841 = vld [vmem:[%s255 + $0x1830] sm:$0xf]
      %v1842 = vld [vmem:[%s255 + $0x1834] sm:$0xf]
      %v1843 = vld [vmem:[%s255 + $0x1838] sm:$0xf]
      %v1844 = vld [vmem:[%s255 + $0x183c] sm:$0xf]
      %v1845 = vld [vmem:[%s255 + $0x1840] sm:$0xf]
      %v1846 = vld [vmem:[%s255 + $0x1844] sm:$0xf]
      %v1847 = vld [vmem:[%s255 + $0x1848] sm:$0xf]
      %v1848 = vld [vmem:[%s255 + $0x184c] sm:$0xf]
      %v1849 = vld [vmem:[%s255 + $0x1850] sm:$0xf]
      %v1850 = vld [vmem:[%s255 + $0x1854] sm:$0xf]
      %v1851 = vld [vmem:[%s255 + $0x1858] sm:$0xf]
      %v1852 = vld [vmem:[%s255 + $0x185c] sm:$0xf]
      %v1853 = vld [vmem:[%s255 + $0x1860] sm:$0xf]
      %v1854 = vld [vmem:[%s255 + $0x1864] sm:$0xf]
      %v1855 = vld [vmem:[%s255 + $0x1868] sm:$0xf]
      %v1856 = vld [vmem:[%s255 + $0x186c] sm:$0xf]
      %v1857 = vld [vmem:[%s255 + $0x1870] sm:$0xf]
      %v1858 = vld [vmem:[%s255 + $0x1874] sm:$0xf]
      %v1859 = vld [vmem:[%s255 + $0x1878] sm:$0xf]
      %v1860 = vld [vmem:[%s255 + $0x187c] sm:$0xf]
      %v1861 = vld [vmem:[%s255 + $0x1880] sm:$0xf]
      %v1862 = vld [vmem:[%s255 + $0x1884] sm:$0xf]
      %v1863 = vld [vmem:[%s255 + $0x1888] sm:$0xf]
      %v1864 = vld [vmem:[%s255 + $0x188c] sm:$0xf]
      %v1865 = vld [vmem:[%s255 + $0x1890] sm:$0xf]
      %v1866 = vld [vmem:[%s255 + $0x1894] sm:$0xf]
      %v1867 = vld [vmem:[%s255 + $0x1898] sm:$0xf]
      %v1868 = vld [vmem:[%s255 + $0x189c] sm:$0xf]
      %v1869 = vld [vmem:[%s255 + $0x18a0] sm:$0xf]
      %v1870 = vld [vmem:[%s255 + $0x18a4] sm:$0xf]
      %v1871 = vld [vmem:[%s255 + $0x18a8] sm:$0xf]
      %v1872 = vld [vmem:[%s255 + $0x18ac] sm:$0xf]
      %v1873 = vld [vmem:[%s255 + $0x18b0] sm:$0xf]
      %v1874 = vld [vmem:[%s255 + $0x18b4] sm:$0xf]
      %v1875 = vld [vmem:[%s255 + $0x18b8] sm:$0xf]
      %v1876 = vld [vmem:[%s255 + $0x18bc] sm:$0xf]
      %v1877 = vld [vmem:[%s255 + $0x18c0] sm:$0xf]
      %v1878 = vld [vmem:[%s255 + $0x18c4] sm:$0xf]
      %v1879 = vld [vmem:[%s255 + $0x18c8] sm:$0xf]
      %v1880 = vld [vmem:[%s255 + $0x18cc] sm:$0xf]
      %v1881 = vld [vmem:[%s255 + $0x18d0] sm:$0xf]
      %v1882 = vld [vmem:[%s255 + $0x18d4] sm:$0xf]
      %v1883 = vld [vmem:[%s255 + $0x18d8] sm:$0xf]
      %v1884 = vld [vmem:[%s255 + $0x18dc] sm:$0xf]
      %v1885 = vld [vmem:[%s255 + $0x18e0] sm:$0xf]
      %v1886 = vld [vmem:[%s255 + $0x18e4] sm:$0xf]
      %v1887 = vld [vmem:[%s255 + $0x18e8] sm:$0xf]
      %v1888 = vld [vmem:[%s255 + $0x18ec] sm:$0xf]
      %v1889 = vld [vmem:[%s255 + $0x18f0] sm:$0xf]
      %v1890 = vld [vmem:[%s255 + $0x18f4] sm:$0xf]
      %v1891 = vld [vmem:[%s255 + $0x18f8] sm:$0xf]
      %v1892 = vld [vmem:[%s255 + $0x18fc] sm:$0xf]
      %v1893 = vld [vmem:[%s255 + $0x1900] sm:$0xf]
      %v1894 = vld [vmem:[%s255 + $0x1904] sm:$0xf]
      %v1895 = vld [vmem:[%s255 + $0x1908] sm:$0xf]
      %v1896 = vld [vmem:[%s255 + $0x190c] sm:$0xf]
      %v1897 = vld [vmem:[%s255 + $0x1910] sm:$0xf]
      %v1898 = vld [vmem:[%s255 + $0x1914] sm:$0xf]
      %v1899 = vld [vmem:[%s255 + $0x1918] sm:$0xf]
      %v1900 = vld [vmem:[%s255 + $0x191c] sm:$0xf]
      %v1901 = vld [vmem:[%s255 + $0x1920] sm:$0xf]
      %v1902 = vld [vmem:[%s255 + $0x1924] sm:$0xf]
      %v1903 = vld [vmem:[%s255 + $0x1928] sm:$0xf]
      %v1904 = vld [vmem:[%s255 + $0x192c] sm:$0xf]
      %v1905 = vld [vmem:[%s255 + $0x1930] sm:$0xf]
      %v1906 = vld [vmem:[%s255 + $0x1934] sm:$0xf]
      %v1907 = vld [vmem:[%s255 + $0x1938] sm:$0xf]
      %v1908 = vld [vmem:[%s255 + $0x193c] sm:$0xf]
      %v1909 = vld [vmem:[%s255 + $0x1940] sm:$0xf]
      %v1910 = vld [vmem:[%s255 + $0x1944] sm:$0xf]
      %v1911 = vld [vmem:[%s255 + $0x1948] sm:$0xf]
      %v1912 = vld [vmem:[%s255 + $0x194c] sm:$0xf]
      %v1913 = vld [vmem:[%s255 + $0x1950] sm:$0xf]
      %v1914 = vld [vmem:[%s255 + $0x1954] sm:$0xf]
      %v1915 = vld [vmem:[%s255 + $0x1958] sm:$0xf]
      %v1916 = vld [vmem:[%s255 + $0x195c] sm:$0xf]
      %v1917 = vld [vmem:[%s255 + $0x1960] sm:$0xf]
      %v1918 = vld [vmem:[%s255 + $0x1964] sm:$0xf]
      %v1919 = vld [vmem:[%s255 + $0x1968] sm:$0xf]
      %v1920 = vld [vmem:[%s255 + $0x196c] sm:$0xf]
      %v1921 = vld [vmem:[%s255 + $0x1970] sm:$0xf]
      %v1922 = vld [vmem:[%s255 + $0x1974] sm:$0xf]
      %v1923 = vld [vmem:[%s255 + $0x1978] sm:$0xf]
      %v1924 = vld [vmem:[%s255 + $0x197c] sm:$0xf]
      %v1925 = vld [vmem:[%s255 + $0x1980] sm:$0xf]
      %v1926 = vld [vmem:[%s255 + $0x1984] sm:$0xf]
      %v1927 = vld [vmem:[%s255 + $0x1988] sm:$0xf]
      %v1928 = vld [vmem:[%s255 + $0x198c] sm:$0xf]
      %v1929 = vld [vmem:[%s255 + $0x1990] sm:$0xf]
      %v1930 = vld [vmem:[%s255 + $0x1994] sm:$0xf]
      %v1931 = vld [vmem:[%s255 + $0x1998] sm:$0xf]
      %v1932 = vld [vmem:[%s255 + $0x199c] sm:$0xf]
      %v1933 = vld [vmem:[%s255 + $0x19a0] sm:$0xf]
      %v1934 = vld [vmem:[%s255 + $0x19a4] sm:$0xf]
      %v1935 = vld [vmem:[%s255 + $0x19a8] sm:$0xf]
      %v1936 = vld [vmem:[%s255 + $0x19ac] sm:$0xf]
      %v1937 = vld [vmem:[%s255 + $0x19b0] sm:$0xf]
      %v1938 = vld [vmem:[%s255 + $0x19b4] sm:$0xf]
      %v1939 = vld [vmem:[%s255 + $0x19b8] sm:$0xf]
      %v1940 = vld [vmem:[%s255 + $0x19bc] sm:$0xf]
      %v1941 = vld [vmem:[%s255 + $0x19c0] sm:$0xf]
      %v1942 = vld [vmem:[%s255 + $0x19c4] sm:$0xf]
      %v1943 = vld [vmem:[%s255 + $0x19c8] sm:$0xf]
      %v1944 = vld [vmem:[%s255 + $0x19cc] sm:$0xf]
      %v1945 = vld [vmem:[%s255 + $0x19d0] sm:$0xf]
      %v1946 = vld [vmem:[%s255 + $0x19d4] sm:$0xf]
      %v1947 = vld [vmem:[%s255 + $0x19d8] sm:$0xf]
      %v1948 = vld [vmem:[%s255 + $0x19dc] sm:$0xf]
      %v1949 = vld [vmem:[%s255 + $0x19e0] sm:$0xf]
      %v1950 = vld [vmem:[%s255 + $0x19e4] sm:$0xf]
      %v1951 = vld [vmem:[%s255 + $0x19e8] sm:$0xf]
      %v1952 = vld [vmem:[%s255 + $0x19ec] sm:$0xf]
      %v1953 = vld [vmem:[%s255 + $0x19f0] sm:$0xf]
      %v1954 = vld [vmem:[%s255 + $0x19f4] sm:$0xf]
      %v1955 = vld [vmem:[%s255 + $0x19f8] sm:$0xf]
      %v1956 = vld [vmem:[%s255 + $0x19fc] sm:$0xf]
      %v1957 = vld [vmem:[%s255 + $0x1a00] sm:$0xf]
      %v1958 = vld [vmem:[%s255 + $0x1a04] sm:$0xf]
      %v1959 = vld [vmem:[%s255 + $0x1a08] sm:$0xf]
      %v1960 = vld [vmem:[%s255 + $0x1a0c] sm:$0xf]
      %v1961 = vld [vmem:[%s255 + $0x1a10] sm:$0xf]
      %v1962 = vld [vmem:[%s255 + $0x1a14] sm:$0xf]
      %v1963 = vld [vmem:[%s255 + $0x1a18] sm:$0xf]
      %v1964 = vld [vmem:[%s255 + $0x1a1c] sm:$0xf]
      %v1965 = vld [vmem:[%s255 + $0x1a20] sm:$0xf]
      %v1966 = vld [vmem:[%s255 + $0x1a24] sm:$0xf]
      %v1967 = vld [vmem:[%s255 + $0x1a28] sm:$0xf]
      %v1968 = vld [vmem:[%s255 + $0x1a2c] sm:$0xf]
      %v1969 = vld [vmem:[%s255 + $0x1a30] sm:$0xf]
      %v1970 = vld [vmem:[%s255 + $0x1a34] sm:$0xf]
      %v1971 = vld [vmem:[%s255 + $0x1a38] sm:$0xf]
      %v1972 = vld [vmem:[%s255 + $0x1a3c] sm:$0xf]
      %v1973 = vld [vmem:[%s255 + $0x1a40] sm:$0xf]
      %v1974 = vld [vmem:[%s255 + $0x1a44] sm:$0xf]
      %v1975 = vld [vmem:[%s255 + $0x1a48] sm:$0xf]
      %v1976 = vld [vmem:[%s255 + $0x1a4c] sm:$0xf]
      %v1977 = vld [vmem:[%s255 + $0x1a50] sm:$0xf]
      %v1978 = vld [vmem:[%s255 + $0x1a54] sm:$0xf]
      %v1979 = vld [vmem:[%s255 + $0x1a58] sm:$0xf]
      %v1980 = vld [vmem:[%s255 + $0x1a5c] sm:$0xf]
      %v1981 = vld [vmem:[%s255 + $0x1a60] sm:$0xf]
      %v1982 = vld [vmem:[%s255 + $0x1a64] sm:$0xf]
      %v1983 = vld [vmem:[%s255 + $0x1a68] sm:$0xf]
      %v1984 = vld [vmem:[%s255 + $0x1a6c] sm:$0xf]
      %v1985 = vld [vmem:[%s255 + $0x1a70] sm:$0xf]
      %v1986 = vld [vmem:[%s255 + $0x1a74] sm:$0xf]
      %v1987 = vld [vmem:[%s255 + $0x1a78] sm:$0xf]
      %v1988 = vld [vmem:[%s255 + $0x1a7c] sm:$0xf]
      %v1989 = vld [vmem:[%s255 + $0x1a80] sm:$0xf]
      %v1990 = vld [vmem:[%s255 + $0x1a84] sm:$0xf]
      %v1991 = vld [vmem:[%s255 + $0x1a88] sm:$0xf]
      %v1992 = vld [vmem:[%s255 + $0x1a8c] sm:$0xf]
      %v1993 = vld [vmem:[%s255 + $0x1a90] sm:$0xf]
      %v1994 = vld [vmem:[%s255 + $0x1a94] sm:$0xf]
      %v1995 = vld [vmem:[%s255 + $0x1a98] sm:$0xf]
      %v1996 = vld [vmem:[%s255 + $0x1a9c] sm:$0xf]
      %v1997 = vld [vmem:[%s255 + $0x1aa0] sm:$0xf]
      %v1998 = vld [vmem:[%s255 + $0x1aa4] sm:$0xf]
      %v1999 = vld [vmem:[%s255 + $0x1aa8] sm:$0xf]
      %v2000 = vld [vmem:[%s255 + $0x1aac] sm:$0xf]
      %v2001 = vld [vmem:[%s255 + $0x1ab0] sm:$0xf]
      %v2002 = vld [vmem:[%s255 + $0x1ab4] sm:$0xf]
      %v2003 = vld [vmem:[%s255 + $0x1ab8] sm:$0xf]
      %v2004 = vld [vmem:[%s255 + $0x1abc] sm:$0xf]
      %v2005 = vld [vmem:[%s255 + $0x1ac0] sm:$0xf]
      %v2006 = vld [vmem:[%s255 + $0x1ac4] sm:$0xf]
      %v2007 = vld [vmem:[%s255 + $0x1ac8] sm:$0xf]
      %v2008 = vld [vmem:[%s255 + $0x1acc] sm:$0xf]
      %v2009 = vld [vmem:[%s255 + $0x1ad0] sm:$0xf]
      %v2010 = vld [vmem:[%s255 + $0x1ad4] sm:$0xf]
      %v2011 = vld [vmem:[%s255 + $0x1ad8] sm:$0xf]
      %v2012 = vld [vmem:[%s255 + $0x1adc] sm:$0xf]
      %v2013 = vld [vmem:[%s255 + $0x1ae0] sm:$0xf]
      %v2014 = vld [vmem:[%s255 + $0x1ae4] sm:$0xf]
      %v2015 = vld [vmem:[%s255 + $0x1ae8] sm:$0xf]
      %v2016 = vld [vmem:[%s255 + $0x1aec] sm:$0xf]
      %v2017 = vld [vmem:[%s255 + $0x1af0] sm:$0xf]
      %v2018 = vld [vmem:[%s255 + $0x1af4] sm:$0xf]
      %v2019 = vld [vmem:[%s255 + $0x1af8] sm:$0xf]
      %v2020 = vld [vmem:[%s255 + $0x1afc] sm:$0xf]
      %v2021 = vld [vmem:[%s255 + $0x1b00] sm:$0xf]
      %v2022 = vld [vmem:[%s255 + $0x1b04] sm:$0xf]
      %v2023 = vld [vmem:[%s255 + $0x1b08] sm:$0xf]
      %v2024 = vld [vmem:[%s255 + $0x1b0c] sm:$0xf]
      %v2025 = vld [vmem:[%s255 + $0x1b10] sm:$0xf]
      %v2026 = vld [vmem:[%s255 + $0x1b14] sm:$0xf]
      %v2027 = vld [vmem:[%s255 + $0x1b18] sm:$0xf]
      %v2028 = vld [vmem:[%s255 + $0x1b1c] sm:$0xf]
      %v2029 = vld [vmem:[%s255 + $0x1b20] sm:$0xf]
      %v2030 = vld [vmem:[%s255 + $0x1b24] sm:$0xf]
      %v2031 = vld [vmem:[%s255 + $0x1b28] sm:$0xf]
      %v2032 = vld [vmem:[%s255 + $0x1b2c] sm:$0xf]
      %v2033 = vld [vmem:[%s255 + $0x1b30] sm:$0xf]
      %v2034 = vld [vmem:[%s255 + $0x1b34] sm:$0xf]
      %v2035 = vld [vmem:[%s255 + $0x1b38] sm:$0xf]
      %v2036 = vld [vmem:[%s255 + $0x1b3c] sm:$0xf]
      %v2037 = vld [vmem:[%s255 + $0x1b40] sm:$0xf]
      %v2038 = vld [vmem:[%s255 + $0x1b44] sm:$0xf]
      %v2039 = vld [vmem:[%s255 + $0x1b48] sm:$0xf]
      %v2040 = vld [vmem:[%s255 + $0x1b4c] sm:$0xf]
      %v2041 = vld [vmem:[%s255 + $0x1b50] sm:$0xf]
      %v2042 = vld [vmem:[%s255 + $0x1b54] sm:$0xf]
      %v2043 = vld [vmem:[%s255 + $0x1b58] sm:$0xf]
      %v2044 = vld [vmem:[%s255 + $0x1b5c] sm:$0xf]
      %v2045 = vld [vmem:[%s255 + $0x1b60] sm:$0xf]
      %v2046 = vld [vmem:[%s255 + $0x1b64] sm:$0xf]
      %v2047 = vld [vmem:[%s255 + $0x1b68] sm:$0xf]
      %v2048 = vld [vmem:[%s255 + $0x1b6c] sm:$0xf]
      %v2049 = vld [vmem:[%s255 + $0x1b70] sm:$0xf]
      %v2050 = vld [vmem:[%s255 + $0x1b74] sm:$0xf]
      %v2051 = vld [vmem:[%s255 + $0x1b78] sm:$0xf]
      %v2052 = vld [vmem:[%s255 + $0x1b7c] sm:$0xf]
      %v2053 = vld [vmem:[%s255 + $0x1b80] sm:$0xf]
      %v2054 = vld [vmem:[%s255 + $0x1b84] sm:$0xf]
      %v2055 = vld [vmem:[%s255 + $0x1b88] sm:$0xf]
      %v2056 = vld [vmem:[%s255 + $0x1b8c] sm:$0xf]
      %v2057 = vld [vmem:[%s255 + $0x1b90] sm:$0xf]
      %v2058 = vld [vmem:[%s255 + $0x1b94] sm:$0xf]
      %v2059 = vld [vmem:[%s255 + $0x1b98] sm:$0xf]
      %v2060 = vld [vmem:[%s255 + $0x1b9c] sm:$0xf]
      %v2061 = vld [vmem:[%s255 + $0x1ba0] sm:$0xf]
      %v2062 = vld [vmem:[%s255 + $0x1ba4] sm:$0xf]
      %v2063 = vld [vmem:[%s255 + $0x1ba8] sm:$0xf]
      %v2064 = vld [vmem:[%s255 + $0x1bac] sm:$0xf]
      %v2065 = vld [vmem:[%s255 + $0x1bb0] sm:$0xf]
      %v2066 = vld [vmem:[%s255 + $0x1bb4] sm:$0xf]
      %v2067 = vld [vmem:[%s255 + $0x1bb8] sm:$0xf]
      %v2068 = vld [vmem:[%s255 + $0x1bbc] sm:$0xf]
      %v2069 = vld [vmem:[%s255 + $0x1bc0] sm:$0xf]
      %v2070 = vld [vmem:[%s255 + $0x1bc4] sm:$0xf]
      %v2071 = vld [vmem:[%s255 + $0x1bc8] sm:$0xf]
      %v2072 = vld [vmem:[%s255 + $0x1bcc] sm:$0xf]
      %v2073 = vld [vmem:[%s255 + $0x1bd0] sm:$0xf]
      %v2074 = vld [vmem:[%s255 + $0x1bd4] sm:$0xf]
      %v2075 = vld [vmem:[%s255 + $0x1bd8] sm:$0xf]
      %v2076 = vld [vmem:[%s255 + $0x1bdc] sm:$0xf]
      %v2077 = vld [vmem:[%s255 + $0x1be0] sm:$0xf]
      %v2078 = vld [vmem:[%s255 + $0x1be4] sm:$0xf]
      %v2079 = vld [vmem:[%s255 + $0x1be8] sm:$0xf]
      %v2080 = vld [vmem:[%s255 + $0x1bec] sm:$0xf]
      %v2081 = vld [vmem:[%s255 + $0x1bf0] sm:$0xf]
      %v2082 = vld [vmem:[%s255 + $0x1bf4] sm:$0xf]
      %v2083 = vld [vmem:[%s255 + $0x1bf8] sm:$0xf]
      %v2084 = vld [vmem:[%s255 + $0x1bfc] sm:$0xf]
      %v2085 = vld [vmem:[%s255 + $0x1c00] sm:$0xf]
      %v2086 = vld [vmem:[%s255 + $0x1c04] sm:$0xf]
      %v2087 = vld [vmem:[%s255 + $0x1c08] sm:$0xf]
      %v2088 = vld [vmem:[%s255 + $0x1c0c] sm:$0xf]
      %v2089 = vld [vmem:[%s255 + $0x1c10] sm:$0xf]
      %v2090 = vld [vmem:[%s255 + $0x1c14] sm:$0xf]
      %v2091 = vld [vmem:[%s255 + $0x1c18] sm:$0xf]
      %v2092 = vld [vmem:[%s255 + $0x1c1c] sm:$0xf]
      %v2093 = vld [vmem:[%s255 + $0x1c20] sm:$0xf]
      %v2094 = vld [vmem:[%s255 + $0x1c24] sm:$0xf]
      %v2095 = vld [vmem:[%s255 + $0x1c28] sm:$0xf]
      %v2096 = vld [vmem:[%s255 + $0x1c2c] sm:$0xf]
      %v2097 = vld [vmem:[%s255 + $0x1c30] sm:$0xf]
      %v2098 = vld [vmem:[%s255 + $0x1c34] sm:$0xf]
      %v2099 = vld [vmem:[%s255 + $0x1c38] sm:$0xf]
      %v2100 = vld [vmem:[%s255 + $0x1c3c] sm:$0xf]
      %v2101 = vld [vmem:[%s255 + $0x1c40] sm:$0xf]
      %v2102 = vld [vmem:[%s255 + $0x1c44] sm:$0xf]
      %v2103 = vld [vmem:[%s255 + $0x1c48] sm:$0xf]
      %v2104 = vld [vmem:[%s255 + $0x1c4c] sm:$0xf]
      %v2105 = vld [vmem:[%s255 + $0x1c50] sm:$0xf]
      %v2106 = vld [vmem:[%s255 + $0x1c54] sm:$0xf]
      %v2107 = vld [vmem:[%s255 + $0x1c58] sm:$0xf]
      %v2108 = vld [vmem:[%s255 + $0x1c5c] sm:$0xf]
      %v2109 = vld [vmem:[%s255 + $0x1c60] sm:$0xf]
      %v2110 = vld [vmem:[%s255 + $0x1c64] sm:$0xf]
      %v2111 = vld [vmem:[%s255 + $0x1c68] sm:$0xf]
      %v2112 = vld [vmem:[%s255 + $0x1c6c] sm:$0xf]
      %v2113 = vld [vmem:[%s255 + $0x1c70] sm:$0xf]
      %v2114 = vld [vmem:[%s255 + $0x1c74] sm:$0xf]
      %v2115 = vld [vmem:[%s255 + $0x1c78] sm:$0xf]
      %v2116 = vld [vmem:[%s255 + $0x1c7c] sm:$0xf]
      %v2117 = vld [vmem:[%s255 + $0x1c80] sm:$0xf]
      %v2118 = vld [vmem:[%s255 + $0x1c84] sm:$0xf]
      %v2119 = vld [vmem:[%s255 + $0x1c88] sm:$0xf]
      %v2120 = vld [vmem:[%s255 + $0x1c8c] sm:$0xf]
      %v2121 = vld [vmem:[%s255 + $0x1c90] sm:$0xf]
      %v2122 = vld [vmem:[%s255 + $0x1c94] sm:$0xf]
      %v2123 = vld [vmem:[%s255 + $0x1c98] sm:$0xf]
      %v2124 = vld [vmem:[%s255 + $0x1c9c] sm:$0xf]
      %v2125 = vld [vmem:[%s255 + $0x1ca0] sm:$0xf]
      %v2126 = vld [vmem:[%s255 + $0x1ca4] sm:$0xf]
      %v2127 = vld [vmem:[%s255 + $0x1ca8] sm:$0xf]
      %v2128 = vld [vmem:[%s255 + $0x1cac] sm:$0xf]
      %v2129 = vld [vmem:[%s255 + $0x1cb0] sm:$0xf]
      %v2130 = vld [vmem:[%s255 + $0x1cb4] sm:$0xf]
      %v2131 = vld [vmem:[%s255 + $0x1cb8] sm:$0xf]
      %v2132 = vld [vmem:[%s255 + $0x1cbc] sm:$0xf]
      %v2133 = vld [vmem:[%s255 + $0x1cc0] sm:$0xf]
      %v2134 = vld [vmem:[%s255 + $0x1cc4] sm:$0xf]
      %v2135 = vld [vmem:[%s255 + $0x1cc8] sm:$0xf]
      %v2136 = vld [vmem:[%s255 + $0x1ccc] sm:$0xf]
      %v2137 = vld [vmem:[%s255 + $0x1cd0] sm:$0xf]
      %v2138 = vld [vmem:[%s255 + $0x1cd4] sm:$0xf]
      %v2139 = vld [vmem:[%s255 + $0x1cd8] sm:$0xf]
      %v2140 = vld [vmem:[%s255 + $0x1cdc] sm:$0xf]
      %v2141 = vld [vmem:[%s255 + $0x1ce0] sm:$0xf]
      %v2142 = vld [vmem:[%s255 + $0x1ce4] sm:$0xf]
      %v2143 = vld [vmem:[%s255 + $0x1ce8] sm:$0xf]
      %v2144 = vld [vmem:[%s255 + $0x1cec] sm:$0xf]
      %v2145 = vld [vmem:[%s255 + $0x1cf0] sm:$0xf]
      %v2146 = vld [vmem:[%s255 + $0x1cf4] sm:$0xf]
      %v2147 = vld [vmem:[%s255 + $0x1cf8] sm:$0xf]
      %v2148 = vld [vmem:[%s255 + $0x1cfc] sm:$0xf]
      %v2149 = vld [vmem:[%s255 + $0x1d00] sm:$0xf]
      %v2150 = vld [vmem:[%s255 + $0x1d04] sm:$0xf]
      %v2151 = vld [vmem:[%s255 + $0x1d08] sm:$0xf]
      %v2152 = vld [vmem:[%s255 + $0x1d0c] sm:$0xf]
      %v2153 = vld [vmem:[%s255 + $0x1d10] sm:$0xf]
      %v2154 = vld [vmem:[%s255 + $0x1d14] sm:$0xf]
      %v2155 = vld [vmem:[%s255 + $0x1d18] sm:$0xf]
      %v2156 = vld [vmem:[%s255 + $0x1d1c] sm:$0xf]
      %v2157 = vld [vmem:[%s255 + $0x1d20] sm:$0xf]
      %v2158 = vld [vmem:[%s255 + $0x1d24] sm:$0xf]
      %v2159 = vld [vmem:[%s255 + $0x1d28] sm:$0xf]
      %v2160 = vld [vmem:[%s255 + $0x1d2c] sm:$0xf]
      %v2161 = vld [vmem:[%s255 + $0x1d30] sm:$0xf]
      %v2162 = vld [vmem:[%s255 + $0x1d34] sm:$0xf]
      %v2163 = vld [vmem:[%s255 + $0x1d38] sm:$0xf]
      %v2164 = vld [vmem:[%s255 + $0x1d3c] sm:$0xf]
      %v2165 = vld [vmem:[%s255 + $0x1d40] sm:$0xf]
      %v2166 = vld [vmem:[%s255 + $0x1d44] sm:$0xf]
      %v2167 = vld [vmem:[%s255 + $0x1d48] sm:$0xf]
      %v2168 = vld [vmem:[%s255 + $0x1d4c] sm:$0xf]
      %v2169 = vld [vmem:[%s255 + $0x1d50] sm:$0xf]
      %v2170 = vld [vmem:[%s255 + $0x1d54] sm:$0xf]
      %v2171 = vld [vmem:[%s255 + $0x1d58] sm:$0xf]
      %v2172 = vld [vmem:[%s255 + $0x1d5c] sm:$0xf]
      %v2173 = vld [vmem:[%s255 + $0x1d60] sm:$0xf]
      %v2174 = vld [vmem:[%s255 + $0x1d64] sm:$0xf]
      %v2175 = vld [vmem:[%s255 + $0x1d68] sm:$0xf]
      %v2176 = vld [vmem:[%s255 + $0x1d6c] sm:$0xf]
      %v2177 = vld [vmem:[%s255 + $0x1d70] sm:$0xf]
      %v2178 = vld [vmem:[%s255 + $0x1d74] sm:$0xf]
      %v2179 = vld [vmem:[%s255 + $0x1d78] sm:$0xf]
      %v2180 = vld [vmem:[%s255 + $0x1d7c] sm:$0xf]
      %v2181 = vld [vmem:[%s255 + $0x1d80] sm:$0xf]
      %v2182 = vld [vmem:[%s255 + $0x1d84] sm:$0xf]
      %v2183 = vld [vmem:[%s255 + $0x1d88] sm:$0xf]
      %v2184 = vld [vmem:[%s255 + $0x1d8c] sm:$0xf]
      %v2185 = vld [vmem:[%s255 + $0x1d90] sm:$0xf]
      %v2186 = vld [vmem:[%s255 + $0x1d94] sm:$0xf]
      %v2187 = vld [vmem:[%s255 + $0x1d98] sm:$0xf]
      %v2188 = vld [vmem:[%s255 + $0x1d9c] sm:$0xf]
      %v2189 = vld [vmem:[%s255 + $0x1da0] sm:$0xf]
      %v2190 = vld [vmem:[%s255 + $0x1da4] sm:$0xf]
      %v2191 = vld [vmem:[%s255 + $0x1da8] sm:$0xf]
      %v2192 = vld [vmem:[%s255 + $0x1dac] sm:$0xf]
      %v2193 = vld [vmem:[%s255 + $0x1db0] sm:$0xf]
      %v2194 = vld [vmem:[%s255 + $0x1db4] sm:$0xf]
      %v2195 = vld [vmem:[%s255 + $0x1db8] sm:$0xf]
      %v2196 = vld [vmem:[%s255 + $0x1dbc] sm:$0xf]
      %v2197 = vld [vmem:[%s255 + $0x1dc0] sm:$0xf]
      %v2198 = vld [vmem:[%s255 + $0x1dc4] sm:$0xf]
      %v2199 = vld [vmem:[%s255 + $0x1dc8] sm:$0xf]
      %v2200 = vld [vmem:[%s255 + $0x1dcc] sm:$0xf]
      %v2201 = vld [vmem:[%s255 + $0x1dd0] sm:$0xf]
      %v2202 = vld [vmem:[%s255 + $0x1dd4] sm:$0xf]
      %v2203 = vld [vmem:[%s255 + $0x1dd8] sm:$0xf]
      %v2204 = vld [vmem:[%s255 + $0x1ddc] sm:$0xf]
      %v2205 = vld [vmem:[%s255 + $0x1de0] sm:$0xf]
      %v2206 = vld [vmem:[%s255 + $0x1de4] sm:$0xf]
      %v2207 = vld [vmem:[%s255 + $0x1de8] sm:$0xf]
      %v2208 = vld [vmem:[%s255 + $0x1dec] sm:$0xf]
      %v2209 = vld [vmem:[%s255 + $0x1df0] sm:$0xf]
      %v2210 = vld [vmem:[%s255 + $0x1df4] sm:$0xf]
      %v2211 = vld [vmem:[%s255 + $0x1df8] sm:$0xf]
      %v2212 = vld [vmem:[%s255 + $0x1dfc] sm:$0xf]
      %v2213 = vld [vmem:[%s255 + $0x1e00] sm:$0xf]
      %v2214 = vld [vmem:[%s255 + $0x1e04] sm:$0xf]
      %v2215 = vld [vmem:[%s255 + $0x1e08] sm:$0xf]
      %v2216 = vld [vmem:[%s255 + $0x1e0c] sm:$0xf]
      %v2217 = vld [vmem:[%s255 + $0x1e10] sm:$0xf]
      %v2218 = vld [vmem:[%s255 + $0x1e14] sm:$0xf]
      %v2219 = vld [vmem:[%s255 + $0x1e18] sm:$0xf]
      %v2220 = vld [vmem:[%s255 + $0x1e1c] sm:$0xf]
      %v2221 = vld [vmem:[%s255 + $0x1e20] sm:$0xf]
      %v2222 = vld [vmem:[%s255 + $0x1e24] sm:$0xf]
      %v2223 = vld [vmem:[%s255 + $0x1e28] sm:$0xf]
      %v2224 = vld [vmem:[%s255 + $0x1e2c] sm:$0xf]
      %v2225 = vld [vmem:[%s255 + $0x1e30] sm:$0xf]
      %v2226 = vld [vmem:[%s255 + $0x1e34] sm:$0xf]
      %v2227 = vld [vmem:[%s255 + $0x1e38] sm:$0xf]
      %v2228 = vld [vmem:[%s255 + $0x1e3c] sm:$0xf]
      %v2229 = vld [vmem:[%s255 + $0x1e40] sm:$0xf]
      %v2230 = vld [vmem:[%s255 + $0x1e44] sm:$0xf]
      %v2231 = vld [vmem:[%s255 + $0x1e48] sm:$0xf]
      %v2232 = vld [vmem:[%s255 + $0x1e4c] sm:$0xf]
      %v2233 = vld [vmem:[%s255 + $0x1e50] sm:$0xf]
      %v2234 = vld [vmem:[%s255 + $0x1e54] sm:$0xf]
      %v2235 = vld [vmem:[%s255 + $0x1e58] sm:$0xf]
      %v2236 = vld [vmem:[%s255 + $0x1e5c] sm:$0xf]
      %v2237 = vld [vmem:[%s255 + $0x1e60] sm:$0xf]
      %v2238 = vld [vmem:[%s255 + $0x1e64] sm:$0xf]
      %v2239 = vld [vmem:[%s255 + $0x1e68] sm:$0xf]
      %v2240 = vld [vmem:[%s255 + $0x1e6c] sm:$0xf]
      %v2241 = vld [vmem:[%s255 + $0x1e70] sm:$0xf]
      %v2242 = vld [vmem:[%s255 + $0x1e74] sm:$0xf]
      %v2243 = vld [vmem:[%s255 + $0x1e78] sm:$0xf]
      %v2244 = vld [vmem:[%s255 + $0x1e7c] sm:$0xf]
      %v2245 = vld [vmem:[%s255 + $0x1e80] sm:$0xf]
      %v2246 = vld [vmem:[%s255 + $0x1e84] sm:$0xf]
      %v2247 = vld [vmem:[%s255 + $0x1e88] sm:$0xf]
      %v2248 = vld [vmem:[%s255 + $0x1e8c] sm:$0xf]
      %v2249 = vld [vmem:[%s255 + $0x1e90] sm:$0xf]
      %v2250 = vld [vmem:[%s255 + $0x1e94] sm:$0xf]
      %v2251 = vld [vmem:[%s255 + $0x1e98] sm:$0xf]
      %v2252 = vld [vmem:[%s255 + $0x1e9c] sm:$0xf]
      %v2253 = vld [vmem:[%s255 + $0x1ea0] sm:$0xf]
      %v2254 = vld [vmem:[%s255 + $0x1ea4] sm:$0xf]
      %v2255 = vld [vmem:[%s255 + $0x1ea8] sm:$0xf]
      %v2256 = vld [vmem:[%s255 + $0x1eac] sm:$0xf]
      %v2257 = vld [vmem:[%s255 + $0x1eb0] sm:$0xf]
      %v2258 = vld [vmem:[%s255 + $0x1eb4] sm:$0xf]
      %v2259 = vld [vmem:[%s255 + $0x1eb8] sm:$0xf]
      %v2260 = vld [vmem:[%s255 + $0x1ebc] sm:$0xf]
      %v2261 = vld [vmem:[%s255 + $0x1ec0] sm:$0xf]
      %v2262 = vld [vmem:[%s255 + $0x1ec4] sm:$0xf]
      %v2263 = vld [vmem:[%s255 + $0x1ec8] sm:$0xf]
      %v2264 = vld [vmem:[%s255 + $0x1ecc] sm:$0xf]
      %v2265 = vld [vmem:[%s255 + $0x1ed0] sm:$0xf]
      %v2266 = vld [vmem:[%s255 + $0x1ed4] sm:$0xf]
      %v2267 = vld [vmem:[%s255 + $0x1ed8] sm:$0xf]
      %v2268 = vld [vmem:[%s255 + $0x1edc] sm:$0xf]
      %v2269 = vld [vmem:[%s255 + $0x1ee0] sm:$0xf]
      %v2270 = vld [vmem:[%s255 + $0x1ee4] sm:$0xf]
      %v2271 = vld [vmem:[%s255 + $0x1ee8] sm:$0xf]
      %v2272 = vld [vmem:[%s255 + $0x1eec] sm:$0xf]
      %v2273 = vld [vmem:[%s255 + $0x1ef0] sm:$0xf]
      %v2274 = vld [vmem:[%s255 + $0x1ef4] sm:$0xf]
      %v2275 = vld [vmem:[%s255 + $0x1ef8] sm:$0xf]
      %v2276 = vld [vmem:[%s255 + $0x1efc] sm:$0xf]
      %v2277 = vld [vmem:[%s255 + $0x1f00] sm:$0xf]
      %v2278 = vld [vmem:[%s255 + $0x1f04] sm:$0xf]
      %v2279 = vld [vmem:[%s255 + $0x1f08] sm:$0xf]
      %v2280 = vld [vmem:[%s255 + $0x1f0c] sm:$0xf]
      %v2281 = vld [vmem:[%s255 + $0x1f10] sm:$0xf]
      %v2282 = vld [vmem:[%s255 + $0x1f14] sm:$0xf]
      %v2283 = vld [vmem:[%s255 + $0x1f18] sm:$0xf]
      %v2284 = vld [vmem:[%s255 + $0x1f1c] sm:$0xf]
      %v2285 = vld [vmem:[%s255 + $0x1f20] sm:$0xf]
      %v2286 = vld [vmem:[%s255 + $0x1f24] sm:$0xf]
      %v2287 = vld [vmem:[%s255 + $0x1f28] sm:$0xf]
      %v2288 = vld [vmem:[%s255 + $0x1f2c] sm:$0xf]
      %v2289 = vld [vmem:[%s255 + $0x1f30] sm:$0xf]
      %v2290 = vld [vmem:[%s255 + $0x1f34] sm:$0xf]
      %v2291 = vld [vmem:[%s255 + $0x1f38] sm:$0xf]
      %v2292 = vld [vmem:[%s255 + $0x1f3c] sm:$0xf]
      %v2293 = vld [vmem:[%s255 + $0x1f40] sm:$0xf]
      %v2294 = vld [vmem:[%s255 + $0x1f44] sm:$0xf]
      %v2295 = vld [vmem:[%s255 + $0x1f48] sm:$0xf]
      %v2296 = vld [vmem:[%s255 + $0x1f4c] sm:$0xf]
      %v2297 = vld [vmem:[%s255 + $0x1f50] sm:$0xf]
      %v2298 = vld [vmem:[%s255 + $0x1f54] sm:$0xf]
      %v2299 = vld [vmem:[%s255 + $0x1f58] sm:$0xf]
      %v2300 = vld [vmem:[%s255 + $0x1f5c] sm:$0xf]
      %v2301 = vld [vmem:[%s255 + $0x1f60] sm:$0xf]
      %v2302 = vld [vmem:[%s255 + $0x1f64] sm:$0xf]
      %v2303 = vld [vmem:[%s255 + $0x1f68] sm:$0xf]
      %v2304 = vld [vmem:[%s255 + $0x1f6c] sm:$0xf]
      %v2305 = vld [vmem:[%s255 + $0x1f70] sm:$0xf]
      %v2306 = vld [vmem:[%s255 + $0x1f74] sm:$0xf]
      %v2307 = vld [vmem:[%s255 + $0x1f78] sm:$0xf]
      %v2308 = vld [vmem:[%s255 + $0x1f7c] sm:$0xf]
      %v2309 = vld [vmem:[%s255 + $0x1f80] sm:$0xf]
      %v2310 = vld [vmem:[%s255 + $0x1f84] sm:$0xf]
      %v2311 = vld [vmem:[%s255 + $0x1f88] sm:$0xf]
      %v2312 = vld [vmem:[%s255 + $0x1f8c] sm:$0xf]
      %v2313 = vld [vmem:[%s255 + $0x1f90] sm:$0xf]
      %v2314 = vld [vmem:[%s255 + $0x1f94] sm:$0xf]
      %v2315 = vld [vmem:[%s255 + $0x1f98] sm:$0xf]
      %v2316 = vld [vmem:[%s255 + $0x1f9c] sm:$0xf]
      %v2317 = vld [vmem:[%s255 + $0x1fa0] sm:$0xf]
      %v2318 = vld [vmem:[%s255 + $0x1fa4] sm:$0xf]
      %v2319 = vld [vmem:[%s255 + $0x1fa8] sm:$0xf]
      %v2320 = vld [vmem:[%s255 + $0x1fac] sm:$0xf]
      %v2321 = vld [vmem:[%s255 + $0x1fb0] sm:$0xf]
      %v2322 = vld [vmem:[%s255 + $0x1fb4] sm:$0xf]
      %v2323 = vld [vmem:[%s255 + $0x1fb8] sm:$0xf]
      %v2324 = vld [vmem:[%s255 + $0x1fbc] sm:$0xf]
      %v2325 = vld [vmem:[%s255 + $0x1fc0] sm:$0xf]
      %v2326 = vld [vmem:[%s255 + $0x1fc4] sm:$0xf]
      %v2327 = vld [vmem:[%s255 + $0x1fc8] sm:$0xf]
      %v2328 = vld [vmem:[%s255 + $0x1fcc] sm:$0xf]
      %v2329 = vld [vmem:[%s255 + $0x1fd0] sm:$0xf]
      %v2330 = vld [vmem:[%s255 + $0x1fd4] sm:$0xf]
      %v2331 = vld [vmem:[%s255 + $0x1fd8] sm:$0xf]
      %v2332 = vld [vmem:[%s255 + $0x1fdc] sm:$0xf]
      %v2333 = vld [vmem:[%s255 + $0x1fe0] sm:$0xf]
      %v2334 = vld [vmem:[%s255 + $0x1fe4] sm:$0xf]
      %v2335 = vld [vmem:[%s255 + $0x1fe8] sm:$0xf]
      %v2336 = vld [vmem:[%s255 + $0x1fec] sm:$0xf]
      %v2337 = vld [vmem:[%s255 + $0x1ff0] sm:$0xf]
      %v2338 = vld [vmem:[%s255 + $0x1ff4] sm:$0xf]
      %v2339 = vld [vmem:[%s255 + $0x1ff8] sm:$0xf]
      %v2340 = vld [vmem:[%s255 + $0x1ffc] sm:$0xf]
      %v2341 = vld [vmem:[%s255 + $0x2000] sm:$0xf]
      %v2342 = vld [vmem:[%s255 + $0x2004] sm:$0xf]
      %v2343 = vld [vmem:[%s255 + $0x2008] sm:$0xf]
      %v2344 = vld [vmem:[%s255 + $0x200c] sm:$0xf]
      %v2345 = vld [vmem:[%s255 + $0x2010] sm:$0xf]
      %v2346 = vld [vmem:[%s255 + $0x2014] sm:$0xf]
      %v2347 = vld [vmem:[%s255 + $0x2018] sm:$0xf]
      %v2348 = vld [vmem:[%s255 + $0x201c] sm:$0xf]
      %v2349 = vld [vmem:[%s255 + $0x2020] sm:$0xf]
      %v2350 = vld [vmem:[%s255 + $0x2024] sm:$0xf]
      %v2351 = vld [vmem:[%s255 + $0x2028] sm:$0xf]
      %v2352 = vld [vmem:[%s255 + $0x202c] sm:$0xf]
      %v2353 = vld [vmem:[%s255 + $0x2030] sm:$0xf]
      %v2354 = vld [vmem:[%s255 + $0x2034] sm:$0xf]
      %v2355 = vld [vmem:[%s255 + $0x2038] sm:$0xf]
      %v2356 = vld [vmem:[%s255 + $0x203c] sm:$0xf]
      %v2357 = vld [vmem:[%s255 + $0x2040] sm:$0xf]
      %v2358 = vld [vmem:[%s255 + $0x2044] sm:$0xf]
      %v2359 = vld [vmem:[%s255 + $0x2048] sm:$0xf]
      %v2360 = vld [vmem:[%s255 + $0x204c] sm:$0xf]
      %v2361 = vld [vmem:[%s255 + $0x2050] sm:$0xf]
      %v2362 = vld [vmem:[%s255 + $0x2054] sm:$0xf]
      %v2363 = vld [vmem:[%s255 + $0x2058] sm:$0xf]
      %v2364 = vld [vmem:[%s255 + $0x205c] sm:$0xf]
      %v2365 = vld [vmem:[%s255 + $0x2060] sm:$0xf]
      %v2366 = vld [vmem:[%s255 + $0x2064] sm:$0xf]
      %v2367 = vld [vmem:[%s255 + $0x2068] sm:$0xf]
      %v2368 = vld [vmem:[%s255 + $0x206c] sm:$0xf]
      %v2369 = vld [vmem:[%s255 + $0x2070] sm:$0xf]
      %v2370 = vld [vmem:[%s255 + $0x2074] sm:$0xf]
      %v2371 = vld [vmem:[%s255 + $0x2078] sm:$0xf]
      %v2372 = vld [vmem:[%s255 + $0x207c] sm:$0xf]
      %v2373 = vld [vmem:[%s255 + $0x2080] sm:$0xf]
      %v2374 = vld [vmem:[%s255 + $0x2084] sm:$0xf]
      %v2375 = vld [vmem:[%s255 + $0x2088] sm:$0xf]
      %v2376 = vld [vmem:[%s255 + $0x208c] sm:$0xf]
      %v2377 = vld [vmem:[%s255 + $0x2090] sm:$0xf]
      %v2378 = vld [vmem:[%s255 + $0x2094] sm:$0xf]
      %v2379 = vld [vmem:[%s255 + $0x2098] sm:$0xf]
      %v2380 = vld [vmem:[%s255 + $0x209c] sm:$0xf]
      %v2381 = vld [vmem:[%s255 + $0x20a0] sm:$0xf]
      %v2382 = vld [vmem:[%s255 + $0x20a4] sm:$0xf]
      %v2383 = vld [vmem:[%s255 + $0x20a8] sm:$0xf]
      %v2384 = vld [vmem:[%s255 + $0x20ac] sm:$0xf]
      %v2385 = vld [vmem:[%s255 + $0x20b0] sm:$0xf]
      %v2386 = vld [vmem:[%s255 + $0x20b4] sm:$0xf]
      %v2387 = vld [vmem:[%s255 + $0x20b8] sm:$0xf]
      %v2388 = vld [vmem:[%s255 + $0x20bc] sm:$0xf]
      %v2389 = vld [vmem:[%s255 + $0x20c0] sm:$0xf]
      %v2390 = vld [vmem:[%s255 + $0x20c4] sm:$0xf]
      %v2391 = vld [vmem:[%s255 + $0x20c8] sm:$0xf]
      %v2392 = vld [vmem:[%s255 + $0x20cc] sm:$0xf]
      %v2393 = vld [vmem:[%s255 + $0x20d0] sm:$0xf]
      %v2394 = vld [vmem:[%s255 + $0x20d4] sm:$0xf]
      %v2395 = vld [vmem:[%s255 + $0x20d8] sm:$0xf]
      %v2396 = vld [vmem:[%s255 + $0x20dc] sm:$0xf]
      %v2397 = vld [vmem:[%s255 + $0x20e0] sm:$0xf]
      %v2398 = vld [vmem:[%s255 + $0x20e4] sm:$0xf]
      %v2399 = vld [vmem:[%s255 + $0x20e8] sm:$0xf]
      %v2400 = vld [vmem:[%s255 + $0x20ec] sm:$0xf]
      %v2401 = vld [vmem:[%s255 + $0x20f0] sm:$0xf]
      %v2402 = vld [vmem:[%s255 + $0x20f4] sm:$0xf]
      %v2403 = vld [vmem:[%s255 + $0x20f8] sm:$0xf]
      %v2404 = vld [vmem:[%s255 + $0x20fc] sm:$0xf]
      %v2405 = vld [vmem:[%s255 + $0x2100] sm:$0xf]
      %v2406 = vld [vmem:[%s255 + $0x2104] sm:$0xf]
      %v2407 = vld [vmem:[%s255 + $0x2108] sm:$0xf]
      %v2408 = vld [vmem:[%s255 + $0x210c] sm:$0xf]
      %v2409 = vld [vmem:[%s255 + $0x2110] sm:$0xf]
      %v2410 = vld [vmem:[%s255 + $0x2114] sm:$0xf]
      %v2411 = vld [vmem:[%s255 + $0x2118] sm:$0xf]
      %v2412 = vld [vmem:[%s255 + $0x211c] sm:$0xf]
      %v2413 = vld [vmem:[%s255 + $0x2120] sm:$0xf]
      %v2414 = vld [vmem:[%s255 + $0x2124] sm:$0xf]
      %v2415 = vld [vmem:[%s255 + $0x2128] sm:$0xf]
      %v2416 = vld [vmem:[%s255 + $0x212c] sm:$0xf]
      %v2417 = vld [vmem:[%s255 + $0x2130] sm:$0xf]
      %v2418 = vld [vmem:[%s255 + $0x2134] sm:$0xf]
      %v2419 = vld [vmem:[%s255 + $0x2138] sm:$0xf]
      %v2420 = vld [vmem:[%s255 + $0x213c] sm:$0xf]
      %v2421 = vld [vmem:[%s255 + $0x2140] sm:$0xf]
      %v2422 = vld [vmem:[%s255 + $0x2144] sm:$0xf]
      %v2423 = vld [vmem:[%s255 + $0x2148] sm:$0xf]
      %v2424 = vld [vmem:[%s255 + $0x214c] sm:$0xf]
      %v2425 = vld [vmem:[%s255 + $0x2150] sm:$0xf]
      %v2426 = vld [vmem:[%s255 + $0x2154] sm:$0xf]
      %v2427 = vld [vmem:[%s255 + $0x2158] sm:$0xf]
      %v2428 = vld [vmem:[%s255 + $0x215c] sm:$0xf]
      %v2429 = vld [vmem:[%s255 + $0x2160] sm:$0xf]
      %v2430 = vld [vmem:[%s255 + $0x2164] sm:$0xf]
      %v2431 = vld [vmem:[%s255 + $0x2168] sm:$0xf]
      %v2432 = vld [vmem:[%s255 + $0x216c] sm:$0xf]
      %v2433 = vld [vmem:[%s255 + $0x2170] sm:$0xf]
      %v2434 = vld [vmem:[%s255 + $0x2174] sm:$0xf]
      %v2435 = vld [vmem:[%s255 + $0x2178] sm:$0xf]
      %v2436 = vld [vmem:[%s255 + $0x217c] sm:$0xf]
      %v2437 = vld [vmem:[%s255 + $0x2180] sm:$0xf]
      %v2438 = vld [vmem:[%s255 + $0x2184] sm:$0xf]
      %v2439 = vld [vmem:[%s255 + $0x2188] sm:$0xf]
      %v2440 = vld [vmem:[%s255 + $0x218c] sm:$0xf]
      %v2441 = vld [vmem:[%s255 + $0x2190] sm:$0xf]
      %v2442 = vld [vmem:[%s255 + $0x2194] sm:$0xf]
      %v2443 = vld [vmem:[%s255 + $0x2198] sm:$0xf]
      %v2444 = vld [vmem:[%s255 + $0x219c] sm:$0xf]
      %v2445 = vld [vmem:[%s255 + $0x21a0] sm:$0xf]
      %v2446 = vld [vmem:[%s255 + $0x21a4] sm:$0xf]
      %v2447 = vld [vmem:[%s255 + $0x21a8] sm:$0xf]
      %v2448 = vld [vmem:[%s255 + $0x21ac] sm:$0xf]
      %v2449 = vld [vmem:[%s255 + $0x21b0] sm:$0xf]
      %v2450 = vld [vmem:[%s255 + $0x21b4] sm:$0xf]
      %v2451 = vld [vmem:[%s255 + $0x21b8] sm:$0xf]
      %v2452 = vld [vmem:[%s255 + $0x21bc] sm:$0xf]
      %v2453 = vld [vmem:[%s255 + $0x21c0] sm:$0xf]
      %v2454 = vld [vmem:[%s255 + $0x21c4] sm:$0xf]
      %v2455 = vld [vmem:[%s255 + $0x21c8] sm:$0xf]
      %v2456 = vld [vmem:[%s255 + $0x21cc] sm:$0xf]
      %v2457 = vld [vmem:[%s255 + $0x21d0] sm:$0xf]
      %v2458 = vld [vmem:[%s255 + $0x21d4] sm:$0xf]
      %v2459 = vld [vmem:[%s255 + $0x21d8] sm:$0xf]
      %v2460 = vld [vmem:[%s255 + $0x21dc] sm:$0xf]
      %v2461 = vld [vmem:[%s255 + $0x21e0] sm:$0xf]
      %v2462 = vld [vmem:[%s255 + $0x21e4] sm:$0xf]
      %v2463 = vld [vmem:[%s255 + $0x21e8] sm:$0xf]
      %v2464 = vld [vmem:[%s255 + $0x21ec] sm:$0xf]
      %v2465 = vld [vmem:[%s255 + $0x21f0] sm:$0xf]
      %v2466 = vld [vmem:[%s255 + $0x21f4] sm:$0xf]
      %v2467 = vld [vmem:[%s255 + $0x21f8] sm:$0xf]
      %v2468 = vld [vmem:[%s255 + $0x21fc] sm:$0xf]
      %v2469 = vld [vmem:[%s255 + $0x2200] sm:$0xf]
      %v2470 = vld [vmem:[%s255 + $0x2204] sm:$0xf]
      %v2471 = vld [vmem:[%s255 + $0x2208] sm:$0xf]
      %v2472 = vld [vmem:[%s255 + $0x220c] sm:$0xf]
      %v2473 = vld [vmem:[%s255 + $0x2210] sm:$0xf]
      %v2474 = vld [vmem:[%s255 + $0x2214] sm:$0xf]
      %v2475 = vld [vmem:[%s255 + $0x2218] sm:$0xf]
      %v2476 = vld [vmem:[%s255 + $0x221c] sm:$0xf]
      %v2477 = vld [vmem:[%s255 + $0x2220] sm:$0xf]
      %v2478 = vld [vmem:[%s255 + $0x2224] sm:$0xf]
      %v2479 = vld [vmem:[%s255 + $0x2228] sm:$0xf]
      %v2480 = vld [vmem:[%s255 + $0x222c] sm:$0xf]
      %v2481 = vld [vmem:[%s255 + $0x2230] sm:$0xf]
      %v2482 = vld [vmem:[%s255 + $0x2234] sm:$0xf]
      %v2483 = vld [vmem:[%s255 + $0x2238] sm:$0xf]
      %v2484 = vld [vmem:[%s255 + $0x223c] sm:$0xf]
      %v2485 = vld [vmem:[%s255 + $0x2240] sm:$0xf]
      %v2486 = vld [vmem:[%s255 + $0x2244] sm:$0xf]
      %v2487 = vld [vmem:[%s255 + $0x2248] sm:$0xf]
      %v2488 = vld [vmem:[%s255 + $0x224c] sm:$0xf]
      %v2489 = vld [vmem:[%s255 + $0x2250] sm:$0xf]
      %v2490 = vld [vmem:[%s255 + $0x2254] sm:$0xf]
      %v2491 = vld [vmem:[%s255 + $0x2258] sm:$0xf]
      %v2492 = vld [vmem:[%s255 + $0x225c] sm:$0xf]
      %v2493 = vld [vmem:[%s255 + $0x2260] sm:$0xf]
      %v2494 = vld [vmem:[%s255 + $0x2264] sm:$0xf]
      %v2495 = vld [vmem:[%s255 + $0x2268] sm:$0xf]
      %v2496 = vld [vmem:[%s255 + $0x226c] sm:$0xf]
      %v2497 = vld [vmem:[%s255 + $0x2270] sm:$0xf]
      %v2498 = vld [vmem:[%s255 + $0x2274] sm:$0xf]
      %v2499 = vld [vmem:[%s255 + $0x2278] sm:$0xf]
      %v2500 = vld [vmem:[%s255 + $0x227c] sm:$0xf]
      %v2501 = vld [vmem:[%s255 + $0x2280] sm:$0xf]
      %v2502 = vld [vmem:[%s255 + $0x2284] sm:$0xf]
      %v2503 = vld [vmem:[%s255 + $0x2288] sm:$0xf]
      %v2504 = vld [vmem:[%s255 + $0x228c] sm:$0xf]
      %v2505 = vld [vmem:[%s255 + $0x2290] sm:$0xf]
      %v2506 = vld [vmem:[%s255 + $0x2294] sm:$0xf]
      %v2507 = vld [vmem:[%s255 + $0x2298] sm:$0xf]
      %v2508 = vld [vmem:[%s255 + $0x229c] sm:$0xf]
      %v2509 = vld [vmem:[%s255 + $0x22a0] sm:$0xf]
      %v2510 = vld [vmem:[%s255 + $0x22a4] sm:$0xf]
      %v2511 = vld [vmem:[%s255 + $0x22a8] sm:$0xf]
      %v2512 = vld [vmem:[%s255 + $0x22ac] sm:$0xf]
      %v2513 = vld [vmem:[%s255 + $0x22b0] sm:$0xf]
      %v2514 = vld [vmem:[%s255 + $0x22b4] sm:$0xf]
      %v2515 = vld [vmem:[%s255 + $0x22b8] sm:$0xf]
      %v2516 = vld [vmem:[%s255 + $0x22bc] sm:$0xf]
      %v2517 = vld [vmem:[%s255 + $0x22c0] sm:$0xf]
      %v2518 = vld [vmem:[%s255 + $0x22c4] sm:$0xf]
      %v2519 = vld [vmem:[%s255 + $0x22c8] sm:$0xf]
      %v2520 = vld [vmem:[%s255 + $0x22cc] sm:$0xf]
      %v2521 = vld [vmem:[%s255 + $0x22d0] sm:$0xf]
      %v2522 = vld [vmem:[%s255 + $0x22d4] sm:$0xf]
      %v2523 = vld [vmem:[%s255 + $0x22d8] sm:$0xf]
      %v2524 = vld [vmem:[%s255 + $0x22dc] sm:$0xf]
      %v2525 = vld [vmem:[%s255 + $0x22e0] sm:$0xf]
      %v2526 = vld [vmem:[%s255 + $0x22e4] sm:$0xf]
      %v2527 = vld [vmem:[%s255 + $0x22e8] sm:$0xf]
      %v2528 = vld [vmem:[%s255 + $0x22ec] sm:$0xf]
      %v2529 = vld [vmem:[%s255 + $0x22f0] sm:$0xf]
      %v2530 = vld [vmem:[%s255 + $0x22f4] sm:$0xf]
      %v2531 = vld [vmem:[%s255 + $0x22f8] sm:$0xf]
      %v2532 = vld [vmem:[%s255 + $0x22fc] sm:$0xf]
      %v2533 = vld [vmem:[%s255 + $0x2300] sm:$0xf]
      %v2534 = vld [vmem:[%s255 + $0x2304] sm:$0xf]
      %v2535 = vld [vmem:[%s255 + $0x2308] sm:$0xf]
      %v2536 = vld [vmem:[%s255 + $0x230c] sm:$0xf]
      %v2537 = vld [vmem:[%s255 + $0x2310] sm:$0xf]
      %v2538 = vld [vmem:[%s255 + $0x2314] sm:$0xf]
      %v2539 = vld [vmem:[%s255 + $0x2318] sm:$0xf]
      %v2540 = vld [vmem:[%s255 + $0x231c] sm:$0xf]
      %v2541 = vld [vmem:[%s255 + $0x2320] sm:$0xf]
      %v2542 = vld [vmem:[%s255 + $0x2324] sm:$0xf]
      %v2543 = vld [vmem:[%s255 + $0x2328] sm:$0xf]
      %v2544 = vld [vmem:[%s255 + $0x232c] sm:$0xf]
      %v2545 = vld [vmem:[%s255 + $0x2330] sm:$0xf]
      %v2546 = vld [vmem:[%s255 + $0x2334] sm:$0xf]
      %v2547 = vld [vmem:[%s255 + $0x2338] sm:$0xf]
      %v2548 = vld [vmem:[%s255 + $0x233c] sm:$0xf]
      %v2549 = vld [vmem:[%s255 + $0x2340] sm:$0xf]
      %v2550 = vld [vmem:[%s255 + $0x2344] sm:$0xf]
      %v2551 = vld [vmem:[%s255 + $0x2348] sm:$0xf]
      %v2552 = vld [vmem:[%s255 + $0x234c] sm:$0xf]
      %v2553 = vld [vmem:[%s255 + $0x2350] sm:$0xf]
      %v2554 = vld [vmem:[%s255 + $0x2354] sm:$0xf]
      %v2555 = vld [vmem:[%s255 + $0x2358] sm:$0xf]
      %v2556 = vld [vmem:[%s255 + $0x235c] sm:$0xf]
      %v2557 = vld [vmem:[%s255 + $0x2360] sm:$0xf]
      %v2558 = vld [vmem:[%s255 + $0x2364] sm:$0xf]
      %v2559 = vld [vmem:[%s255 + $0x2368] sm:$0xf]
      %v2560 = vld [vmem:[%s255 + $0x236c] sm:$0xf]
      %v2561 = vld [vmem:[%s255 + $0x2370] sm:$0xf]
      %v2562 = vld [vmem:[%s255 + $0x2374] sm:$0xf]
      %v2563 = vld [vmem:[%s255 + $0x2378] sm:$0xf]
      %v2564 = vld [vmem:[%s255 + $0x237c] sm:$0xf]
      %v2565 = vld [vmem:[%s255 + $0x2380] sm:$0xf]
      %v2566 = vld [vmem:[%s255 + $0x2384] sm:$0xf]
      %v2567 = vld [vmem:[%s255 + $0x2388] sm:$0xf]
      %v2568 = vld [vmem:[%s255 + $0x238c] sm:$0xf]
      %v2569 = vld [vmem:[%s255 + $0x2390] sm:$0xf]
      %v2570 = vld [vmem:[%s255 + $0x2394] sm:$0xf]
      %v2571 = vld [vmem:[%s255 + $0x2398] sm:$0xf]
      %v2572 = vld [vmem:[%s255 + $0x239c] sm:$0xf]
      %v2573 = vld [vmem:[%s255 + $0x23a0] sm:$0xf]
      %v2574 = vld [vmem:[%s255 + $0x23a4] sm:$0xf]
      %v2575 = vld [vmem:[%s255 + $0x23a8] sm:$0xf]
      %v2576 = vld [vmem:[%s255 + $0x23ac] sm:$0xf]
      %v2577 = vld [vmem:[%s255 + $0x23b0] sm:$0xf]
      %v2578 = vld [vmem:[%s255 + $0x23b4] sm:$0xf]
      %v2579 = vld [vmem:[%s255 + $0x23b8] sm:$0xf]
      %v2580 = vld [vmem:[%s255 + $0x23bc] sm:$0xf]
      %v2581 = vld [vmem:[%s255 + $0x23c0] sm:$0xf]
      %v2582 = vld [vmem:[%s255 + $0x23c4] sm:$0xf]
      %v2583 = vld [vmem:[%s255 + $0x23c8] sm:$0xf]
      %v2584 = vld [vmem:[%s255 + $0x23cc] sm:$0xf]
      %v2585 = vld [vmem:[%s255 + $0x23d0] sm:$0xf]
      %v2586 = vld [vmem:[%s255 + $0x23d4] sm:$0xf]
      %v2587 = vld [vmem:[%s255 + $0x23d8] sm:$0xf]
      %v2588 = vld [vmem:[%s255 + $0x23dc] sm:$0xf]
      %v2589 = vld [vmem:[%s255 + $0x23e0] sm:$0xf]
      %v2590 = vld [vmem:[%s255 + $0x23e4] sm:$0xf]
      %v2591 = vld [vmem:[%s255 + $0x23e8] sm:$0xf]
      %v2592 = vld [vmem:[%s255 + $0x23ec] sm:$0xf]
      %v2593 = vld [vmem:[%s255 + $0x23f0] sm:$0xf]
      %v2594 = vld [vmem:[%s255 + $0x23f4] sm:$0xf]
      %v2595 = vld [vmem:[%s255 + $0x23f8] sm:$0xf]
      %v2596 = vld [vmem:[%s255 + $0x23fc] sm:$0xf]
      %v2597 = vld [vmem:[%s255 + $0x2400] sm:$0xf]
      %v2598 = vld [vmem:[%s255 + $0x2404] sm:$0xf]
      %v2599 = vld [vmem:[%s255 + $0x2408] sm:$0xf]
      %v2600 = vld [vmem:[%s255 + $0x240c] sm:$0xf]
      %v2601 = vld [vmem:[%s255 + $0x2410] sm:$0xf]
      %v2602 = vld [vmem:[%s255 + $0x2414] sm:$0xf]
      %v2603 = vld [vmem:[%s255 + $0x2418] sm:$0xf]
      %v2604 = vld [vmem:[%s255 + $0x241c] sm:$0xf]
      %v2605 = vld [vmem:[%s255 + $0x2420] sm:$0xf]
      %v2606 = vld [vmem:[%s255 + $0x2424] sm:$0xf]
      %v2607 = vld [vmem:[%s255 + $0x2428] sm:$0xf]
      %v2608 = vld [vmem:[%s255 + $0x242c] sm:$0xf]
      %v2609 = vld [vmem:[%s255 + $0x2430] sm:$0xf]
      %v2610 = vld [vmem:[%s255 + $0x2434] sm:$0xf]
      %v2611 = vld [vmem:[%s255 + $0x2438] sm:$0xf]
      %v2612 = vld [vmem:[%s255 + $0x243c] sm:$0xf]
      %v2613 = vld [vmem:[%s255 + $0x2440] sm:$0xf]
      %v2614 = vld [vmem:[%s255 + $0x2444] sm:$0xf]
      %v2615 = vld [vmem:[%s255 + $0x2448] sm:$0xf]
      %v2616 = vld [vmem:[%s255 + $0x244c] sm:$0xf]
      %v2617 = vld [vmem:[%s255 + $0x2450] sm:$0xf]
      %v2618 = vld [vmem:[%s255 + $0x2454] sm:$0xf]
      %v2619 = vld [vmem:[%s255 + $0x2458] sm:$0xf]
      %v2620 = vld [vmem:[%s255 + $0x245c] sm:$0xf]
      %v2621 = vld [vmem:[%s255 + $0x2460] sm:$0xf]
      %v2622 = vld [vmem:[%s255 + $0x2464] sm:$0xf]
      %v2623 = vld [vmem:[%s255 + $0x2468] sm:$0xf]
      %v2624 = vld [vmem:[%s255 + $0x246c] sm:$0xf]
      %v2625 = vld [vmem:[%s255 + $0x2470] sm:$0xf]
      %v2626 = vld [vmem:[%s255 + $0x2474] sm:$0xf]
      %v2627 = vld [vmem:[%s255 + $0x2478] sm:$0xf]
      %v2628 = vld [vmem:[%s255 + $0x247c] sm:$0xf]
      %v2629 = vld [vmem:[%s255 + $0x2480] sm:$0xf]
      %v2630 = vld [vmem:[%s255 + $0x2484] sm:$0xf]
      %v2631 = vld [vmem:[%s255 + $0x2488] sm:$0xf]
      %v2632 = vld [vmem:[%s255 + $0x248c] sm:$0xf]
      %v2633 = vld [vmem:[%s255 + $0x2490] sm:$0xf]
      %v2634 = vld [vmem:[%s255 + $0x2494] sm:$0xf]
      %v2635 = vld [vmem:[%s255 + $0x2498] sm:$0xf]
      %v2636 = vld [vmem:[%s255 + $0x249c] sm:$0xf]
      %v2637 = vld [vmem:[%s255 + $0x24a0] sm:$0xf]
      %v2638 = vld [vmem:[%s255 + $0x24a4] sm:$0xf]
      %v2639 = vld [vmem:[%s255 + $0x24a8] sm:$0xf]
      %v2640 = vld [vmem:[%s255 + $0x24ac] sm:$0xf]
      %v2641 = vld [vmem:[%s255 + $0x24b0] sm:$0xf]
      %v2642 = vld [vmem:[%s255 + $0x24b4] sm:$0xf]
      %v2643 = vld [vmem:[%s255 + $0x24b8] sm:$0xf]
      %v2644 = vld [vmem:[%s255 + $0x24bc] sm:$0xf]
      %v2645 = vld [vmem:[%s255 + $0x24c0] sm:$0xf]
      %v2646 = vld [vmem:[%s255 + $0x24c4] sm:$0xf]
      %v2647 = vld [vmem:[%s255 + $0x24c8] sm:$0xf]
      %v2648 = vld [vmem:[%s255 + $0x24cc] sm:$0xf]
      %v2649 = vld [vmem:[%s255 + $0x24d0] sm:$0xf]
      %v2650 = vld [vmem:[%s255 + $0x24d4] sm:$0xf]
      %v2651 = vld [vmem:[%s255 + $0x24d8] sm:$0xf]
      %v2652 = vld [vmem:[%s255 + $0x24dc] sm:$0xf]
      %v2653 = vld [vmem:[%s255 + $0x24e0] sm:$0xf]
      %v2654 = vld [vmem:[%s255 + $0x24e4] sm:$0xf]
      %v2655 = vld [vmem:[%s255 + $0x24e8] sm:$0xf]
      %v2656 = vld [vmem:[%s255 + $0x24ec] sm:$0xf]
      %v2657 = vld [vmem:[%s255 + $0x24f0] sm:$0xf]
      %v2658 = vld [vmem:[%s255 + $0x24f4] sm:$0xf]
      %v2659 = vld [vmem:[%s255 + $0x24f8] sm:$0xf]
      %v2660 = vld [vmem:[%s255 + $0x24fc] sm:$0xf]
      %v2661 = vld [vmem:[%s255 + $0x2500] sm:$0xf]
      %v2662 = vld [vmem:[%s255 + $0x2504] sm:$0xf]
      %v2663 = vld [vmem:[%s255 + $0x2508] sm:$0xf]
      %v2664 = vld [vmem:[%s255 + $0x250c] sm:$0xf]
      %v2665 = vld [vmem:[%s255 + $0x2510] sm:$0xf]
      %v2666 = vld [vmem:[%s255 + $0x2514] sm:$0xf]
      %v2667 = vld [vmem:[%s255 + $0x2518] sm:$0xf]
      %v2668 = vld [vmem:[%s255 + $0x251c] sm:$0xf]
      %v2669 = vld [vmem:[%s255 + $0x2520] sm:$0xf]
      %v2670 = vld [vmem:[%s255 + $0x2524] sm:$0xf]
      %v2671 = vld [vmem:[%s255 + $0x2528] sm:$0xf]
      %v2672 = vld [vmem:[%s255 + $0x252c] sm:$0xf]
      %v2673 = vld [vmem:[%s255 + $0x2530] sm:$0xf]
      %v2674 = vld [vmem:[%s255 + $0x2534] sm:$0xf]
      %v2675 = vld [vmem:[%s255 + $0x2538] sm:$0xf]
      %v2676 = vld [vmem:[%s255 + $0x253c] sm:$0xf]
      %v2677 = vld [vmem:[%s255 + $0x2540] sm:$0xf]
      %v2678 = vld [vmem:[%s255 + $0x2544] sm:$0xf]
      %v2679 = vld [vmem:[%s255 + $0x2548] sm:$0xf]
      %v2680 = vld [vmem:[%s255 + $0x254c] sm:$0xf]
      %v2681 = vld [vmem:[%s255 + $0x2550] sm:$0xf]
      %v2682 = vld [vmem:[%s255 + $0x2554] sm:$0xf]
      %v2683 = vld [vmem:[%s255 + $0x2558] sm:$0xf]
      %v2684 = vld [vmem:[%s255 + $0x255c] sm:$0xf]
      %v2685 = vld [vmem:[%s255 + $0x2560] sm:$0xf]
      %v2686 = vld [vmem:[%s255 + $0x2564] sm:$0xf]
      %v2687 = vld [vmem:[%s255 + $0x2568] sm:$0xf]
      %v2688 = vld [vmem:[%s255 + $0x256c] sm:$0xf]
      %v2689 = vld [vmem:[%s255 + $0x2570] sm:$0xf]
      %v2690 = vld [vmem:[%s255 + $0x2574] sm:$0xf]
      %v2691 = vld [vmem:[%s255 + $0x2578] sm:$0xf]
      %v2692 = vld [vmem:[%s255 + $0x257c] sm:$0xf]
      %v2693 = vld [vmem:[%s255 + $0x2580] sm:$0xf]
      %v2694 = vld [vmem:[%s255 + $0x2584] sm:$0xf]
      %v2695 = vld [vmem:[%s255 + $0x2588] sm:$0xf]
      %v2696 = vld [vmem:[%s255 + $0x258c] sm:$0xf]
      %v2697 = vld [vmem:[%s255 + $0x2590] sm:$0xf]
      %v2698 = vld [vmem:[%s255 + $0x2594] sm:$0xf]
      %v2699 = vld [vmem:[%s255 + $0x2598] sm:$0xf]
      %v2700 = vld [vmem:[%s255 + $0x259c] sm:$0xf]
      %v2701 = vld [vmem:[%s255 + $0x25a0] sm:$0xf]
      %v2702 = vld [vmem:[%s255 + $0x25a4] sm:$0xf]
      %v2703 = vld [vmem:[%s255 + $0x25a8] sm:$0xf]
      %v2704 = vld [vmem:[%s255 + $0x25ac] sm:$0xf]
      %v2705 = vld [vmem:[%s255 + $0x25b0] sm:$0xf]
      %v2706 = vld [vmem:[%s255 + $0x25b4] sm:$0xf]
      %v2707 = vld [vmem:[%s255 + $0x25b8] sm:$0xf]
      %v2708 = vld [vmem:[%s255 + $0x25bc] sm:$0xf]
      %v2709 = vld [vmem:[%s255 + $0x25c0] sm:$0xf]
      %v2710 = vld [vmem:[%s255 + $0x25c4] sm:$0xf]
      %v2711 = vld [vmem:[%s255 + $0x25c8] sm:$0xf]
      %v2712 = vld [vmem:[%s255 + $0x25cc] sm:$0xf]
      %v2713 = vld [vmem:[%s255 + $0x25d0] sm:$0xf]
      %v2714 = vld [vmem:[%s255 + $0x25d4] sm:$0xf]
      %v2715 = vld [vmem:[%s255 + $0x25d8] sm:$0xf]
      %v2716 = vld [vmem:[%s255 + $0x25dc] sm:$0xf]
      %v2717 = vld [vmem:[%s255 + $0x25e0] sm:$0xf]
      %v2718 = vld [vmem:[%s255 + $0x25e4] sm:$0xf]
      %v2719 = vld [vmem:[%s255 + $0x25e8] sm:$0xf]
      %v2720 = vld [vmem:[%s255 + $0x25ec] sm:$0xf]
      %v2721 = vld [vmem:[%s255 + $0x25f0] sm:$0xf]
      %v2722 = vld [vmem:[%s255 + $0x25f4] sm:$0xf]
      %v2723 = vld [vmem:[%s255 + $0x25f8] sm:$0xf]
      %v2724 = vld [vmem:[%s255 + $0x25fc] sm:$0xf]
      %v2725 = vld [vmem:[%s255 + $0x2600] sm:$0xf]
      %v2726 = vld [vmem:[%s255 + $0x2604] sm:$0xf]
      %v2727 = vld [vmem:[%s255 + $0x2608] sm:$0xf]
      %v2728 = vld [vmem:[%s255 + $0x260c] sm:$0xf]
      %v2729 = vld [vmem:[%s255 + $0x2610] sm:$0xf]
      %v2730 = vld [vmem:[%s255 + $0x2614] sm:$0xf]
      %v2731 = vld [vmem:[%s255 + $0x2618] sm:$0xf]
      %v2732 = vld [vmem:[%s255 + $0x261c] sm:$0xf]
      %v2733 = vld [vmem:[%s255 + $0x2620] sm:$0xf]
      %v2734 = vld [vmem:[%s255 + $0x2624] sm:$0xf]
      %v2735 = vld [vmem:[%s255 + $0x2628] sm:$0xf]
      %v2736 = vld [vmem:[%s255 + $0x262c] sm:$0xf]
      %v2737 = vld [vmem:[%s255 + $0x2630] sm:$0xf]
      %v2738 = vld [vmem:[%s255 + $0x2634] sm:$0xf]
      %v2739 = vld [vmem:[%s255 + $0x2638] sm:$0xf]
      %v2740 = vld [vmem:[%s255 + $0x263c] sm:$0xf]
      %v2741 = vld [vmem:[%s255 + $0x2640] sm:$0xf]
      %v2742 = vld [vmem:[%s255 + $0x2644] sm:$0xf]
      %v2743 = vld [vmem:[%s255 + $0x2648] sm:$0xf]
      %v2744 = vld [vmem:[%s255 + $0x264c] sm:$0xf]
      %v2745 = vld [vmem:[%s255 + $0x2650] sm:$0xf]
      %v2746 = vld [vmem:[%s255 + $0x2654] sm:$0xf]
      %v2747 = vld [vmem:[%s255 + $0x2658] sm:$0xf]
      %v2748 = vld [vmem:[%s255 + $0x265c] sm:$0xf]
      %v2749 = vld [vmem:[%s255 + $0x2660] sm:$0xf]
      %v2750 = vld [vmem:[%s255 + $0x2664] sm:$0xf]
      %v2751 = vld [vmem:[%s255 + $0x2668] sm:$0xf]
      %v2752 = vld [vmem:[%s255 + $0x266c] sm:$0xf]
      %v2753 = vld [vmem:[%s255 + $0x2670] sm:$0xf]
      %v2754 = vld [vmem:[%s255 + $0x2674] sm:$0xf]
      %v2755 = vld [vmem:[%s255 + $0x2678] sm:$0xf]
      %v2756 = vld [vmem:[%s255 + $0x267c] sm:$0xf]
      %v2757 = vld [vmem:[%s255 + $0x2680] sm:$0xf]
      %v2758 = vld [vmem:[%s255 + $0x2684] sm:$0xf]
      %v2759 = vld [vmem:[%s255 + $0x2688] sm:$0xf]
      %v2760 = vld [vmem:[%s255 + $0x268c] sm:$0xf]
      %v2761 = vld [vmem:[%s255 + $0x2690] sm:$0xf]
      %v2762 = vld [vmem:[%s255 + $0x2694] sm:$0xf]
      %v2763 = vld [vmem:[%s255 + $0x2698] sm:$0xf]
      %v2764 = vld [vmem:[%s255 + $0x269c] sm:$0xf]
      %v2765 = vld [vmem:[%s255 + $0x26a0] sm:$0xf]
      %v2766 = vld [vmem:[%s255 + $0x26a4] sm:$0xf]
      %v2767 = vld [vmem:[%s255 + $0x26a8] sm:$0xf]
      %v2768 = vld [vmem:[%s255 + $0x26ac] sm:$0xf]
      %v2769 = vld [vmem:[%s255 + $0x26b0] sm:$0xf]
      %v2770 = vld [vmem:[%s255 + $0x26b4] sm:$0xf]
      %v2771 = vld [vmem:[%s255 + $0x26b8] sm:$0xf]
      %v2772 = vld [vmem:[%s255 + $0x26bc] sm:$0xf]
      %v2773 = vld [vmem:[%s255 + $0x26c0] sm:$0xf]
      %v2774 = vld [vmem:[%s255 + $0x26c4] sm:$0xf]
      %v2775 = vld [vmem:[%s255 + $0x26c8] sm:$0xf]
      %v2776 = vld [vmem:[%s255 + $0x26cc] sm:$0xf]
      %v2777 = vld [vmem:[%s255 + $0x26d0] sm:$0xf]
      %v2778 = vld [vmem:[%s255 + $0x26d4] sm:$0xf]
      %v2779 = vld [vmem:[%s255 + $0x26d8] sm:$0xf]
      %v2780 = vld [vmem:[%s255 + $0x26dc] sm:$0xf]
      %v2781 = vld [vmem:[%s255 + $0x26e0] sm:$0xf]
      %v2782 = vld [vmem:[%s255 + $0x26e4] sm:$0xf]
      %v2783 = vld [vmem:[%s255 + $0x26e8] sm:$0xf]
      %v2784 = vld [vmem:[%s255 + $0x26ec] sm:$0xf]
      %v2785 = vld [vmem:[%s255 + $0x26f0] sm:$0xf]
      %v2786 = vld [vmem:[%s255 + $0x26f4] sm:$0xf]
      %v2787 = vld [vmem:[%s255 + $0x26f8] sm:$0xf]
      %v2788 = vld [vmem:[%s255 + $0x26fc] sm:$0xf]
      %v2789 = vld [vmem:[%s255 + $0x2700] sm:$0xf]
      %v2790 = vld [vmem:[%s255 + $0x2704] sm:$0xf]
      %v2791 = vld [vmem:[%s255 + $0x2708] sm:$0xf]
      %v2792 = vld [vmem:[%s255 + $0x270c] sm:$0xf]
      %v2793 = vld [vmem:[%s255 + $0x2710] sm:$0xf]
      %v2794 = vld [vmem:[%s255 + $0x2714] sm:$0xf]
      %v2795 = vld [vmem:[%s255 + $0x2718] sm:$0xf]
      %v2796 = vld [vmem:[%s255 + $0x271c] sm:$0xf]
      %v2797 = vld [vmem:[%s255 + $0x2720] sm:$0xf]
      %v2798 = vld [vmem:[%s255 + $0x2724] sm:$0xf]
      %v2799 = vld [vmem:[%s255 + $0x2728] sm:$0xf]
      %v2800 = vld [vmem:[%s255 + $0x272c] sm:$0xf]
      %v2801 = vld [vmem:[%s255 + $0x2730] sm:$0xf]
      %v2802 = vld [vmem:[%s255 + $0x2734] sm:$0xf]
      %v2803 = vld [vmem:[%s255 + $0x2738] sm:$0xf]
      %v2804 = vld [vmem:[%s255 + $0x273c] sm:$0xf]
      %v2805 = vld [vmem:[%s255 + $0x2740] sm:$0xf]
      %v2806 = vld [vmem:[%s255 + $0x2744] sm:$0xf]
      %v2807 = vld [vmem:[%s255 + $0x2748] sm:$0xf]
      %v2808 = vld [vmem:[%s255 + $0x274c] sm:$0xf]
      %v2809 = vld [vmem:[%s255 + $0x2750] sm:$0xf]
      %v2810 = vld [vmem:[%s255 + $0x2754] sm:$0xf]
      %v2811 = vld [vmem:[%s255 + $0x2758] sm:$0xf]
      %v2812 = vld [vmem:[%s255 + $0x275c] sm:$0xf]
      %v2813 = vld [vmem:[%s255 + $0x2760] sm:$0xf]
      %v2814 = vld [vmem:[%s255 + $0x2764] sm:$0xf]
      %v2815 = vld [vmem:[%s255 + $0x2768] sm:$0xf]
      %v2816 = vld [vmem:[%s255 + $0x276c] sm:$0xf]
      %v2817 = vld [vmem:[%s255 + $0x2770] sm:$0xf]
      %v2818 = vld [vmem:[%s255 + $0x2774] sm:$0xf]
      %v2819 = vld [vmem:[%s255 + $0x2778] sm:$0xf]
      %v2820 = vld [vmem:[%s255 + $0x277c] sm:$0xf]
      %v2821 = vld [vmem:[%s255 + $0x2780] sm:$0xf]
      %v2822 = vld [vmem:[%s255 + $0x2784] sm:$0xf]
      %v2823 = vld [vmem:[%s255 + $0x2788] sm:$0xf]
      %v2824 = vld [vmem:[%s255 + $0x278c] sm:$0xf]
      %v2825 = vld [vmem:[%s255 + $0x2790] sm:$0xf]
      %v2826 = vld [vmem:[%s255 + $0x2794] sm:$0xf]
      %v2827 = vld [vmem:[%s255 + $0x2798] sm:$0xf]
      %v2828 = vld [vmem:[%s255 + $0x279c] sm:$0xf]
      %v2829 = vld [vmem:[%s255 + $0x27a0] sm:$0xf]
      %v2830 = vld [vmem:[%s255 + $0x27a4] sm:$0xf]
      %v2831 = vld [vmem:[%s255 + $0x27a8] sm:$0xf]
      %v2832 = vld [vmem:[%s255 + $0x27ac] sm:$0xf]
      %v2833 = vld [vmem:[%s255 + $0x27b0] sm:$0xf]
      %v2834 = vld [vmem:[%s255 + $0x27b4] sm:$0xf]
      %v2835 = vld [vmem:[%s255 + $0x27b8] sm:$0xf]
      %v2836 = vld [vmem:[%s255 + $0x27bc] sm:$0xf]
      %v2837 = vld [vmem:[%s255 + $0x27c0] sm:$0xf]
      %v2838 = vld [vmem:[%s255 + $0x27c4] sm:$0xf]
      %v2839 = vld [vmem:[%s255 + $0x27c8] sm:$0xf]
      %v2840 = vld [vmem:[%s255 + $0x27cc] sm:$0xf]
      %v2841 = vld [vmem:[%s255 + $0x27d0] sm:$0xf]
      %v2842 = vld [vmem:[%s255 + $0x27d4] sm:$0xf]
      %v2843 = vld [vmem:[%s255 + $0x27d8] sm:$0xf]
      %v2844 = vld [vmem:[%s255 + $0x27dc] sm:$0xf]
      %v2845 = vld [vmem:[%s255 + $0x27e0] sm:$0xf]
      %v2846 = vld [vmem:[%s255 + $0x27e4] sm:$0xf]
      %v2847 = vld [vmem:[%s255 + $0x27e8] sm:$0xf]
      %v2848 = vld [vmem:[%s255 + $0x27ec] sm:$0xf]
      %v2849 = vld [vmem:[%s255 + $0x27f0] sm:$0xf]
      %v2850 = vld [vmem:[%s255 + $0x27f4] sm:$0xf]
      %v2851 = vld [vmem:[%s255 + $0x27f8] sm:$0xf]
      %v2852 = vld [vmem:[%s255 + $0x27fc] sm:$0xf]
      %v2853 = vld [vmem:[%s255 + $0x2800] sm:$0xf]
      %v2854 = vld [vmem:[%s255 + $0x2804] sm:$0xf]
      %v2855 = vld [vmem:[%s255 + $0x2808] sm:$0xf]
      %v2856 = vld [vmem:[%s255 + $0x280c] sm:$0xf]
      %v2857 = vld [vmem:[%s255 + $0x2810] sm:$0xf]
      %v2858 = vld [vmem:[%s255 + $0x2814] sm:$0xf]
      %v2859 = vld [vmem:[%s255 + $0x2818] sm:$0xf]
      %v2860 = vld [vmem:[%s255 + $0x281c] sm:$0xf]
      %v2861 = vld [vmem:[%s255 + $0x2820] sm:$0xf]
      %v2862 = vld [vmem:[%s255 + $0x2824] sm:$0xf]
      %v2863 = vld [vmem:[%s255 + $0x2828] sm:$0xf]
      %v2864 = vld [vmem:[%s255 + $0x282c] sm:$0xf]
      %v2865 = vld [vmem:[%s255 + $0x2830] sm:$0xf]
      %v2866 = vld [vmem:[%s255 + $0x2834] sm:$0xf]
      %v2867 = vld [vmem:[%s255 + $0x2838] sm:$0xf]
      %v2868 = vld [vmem:[%s255 + $0x283c] sm:$0xf]
      %v2869 = vld [vmem:[%s255 + $0x2840] sm:$0xf]
      %v2870 = vld [vmem:[%s255 + $0x2844] sm:$0xf]
      %v2871 = vld [vmem:[%s255 + $0x2848] sm:$0xf]
      %v2872 = vld [vmem:[%s255 + $0x284c] sm:$0xf]
      %v2873 = vld [vmem:[%s255 + $0x2850] sm:$0xf]
      %v2874 = vld [vmem:[%s255 + $0x2854] sm:$0xf]
      %v2875 = vld [vmem:[%s255 + $0x2858] sm:$0xf]
      %v2876 = vld [vmem:[%s255 + $0x285c] sm:$0xf]
      %v2877 = vld [vmem:[%s255 + $0x2860] sm:$0xf]
      %v2878 = vld [vmem:[%s255 + $0x2864] sm:$0xf]
      %v2879 = vld [vmem:[%s255 + $0x2868] sm:$0xf]
      %v2880 = vld [vmem:[%s255 + $0x286c] sm:$0xf]
      %v2881 = vld [vmem:[%s255 + $0x2870] sm:$0xf]
      %v2882 = vld [vmem:[%s255 + $0x2874] sm:$0xf]
      %v2883 = vld [vmem:[%s255 + $0x2878] sm:$0xf]
      %v2884 = vld [vmem:[%s255 + $0x287c] sm:$0xf]
      %v2906 = vcombine.high %v272, %v272
      %v2908 = vunpack.c.l.s4 1966171168
      %v2909 = vunpack.c.0.s8 %v2908
      %v2910 = vlaneseq
      %v2911 = vshrl.u32 %v2910, 7
      %v2912 = vsub.s32 %v2909, %v2911
      %v2913 = vrot.slane %v272, %v2912
      %v2915 = vunpack.c.l.s4 1966171168
      %v2916 = vunpack.c.0.s8 %v2915
      %v2917 = vlaneseq
      %v2918 = vshrl.u32 %v2917, 7
      %v2919 = vsub.s32 %v2916, %v2918
      %v2920 = vrot.slane %v2906, %v2919
      %v2921 = vcombine.high %v2913, %v2913
      %v2922 = vcombine.high %v2920, %v2920
      %v2924 = vunpack.c.l.s4 1966171168
      %v2925 = vunpack.c.0.s8 %v2924
      %v2926 = vlaneseq
      %v2927 = vshrl.u32 %v2926, 7
      %v2928 = vsub.s32 %v2925, %v2927
      %v2929 = vrot.slane %v2913, %v2928
      %v2931 = vunpack.c.l.s4 1966171168
      %v2932 = vunpack.c.0.s8 %v2931
      %v2933 = vlaneseq
      %v2934 = vshrl.u32 %v2933, 7
      %v2935 = vsub.s32 %v2932, %v2934
      %v2936 = vrot.slane %v2920, %v2935
      %v2938 = vunpack.c.l.s4 1966171168
      %v2939 = vunpack.c.0.s8 %v2938
      %v2940 = vlaneseq
      %v2941 = vshrl.u32 %v2940, 7
      %v2942 = vsub.s32 %v2939, %v2941
      %v2943 = vrot.slane %v2921, %v2942
      %v2945 = vunpack.c.l.s4 1966171168
      %v2946 = vunpack.c.0.s8 %v2945
      %v2947 = vlaneseq
      %v2948 = vshrl.u32 %v2947, 7
      %v2949 = vsub.s32 %v2946, %v2948
      %v2950 = vrot.slane %v2922, %v2949
      %v2951 = vcombine.high %v2929, %v2929
      %v2952 = vcombine.high %v2936, %v2936
      %v2953 = vcombine.high %v2943, %v2943
      %v2954 = vcombine.high %v2950, %v2950
      %v2955 = vcombine.high %v273, %v273
      %v2957 = vunpack.c.l.s4 1966171168
      %v2958 = vunpack.c.0.s8 %v2957
      %v2959 = vlaneseq
      %v2960 = vshrl.u32 %v2959, 7
      %v2961 = vsub.s32 %v2958, %v2960
      %v2962 = vrot.slane %v273, %v2961
      %v2964 = vunpack.c.l.s4 1966171168
      %v2965 = vunpack.c.0.s8 %v2964
      %v2966 = vlaneseq
      %v2967 = vshrl.u32 %v2966, 7
      %v2968 = vsub.s32 %v2965, %v2967
      %v2969 = vrot.slane %v2955, %v2968
      %v2970 = vcombine.high %v2962, %v2962
      %v2971 = vcombine.high %v2969, %v2969
      %v2973 = vunpack.c.l.s4 1966171168
      %v2974 = vunpack.c.0.s8 %v2973
      %v2975 = vlaneseq
      %v2976 = vshrl.u32 %v2975, 7
      %v2977 = vsub.s32 %v2974, %v2976
      %v2978 = vrot.slane %v2962, %v2977
      %v2980 = vunpack.c.l.s4 1966171168
      %v2981 = vunpack.c.0.s8 %v2980
      %v2982 = vlaneseq
      %v2983 = vshrl.u32 %v2982, 7
      %v2984 = vsub.s32 %v2981, %v2983
      %v2985 = vrot.slane %v2969, %v2984
      %v2987 = vunpack.c.l.s4 1966171168
      %v2988 = vunpack.c.0.s8 %v2987
      %v2989 = vlaneseq
      %v2990 = vshrl.u32 %v2989, 7
      %v2991 = vsub.s32 %v2988, %v2990
      %v2992 = vrot.slane %v2970, %v2991
      %v2994 = vunpack.c.l.s4 1966171168
      %v2995 = vunpack.c.0.s8 %v2994
      %v2996 = vlaneseq
      %v2997 = vshrl.u32 %v2996, 7
      %v2998 = vsub.s32 %v2995, %v2997
      %v2999 = vrot.slane %v2971, %v2998
      %v3000 = vcombine.high %v2978, %v2978
      %v3001 = vcombine.high %v2985, %v2985
      %v3002 = vcombine.high %v2992, %v2992
      %v3003 = vcombine.high %v2999, %v2999
      %v3004 = vcombine.high %v274, %v274
      %v3006 = vunpack.c.l.s4 1966171168
      %v3007 = vunpack.c.0.s8 %v3006
      %v3008 = vlaneseq
      %v3009 = vshrl.u32 %v3008, 7
      %v3010 = vsub.s32 %v3007, %v3009
      %v3011 = vrot.slane %v274, %v3010
      %v3013 = vunpack.c.l.s4 1966171168
      %v3014 = vunpack.c.0.s8 %v3013
      %v3015 = vlaneseq
      %v3016 = vshrl.u32 %v3015, 7
      %v3017 = vsub.s32 %v3014, %v3016
      %v3018 = vrot.slane %v3004, %v3017
      %v3019 = vcombine.high %v3011, %v3011
      %v3020 = vcombine.high %v3018, %v3018
      %v3022 = vunpack.c.l.s4 1966171168
      %v3023 = vunpack.c.0.s8 %v3022
      %v3024 = vlaneseq
      %v3025 = vshrl.u32 %v3024, 7
      %v3026 = vsub.s32 %v3023, %v3025
      %v3027 = vrot.slane %v3011, %v3026
      %v3029 = vunpack.c.l.s4 1966171168
      %v3030 = vunpack.c.0.s8 %v3029
      %v3031 = vlaneseq
      %v3032 = vshrl.u32 %v3031, 7
      %v3033 = vsub.s32 %v3030, %v3032
      %v3034 = vrot.slane %v3018, %v3033
      %v3036 = vunpack.c.l.s4 1966171168
      %v3037 = vunpack.c.0.s8 %v3036
      %v3038 = vlaneseq
      %v3039 = vshrl.u32 %v3038, 7
      %v3040 = vsub.s32 %v3037, %v3039
      %v3041 = vrot.slane %v3019, %v3040
      %v3043 = vunpack.c.l.s4 1966171168
      %v3044 = vunpack.c.0.s8 %v3043
      %v3045 = vlaneseq
      %v3046 = vshrl.u32 %v3045, 7
      %v3047 = vsub.s32 %v3044, %v3046
      %v3048 = vrot.slane %v3020, %v3047
      %v3049 = vcombine.high %v3027, %v3027
      %v3050 = vcombine.high %v3034, %v3034
      %v3051 = vcombine.high %v3041, %v3041
      %v3052 = vcombine.high %v3048, %v3048
      %v3053 = vcombine.high %v275, %v275
      %v3055 = vunpack.c.l.s4 1966171168
      %v3056 = vunpack.c.0.s8 %v3055
      %v3057 = vlaneseq
      %v3058 = vshrl.u32 %v3057, 7
      %v3059 = vsub.s32 %v3056, %v3058
      %v3060 = vrot.slane %v275, %v3059
      %v3062 = vunpack.c.l.s4 1966171168
      %v3063 = vunpack.c.0.s8 %v3062
      %v3064 = vlaneseq
      %v3065 = vshrl.u32 %v3064, 7
      %v3066 = vsub.s32 %v3063, %v3065
      %v3067 = vrot.slane %v3053, %v3066
      %v3068 = vcombine.high %v3060, %v3060
      %v3069 = vcombine.high %v3067, %v3067
      %v3071 = vunpack.c.l.s4 1966171168
      %v3072 = vunpack.c.0.s8 %v3071
      %v3073 = vlaneseq
      %v3074 = vshrl.u32 %v3073, 7
      %v3075 = vsub.s32 %v3072, %v3074
      %v3076 = vrot.slane %v3060, %v3075
      %v3078 = vunpack.c.l.s4 1966171168
      %v3079 = vunpack.c.0.s8 %v3078
      %v3080 = vlaneseq
      %v3081 = vshrl.u32 %v3080, 7
      %v3082 = vsub.s32 %v3079, %v3081
      %v3083 = vrot.slane %v3067, %v3082
      %v3085 = vunpack.c.l.s4 1966171168
      %v3086 = vunpack.c.0.s8 %v3085
      %v3087 = vlaneseq
      %v3088 = vshrl.u32 %v3087, 7
      %v3089 = vsub.s32 %v3086, %v3088
      %v3090 = vrot.slane %v3068, %v3089
      %v3092 = vunpack.c.l.s4 1966171168
      %v3093 = vunpack.c.0.s8 %v3092
      %v3094 = vlaneseq
      %v3095 = vshrl.u32 %v3094, 7
      %v3096 = vsub.s32 %v3093, %v3095
      %v3097 = vrot.slane %v3069, %v3096
      %v3098 = vcombine.high %v3076, %v3076
      %v3099 = vcombine.high %v3083, %v3083
      %v3100 = vcombine.high %v3090, %v3090
      %v3101 = vcombine.high %v3097, %v3097
      %v3102 = vcombine.high %v276, %v276
      %v3104 = vunpack.c.l.s4 1966171168
      %v3105 = vunpack.c.0.s8 %v3104
      %v3106 = vlaneseq
      %v3107 = vshrl.u32 %v3106, 7
      %v3108 = vsub.s32 %v3105, %v3107
      %v3109 = vrot.slane %v276, %v3108
      %v3111 = vunpack.c.l.s4 1966171168
      %v3112 = vunpack.c.0.s8 %v3111
      %v3113 = vlaneseq
      %v3114 = vshrl.u32 %v3113, 7
      %v3115 = vsub.s32 %v3112, %v3114
      %v3116 = vrot.slane %v3102, %v3115
      %v3117 = vcombine.high %v3109, %v3109
      %v3118 = vcombine.high %v3116, %v3116
      %v3120 = vunpack.c.l.s4 1966171168
      %v3121 = vunpack.c.0.s8 %v3120
      %v3122 = vlaneseq
      %v3123 = vshrl.u32 %v3122, 7
      %v3124 = vsub.s32 %v3121, %v3123
      %v3125 = vrot.slane %v3109, %v3124
      %v3127 = vunpack.c.l.s4 1966171168
      %v3128 = vunpack.c.0.s8 %v3127
      %v3129 = vlaneseq
      %v3130 = vshrl.u32 %v3129, 7
      %v3131 = vsub.s32 %v3128, %v3130
      %v3132 = vrot.slane %v3116, %v3131
      %v3134 = vunpack.c.l.s4 1966171168
      %v3135 = vunpack.c.0.s8 %v3134
      %v3136 = vlaneseq
      %v3137 = vshrl.u32 %v3136, 7
      %v3138 = vsub.s32 %v3135, %v3137
      %v3139 = vrot.slane %v3117, %v3138
      %v3141 = vunpack.c.l.s4 1966171168
      %v3142 = vunpack.c.0.s8 %v3141
      %v3143 = vlaneseq
      %v3144 = vshrl.u32 %v3143, 7
      %v3145 = vsub.s32 %v3142, %v3144
      %v3146 = vrot.slane %v3118, %v3145
      %v3147 = vcombine.high %v3125, %v3125
      %v3148 = vcombine.high %v3132, %v3132
      %v3149 = vcombine.high %v3139, %v3139
      %v3150 = vcombine.high %v3146, %v3146
      %v3151 = vcombine.high %v277, %v277
      %v3153 = vunpack.c.l.s4 1966171168
      %v3154 = vunpack.c.0.s8 %v3153
      %v3155 = vlaneseq
      %v3156 = vshrl.u32 %v3155, 7
      %v3157 = vsub.s32 %v3154, %v3156
      %v3158 = vrot.slane %v277, %v3157
      %v3160 = vunpack.c.l.s4 1966171168
      %v3161 = vunpack.c.0.s8 %v3160
      %v3162 = vlaneseq
      %v3163 = vshrl.u32 %v3162, 7
      %v3164 = vsub.s32 %v3161, %v3163
      %v3165 = vrot.slane %v3151, %v3164
      %v3166 = vcombine.high %v3158, %v3158
      %v3167 = vcombine.high %v3165, %v3165
      %v3169 = vunpack.c.l.s4 1966171168
      %v3170 = vunpack.c.0.s8 %v3169
      %v3171 = vlaneseq
      %v3172 = vshrl.u32 %v3171, 7
      %v3173 = vsub.s32 %v3170, %v3172
      %v3174 = vrot.slane %v3158, %v3173
      %v3176 = vunpack.c.l.s4 1966171168
      %v3177 = vunpack.c.0.s8 %v3176
      %v3178 = vlaneseq
      %v3179 = vshrl.u32 %v3178, 7
      %v3180 = vsub.s32 %v3177, %v3179
      %v3181 = vrot.slane %v3165, %v3180
      %v3183 = vunpack.c.l.s4 1966171168
      %v3184 = vunpack.c.0.s8 %v3183
      %v3185 = vlaneseq
      %v3186 = vshrl.u32 %v3185, 7
      %v3187 = vsub.s32 %v3184, %v3186
      %v3188 = vrot.slane %v3166, %v3187
      %v3190 = vunpack.c.l.s4 1966171168
      %v3191 = vunpack.c.0.s8 %v3190
      %v3192 = vlaneseq
      %v3193 = vshrl.u32 %v3192, 7
      %v3194 = vsub.s32 %v3191, %v3193
      %v3195 = vrot.slane %v3167, %v3194
      %v3196 = vcombine.high %v3174, %v3174
      %v3197 = vcombine.high %v3181, %v3181
      %v3198 = vcombine.high %v3188, %v3188
      %v3199 = vcombine.high %v3195, %v3195
      %v3200 = vcombine.high %v278, %v278
      %v3202 = vunpack.c.l.s4 1966171168
      %v3203 = vunpack.c.0.s8 %v3202
      %v3204 = vlaneseq
      %v3205 = vshrl.u32 %v3204, 7
      %v3206 = vsub.s32 %v3203, %v3205
      %v3207 = vrot.slane %v278, %v3206
      %v3209 = vunpack.c.l.s4 1966171168
      %v3210 = vunpack.c.0.s8 %v3209
      %v3211 = vlaneseq
      %v3212 = vshrl.u32 %v3211, 7
      %v3213 = vsub.s32 %v3210, %v3212
      %v3214 = vrot.slane %v3200, %v3213
      %v3215 = vcombine.high %v3207, %v3207
      %v3216 = vcombine.high %v3214, %v3214
      %v3218 = vunpack.c.l.s4 1966171168
      %v3219 = vunpack.c.0.s8 %v3218
      %v3220 = vlaneseq
      %v3221 = vshrl.u32 %v3220, 7
      %v3222 = vsub.s32 %v3219, %v3221
      %v3223 = vrot.slane %v3207, %v3222
      %v3225 = vunpack.c.l.s4 1966171168
      %v3226 = vunpack.c.0.s8 %v3225
      %v3227 = vlaneseq
      %v3228 = vshrl.u32 %v3227, 7
      %v3229 = vsub.s32 %v3226, %v3228
      %v3230 = vrot.slane %v3214, %v3229
      %v3232 = vunpack.c.l.s4 1966171168
      %v3233 = vunpack.c.0.s8 %v3232
      %v3234 = vlaneseq
      %v3235 = vshrl.u32 %v3234, 7
      %v3236 = vsub.s32 %v3233, %v3235
      %v3237 = vrot.slane %v3215, %v3236
      %v3239 = vunpack.c.l.s4 1966171168
      %v3240 = vunpack.c.0.s8 %v3239
      %v3241 = vlaneseq
      %v3242 = vshrl.u32 %v3241, 7
      %v3243 = vsub.s32 %v3240, %v3242
      %v3244 = vrot.slane %v3216, %v3243
      %v3245 = vcombine.high %v3223, %v3223
      %v3246 = vcombine.high %v3230, %v3230
      %v3247 = vcombine.high %v3237, %v3237
      %v3248 = vcombine.high %v3244, %v3244
      %v3249 = vcombine.high %v279, %v279
      %v3251 = vunpack.c.l.s4 1966171168
      %v3252 = vunpack.c.0.s8 %v3251
      %v3253 = vlaneseq
      %v3254 = vshrl.u32 %v3253, 7
      %v3255 = vsub.s32 %v3252, %v3254
      %v3256 = vrot.slane %v279, %v3255
      %v3258 = vunpack.c.l.s4 1966171168
      %v3259 = vunpack.c.0.s8 %v3258
      %v3260 = vlaneseq
      %v3261 = vshrl.u32 %v3260, 7
      %v3262 = vsub.s32 %v3259, %v3261
      %v3263 = vrot.slane %v3249, %v3262
      %v3264 = vcombine.high %v3256, %v3256
      %v3265 = vcombine.high %v3263, %v3263
      %v3267 = vunpack.c.l.s4 1966171168
      %v3268 = vunpack.c.0.s8 %v3267
      %v3269 = vlaneseq
      %v3270 = vshrl.u32 %v3269, 7
      %v3271 = vsub.s32 %v3268, %v3270
      %v3272 = vrot.slane %v3256, %v3271
      %v3274 = vunpack.c.l.s4 1966171168
      %v3275 = vunpack.c.0.s8 %v3274
      %v3276 = vlaneseq
      %v3277 = vshrl.u32 %v3276, 7
      %v3278 = vsub.s32 %v3275, %v3277
      %v3279 = vrot.slane %v3263, %v3278
      %v3281 = vunpack.c.l.s4 1966171168
      %v3282 = vunpack.c.0.s8 %v3281
      %v3283 = vlaneseq
      %v3284 = vshrl.u32 %v3283, 7
      %v3285 = vsub.s32 %v3282, %v3284
      %v3286 = vrot.slane %v3264, %v3285
      %v3288 = vunpack.c.l.s4 1966171168
      %v3289 = vunpack.c.0.s8 %v3288
      %v3290 = vlaneseq
      %v3291 = vshrl.u32 %v3290, 7
      %v3292 = vsub.s32 %v3289, %v3291
      %v3293 = vrot.slane %v3265, %v3292
      %v3294 = vcombine.high %v3272, %v3272
      %v3295 = vcombine.high %v3279, %v3279
      %v3296 = vcombine.high %v3286, %v3286
      %v3297 = vcombine.high %v3293, %v3293
      %v3298 = vcombine.high %v280, %v280
      %v3300 = vunpack.c.l.s4 1966171168
      %v3301 = vunpack.c.0.s8 %v3300
      %v3302 = vlaneseq
      %v3303 = vshrl.u32 %v3302, 7
      %v3304 = vsub.s32 %v3301, %v3303
      %v3305 = vrot.slane %v280, %v3304
      %v3307 = vunpack.c.l.s4 1966171168
      %v3308 = vunpack.c.0.s8 %v3307
      %v3309 = vlaneseq
      %v3310 = vshrl.u32 %v3309, 7
      %v3311 = vsub.s32 %v3308, %v3310
      %v3312 = vrot.slane %v3298, %v3311
      %v3313 = vcombine.high %v3305, %v3305
      %v3314 = vcombine.high %v3312, %v3312
      %v3316 = vunpack.c.l.s4 1966171168
      %v3317 = vunpack.c.0.s8 %v3316
      %v3318 = vlaneseq
      %v3319 = vshrl.u32 %v3318, 7
      %v3320 = vsub.s32 %v3317, %v3319
      %v3321 = vrot.slane %v3305, %v3320
      %v3323 = vunpack.c.l.s4 1966171168
      %v3324 = vunpack.c.0.s8 %v3323
      %v3325 = vlaneseq
      %v3326 = vshrl.u32 %v3325, 7
      %v3327 = vsub.s32 %v3324, %v3326
      %v3328 = vrot.slane %v3312, %v3327
      %v3330 = vunpack.c.l.s4 1966171168
      %v3331 = vunpack.c.0.s8 %v3330
      %v3332 = vlaneseq
      %v3333 = vshrl.u32 %v3332, 7
      %v3334 = vsub.s32 %v3331, %v3333
      %v3335 = vrot.slane %v3313, %v3334
      %v3337 = vunpack.c.l.s4 1966171168
      %v3338 = vunpack.c.0.s8 %v3337
      %v3339 = vlaneseq
      %v3340 = vshrl.u32 %v3339, 7
      %v3341 = vsub.s32 %v3338, %v3340
      %v3342 = vrot.slane %v3314, %v3341
      %v3343 = vcombine.high %v3321, %v3321
      %v3344 = vcombine.high %v3328, %v3328
      %v3345 = vcombine.high %v3335, %v3335
      %v3346 = vcombine.high %v3342, %v3342
      %v3347 = vcombine.high %v281, %v281
      %v3349 = vunpack.c.l.s4 1966171168
      %v3350 = vunpack.c.0.s8 %v3349
      %v3351 = vlaneseq
      %v3352 = vshrl.u32 %v3351, 7
      %v3353 = vsub.s32 %v3350, %v3352
      %v3354 = vrot.slane %v281, %v3353
      %v3356 = vunpack.c.l.s4 1966171168
      %v3357 = vunpack.c.0.s8 %v3356
      %v3358 = vlaneseq
      %v3359 = vshrl.u32 %v3358, 7
      %v3360 = vsub.s32 %v3357, %v3359
      %v3361 = vrot.slane %v3347, %v3360
      %v3362 = vcombine.high %v3354, %v3354
      %v3363 = vcombine.high %v3361, %v3361
      %v3365 = vunpack.c.l.s4 1966171168
      %v3366 = vunpack.c.0.s8 %v3365
      %v3367 = vlaneseq
      %v3368 = vshrl.u32 %v3367, 7
      %v3369 = vsub.s32 %v3366, %v3368
      %v3370 = vrot.slane %v3354, %v3369
      %v3372 = vunpack.c.l.s4 1966171168
      %v3373 = vunpack.c.0.s8 %v3372
      %v3374 = vlaneseq
      %v3375 = vshrl.u32 %v3374, 7
      %v3376 = vsub.s32 %v3373, %v3375
      %v3377 = vrot.slane %v3361, %v3376
      %v3379 = vunpack.c.l.s4 1966171168
      %v3380 = vunpack.c.0.s8 %v3379
      %v3381 = vlaneseq
      %v3382 = vshrl.u32 %v3381, 7
      %v3383 = vsub.s32 %v3380, %v3382
      %v3384 = vrot.slane %v3362, %v3383
      %v3386 = vunpack.c.l.s4 1966171168
      %v3387 = vunpack.c.0.s8 %v3386
      %v3388 = vlaneseq
      %v3389 = vshrl.u32 %v3388, 7
      %v3390 = vsub.s32 %v3387, %v3389
      %v3391 = vrot.slane %v3363, %v3390
      %v3392 = vcombine.high %v3370, %v3370
      %v3393 = vcombine.high %v3377, %v3377
      %v3394 = vcombine.high %v3384, %v3384
      %v3395 = vcombine.high %v3391, %v3391
      %v3396 = vcombine.high %v282, %v282
      %v3398 = vunpack.c.l.s4 1966171168
      %v3399 = vunpack.c.0.s8 %v3398
      %v3400 = vlaneseq
      %v3401 = vshrl.u32 %v3400, 7
      %v3402 = vsub.s32 %v3399, %v3401
      %v3403 = vrot.slane %v282, %v3402
      %v3405 = vunpack.c.l.s4 1966171168
      %v3406 = vunpack.c.0.s8 %v3405
      %v3407 = vlaneseq
      %v3408 = vshrl.u32 %v3407, 7
      %v3409 = vsub.s32 %v3406, %v3408
      %v3410 = vrot.slane %v3396, %v3409
      %v3411 = vcombine.high %v3403, %v3403
      %v3412 = vcombine.high %v3410, %v3410
      %v3414 = vunpack.c.l.s4 1966171168
      %v3415 = vunpack.c.0.s8 %v3414
      %v3416 = vlaneseq
      %v3417 = vshrl.u32 %v3416, 7
      %v3418 = vsub.s32 %v3415, %v3417
      %v3419 = vrot.slane %v3403, %v3418
      %v3421 = vunpack.c.l.s4 1966171168
      %v3422 = vunpack.c.0.s8 %v3421
      %v3423 = vlaneseq
      %v3424 = vshrl.u32 %v3423, 7
      %v3425 = vsub.s32 %v3422, %v3424
      %v3426 = vrot.slane %v3410, %v3425
      %v3428 = vunpack.c.l.s4 1966171168
      %v3429 = vunpack.c.0.s8 %v3428
      %v3430 = vlaneseq
      %v3431 = vshrl.u32 %v3430, 7
      %v3432 = vsub.s32 %v3429, %v3431
      %v3433 = vrot.slane %v3411, %v3432
      %v3435 = vunpack.c.l.s4 1966171168
      %v3436 = vunpack.c.0.s8 %v3435
      %v3437 = vlaneseq
      %v3438 = vshrl.u32 %v3437, 7
      %v3439 = vsub.s32 %v3436, %v3438
      %v3440 = vrot.slane %v3412, %v3439
      %v3441 = vcombine.high %v3419, %v3419
      %v3442 = vcombine.high %v3426, %v3426
      %v3443 = vcombine.high %v3433, %v3433
      %v3444 = vcombine.high %v3440, %v3440
      %v3445 = vcombine.high %v283, %v283
      %v3447 = vunpack.c.l.s4 1966171168
      %v3448 = vunpack.c.0.s8 %v3447
      %v3449 = vlaneseq
      %v3450 = vshrl.u32 %v3449, 7
      %v3451 = vsub.s32 %v3448, %v3450
      %v3452 = vrot.slane %v283, %v3451
      %v3454 = vunpack.c.l.s4 1966171168
      %v3455 = vunpack.c.0.s8 %v3454
      %v3456 = vlaneseq
      %v3457 = vshrl.u32 %v3456, 7
      %v3458 = vsub.s32 %v3455, %v3457
      %v3459 = vrot.slane %v3445, %v3458
      %v3460 = vcombine.high %v3452, %v3452
      %v3461 = vcombine.high %v3459, %v3459
      %v3463 = vunpack.c.l.s4 1966171168
      %v3464 = vunpack.c.0.s8 %v3463
      %v3465 = vlaneseq
      %v3466 = vshrl.u32 %v3465, 7
      %v3467 = vsub.s32 %v3464, %v3466
      %v3468 = vrot.slane %v3452, %v3467
      %v3470 = vunpack.c.l.s4 1966171168
      %v3471 = vunpack.c.0.s8 %v3470
      %v3472 = vlaneseq
      %v3473 = vshrl.u32 %v3472, 7
      %v3474 = vsub.s32 %v3471, %v3473
      %v3475 = vrot.slane %v3459, %v3474
      %v3477 = vunpack.c.l.s4 1966171168
      %v3478 = vunpack.c.0.s8 %v3477
      %v3479 = vlaneseq
      %v3480 = vshrl.u32 %v3479, 7
      %v3481 = vsub.s32 %v3478, %v3480
      %v3482 = vrot.slane %v3460, %v3481
      %v3484 = vunpack.c.l.s4 1966171168
      %v3485 = vunpack.c.0.s8 %v3484
      %v3486 = vlaneseq
      %v3487 = vshrl.u32 %v3486, 7
      %v3488 = vsub.s32 %v3485, %v3487
      %v3489 = vrot.slane %v3461, %v3488
      %v3490 = vcombine.high %v3468, %v3468
      %v3491 = vcombine.high %v3475, %v3475
      %v3492 = vcombine.high %v3482, %v3482
      %v3493 = vcombine.high %v3489, %v3489
      %v3494 = vcombine.high %v284, %v284
      %v3496 = vunpack.c.l.s4 1966171168
      %v3497 = vunpack.c.0.s8 %v3496
      %v3498 = vlaneseq
      %v3499 = vshrl.u32 %v3498, 7
      %v3500 = vsub.s32 %v3497, %v3499
      %v3501 = vrot.slane %v284, %v3500
      %v3503 = vunpack.c.l.s4 1966171168
      %v3504 = vunpack.c.0.s8 %v3503
      %v3505 = vlaneseq
      %v3506 = vshrl.u32 %v3505, 7
      %v3507 = vsub.s32 %v3504, %v3506
      %v3508 = vrot.slane %v3494, %v3507
      %v3509 = vcombine.high %v3501, %v3501
      %v3510 = vcombine.high %v3508, %v3508
      %v3512 = vunpack.c.l.s4 1966171168
      %v3513 = vunpack.c.0.s8 %v3512
      %v3514 = vlaneseq
      %v3515 = vshrl.u32 %v3514, 7
      %v3516 = vsub.s32 %v3513, %v3515
      %v3517 = vrot.slane %v3501, %v3516
      %v3519 = vunpack.c.l.s4 1966171168
      %v3520 = vunpack.c.0.s8 %v3519
      %v3521 = vlaneseq
      %v3522 = vshrl.u32 %v3521, 7
      %v3523 = vsub.s32 %v3520, %v3522
      %v3524 = vrot.slane %v3508, %v3523
      %v3526 = vunpack.c.l.s4 1966171168
      %v3527 = vunpack.c.0.s8 %v3526
      %v3528 = vlaneseq
      %v3529 = vshrl.u32 %v3528, 7
      %v3530 = vsub.s32 %v3527, %v3529
      %v3531 = vrot.slane %v3509, %v3530
      %v3533 = vunpack.c.l.s4 1966171168
      %v3534 = vunpack.c.0.s8 %v3533
      %v3535 = vlaneseq
      %v3536 = vshrl.u32 %v3535, 7
      %v3537 = vsub.s32 %v3534, %v3536
      %v3538 = vrot.slane %v3510, %v3537
      %v3539 = vcombine.high %v3517, %v3517
      %v3540 = vcombine.high %v3524, %v3524
      %v3541 = vcombine.high %v3531, %v3531
      %v3542 = vcombine.high %v3538, %v3538
      %v3543 = vcombine.high %v285, %v285
      %v3545 = vunpack.c.l.s4 1966171168
      %v3546 = vunpack.c.0.s8 %v3545
      %v3547 = vlaneseq
      %v3548 = vshrl.u32 %v3547, 7
      %v3549 = vsub.s32 %v3546, %v3548
      %v3550 = vrot.slane %v285, %v3549
      %v3552 = vunpack.c.l.s4 1966171168
      %v3553 = vunpack.c.0.s8 %v3552
      %v3554 = vlaneseq
      %v3555 = vshrl.u32 %v3554, 7
      %v3556 = vsub.s32 %v3553, %v3555
      %v3557 = vrot.slane %v3543, %v3556
      %v3558 = vcombine.high %v3550, %v3550
      %v3559 = vcombine.high %v3557, %v3557
      %v3561 = vunpack.c.l.s4 1966171168
      %v3562 = vunpack.c.0.s8 %v3561
      %v3563 = vlaneseq
      %v3564 = vshrl.u32 %v3563, 7
      %v3565 = vsub.s32 %v3562, %v3564
      %v3566 = vrot.slane %v3550, %v3565
      %v3568 = vunpack.c.l.s4 1966171168
      %v3569 = vunpack.c.0.s8 %v3568
      %v3570 = vlaneseq
      %v3571 = vshrl.u32 %v3570, 7
      %v3572 = vsub.s32 %v3569, %v3571
      %v3573 = vrot.slane %v3557, %v3572
      %v3575 = vunpack.c.l.s4 1966171168
      %v3576 = vunpack.c.0.s8 %v3575
      %v3577 = vlaneseq
      %v3578 = vshrl.u32 %v3577, 7
      %v3579 = vsub.s32 %v3576, %v3578
      %v3580 = vrot.slane %v3558, %v3579
      %v3582 = vunpack.c.l.s4 1966171168
      %v3583 = vunpack.c.0.s8 %v3582
      %v3584 = vlaneseq
      %v3585 = vshrl.u32 %v3584, 7
      %v3586 = vsub.s32 %v3583, %v3585
      %v3587 = vrot.slane %v3559, %v3586
      %v3588 = vcombine.high %v3566, %v3566
      %v3589 = vcombine.high %v3573, %v3573
      %v3590 = vcombine.high %v3580, %v3580
      %v3591 = vcombine.high %v3587, %v3587
      %v3592 = vcombine.high %v286, %v286
      %v3594 = vunpack.c.l.s4 1966171168
      %v3595 = vunpack.c.0.s8 %v3594
      %v3596 = vlaneseq
      %v3597 = vshrl.u32 %v3596, 7
      %v3598 = vsub.s32 %v3595, %v3597
      %v3599 = vrot.slane %v286, %v3598
      %v3601 = vunpack.c.l.s4 1966171168
      %v3602 = vunpack.c.0.s8 %v3601
      %v3603 = vlaneseq
      %v3604 = vshrl.u32 %v3603, 7
      %v3605 = vsub.s32 %v3602, %v3604
      %v3606 = vrot.slane %v3592, %v3605
      %v3607 = vcombine.high %v3599, %v3599
      %v3608 = vcombine.high %v3606, %v3606
      %v3610 = vunpack.c.l.s4 1966171168
      %v3611 = vunpack.c.0.s8 %v3610
      %v3612 = vlaneseq
      %v3613 = vshrl.u32 %v3612, 7
      %v3614 = vsub.s32 %v3611, %v3613
      %v3615 = vrot.slane %v3599, %v3614
      %v3617 = vunpack.c.l.s4 1966171168
      %v3618 = vunpack.c.0.s8 %v3617
      %v3619 = vlaneseq
      %v3620 = vshrl.u32 %v3619, 7
      %v3621 = vsub.s32 %v3618, %v3620
      %v3622 = vrot.slane %v3606, %v3621
      %v3624 = vunpack.c.l.s4 1966171168
      %v3625 = vunpack.c.0.s8 %v3624
      %v3626 = vlaneseq
      %v3627 = vshrl.u32 %v3626, 7
      %v3628 = vsub.s32 %v3625, %v3627
      %v3629 = vrot.slane %v3607, %v3628
      %v3631 = vunpack.c.l.s4 1966171168
      %v3632 = vunpack.c.0.s8 %v3631
      %v3633 = vlaneseq
      %v3634 = vshrl.u32 %v3633, 7
      %v3635 = vsub.s32 %v3632, %v3634
      %v3636 = vrot.slane %v3608, %v3635
      %v3637 = vcombine.high %v3615, %v3615
      %v3638 = vcombine.high %v3622, %v3622
      %v3639 = vcombine.high %v3629, %v3629
      %v3640 = vcombine.high %v3636, %v3636
      %v3641 = vcombine.high %v287, %v287
      %v3643 = vunpack.c.l.s4 1966171168
      %v3644 = vunpack.c.0.s8 %v3643
      %v3645 = vlaneseq
      %v3646 = vshrl.u32 %v3645, 7
      %v3647 = vsub.s32 %v3644, %v3646
      %v3648 = vrot.slane %v287, %v3647
      %v3650 = vunpack.c.l.s4 1966171168
      %v3651 = vunpack.c.0.s8 %v3650
      %v3652 = vlaneseq
      %v3653 = vshrl.u32 %v3652, 7
      %v3654 = vsub.s32 %v3651, %v3653
      %v3655 = vrot.slane %v3641, %v3654
      %v3656 = vcombine.high %v3648, %v3648
      %v3657 = vcombine.high %v3655, %v3655
      %v3659 = vunpack.c.l.s4 1966171168
      %v3660 = vunpack.c.0.s8 %v3659
      %v3661 = vlaneseq
      %v3662 = vshrl.u32 %v3661, 7
      %v3663 = vsub.s32 %v3660, %v3662
      %v3664 = vrot.slane %v3648, %v3663
      %v3666 = vunpack.c.l.s4 1966171168
      %v3667 = vunpack.c.0.s8 %v3666
      %v3668 = vlaneseq
      %v3669 = vshrl.u32 %v3668, 7
      %v3670 = vsub.s32 %v3667, %v3669
      %v3671 = vrot.slane %v3655, %v3670
      %v3673 = vunpack.c.l.s4 1966171168
      %v3674 = vunpack.c.0.s8 %v3673
      %v3675 = vlaneseq
      %v3676 = vshrl.u32 %v3675, 7
      %v3677 = vsub.s32 %v3674, %v3676
      %v3678 = vrot.slane %v3656, %v3677
      %v3680 = vunpack.c.l.s4 1966171168
      %v3681 = vunpack.c.0.s8 %v3680
      %v3682 = vlaneseq
      %v3683 = vshrl.u32 %v3682, 7
      %v3684 = vsub.s32 %v3681, %v3683
      %v3685 = vrot.slane %v3657, %v3684
      %v3686 = vcombine.high %v3664, %v3664
      %v3687 = vcombine.high %v3671, %v3671
      %v3688 = vcombine.high %v3678, %v3678
      %v3689 = vcombine.high %v3685, %v3685
      %v3690 = vcombine.high %v288, %v288
      %v3692 = vunpack.c.l.s4 1966171168
      %v3693 = vunpack.c.0.s8 %v3692
      %v3694 = vlaneseq
      %v3695 = vshrl.u32 %v3694, 7
      %v3696 = vsub.s32 %v3693, %v3695
      %v3697 = vrot.slane %v288, %v3696
      %v3699 = vunpack.c.l.s4 1966171168
      %v3700 = vunpack.c.0.s8 %v3699
      %v3701 = vlaneseq
      %v3702 = vshrl.u32 %v3701, 7
      %v3703 = vsub.s32 %v3700, %v3702
      %v3704 = vrot.slane %v3690, %v3703
      %v3705 = vcombine.high %v3697, %v3697
      %v3706 = vcombine.high %v3704, %v3704
      %v3708 = vunpack.c.l.s4 1966171168
      %v3709 = vunpack.c.0.s8 %v3708
      %v3710 = vlaneseq
      %v3711 = vshrl.u32 %v3710, 7
      %v3712 = vsub.s32 %v3709, %v3711
      %v3713 = vrot.slane %v3697, %v3712
      %v3715 = vunpack.c.l.s4 1966171168
      %v3716 = vunpack.c.0.s8 %v3715
      %v3717 = vlaneseq
      %v3718 = vshrl.u32 %v3717, 7
      %v3719 = vsub.s32 %v3716, %v3718
      %v3720 = vrot.slane %v3704, %v3719
      %v3722 = vunpack.c.l.s4 1966171168
      %v3723 = vunpack.c.0.s8 %v3722
      %v3724 = vlaneseq
      %v3725 = vshrl.u32 %v3724, 7
      %v3726 = vsub.s32 %v3723, %v3725
      %v3727 = vrot.slane %v3705, %v3726
      %v3729 = vunpack.c.l.s4 1966171168
      %v3730 = vunpack.c.0.s8 %v3729
      %v3731 = vlaneseq
      %v3732 = vshrl.u32 %v3731, 7
      %v3733 = vsub.s32 %v3730, %v3732
      %v3734 = vrot.slane %v3706, %v3733
      %v3735 = vcombine.high %v3713, %v3713
      %v3736 = vcombine.high %v3720, %v3720
      %v3737 = vcombine.high %v3727, %v3727
      %v3738 = vcombine.high %v3734, %v3734
      %v3739 = vcombine.high %v289, %v289
      %v3741 = vunpack.c.l.s4 1966171168
      %v3742 = vunpack.c.0.s8 %v3741
      %v3743 = vlaneseq
      %v3744 = vshrl.u32 %v3743, 7
      %v3745 = vsub.s32 %v3742, %v3744
      %v3746 = vrot.slane %v289, %v3745
      %v3748 = vunpack.c.l.s4 1966171168
      %v3749 = vunpack.c.0.s8 %v3748
      %v3750 = vlaneseq
      %v3751 = vshrl.u32 %v3750, 7
      %v3752 = vsub.s32 %v3749, %v3751
      %v3753 = vrot.slane %v3739, %v3752
      %v3754 = vcombine.high %v3746, %v3746
      %v3755 = vcombine.high %v3753, %v3753
      %v3757 = vunpack.c.l.s4 1966171168
      %v3758 = vunpack.c.0.s8 %v3757
      %v3759 = vlaneseq
      %v3760 = vshrl.u32 %v3759, 7
      %v3761 = vsub.s32 %v3758, %v3760
      %v3762 = vrot.slane %v3746, %v3761
      %v3764 = vunpack.c.l.s4 1966171168
      %v3765 = vunpack.c.0.s8 %v3764
      %v3766 = vlaneseq
      %v3767 = vshrl.u32 %v3766, 7
      %v3768 = vsub.s32 %v3765, %v3767
      %v3769 = vrot.slane %v3753, %v3768
      %v3771 = vunpack.c.l.s4 1966171168
      %v3772 = vunpack.c.0.s8 %v3771
      %v3773 = vlaneseq
      %v3774 = vshrl.u32 %v3773, 7
      %v3775 = vsub.s32 %v3772, %v3774
      %v3776 = vrot.slane %v3754, %v3775
      %v3778 = vunpack.c.l.s4 1966171168
      %v3779 = vunpack.c.0.s8 %v3778
      %v3780 = vlaneseq
      %v3781 = vshrl.u32 %v3780, 7
      %v3782 = vsub.s32 %v3779, %v3781
      %v3783 = vrot.slane %v3755, %v3782
      %v3784 = vcombine.high %v3762, %v3762
      %v3785 = vcombine.high %v3769, %v3769
      %v3786 = vcombine.high %v3776, %v3776
      %v3787 = vcombine.high %v3783, %v3783
      %v3788 = vcombine.high %v290, %v290
      %v3790 = vunpack.c.l.s4 1966171168
      %v3791 = vunpack.c.0.s8 %v3790
      %v3792 = vlaneseq
      %v3793 = vshrl.u32 %v3792, 7
      %v3794 = vsub.s32 %v3791, %v3793
      %v3795 = vrot.slane %v290, %v3794
      %v3797 = vunpack.c.l.s4 1966171168
      %v3798 = vunpack.c.0.s8 %v3797
      %v3799 = vlaneseq
      %v3800 = vshrl.u32 %v3799, 7
      %v3801 = vsub.s32 %v3798, %v3800
      %v3802 = vrot.slane %v3788, %v3801
      %v3803 = vcombine.high %v3795, %v3795
      %v3804 = vcombine.high %v3802, %v3802
      %v3806 = vunpack.c.l.s4 1966171168
      %v3807 = vunpack.c.0.s8 %v3806
      %v3808 = vlaneseq
      %v3809 = vshrl.u32 %v3808, 7
      %v3810 = vsub.s32 %v3807, %v3809
      %v3811 = vrot.slane %v3795, %v3810
      %v3813 = vunpack.c.l.s4 1966171168
      %v3814 = vunpack.c.0.s8 %v3813
      %v3815 = vlaneseq
      %v3816 = vshrl.u32 %v3815, 7
      %v3817 = vsub.s32 %v3814, %v3816
      %v3818 = vrot.slane %v3802, %v3817
      %v3820 = vunpack.c.l.s4 1966171168
      %v3821 = vunpack.c.0.s8 %v3820
      %v3822 = vlaneseq
      %v3823 = vshrl.u32 %v3822, 7
      %v3824 = vsub.s32 %v3821, %v3823
      %v3825 = vrot.slane %v3803, %v3824
      %v3827 = vunpack.c.l.s4 1966171168
      %v3828 = vunpack.c.0.s8 %v3827
      %v3829 = vlaneseq
      %v3830 = vshrl.u32 %v3829, 7
      %v3831 = vsub.s32 %v3828, %v3830
      %v3832 = vrot.slane %v3804, %v3831
      %v3833 = vcombine.high %v3811, %v3811
      %v3834 = vcombine.high %v3818, %v3818
      %v3835 = vcombine.high %v3825, %v3825
      %v3836 = vcombine.high %v3832, %v3832
      %v3837 = vcombine.high %v291, %v291
      %v3839 = vunpack.c.l.s4 1966171168
      %v3840 = vunpack.c.0.s8 %v3839
      %v3841 = vlaneseq
      %v3842 = vshrl.u32 %v3841, 7
      %v3843 = vsub.s32 %v3840, %v3842
      %v3844 = vrot.slane %v291, %v3843
      %v3846 = vunpack.c.l.s4 1966171168
      %v3847 = vunpack.c.0.s8 %v3846
      %v3848 = vlaneseq
      %v3849 = vshrl.u32 %v3848, 7
      %v3850 = vsub.s32 %v3847, %v3849
      %v3851 = vrot.slane %v3837, %v3850
      %v3852 = vcombine.high %v3844, %v3844
      %v3853 = vcombine.high %v3851, %v3851
      %v3855 = vunpack.c.l.s4 1966171168
      %v3856 = vunpack.c.0.s8 %v3855
      %v3857 = vlaneseq
      %v3858 = vshrl.u32 %v3857, 7
      %v3859 = vsub.s32 %v3856, %v3858
      %v3860 = vrot.slane %v3844, %v3859
      %v3862 = vunpack.c.l.s4 1966171168
      %v3863 = vunpack.c.0.s8 %v3862
      %v3864 = vlaneseq
      %v3865 = vshrl.u32 %v3864, 7
      %v3866 = vsub.s32 %v3863, %v3865
      %v3867 = vrot.slane %v3851, %v3866
      %v3869 = vunpack.c.l.s4 1966171168
      %v3870 = vunpack.c.0.s8 %v3869
      %v3871 = vlaneseq
      %v3872 = vshrl.u32 %v3871, 7
      %v3873 = vsub.s32 %v3870, %v3872
      %v3874 = vrot.slane %v3852, %v3873
      %v3876 = vunpack.c.l.s4 1966171168
      %v3877 = vunpack.c.0.s8 %v3876
      %v3878 = vlaneseq
      %v3879 = vshrl.u32 %v3878, 7
      %v3880 = vsub.s32 %v3877, %v3879
      %v3881 = vrot.slane %v3853, %v3880
      %v3882 = vcombine.high %v3860, %v3860
      %v3883 = vcombine.high %v3867, %v3867
      %v3884 = vcombine.high %v3874, %v3874
      %v3885 = vcombine.high %v3881, %v3881
      %v3887 = vunpack.c.l.s4 1966171168
      %v3888 = vunpack.c.0.s8 %v3887
      %v3889 = vlaneseq
      %v3890 = vshrl.u32 %v3889, 7
      %v3891 = vsub.s32 %v3888, %v3890
      %v3892 = vrot.slane %v292, %v3891
      %v3893 = vcombine.high %v3892, %v3892
      %v3895 = vunpack.c.l.s4 1966171168
      %v3896 = vunpack.c.0.s8 %v3895
      %v3897 = vlaneseq
      %v3898 = vshrl.u32 %v3897, 7
      %v3899 = vsub.s32 %v3896, %v3898
      %v3900 = vrot.slane %v3892, %v3899
      %v3902 = vunpack.c.l.s4 1966171168
      %v3903 = vunpack.c.0.s8 %v3902
      %v3904 = vlaneseq
      %v3905 = vshrl.u32 %v3904, 7
      %v3906 = vsub.s32 %v3903, %v3905
      %v3907 = vrot.slane %v3893, %v3906
      %v6662 = vunpack.c.l.b16 %v293
      %v6663 = vunpack.c.l.b16 %v294
      %v6664 = vunpack.c.l.b16 %v295
      %v6665 = vunpack.c.l.b16 %v296
      %v6666 = vunpack.c.l.b16 %v297
      %v6667 = vunpack.c.l.b16 %v298
      %v6668 = vunpack.c.l.b16 %v299
      %v6669 = vunpack.c.l.b16 %v300
      %v6670 = vunpack.c.l.b16 %v301
      %v6671 = vunpack.c.l.b16 %v302
      %v6672 = vunpack.c.l.b16 %v303
      %v6673 = vunpack.c.l.b16 %v304
      %v6674 = vunpack.c.l.b16 %v305
      %v6675 = vunpack.c.l.b16 %v306
      %v6676 = vunpack.c.l.b16 %v307
      %v6677 = vunpack.c.l.b16 %v308
      %v6678 = vunpack.c.l.b16 %v309
      %v6679 = vunpack.c.l.b16 %v310
      %v6680 = vunpack.c.l.b16 %v311
      %v6681 = vunpack.c.l.b16 %v312
      %v6682 = vunpack.c.l.b16 %v313
      %v6683 = vunpack.c.l.b16 %v314
      %v6684 = vunpack.c.l.b16 %v315
      %v6685 = vunpack.c.l.b16 %v316
      %v6686 = vunpack.c.l.b16 %v317
      %v6687 = vunpack.c.l.b16 %v318
      %v6688 = vunpack.c.l.b16 %v319
      %v6689 = vunpack.c.l.b16 %v320
      %v6690 = vunpack.c.l.b16 %v321
      %v6691 = vunpack.c.l.b16 %v322
      %v6692 = vunpack.c.l.b16 %v323
      %v6693 = vunpack.c.l.b16 %v324
      %v6694 = vunpack.c.l.b16 %v325
      %v6695 = vunpack.c.l.b16 %v326
      %v6696 = vunpack.c.l.b16 %v327
      %v6697 = vunpack.c.l.b16 %v328
      %v6698 = vunpack.c.l.b16 %v329
      %v6699 = vunpack.c.l.b16 %v330
      %v6700 = vunpack.c.l.b16 %v331
      %v6701 = vunpack.c.l.b16 %v332
      %v6702 = vunpack.c.l.b16 %v333
      %v6703 = vunpack.c.l.b16 %v334
      %v6704 = vunpack.c.l.b16 %v335
      %v6705 = vunpack.c.l.b16 %v336
      %v6706 = vunpack.c.l.b16 %v337
      %v6707 = vunpack.c.l.b16 %v338
      %v6708 = vunpack.c.l.b16 %v339
      %v6709 = vunpack.c.l.b16 %v340
      %v6710 = vunpack.c.l.b16 %v341
      %v6711 = vunpack.c.l.b16 %v342
      %v6712 = vunpack.c.l.b16 %v343
      %v6713 = vunpack.c.l.b16 %v344
      %v6714 = vunpack.c.l.b16 %v345
      %v6715 = vunpack.c.l.b16 %v346
      %v6716 = vunpack.c.l.b16 %v347
      %v6717 = vunpack.c.l.b16 %v348
      %v6718 = vunpack.c.l.b16 %v349
      %v6719 = vunpack.c.l.b16 %v350
      %v6720 = vunpack.c.l.b16 %v351
      %v6721 = vunpack.c.l.b16 %v352
      %v6722 = vunpack.c.l.b16 %v353
      %v6723 = vunpack.c.l.b16 %v354
      %v6724 = vunpack.c.l.b16 %v355
      %v6725 = vunpack.c.l.b16 %v356
      %v6726 = vunpack.c.l.b16 %v357
      %v6727 = vunpack.c.l.b16 %v358
      %v6728 = vunpack.c.l.b16 %v359
      %v6729 = vunpack.c.l.b16 %v360
      %v6730 = vunpack.c.l.b16 %v361
      %v6731 = vunpack.c.l.b16 %v362
      %v6732 = vunpack.c.l.b16 %v363
      %v6733 = vunpack.c.l.b16 %v364
      %v6734 = vunpack.c.l.b16 %v365
      %v6735 = vunpack.c.l.b16 %v366
      %v6736 = vunpack.c.l.b16 %v367
      %v6737 = vunpack.c.l.b16 %v368
      %v6738 = vunpack.c.l.b16 %v369
      %v6739 = vunpack.c.l.b16 %v370
      %v6740 = vunpack.c.l.b16 %v371
      %v6741 = vunpack.c.l.b16 %v372
      %v6742 = vunpack.c.l.b16 %v373
      %v6743 = vunpack.c.l.b16 %v374
      %v6744 = vunpack.c.l.b16 %v375
      %v6745 = vunpack.c.l.b16 %v376
      %v6746 = vunpack.c.l.b16 %v377
      %v6747 = vunpack.c.l.b16 %v378
      %v6748 = vunpack.c.l.b16 %v379
      %v6749 = vunpack.c.l.b16 %v380
      %v6750 = vunpack.c.l.b16 %v381
      %v6751 = vunpack.c.l.b16 %v382
      %v6752 = vunpack.c.l.b16 %v383
      %v6753 = vunpack.c.l.b16 %v384
      %v6754 = vunpack.c.l.b16 %v385
      %v6755 = vunpack.c.l.b16 %v386
      %v6756 = vunpack.c.l.b16 %v387
      %v6757 = vunpack.c.l.b16 %v388
      %v6758 = vunpack.c.l.b16 %v389
      %v6759 = vunpack.c.l.b16 %v390
      %v6760 = vunpack.c.l.b16 %v391
      %v6761 = vunpack.c.l.b16 %v392
      %v6762 = vunpack.c.l.b16 %v393
      %v6763 = vunpack.c.l.b16 %v394
      %v6764 = vunpack.c.l.b16 %v395
      %v6765 = vunpack.c.l.b16 %v396
      %v6766 = vunpack.c.l.b16 %v397
      %v6767 = vunpack.c.l.b16 %v398
      %v6768 = vunpack.c.l.b16 %v399
      %v6769 = vunpack.c.l.b16 %v400
      %v6770 = vunpack.c.l.b16 %v401
      %v6771 = vunpack.c.l.b16 %v402
      %v6772 = vunpack.c.l.b16 %v403
      %v6773 = vunpack.c.l.b16 %v404
      %v6774 = vunpack.c.l.b16 %v405
      %v6775 = vunpack.c.l.b16 %v406
      %v6776 = vunpack.c.l.b16 %v407
      %v6777 = vunpack.c.l.b16 %v408
      %v6778 = vunpack.c.l.b16 %v409
      %v6779 = vunpack.c.l.b16 %v410
      %v6780 = vunpack.c.l.b16 %v411
      %v6781 = vunpack.c.l.b16 %v412
      %v6782 = vunpack.c.l.b16 %v413
      %v6783 = vunpack.c.l.b16 %v414
      %v6784 = vunpack.c.l.b16 %v415
      %v6785 = vunpack.c.l.b16 %v416
      %v6786 = vunpack.c.l.b16 %v417
      %v6787 = vunpack.c.l.b16 %v418
      %v6788 = vunpack.c.l.b16 %v419
      %v6789 = vunpack.c.l.b16 %v420
      %v6790 = vunpack.c.l.b16 %v421
      %v6791 = vunpack.c.l.b16 %v422
      %v6792 = vunpack.c.l.b16 %v423
      %v6793 = vunpack.c.l.b16 %v424
      %v6794 = vunpack.c.l.b16 %v425
      %v6795 = vunpack.c.l.b16 %v426
      %v6796 = vunpack.c.l.b16 %v427
      %v6797 = vunpack.c.l.b16 %v428
      %v6798 = vunpack.c.l.b16 %v429
      %v6799 = vunpack.c.l.b16 %v430
      %v6800 = vunpack.c.l.b16 %v431
      %v6801 = vunpack.c.l.b16 %v432
      %v6802 = vunpack.c.l.b16 %v433
      %v6803 = vunpack.c.l.b16 %v434
      %v6804 = vunpack.c.l.b16 %v435
      %v6805 = vunpack.c.l.b16 %v436
      %v6806 = vunpack.c.l.b16 %v437
      %v6807 = vunpack.c.l.b16 %v438
      %v6808 = vunpack.c.l.b16 %v439
      %v6809 = vunpack.c.l.b16 %v440
      %v6810 = vunpack.c.l.b16 %v441
      %v6811 = vunpack.c.l.b16 %v442
      %v6812 = vunpack.c.l.b16 %v443
      %v6813 = vunpack.c.l.b16 %v444
      %v6814 = vunpack.c.l.b16 %v445
      %v6815 = vunpack.c.l.b16 %v446
      %v6816 = vunpack.c.l.b16 %v447
      %v6817 = vunpack.c.l.b16 %v448
      %v6818 = vunpack.c.l.b16 %v449
      %v6819 = vunpack.c.l.b16 %v450
      %v6820 = vunpack.c.l.b16 %v451
      %v6821 = vunpack.c.l.b16 %v452
      %v6822 = vunpack.c.l.b16 %v453
      %v6823 = vunpack.c.l.b16 %v454
      %v6824 = vunpack.c.l.b16 %v455
      %v6825 = vunpack.c.l.b16 %v456
      %v6826 = vunpack.c.l.b16 %v457
      %v6827 = vunpack.c.l.b16 %v458
      %v6828 = vunpack.c.l.b16 %v459
      %v6829 = vunpack.c.l.b16 %v460
      %v6830 = vunpack.c.l.b16 %v461
      %v6831 = vunpack.c.l.b16 %v462
      %v6832 = vunpack.c.l.b16 %v463
      %v6833 = vunpack.c.l.b16 %v464
      %v6834 = vunpack.c.l.b16 %v465
      %v6835 = vunpack.c.l.b16 %v466
      %v6836 = vunpack.c.l.b16 %v467
      %v6837 = vunpack.c.l.b16 %v468
      %v6838 = vunpack.c.l.b16 %v469
      %v6839 = vunpack.c.l.b16 %v470
      %v6840 = vunpack.c.l.b16 %v471
      %v6841 = vunpack.c.l.b16 %v472
      %v6842 = vunpack.c.l.b16 %v473
      %v6843 = vunpack.c.l.b16 %v474
      %v6844 = vunpack.c.l.b16 %v475
      %v6845 = vunpack.c.l.b16 %v476
      %v6846 = vunpack.c.l.b16 %v477
      %v6847 = vunpack.c.l.b16 %v478
      %v6848 = vunpack.c.l.b16 %v479
      %v6849 = vunpack.c.l.b16 %v480
      %v6850 = vunpack.c.l.b16 %v481
      %v6851 = vunpack.c.l.b16 %v482
      %v6852 = vunpack.c.l.b16 %v483
      %v6853 = vunpack.c.l.b16 %v484
      %v6854 = vunpack.c.l.b16 %v485
      %v6855 = vunpack.c.l.b16 %v486
      %v6856 = vunpack.c.l.b16 %v487
      %v6857 = vunpack.c.l.b16 %v488
      %v6858 = vunpack.c.l.b16 %v489
      %v6859 = vunpack.c.l.b16 %v490
      %v6860 = vunpack.c.l.b16 %v491
      %v6861 = vunpack.c.l.b16 %v492
      %v6862 = vunpack.c.l.b16 %v493
      %v6863 = vunpack.c.l.b16 %v494
      %v6864 = vunpack.c.l.b16 %v495
      %v6865 = vunpack.c.l.b16 %v496
      %v6866 = vunpack.c.l.b16 %v497
      %v6867 = vunpack.c.l.b16 %v498
      %v6868 = vunpack.c.l.b16 %v499
      %v6869 = vunpack.c.l.b16 %v500
      %v6870 = vunpack.c.l.b16 %v501
      %v6871 = vunpack.c.l.b16 %v502
      %v6872 = vunpack.c.l.b16 %v503
      %v6873 = vunpack.c.l.b16 %v504
      %v6874 = vunpack.c.l.b16 %v505
      %v6875 = vunpack.c.l.b16 %v506
      %v6876 = vunpack.c.l.b16 %v507
      %v6877 = vunpack.c.l.b16 %v508
      %v6878 = vunpack.c.l.b16 %v509
      %v6879 = vunpack.c.l.b16 %v510
      %v6880 = vunpack.c.l.b16 %v511
      %v6881 = vunpack.c.l.b16 %v512
      %v6882 = vunpack.c.l.b16 %v513
      %v6883 = vunpack.c.l.b16 %v514
      %v6884 = vunpack.c.l.b16 %v515
      %v6885 = vunpack.c.l.b16 %v516
      %v6886 = vunpack.c.l.b16 %v517
      %v6887 = vunpack.c.l.b16 %v518
      %v6888 = vunpack.c.l.b16 %v519
      %v6889 = vunpack.c.l.b16 %v520
      %v6890 = vunpack.c.l.b16 %v521
      %v6891 = vunpack.c.l.b16 %v522
      %v6892 = vunpack.c.l.b16 %v523
      %v6893 = vunpack.c.l.b16 %v524
      %v6894 = vunpack.c.l.b16 %v525
      %v6895 = vunpack.c.l.b16 %v526
      %v6896 = vunpack.c.l.b16 %v527
      %v6897 = vunpack.c.l.b16 %v528
      %v6898 = vunpack.c.l.b16 %v529
      %v6899 = vunpack.c.l.b16 %v530
      %v6900 = vunpack.c.l.b16 %v531
      %v6901 = vunpack.c.l.b16 %v532
      %v6902 = vunpack.c.l.b16 %v533
      %v6903 = vunpack.c.l.b16 %v534
      %v6904 = vunpack.c.l.b16 %v535
      %v6905 = vunpack.c.l.b16 %v536
      %v6906 = vunpack.c.l.b16 %v537
      %v6907 = vunpack.c.l.b16 %v538
      %v6908 = vunpack.c.l.b16 %v539
      %v6909 = vunpack.c.l.b16 %v540
      %v6910 = vunpack.c.l.b16 %v541
      %v6911 = vunpack.c.l.b16 %v542
      %v6912 = vunpack.c.l.b16 %v543
      %v6913 = vunpack.c.l.b16 %v544
      %v6914 = vunpack.c.l.b16 %v545
      %v6915 = vunpack.c.l.b16 %v546
      %v6916 = vunpack.c.l.b16 %v547
      %v6917 = vunpack.c.l.b16 %v548
      %v6918 = vunpack.c.l.b16 %v549
      %v6919 = vunpack.c.l.b16 %v550
      %v6920 = vunpack.c.l.b16 %v551
      %v6921 = vunpack.c.l.b16 %v552
      %v6922 = vunpack.c.l.b16 %v553
      %v6923 = vunpack.c.l.b16 %v554
      %v6924 = vunpack.c.l.b16 %v555
      %v6925 = vunpack.c.l.b16 %v556
      %v6926 = vunpack.c.l.b16 %v557
      %v6927 = vunpack.c.l.b16 %v558
      %v6928 = vunpack.c.l.b16 %v559
      %v6929 = vunpack.c.l.b16 %v560
      %v6930 = vunpack.c.l.b16 %v561
      %v6931 = vunpack.c.l.b16 %v562
      %v6932 = vunpack.c.l.b16 %v563
      %v6933 = vunpack.c.l.b16 %v564
      %v6934 = vunpack.c.l.b16 %v565
      %v6935 = vunpack.c.l.b16 %v566
      %v6936 = vunpack.c.l.b16 %v567
      %v6937 = vunpack.c.l.b16 %v568
      %v6938 = vunpack.c.l.b16 %v569
      %v6939 = vunpack.c.l.b16 %v570
      %v6940 = vunpack.c.l.b16 %v571
      %v6941 = vunpack.c.l.b16 %v572
      %v6942 = vunpack.c.l.b16 %v573
      %v6943 = vunpack.c.l.b16 %v574
      %v6944 = vunpack.c.l.b16 %v575
      %v6945 = vunpack.c.l.b16 %v576
      %v6946 = vunpack.c.l.b16 %v577
      %v6947 = vunpack.c.l.b16 %v578
      %v6948 = vunpack.c.l.b16 %v579
      %v6949 = vunpack.c.l.b16 %v580
      %v6950 = vunpack.c.l.b16 %v581
      %v6951 = vunpack.c.l.b16 %v582
      %v6952 = vunpack.c.l.b16 %v583
      %v6953 = vunpack.c.l.b16 %v584
      %v6954 = vunpack.c.l.b16 %v585
      %v6955 = vunpack.c.l.b16 %v586
      %v6956 = vunpack.c.l.b16 %v587
      %v6957 = vunpack.c.l.b16 %v588
      %v6958 = vunpack.c.l.b16 %v589
      %v6959 = vunpack.c.l.b16 %v590
      %v6960 = vunpack.c.l.b16 %v591
      %v6961 = vunpack.c.l.b16 %v592
      %v6962 = vunpack.c.l.b16 %v593
      %v6963 = vunpack.c.l.b16 %v594
      %v6964 = vunpack.c.l.b16 %v595
      %v6965 = vunpack.c.l.b16 %v596
      %v6966 = vunpack.c.l.b16 %v597
      %v6967 = vunpack.c.l.b16 %v598
      %v6968 = vunpack.c.l.b16 %v599
      %v6969 = vunpack.c.l.b16 %v600
      %v6970 = vunpack.c.l.b16 %v601
      %v6971 = vunpack.c.l.b16 %v602
      %v6972 = vunpack.c.l.b16 %v603
      %v6973 = vunpack.c.l.b16 %v604
      %v6974 = vunpack.c.l.b16 %v605
      %v6975 = vunpack.c.l.b16 %v606
      %v6976 = vunpack.c.l.b16 %v607
      %v6977 = vunpack.c.l.b16 %v608
      %v6978 = vunpack.c.l.b16 %v609
      %v6979 = vunpack.c.l.b16 %v610
      %v6980 = vunpack.c.l.b16 %v611
      %v6981 = vunpack.c.l.b16 %v612
      %v6982 = vunpack.c.l.b16 %v613
      %v6983 = vunpack.c.l.b16 %v614
      %v6984 = vunpack.c.l.b16 %v615
      %v6985 = vunpack.c.l.b16 %v616
      %v6986 = vunpack.c.l.b16 %v617
      %v6987 = vunpack.c.l.b16 %v618
      %v6988 = vunpack.c.l.b16 %v619
      %v6989 = vunpack.c.l.b16 %v620
      %v6990 = vunpack.c.l.b16 %v621
      %v6991 = vunpack.c.l.b16 %v622
      %v6992 = vunpack.c.l.b16 %v623
      %v6993 = vunpack.c.l.b16 %v624
      %v6994 = vunpack.c.l.b16 %v625
      %v6995 = vunpack.c.l.b16 %v626
      %v6996 = vunpack.c.l.b16 %v627
      %v6997 = vunpack.c.l.b16 %v628
      %v6998 = vunpack.c.l.b16 %v629
      %v6999 = vunpack.c.l.b16 %v630
      %v7000 = vunpack.c.l.b16 %v631
      %v7001 = vunpack.c.l.b16 %v632
      %v7002 = vunpack.c.l.b16 %v633
      %v7003 = vunpack.c.l.b16 %v634
      %v7004 = vunpack.c.l.b16 %v635
      %v7005 = vunpack.c.l.b16 %v636
      %v7006 = vunpack.c.l.b16 %v637
      %v7007 = vunpack.c.l.b16 %v638
      %v7008 = vunpack.c.l.b16 %v639
      %v7009 = vunpack.c.l.b16 %v640
      %v7010 = vunpack.c.l.b16 %v641
      %v7011 = vunpack.c.l.b16 %v642
      %v7012 = vunpack.c.l.b16 %v643
      %v7013 = vunpack.c.l.b16 %v644
      %v7014 = vunpack.c.l.b16 %v645
      %v7015 = vunpack.c.l.b16 %v646
      %v7016 = vunpack.c.l.b16 %v647
      %v7017 = vunpack.c.l.b16 %v648
      %v7018 = vunpack.c.l.b16 %v649
      %v7019 = vunpack.c.l.b16 %v650
      %v7020 = vunpack.c.l.b16 %v651
      %v7021 = vunpack.c.l.b16 %v652
      %v7022 = vunpack.c.l.b16 %v653
      %v7023 = vunpack.c.l.b16 %v654
      %v7024 = vunpack.c.l.b16 %v655
      %v7025 = vunpack.c.l.b16 %v656
      %v7026 = vunpack.c.l.b16 %v657
      %v7027 = vunpack.c.l.b16 %v658
      %v7028 = vunpack.c.l.b16 %v659
      %v7029 = vunpack.c.l.b16 %v660
      %v7030 = vunpack.c.l.b16 %v661
      %v7031 = vunpack.c.l.b16 %v662
      %v7032 = vunpack.c.l.b16 %v663
      %v7033 = vunpack.c.l.b16 %v664
      %v7034 = vunpack.c.l.b16 %v665
      %v7035 = vunpack.c.l.b16 %v666
      %v7036 = vunpack.c.l.b16 %v667
      %v7037 = vunpack.c.l.b16 %v668
      %v7038 = vunpack.c.l.b16 %v669
      %v7039 = vunpack.c.l.b16 %v670
      %v7040 = vunpack.c.l.b16 %v671
      %v7041 = vunpack.c.l.b16 %v672
      %v7042 = vunpack.c.l.b16 %v673
      %v7043 = vunpack.c.l.b16 %v674
      %v7044 = vunpack.c.l.b16 %v675
      %v7045 = vunpack.c.l.b16 %v676
      %v7046 = vunpack.c.l.b16 %v677
      %v7047 = vunpack.c.l.b16 %v678
      %v7048 = vunpack.c.l.b16 %v679
      %v7049 = vunpack.c.l.b16 %v680
      %v7050 = vunpack.c.l.b16 %v681
      %v7051 = vunpack.c.l.b16 %v682
      %v7052 = vunpack.c.l.b16 %v683
      %v7053 = vunpack.c.l.b16 %v684
      %v7054 = vunpack.c.l.b16 %v685
      %v7055 = vunpack.c.l.b16 %v686
      %v7056 = vunpack.c.l.b16 %v687
      %v7057 = vunpack.c.l.b16 %v688
      %v7058 = vunpack.c.l.b16 %v689
      %v7059 = vunpack.c.l.b16 %v690
      %v7060 = vunpack.c.l.b16 %v691
      %v7061 = vunpack.c.l.b16 %v692
      %v7062 = vunpack.c.l.b16 %v693
      %v7063 = vunpack.c.l.b16 %v694
      %v7064 = vunpack.c.l.b16 %v695
      %v7065 = vunpack.c.l.b16 %v696
      %v7066 = vunpack.c.l.b16 %v697
      %v7067 = vunpack.c.l.b16 %v698
      %v7068 = vunpack.c.l.b16 %v699
      %v7069 = vunpack.c.l.b16 %v700
      %v7070 = vunpack.c.l.b16 %v701
      %v7071 = vunpack.c.l.b16 %v702
      %v7072 = vunpack.c.l.b16 %v703
      %v7073 = vunpack.c.l.b16 %v704
      %v7074 = vunpack.c.l.b16 %v705
      %v7075 = vunpack.c.l.b16 %v706
      %v7076 = vunpack.c.l.b16 %v707
      %v7077 = vunpack.c.l.b16 %v708
      %v7078 = vunpack.c.l.b16 %v709
      %v7079 = vunpack.c.l.b16 %v710
      %v7080 = vunpack.c.l.b16 %v711
      %v7081 = vunpack.c.l.b16 %v712
      %v7082 = vunpack.c.l.b16 %v713
      %v7083 = vunpack.c.l.b16 %v714
      %v7084 = vunpack.c.l.b16 %v715
      %v7085 = vunpack.c.l.b16 %v716
      %v7086 = vunpack.c.l.b16 %v717
      %v7087 = vunpack.c.l.b16 %v718
      %v7088 = vunpack.c.l.b16 %v719
      %v7089 = vunpack.c.l.b16 %v720
      %v7090 = vunpack.c.l.b16 %v721
      %v7091 = vunpack.c.l.b16 %v722
      %v7092 = vunpack.c.l.b16 %v723
      %v7093 = vunpack.c.l.b16 %v724
      %v7094 = vunpack.c.l.b16 %v725
      %v7095 = vunpack.c.l.b16 %v726
      %v7096 = vunpack.c.l.b16 %v727
      %v7097 = vunpack.c.l.b16 %v728
      %v7098 = vunpack.c.l.b16 %v729
      %v7099 = vunpack.c.l.b16 %v730
      %v7100 = vunpack.c.l.b16 %v731
      %v7101 = vunpack.c.l.b16 %v732
      %v7102 = vunpack.c.l.b16 %v733
      %v7103 = vunpack.c.l.b16 %v734
      %v7104 = vunpack.c.l.b16 %v735
      %v7105 = vunpack.c.l.b16 %v736
      %v7106 = vunpack.c.l.b16 %v737
      %v7107 = vunpack.c.l.b16 %v738
      %v7108 = vunpack.c.l.b16 %v739
      %v7109 = vunpack.c.l.b16 %v740
      %v7110 = vunpack.c.l.b16 %v741
      %v7111 = vunpack.c.l.b16 %v742
      %v7112 = vunpack.c.l.b16 %v743
      %v7113 = vunpack.c.l.b16 %v744
      %v7114 = vunpack.c.l.b16 %v745
      %v7115 = vunpack.c.l.b16 %v746
      %v7116 = vunpack.c.l.b16 %v747
      %v7117 = vunpack.c.l.b16 %v748
      %v7118 = vunpack.c.l.b16 %v749
      %v7119 = vunpack.c.l.b16 %v750
      %v7120 = vunpack.c.l.b16 %v751
      %v7121 = vunpack.c.l.b16 %v752
      %v7122 = vunpack.c.l.b16 %v753
      %v7123 = vunpack.c.l.b16 %v754
      %v7124 = vunpack.c.l.b16 %v755
      %v7125 = vunpack.c.l.b16 %v756
      %v7126 = vunpack.c.l.b16 %v757
      %v7127 = vunpack.c.l.b16 %v758
      %v7128 = vunpack.c.l.b16 %v759
      %v7129 = vunpack.c.l.b16 %v760
      %v7130 = vunpack.c.l.b16 %v761
      %v7131 = vunpack.c.l.b16 %v762
      %v7132 = vunpack.c.l.b16 %v763
      %v7133 = vunpack.c.l.b16 %v764
      %v7134 = vunpack.c.l.b16 %v765
      %v7135 = vunpack.c.l.b16 %v766
      %v7136 = vunpack.c.l.b16 %v767
      %v7137 = vunpack.c.l.b16 %v768
      %v7138 = vunpack.c.l.b16 %v769
      %v7139 = vunpack.c.l.b16 %v770
      %v7140 = vunpack.c.l.b16 %v771
      %v7141 = vunpack.c.l.b16 %v772
      %v7142 = vunpack.c.l.b16 %v773
      %v7143 = vunpack.c.l.b16 %v774
      %v7144 = vunpack.c.l.b16 %v775
      %v7145 = vunpack.c.l.b16 %v776
      %v7146 = vunpack.c.l.b16 %v777
      %v7147 = vunpack.c.l.b16 %v778
      %v7148 = vunpack.c.l.b16 %v779
      %v7149 = vunpack.c.l.b16 %v780
      %v7150 = vunpack.c.l.b16 %v781
      %v7151 = vunpack.c.l.b16 %v782
      %v7152 = vunpack.c.l.b16 %v783
      %v7153 = vunpack.c.l.b16 %v784
      %v7154 = vunpack.c.l.b16 %v785
      %v7155 = vunpack.c.l.b16 %v786
      %v7156 = vunpack.c.l.b16 %v787
      %v7157 = vunpack.c.l.b16 %v788
      %v7158 = vunpack.c.l.b16 %v789
      %v7159 = vunpack.c.l.b16 %v790
      %v7160 = vunpack.c.l.b16 %v791
      %v7161 = vunpack.c.l.b16 %v792
      %v7162 = vunpack.c.l.b16 %v793
      %v7163 = vunpack.c.l.b16 %v794
      %v7164 = vunpack.c.l.b16 %v795
      %v7165 = vunpack.c.l.b16 %v796
      %v7166 = vunpack.c.l.b16 %v797
      %v7167 = vunpack.c.l.b16 %v798
      %v7168 = vunpack.c.l.b16 %v799
      %v7169 = vunpack.c.l.b16 %v800
      %v7170 = vunpack.c.l.b16 %v801
      %v7171 = vunpack.c.l.b16 %v802
      %v7172 = vunpack.c.l.b16 %v803
      %v7173 = vunpack.c.l.b16 %v804
      %v7174 = vunpack.c.l.b16 %v805
      %v7175 = vunpack.c.l.b16 %v806
      %v7176 = vunpack.c.l.b16 %v807
      %v7177 = vunpack.c.l.b16 %v808
      %v7178 = vunpack.c.l.b16 %v809
      %v7179 = vunpack.c.l.b16 %v810
      %v7180 = vunpack.c.l.b16 %v811
      %v7181 = vunpack.c.l.b16 %v812
      %v7182 = vunpack.c.l.b16 %v813
      %v7183 = vunpack.c.l.b16 %v814
      %v7184 = vunpack.c.l.b16 %v815
      %v7185 = vunpack.c.l.b16 %v816
      %v7186 = vunpack.c.l.b16 %v817
      %v7187 = vunpack.c.l.b16 %v818
      %v7188 = vunpack.c.l.b16 %v819
      %v7189 = vunpack.c.l.b16 %v820
      %v7190 = vunpack.c.l.b16 %v821
      %v7191 = vunpack.c.l.b16 %v822
      %v7192 = vunpack.c.l.b16 %v823
      %v7193 = vunpack.c.l.b16 %v824
      %v7194 = vunpack.c.l.b16 %v825
      %v7195 = vunpack.c.l.b16 %v826
      %v7196 = vunpack.c.l.b16 %v827
      %v7197 = vunpack.c.l.b16 %v828
      %v7198 = vunpack.c.l.b16 %v829
      %v7199 = vunpack.c.l.b16 %v830
      %v7200 = vunpack.c.l.b16 %v831
      %v7201 = vunpack.c.l.b16 %v832
      %v7202 = vunpack.c.l.b16 %v833
      %v7203 = vunpack.c.l.b16 %v834
      %v7204 = vunpack.c.l.b16 %v835
      %v7205 = vunpack.c.l.b16 %v836
      %v7206 = vunpack.c.l.b16 %v837
      %v7207 = vunpack.c.l.b16 %v838
      %v7208 = vunpack.c.l.b16 %v839
      %v7209 = vunpack.c.l.b16 %v840
      %v7210 = vunpack.c.l.b16 %v841
      %v7211 = vunpack.c.l.b16 %v842
      %v7212 = vunpack.c.l.b16 %v843
      %v7213 = vunpack.c.l.b16 %v844
      %v7214 = vunpack.c.l.b16 %v845
      %v7215 = vunpack.c.l.b16 %v846
      %v7216 = vunpack.c.l.b16 %v847
      %v7217 = vunpack.c.l.b16 %v848
      %v7218 = vunpack.c.l.b16 %v849
      %v7219 = vunpack.c.l.b16 %v850
      %v7220 = vunpack.c.l.b16 %v851
      %v7221 = vunpack.c.l.b16 %v852
      %v7222 = vunpack.c.l.b16 %v853
      %v7223 = vunpack.c.l.b16 %v854
      %v7224 = vunpack.c.l.b16 %v855
      %v7225 = vunpack.c.l.b16 %v856
      %v7226 = vunpack.c.l.b16 %v857
      %v7227 = vunpack.c.l.b16 %v858
      %v7228 = vunpack.c.l.b16 %v859
      %v7229 = vunpack.c.l.b16 %v860
      %v7230 = vunpack.c.l.b16 %v861
      %v7231 = vunpack.c.l.b16 %v862
      %v7232 = vunpack.c.l.b16 %v863
      %v7233 = vunpack.c.l.b16 %v864
      %v7234 = vunpack.c.l.b16 %v865
      %v7235 = vunpack.c.l.b16 %v866
      %v7236 = vunpack.c.l.b16 %v867
      %v7237 = vunpack.c.l.b16 %v868
      %v7238 = vunpack.c.l.b16 %v869
      %v7239 = vunpack.c.l.b16 %v870
      %v7240 = vunpack.c.l.b16 %v871
      %v7241 = vunpack.c.l.b16 %v872
      %v7242 = vunpack.c.l.b16 %v873
      %v7243 = vunpack.c.l.b16 %v874
      %v7244 = vunpack.c.l.b16 %v875
      %v7245 = vunpack.c.l.b16 %v876
      %v7246 = vunpack.c.l.b16 %v877
      %v7247 = vunpack.c.l.b16 %v878
      %v7248 = vunpack.c.l.b16 %v879
      %v7249 = vunpack.c.l.b16 %v880
      %v7250 = vunpack.c.l.b16 %v881
      %v7251 = vunpack.c.l.b16 %v882
      %v7252 = vunpack.c.l.b16 %v883
      %v7253 = vunpack.c.l.b16 %v884
      %v7254 = vunpack.c.l.b16 %v885
      %v7255 = vunpack.c.l.b16 %v886
      %v7256 = vunpack.c.l.b16 %v887
      %v7257 = vunpack.c.l.b16 %v888
      %v7258 = vunpack.c.l.b16 %v889
      %v7259 = vunpack.c.l.b16 %v890
      %v7260 = vunpack.c.l.b16 %v891
      %v7261 = vunpack.c.l.b16 %v892
      %v7262 = vunpack.c.l.b16 %v893
      %v7263 = vunpack.c.l.b16 %v894
      %v7264 = vunpack.c.l.b16 %v895
      %v7265 = vunpack.c.l.b16 %v896
      %v7266 = vunpack.c.l.b16 %v897
      %v7267 = vunpack.c.l.b16 %v898
      %v7268 = vunpack.c.l.b16 %v899
      %v7269 = vunpack.c.l.b16 %v900
      %v7270 = vunpack.c.l.b16 %v901
      %v7271 = vunpack.c.l.b16 %v902
      %v7272 = vunpack.c.l.b16 %v903
      %v7273 = vunpack.c.l.b16 %v904
      %v7274 = vunpack.c.l.b16 %v905
      %v7275 = vunpack.c.l.b16 %v906
      %v7276 = vunpack.c.l.b16 %v907
      %v7277 = vunpack.c.l.b16 %v908
      %v7278 = vunpack.c.l.b16 %v909
      %v7279 = vunpack.c.l.b16 %v910
      %v7280 = vunpack.c.l.b16 %v911
      %v7281 = vunpack.c.l.b16 %v912
      %v7282 = vunpack.c.l.b16 %v913
      %v7283 = vunpack.c.l.b16 %v914
      %v7284 = vunpack.c.l.b16 %v915
      %v7285 = vunpack.c.l.b16 %v916
      %v7286 = vunpack.c.l.b16 %v917
      %v7287 = vunpack.c.l.b16 %v918
      %v7288 = vunpack.c.l.b16 %v919
      %v7289 = vunpack.c.l.b16 %v920
      %v7290 = vunpack.c.l.b16 %v921
      %v7291 = vunpack.c.l.b16 %v922
      %v7292 = vunpack.c.l.b16 %v923
      %v7293 = vunpack.c.l.b16 %v924
      %v7294 = vunpack.c.l.b16 %v925
      %v7295 = vunpack.c.l.b16 %v926
      %v7296 = vunpack.c.l.b16 %v927
      %v7297 = vunpack.c.l.b16 %v928
      %v7298 = vunpack.c.l.b16 %v929
      %v7299 = vunpack.c.l.b16 %v930
      %v7300 = vunpack.c.l.b16 %v931
      %v7301 = vunpack.c.l.b16 %v932
      %v7302 = vunpack.c.l.b16 %v933
      %v7303 = vunpack.c.l.b16 %v934
      %v7304 = vunpack.c.l.b16 %v935
      %v7305 = vunpack.c.l.b16 %v936
      %v7306 = vunpack.c.l.b16 %v937
      %v7307 = vunpack.c.l.b16 %v938
      %v7308 = vunpack.c.l.b16 %v939
      %v7309 = vunpack.c.l.b16 %v940
      %v7310 = vunpack.c.l.b16 %v941
      %v7311 = vunpack.c.l.b16 %v942
      %v7312 = vunpack.c.l.b16 %v943
      %v7313 = vunpack.c.l.b16 %v944
      %v7314 = vunpack.c.l.b16 %v945
      %v7315 = vunpack.c.l.b16 %v946
      %v7316 = vunpack.c.l.b16 %v947
      %v7317 = vunpack.c.l.b16 %v948
      %v7318 = vunpack.c.l.b16 %v949
      %v7319 = vunpack.c.l.b16 %v950
      %v7320 = vunpack.c.l.b16 %v951
      %v7321 = vunpack.c.l.b16 %v952
      %v7322 = vunpack.c.l.b16 %v953
      %v7323 = vunpack.c.l.b16 %v954
      %v7324 = vunpack.c.l.b16 %v955
      %v7325 = vunpack.c.l.b16 %v956
      %v7326 = vunpack.c.l.b16 %v957
      %v7327 = vunpack.c.l.b16 %v958
      %v7328 = vunpack.c.l.b16 %v959
      %v7329 = vunpack.c.l.b16 %v960
      %v7330 = vunpack.c.l.b16 %v961
      %v7331 = vunpack.c.l.b16 %v962
      %v7332 = vunpack.c.l.b16 %v963
      %v7333 = vunpack.c.l.b16 %v964
      %v7334 = vunpack.c.l.b16 %v965
      %v7335 = vunpack.c.l.b16 %v966
      %v7336 = vunpack.c.l.b16 %v967
      %v7337 = vunpack.c.l.b16 %v968
      %v7338 = vunpack.c.l.b16 %v969
      %v7339 = vunpack.c.l.b16 %v970
      %v7340 = vunpack.c.l.b16 %v971
      %v7341 = vunpack.c.l.b16 %v972
      %v7342 = vunpack.c.l.b16 %v973
      %v7343 = vunpack.c.l.b16 %v974
      %v7344 = vunpack.c.l.b16 %v975
      %v7345 = vunpack.c.l.b16 %v976
      %v7346 = vunpack.c.l.b16 %v977
      %v7347 = vunpack.c.l.b16 %v978
      %v7348 = vunpack.c.l.b16 %v979
      %v7349 = vunpack.c.l.b16 %v980
      %v7350 = vunpack.c.l.b16 %v981
      %v7351 = vunpack.c.l.b16 %v982
      %v7352 = vunpack.c.l.b16 %v983
      %v7353 = vunpack.c.l.b16 %v984
      %v7354 = vunpack.c.l.b16 %v985
      %v7355 = vunpack.c.l.b16 %v986
      %v7356 = vunpack.c.l.b16 %v987
      %v7357 = vunpack.c.l.b16 %v988
      %v7358 = vunpack.c.l.b16 %v989
      %v7359 = vunpack.c.l.b16 %v990
      %v7360 = vunpack.c.l.b16 %v991
      %v7361 = vunpack.c.l.b16 %v992
      %v7362 = vunpack.c.l.b16 %v993
      %v7363 = vunpack.c.l.b16 %v994
      %v7364 = vunpack.c.l.b16 %v995
      %v7365 = vunpack.c.l.b16 %v996
      %v7366 = vunpack.c.l.b16 %v997
      %v7367 = vunpack.c.l.b16 %v998
      %v7368 = vunpack.c.l.b16 %v999
      %v7369 = vunpack.c.l.b16 %v1000
      %v7370 = vunpack.c.l.b16 %v1001
      %v7371 = vunpack.c.l.b16 %v1002
      %v7372 = vunpack.c.l.b16 %v1003
      %v7373 = vunpack.c.l.b16 %v1004
      %v7374 = vunpack.c.l.b16 %v1005
      %v7375 = vunpack.c.l.b16 %v1006
      %v7376 = vunpack.c.l.b16 %v1007
      %v7377 = vunpack.c.l.b16 %v1008
      %v7378 = vunpack.c.l.b16 %v1009
      %v7379 = vunpack.c.l.b16 %v1010
      %v7380 = vunpack.c.l.b16 %v1011
      %v7381 = vunpack.c.l.b16 %v1012
      %v7382 = vunpack.c.l.b16 %v1013
      %v7383 = vunpack.c.l.b16 %v1014
      %v7384 = vunpack.c.l.b16 %v1015
      %v7385 = vunpack.c.l.b16 %v1016
      %v7386 = vunpack.c.l.b16 %v1017
      %v7387 = vunpack.c.l.b16 %v1018
      %v7388 = vunpack.c.l.b16 %v1019
      %v7389 = vunpack.c.l.b16 %v1020
      %v7390 = vunpack.c.l.b16 %v1021
      %v7391 = vunpack.c.l.b16 %v1022
      %v7392 = vunpack.c.l.b16 %v1023
      %v7393 = vunpack.c.l.b16 %v1024
      %v7394 = vunpack.c.l.b16 %v1025
      %v7395 = vunpack.c.l.b16 %v1026
      %v7396 = vunpack.c.l.b16 %v1027
      %v7397 = vunpack.c.l.b16 %v1028
      %v7398 = vunpack.c.l.b16 %v1029
      %v7399 = vunpack.c.l.b16 %v1030
      %v7400 = vunpack.c.l.b16 %v1031
      %v7401 = vunpack.c.l.b16 %v1032
      %v7402 = vunpack.c.l.b16 %v1033
      %v7403 = vunpack.c.l.b16 %v1034
      %v7404 = vunpack.c.l.b16 %v1035
      %v7405 = vunpack.c.l.b16 %v1036
      %v7406 = vunpack.c.l.b16 %v1037
      %v7407 = vunpack.c.l.b16 %v1038
      %v7408 = vunpack.c.l.b16 %v1039
      %v7409 = vunpack.c.l.b16 %v1040
      %v7410 = vunpack.c.l.b16 %v1041
      %v7411 = vunpack.c.l.b16 %v1042
      %v7412 = vunpack.c.l.b16 %v1043
      %v7413 = vunpack.c.l.b16 %v1044
      %v7414 = vunpack.c.l.b16 %v1045
      %v7415 = vunpack.c.l.b16 %v1046
      %v7416 = vunpack.c.l.b16 %v1047
      %v7417 = vunpack.c.l.b16 %v1048
      %v7418 = vunpack.c.l.b16 %v1049
      %v7419 = vunpack.c.l.b16 %v1050
      %v7420 = vunpack.c.l.b16 %v1051
      %v7421 = vunpack.c.l.b16 %v1052
      %v7422 = vunpack.c.l.b16 %v1053
      %v7423 = vunpack.c.l.b16 %v1054
      %v7424 = vunpack.c.l.b16 %v1055
      %v7425 = vunpack.c.l.b16 %v1056
      %v7426 = vunpack.c.l.b16 %v1057
      %v7427 = vunpack.c.l.b16 %v1058
      %v7428 = vunpack.c.l.b16 %v1059
      %v7429 = vunpack.c.l.b16 %v1060
      %v7430 = vunpack.c.l.b16 %v1061
      %v7431 = vunpack.c.l.b16 %v1062
      %v7432 = vunpack.c.l.b16 %v1063
      %v7433 = vunpack.c.l.b16 %v1064
      %v7434 = vunpack.c.l.b16 %v1065
      %v7435 = vunpack.c.l.b16 %v1066
      %v7436 = vunpack.c.l.b16 %v1067
      %v7437 = vunpack.c.l.b16 %v1068
      %v7438 = vunpack.c.l.b16 %v1069
      %v7439 = vunpack.c.l.b16 %v1070
      %v7440 = vunpack.c.l.b16 %v1071
      %v7441 = vunpack.c.l.b16 %v1072
      %v7442 = vunpack.c.l.b16 %v1073
      %v7443 = vunpack.c.l.b16 %v1074
      %v7444 = vunpack.c.l.b16 %v1075
      %v7445 = vunpack.c.l.b16 %v1076
      %v7446 = vunpack.c.l.b16 %v1077
      %v7447 = vunpack.c.l.b16 %v1078
      %v7448 = vunpack.c.l.b16 %v1079
      %v7449 = vunpack.c.l.b16 %v1080
      %v7450 = vunpack.c.l.b16 %v1081
      %v7451 = vunpack.c.l.b16 %v1082
      %v7452 = vunpack.c.l.b16 %v1083
      %v7453 = vunpack.c.l.b16 %v1084
      %v7454 = vunpack.c.l.b16 %v1085
      %v7455 = vunpack.c.l.b16 %v1086
      %v7456 = vunpack.c.l.b16 %v1087
      %v7457 = vunpack.c.l.b16 %v1088
      %v7458 = vunpack.c.l.b16 %v1089
      %v7459 = vunpack.c.l.b16 %v1090
      %v7460 = vunpack.c.l.b16 %v1091
      %v7461 = vunpack.c.l.b16 %v1092
      %v7462 = vunpack.c.l.b16 %v1093
      %v7463 = vunpack.c.l.b16 %v1094
      %v7464 = vunpack.c.l.b16 %v1095
      %v7465 = vunpack.c.l.b16 %v1096
      %v7466 = vunpack.c.l.b16 %v1097
      %v7467 = vunpack.c.l.b16 %v1098
      %v7468 = vunpack.c.l.b16 %v1099
      %v7469 = vunpack.c.l.b16 %v1100
      %v7470 = vunpack.c.l.b16 %v1101
      %v7471 = vunpack.c.l.b16 %v1102
      %v7472 = vunpack.c.l.b16 %v1103
      %v7473 = vunpack.c.l.b16 %v1104
      %v7474 = vunpack.c.l.b16 %v1105
      %v7475 = vunpack.c.l.b16 %v1106
      %v7476 = vunpack.c.l.b16 %v1107
      %v7477 = vunpack.c.l.b16 %v1108
      %v7478 = vunpack.c.l.b16 %v1109
      %v7479 = vunpack.c.l.b16 %v1110
      %v7480 = vunpack.c.l.b16 %v1111
      %v7481 = vunpack.c.l.b16 %v1112
      %v7482 = vunpack.c.l.b16 %v1113
      %v7483 = vunpack.c.l.b16 %v1114
      %v7484 = vunpack.c.l.b16 %v1115
      %v7485 = vunpack.c.l.b16 %v1116
      %v7486 = vunpack.c.l.b16 %v1117
      %v7487 = vunpack.c.l.b16 %v1118
      %v7488 = vunpack.c.l.b16 %v1119
      %v7489 = vunpack.c.l.b16 %v1120
      %v7490 = vunpack.c.l.b16 %v1121
      %v7491 = vunpack.c.l.b16 %v1122
      %v7492 = vunpack.c.l.b16 %v1123
      %v7493 = vunpack.c.l.b16 %v1124
      %v7494 = vunpack.c.l.b16 %v1125
      %v7495 = vunpack.c.l.b16 %v1126
      %v7496 = vunpack.c.l.b16 %v1127
      %v7497 = vunpack.c.l.b16 %v1128
      %v7498 = vunpack.c.l.b16 %v1129
      %v7499 = vunpack.c.l.b16 %v1130
      %v7500 = vunpack.c.l.b16 %v1131
      %v7501 = vunpack.c.l.b16 %v1132
      %v7502 = vunpack.c.l.b16 %v1133
      %v7503 = vunpack.c.l.b16 %v1134
      %v7504 = vunpack.c.l.b16 %v1135
      %v7505 = vunpack.c.l.b16 %v1136
      %v7506 = vunpack.c.l.b16 %v1137
      %v7507 = vunpack.c.l.b16 %v1138
      %v7508 = vunpack.c.l.b16 %v1139
      %v7509 = vunpack.c.l.b16 %v1140
      %v7510 = vunpack.c.l.b16 %v1141
      %v7511 = vunpack.c.l.b16 %v1142
      %v7512 = vunpack.c.l.b16 %v1143
      %v7513 = vunpack.c.l.b16 %v1144
      %v7514 = vunpack.c.l.b16 %v1145
      %v7515 = vunpack.c.l.b16 %v1146
      %v7516 = vunpack.c.l.b16 %v1147
      %v7517 = vunpack.c.l.b16 %v1148
      %v7518 = vunpack.c.l.b16 %v1149
      %v7519 = vunpack.c.l.b16 %v1150
      %v7520 = vunpack.c.l.b16 %v1151
      %v7521 = vunpack.c.l.b16 %v1152
      %v7522 = vunpack.c.l.b16 %v1153
      %v7523 = vunpack.c.l.b16 %v1154
      %v7524 = vunpack.c.l.b16 %v1155
      %v7525 = vunpack.c.l.b16 %v1156
      %v7526 = vunpack.c.l.b16 %v1157
      %v7527 = vunpack.c.l.b16 %v1158
      %v7528 = vunpack.c.l.b16 %v1159
      %v7529 = vunpack.c.l.b16 %v1160
      %v7530 = vunpack.c.l.b16 %v1161
      %v7531 = vunpack.c.l.b16 %v1162
      %v7532 = vunpack.c.l.b16 %v1163
      %v7533 = vunpack.c.l.b16 %v1164
      %v7534 = vunpack.c.l.b16 %v1165
      %v7535 = vunpack.c.l.b16 %v1166
      %v7536 = vunpack.c.l.b16 %v1167
      %v7537 = vunpack.c.l.b16 %v1168
      %v7538 = vunpack.c.l.b16 %v1169
      %v7539 = vunpack.c.l.b16 %v1170
      %v7540 = vunpack.c.l.b16 %v1171
      %v7541 = vunpack.c.l.b16 %v1172
      %v7542 = vunpack.c.l.b16 %v1173
      %v7543 = vunpack.c.l.b16 %v1174
      %v7544 = vunpack.c.l.b16 %v1175
      %v7545 = vunpack.c.l.b16 %v1176
      %v7546 = vunpack.c.l.b16 %v1177
      %v7547 = vunpack.c.l.b16 %v1178
      %v7548 = vunpack.c.l.b16 %v1179
      %v7549 = vunpack.c.l.b16 %v1180
      %v7550 = vunpack.c.l.b16 %v1181
      %v7551 = vunpack.c.l.b16 %v1182
      %v7552 = vunpack.c.l.b16 %v1183
      %v7553 = vunpack.c.l.b16 %v1184
      %v7554 = vunpack.c.l.b16 %v1185
      %v7555 = vunpack.c.l.b16 %v1186
      %v7556 = vunpack.c.l.b16 %v1187
      %v7557 = vunpack.c.l.b16 %v1188
      %v7558 = vunpack.c.l.b16 %v1189
      %v7559 = vunpack.c.l.b16 %v1190
      %v7560 = vunpack.c.l.b16 %v1191
      %v7561 = vunpack.c.l.b16 %v1192
      %v7562 = vunpack.c.l.b16 %v1193
      %v7563 = vunpack.c.l.b16 %v1194
      %v7564 = vunpack.c.l.b16 %v1195
      %v7565 = vunpack.c.l.b16 %v1196
      %v7566 = vunpack.c.l.b16 %v1197
      %v7567 = vunpack.c.l.b16 %v1198
      %v7568 = vunpack.c.l.b16 %v1199
      %v7569 = vunpack.c.l.b16 %v1200
      %v7570 = vunpack.c.l.b16 %v1201
      %v7571 = vunpack.c.l.b16 %v1202
      %v7572 = vunpack.c.l.b16 %v1203
      %v7573 = vunpack.c.l.b16 %v1204
      %v7574 = vunpack.c.l.b16 %v1205
      %v7575 = vunpack.c.l.b16 %v1206
      %v7576 = vunpack.c.l.b16 %v1207
      %v7577 = vunpack.c.l.b16 %v1208
      %v7578 = vunpack.c.l.b16 %v1209
      %v7579 = vunpack.c.l.b16 %v1210
      %v7580 = vunpack.c.l.b16 %v1211
      %v7581 = vunpack.c.l.b16 %v1212
      %v7582 = vunpack.c.l.b16 %v1213
      %v7583 = vunpack.c.l.b16 %v1214
      %v7584 = vunpack.c.l.b16 %v1215
      %v7585 = vunpack.c.l.b16 %v1216
      %v7586 = vunpack.c.l.b16 %v1217
      %v7587 = vunpack.c.l.b16 %v1218
      %v7588 = vunpack.c.l.b16 %v1219
      %v7589 = vunpack.c.l.b16 %v1220
      %v7590 = vunpack.c.l.b16 %v1221
      %v7591 = vunpack.c.l.b16 %v1222
      %v7592 = vunpack.c.l.b16 %v1223
      %v7593 = vunpack.c.l.b16 %v1224
      %v7594 = vunpack.c.l.b16 %v1225
      %v7595 = vunpack.c.l.b16 %v1226
      %v7596 = vunpack.c.l.b16 %v1227
      %v7597 = vunpack.c.l.b16 %v1228
      %v7598 = vunpack.c.l.b16 %v1229
      %v7599 = vunpack.c.l.b16 %v1230
      %v7600 = vunpack.c.l.b16 %v1231
      %v7601 = vunpack.c.l.b16 %v1232
      %v7602 = vunpack.c.l.b16 %v1233
      %v7603 = vunpack.c.l.b16 %v1234
      %v7604 = vunpack.c.l.b16 %v1235
      %v7605 = vunpack.c.l.b16 %v1236
      %v7606 = vunpack.c.l.b16 %v1237
      %v7607 = vunpack.c.l.b16 %v1238
      %v7608 = vunpack.c.l.b16 %v1239
      %v7609 = vunpack.c.l.b16 %v1240
      %v7610 = vunpack.c.l.b16 %v1241
      %v7611 = vunpack.c.l.b16 %v1242
      %v7612 = vunpack.c.l.b16 %v1243
      %v7613 = vunpack.c.l.b16 %v1244
      %v7614 = vunpack.c.l.b16 %v1245
      %v7615 = vunpack.c.l.b16 %v1246
      %v7616 = vunpack.c.l.b16 %v1247
      %v7617 = vunpack.c.l.b16 %v1248
      %v7618 = vunpack.c.l.b16 %v1249
      %v7619 = vunpack.c.l.b16 %v1250
      %v7620 = vunpack.c.l.b16 %v1251
      %v7621 = vunpack.c.l.b16 %v1252
      %v7622 = vunpack.c.l.b16 %v1253
      %v7623 = vunpack.c.l.b16 %v1254
      %v7624 = vunpack.c.l.b16 %v1255
      %v7625 = vunpack.c.l.b16 %v1256
      %v7626 = vunpack.c.l.b16 %v1257
      %v7627 = vunpack.c.l.b16 %v1258
      %v7628 = vunpack.c.l.b16 %v1259
      %v7629 = vunpack.c.l.b16 %v1260
      %v7630 = vunpack.c.l.b16 %v1261
      %v7631 = vunpack.c.l.b16 %v1262
      %v7632 = vunpack.c.l.b16 %v1263
      %v7633 = vunpack.c.l.b16 %v1264
      %v7634 = vunpack.c.l.b16 %v1265
      %v7635 = vunpack.c.l.b16 %v1266
      %v7636 = vunpack.c.l.b16 %v1267
      %v7637 = vunpack.c.l.b16 %v1268
      %v7638 = vunpack.c.l.b16 %v1269
      %v7639 = vunpack.c.l.b16 %v1270
      %v7640 = vunpack.c.l.b16 %v1271
      %v7641 = vunpack.c.l.b16 %v1272
      %v7642 = vunpack.c.l.b16 %v1273
      %v7643 = vunpack.c.l.b16 %v1274
      %v7644 = vunpack.c.l.b16 %v1275
      %v7645 = vunpack.c.l.b16 %v1276
      %v7646 = vunpack.c.l.b16 %v1277
      %v7647 = vunpack.c.l.b16 %v1278
      %v7648 = vunpack.c.l.b16 %v1279
      %v7649 = vunpack.c.l.b16 %v1280
      %v7650 = vunpack.c.l.b16 %v1281
      %v7651 = vunpack.c.l.b16 %v1282
      %v7652 = vunpack.c.l.b16 %v1283
      %v7653 = vunpack.c.l.b16 %v1284
      %v7654 = vunpack.c.l.b16 %v1285
      %v7655 = vunpack.c.l.b16 %v1286
      %v7656 = vunpack.c.l.b16 %v1287
      %v7657 = vunpack.c.l.b16 %v1288
      %v7658 = vunpack.c.l.b16 %v1289
      %v7659 = vunpack.c.l.b16 %v1290
      %v7660 = vunpack.c.l.b16 %v1291
      %v7661 = vunpack.c.l.b16 %v1292
      %v7662 = vunpack.c.l.b16 %v1293
      %v7663 = vunpack.c.l.b16 %v1294
      %v7664 = vunpack.c.l.b16 %v1295
      %v7665 = vunpack.c.l.b16 %v1296
      %v7666 = vunpack.c.l.b16 %v1297
      %v7667 = vunpack.c.l.b16 %v1298
      %v7668 = vunpack.c.l.b16 %v1299
      %v7669 = vunpack.c.l.b16 %v1300
      %v7670 = vunpack.c.l.b16 %v1301
      %v7671 = vunpack.c.l.b16 %v1302
      %v7672 = vunpack.c.l.b16 %v1303
      %v7673 = vunpack.c.l.b16 %v1304
      %v7674 = vunpack.c.l.b16 %v1305
      %v7675 = vunpack.c.l.b16 %v1306
      %v7676 = vunpack.c.l.b16 %v1307
      %v7677 = vunpack.c.l.b16 %v1308
      %v7678 = vunpack.c.l.b16 %v1309
      %v7679 = vunpack.c.l.b16 %v1310
      %v7680 = vunpack.c.l.b16 %v1311
      %v7681 = vunpack.c.l.b16 %v1312
      %v7682 = vunpack.c.l.b16 %v1313
      %v7683 = vunpack.c.l.b16 %v1314
      %v7684 = vunpack.c.l.b16 %v1315
      %v7685 = vunpack.c.l.b16 %v1316
      %v7686 = vunpack.c.l.b16 %v1317
      %v7687 = vunpack.c.l.b16 %v1318
      %v7688 = vunpack.c.l.b16 %v1319
      %v7689 = vunpack.c.l.b16 %v1320
      %v7690 = vunpack.c.l.b16 %v1321
      %v7691 = vunpack.c.l.b16 %v1322
      %v7692 = vunpack.c.l.b16 %v1323
      %v7693 = vunpack.c.l.b16 %v1324
      %v7694 = vunpack.c.l.b16 %v1325
      %v7695 = vunpack.c.l.b16 %v1326
      %v7696 = vunpack.c.l.b16 %v1327
      %v7697 = vunpack.c.l.b16 %v1328
      %v7698 = vunpack.c.l.b16 %v1329
      %v7699 = vunpack.c.l.b16 %v1330
      %v7700 = vunpack.c.l.b16 %v1331
      %v7701 = vunpack.c.l.b16 %v1332
      %v7702 = vunpack.c.l.b16 %v1333
      %v7703 = vunpack.c.l.b16 %v1334
      %v7704 = vunpack.c.l.b16 %v1335
      %v7705 = vunpack.c.l.b16 %v1336
      %v7706 = vunpack.c.l.b16 %v1337
      %v7707 = vunpack.c.l.b16 %v1338
      %v7708 = vunpack.c.l.b16 %v1339
      %v7709 = vunpack.c.l.b16 %v1340
      %v7710 = vunpack.c.l.b16 %v1341
      %v7711 = vunpack.c.l.b16 %v1342
      %v7712 = vunpack.c.l.b16 %v1343
      %v7713 = vunpack.c.l.b16 %v1344
      %v7714 = vunpack.c.l.b16 %v1345
      %v7715 = vunpack.c.l.b16 %v1346
      %v7716 = vunpack.c.l.b16 %v1347
      %v7717 = vunpack.c.l.b16 %v1348
      %v7718 = vunpack.c.l.b16 %v1349
      %v7719 = vunpack.c.l.b16 %v1350
      %v7720 = vunpack.c.l.b16 %v1351
      %v7721 = vunpack.c.l.b16 %v1352
      %v7722 = vunpack.c.l.b16 %v1353
      %v7723 = vunpack.c.l.b16 %v1354
      %v7724 = vunpack.c.l.b16 %v1355
      %v7725 = vunpack.c.l.b16 %v1356
      %v7726 = vunpack.c.l.b16 %v1357
      %v7727 = vunpack.c.l.b16 %v1358
      %v7728 = vunpack.c.l.b16 %v1359
      %v7729 = vunpack.c.l.b16 %v1360
      %v7730 = vunpack.c.l.b16 %v1361
      %v7731 = vunpack.c.l.b16 %v1362
      %v7732 = vunpack.c.l.b16 %v1363
      %v7733 = vunpack.c.l.b16 %v1364
      %v7734 = vunpack.c.l.b16 %v1365
      %v7735 = vunpack.c.l.b16 %v1366
      %v7736 = vunpack.c.l.b16 %v1367
      %v7737 = vunpack.c.l.b16 %v1368
      %v7738 = vunpack.c.l.b16 %v1369
      %v7739 = vunpack.c.l.b16 %v1370
      %v7740 = vunpack.c.l.b16 %v1371
      %v7741 = vunpack.c.l.b16 %v1372
      %v7742 = vunpack.c.l.b16 %v1373
      %v7743 = vunpack.c.l.b16 %v1374
      %v7744 = vunpack.c.l.b16 %v1375
      %v7745 = vunpack.c.l.b16 %v1376
      %v7746 = vunpack.c.l.b16 %v1377
      %v7747 = vunpack.c.l.b16 %v1378
      %v7748 = vunpack.c.l.b16 %v1379
      %v7749 = vunpack.c.l.b16 %v1380
      %v7750 = vunpack.c.l.b16 %v1381
      %v7751 = vunpack.c.l.b16 %v1382
      %v7752 = vunpack.c.l.b16 %v1383
      %v7753 = vunpack.c.l.b16 %v1384
      %v7754 = vunpack.c.l.b16 %v1385
      %v7755 = vunpack.c.l.b16 %v1386
      %v7756 = vunpack.c.l.b16 %v1387
      %v7757 = vunpack.c.l.b16 %v1388
      %v7758 = vunpack.c.l.b16 %v1389
      %v7759 = vunpack.c.l.b16 %v1390
      %v7760 = vunpack.c.l.b16 %v1391
      %v7761 = vunpack.c.l.b16 %v1392
      %v7762 = vunpack.c.l.b16 %v1393
      %v7763 = vunpack.c.l.b16 %v1394
      %v7764 = vunpack.c.l.b16 %v1395
      %v7765 = vunpack.c.l.b16 %v1396
      %v7766 = vunpack.c.l.b16 %v1397
      %v7767 = vunpack.c.l.b16 %v1398
      %v7768 = vunpack.c.l.b16 %v1399
      %v7769 = vunpack.c.l.b16 %v1400
      %v7770 = vunpack.c.l.b16 %v1401
      %v7771 = vunpack.c.l.b16 %v1402
      %v7772 = vunpack.c.l.b16 %v1403
      %v7773 = vunpack.c.l.b16 %v1404
      %v7774 = vunpack.c.l.b16 %v1405
      %v7775 = vunpack.c.l.b16 %v1406
      %v7776 = vunpack.c.l.b16 %v1407
      %v7777 = vunpack.c.l.b16 %v1408
      %v7778 = vunpack.c.l.b16 %v1409
      %v7779 = vunpack.c.l.b16 %v1410
      %v7780 = vunpack.c.l.b16 %v1411
      %v7781 = vunpack.c.l.b16 %v1412
      %v7782 = vunpack.c.l.b16 %v1413
      %v7783 = vunpack.c.l.b16 %v1414
      %v7784 = vunpack.c.l.b16 %v1415
      %v7785 = vunpack.c.l.b16 %v1416
      %v7786 = vunpack.c.l.b16 %v1417
      %v7787 = vunpack.c.l.b16 %v1418
      %v7788 = vunpack.c.l.b16 %v1419
      %v7789 = vunpack.c.l.b16 %v1420
      %v7790 = vunpack.c.l.b16 %v1421
      %v7791 = vunpack.c.l.b16 %v1422
      %v7792 = vunpack.c.l.b16 %v1423
      %v7793 = vunpack.c.l.b16 %v1424
      %v7794 = vunpack.c.l.b16 %v1425
      %v7795 = vunpack.c.l.b16 %v1426
      %v7796 = vunpack.c.l.b16 %v1427
      %v7797 = vunpack.c.l.b16 %v1428
      %v7798 = vunpack.c.l.b16 %v1429
      %v7799 = vunpack.c.l.b16 %v1430
      %v7800 = vunpack.c.l.b16 %v1431
      %v7801 = vunpack.c.l.b16 %v1432
      %v7802 = vunpack.c.l.b16 %v1433
      %v7803 = vunpack.c.l.b16 %v1434
      %v7804 = vunpack.c.l.b16 %v1435
      %v7805 = vunpack.c.l.b16 %v1436
      %v7806 = vunpack.c.l.b16 %v1437
      %v7807 = vunpack.c.l.b16 %v1438
      %v7808 = vunpack.c.l.b16 %v1439
      %v7809 = vunpack.c.l.b16 %v1440
      %v7810 = vunpack.c.l.b16 %v1441
      %v7811 = vunpack.c.l.b16 %v1442
      %v7812 = vunpack.c.l.b16 %v1443
      %v7813 = vunpack.c.l.b16 %v1444
      %v7814 = vunpack.c.l.b16 %v1445
      %v7815 = vunpack.c.l.b16 %v1446
      %v7816 = vunpack.c.l.b16 %v1447
      %v7817 = vunpack.c.l.b16 %v1448
      %v7818 = vunpack.c.l.b16 %v1449
      %v7819 = vunpack.c.l.b16 %v1450
      %v7820 = vunpack.c.l.b16 %v1451
      %v7821 = vunpack.c.l.b16 %v1452
      %v7822 = vunpack.c.l.b16 %v1453
      %v7823 = vunpack.c.l.b16 %v1454
      %v7824 = vunpack.c.l.b16 %v1455
      %v7825 = vunpack.c.l.b16 %v1456
      %v7826 = vunpack.c.l.b16 %v1457
      %v7827 = vunpack.c.l.b16 %v1458
      %v7828 = vunpack.c.l.b16 %v1459
      %v7829 = vunpack.c.l.b16 %v1460
      %v7830 = vunpack.c.l.b16 %v1461
      %v7831 = vunpack.c.l.b16 %v1462
      %v7832 = vunpack.c.l.b16 %v1463
      %v7833 = vunpack.c.l.b16 %v1464
      %v7834 = vunpack.c.l.b16 %v1465
      %v7835 = vunpack.c.l.b16 %v1466
      %v7836 = vunpack.c.l.b16 %v1467
      %v7837 = vunpack.c.l.b16 %v1468
      %v7838 = vunpack.c.l.b16 %v1469
      %v7839 = vunpack.c.l.b16 %v1470
      %v7840 = vunpack.c.l.b16 %v1471
      %v7841 = vunpack.c.l.b16 %v1472
      %v7842 = vunpack.c.l.b16 %v1473
      %v7843 = vunpack.c.l.b16 %v1474
      %v7844 = vunpack.c.l.b16 %v1475
      %v7845 = vunpack.c.l.b16 %v1476
      %v7846 = vunpack.c.l.b16 %v1477
      %v7847 = vunpack.c.l.b16 %v1478
      %v7848 = vunpack.c.l.b16 %v1479
      %v7849 = vunpack.c.l.b16 %v1480
      %v7850 = vunpack.c.l.b16 %v1481
      %v7851 = vunpack.c.l.b16 %v1482
      %v7852 = vunpack.c.l.b16 %v1483
      %v7853 = vunpack.c.l.b16 %v1484
      %v7854 = vunpack.c.l.b16 %v1485
      %v7855 = vunpack.c.l.b16 %v1486
      %v7856 = vunpack.c.l.b16 %v1487
      %v7857 = vunpack.c.l.b16 %v1488
      %v7858 = vunpack.c.l.b16 %v1489
      %v7859 = vunpack.c.l.b16 %v1490
      %v7860 = vunpack.c.l.b16 %v1491
      %v7861 = vunpack.c.l.b16 %v1492
      %v7862 = vunpack.c.l.b16 %v1493
      %v7863 = vunpack.c.l.b16 %v1494
      %v7864 = vunpack.c.l.b16 %v1495
      %v7865 = vunpack.c.l.b16 %v1496
      %v7866 = vunpack.c.l.b16 %v1497
      %v7867 = vunpack.c.l.b16 %v1498
      %v7868 = vunpack.c.l.b16 %v1499
      %v7869 = vunpack.c.l.b16 %v1500
      %v7870 = vunpack.c.l.b16 %v1501
      %v7871 = vunpack.c.l.b16 %v1502
      %v7872 = vunpack.c.l.b16 %v1503
      %v7873 = vunpack.c.l.b16 %v1504
      %v7874 = vunpack.c.l.b16 %v1505
      %v7875 = vunpack.c.l.b16 %v1506
      %v7876 = vunpack.c.l.b16 %v1507
      %v7877 = vunpack.c.l.b16 %v1508
      %v7878 = vunpack.c.l.b16 %v1509
      %v7879 = vunpack.c.l.b16 %v1510
      %v7880 = vunpack.c.l.b16 %v1511
      %v7881 = vunpack.c.l.b16 %v1512
      %v7882 = vunpack.c.l.b16 %v1513
      %v7883 = vunpack.c.l.b16 %v1514
      %v7884 = vunpack.c.l.b16 %v1515
      %v7885 = vunpack.c.l.b16 %v1516
      %v7886 = vunpack.c.l.b16 %v1517
      %v7887 = vunpack.c.l.b16 %v1518
      %v7888 = vunpack.c.l.b16 %v1519
      %v7889 = vunpack.c.l.b16 %v1520
      %v7890 = vunpack.c.l.b16 %v1521
      %v7891 = vunpack.c.l.b16 %v1522
      %v7892 = vunpack.c.l.b16 %v1523
      %v7893 = vunpack.c.l.b16 %v1524
      %v7894 = vunpack.c.l.b16 %v1525
      %v7895 = vunpack.c.l.b16 %v1526
      %v7896 = vunpack.c.l.b16 %v1527
      %v7897 = vunpack.c.l.b16 %v1528
      %v7898 = vunpack.c.l.b16 %v1529
      %v7899 = vunpack.c.l.b16 %v1530
      %v7900 = vunpack.c.l.b16 %v1531
      %v7901 = vunpack.c.l.b16 %v1532
      %v7902 = vunpack.c.l.b16 %v1533
      %v7903 = vunpack.c.l.b16 %v1534
      %v7904 = vunpack.c.l.b16 %v1535
      %v7905 = vunpack.c.l.b16 %v1536
      %v7906 = vunpack.c.l.b16 %v1537
      %v7907 = vunpack.c.l.b16 %v1538
      %v7908 = vunpack.c.l.b16 %v1539
      %v7909 = vunpack.c.l.b16 %v1540
      %v7910 = vunpack.c.l.b16 %v1541
      %v7911 = vunpack.c.l.b16 %v1542
      %v7912 = vunpack.c.l.b16 %v1543
      %v7913 = vunpack.c.l.b16 %v1544
      %v7914 = vunpack.c.l.b16 %v1545
      %v7915 = vunpack.c.l.b16 %v1546
      %v7916 = vunpack.c.l.b16 %v1547
      %v7917 = vunpack.c.l.b16 %v1548
      %v7918 = vunpack.c.l.b16 %v1549
      %v7919 = vunpack.c.l.b16 %v1550
      %v7920 = vunpack.c.l.b16 %v1551
      %v7921 = vunpack.c.l.b16 %v1552
      %v7922 = vunpack.c.l.b16 %v1553
      %v7923 = vunpack.c.l.b16 %v1554
      %v7924 = vunpack.c.l.b16 %v1555
      %v7925 = vunpack.c.l.b16 %v1556
      %v7926 = vunpack.c.l.b16 %v1557
      %v7927 = vunpack.c.l.b16 %v1558
      %v7928 = vunpack.c.l.b16 %v1559
      %v7929 = vunpack.c.l.b16 %v1560
      %v7930 = vunpack.c.l.b16 %v1561
      %v7931 = vunpack.c.l.b16 %v1562
      %v7932 = vunpack.c.l.b16 %v1563
      %v7933 = vunpack.c.l.b16 %v1564
      %v7934 = vunpack.c.l.b16 %v1565
      %v7935 = vunpack.c.l.b16 %v1566
      %v7936 = vunpack.c.l.b16 %v1567
      %v7937 = vunpack.c.l.b16 %v1568
      %v7938 = vunpack.c.l.b16 %v1569
      %v7939 = vunpack.c.l.b16 %v1570
      %v7940 = vunpack.c.l.b16 %v1571
      %v7941 = vunpack.c.l.b16 %v1572
      %v7942 = vunpack.c.l.b16 %v1573
      %v7943 = vunpack.c.l.b16 %v1574
      %v7944 = vunpack.c.l.b16 %v1575
      %v7945 = vunpack.c.l.b16 %v1576
      %v7946 = vunpack.c.l.b16 %v1577
      %v7947 = vunpack.c.l.b16 %v1578
      %v7948 = vunpack.c.l.b16 %v1579
      %v7949 = vunpack.c.l.b16 %v1580
      %v7950 = vunpack.c.l.b16 %v1581
      %v7951 = vunpack.c.l.b16 %v1582
      %v7952 = vunpack.c.l.b16 %v1583
      %v7953 = vunpack.c.l.b16 %v1584
      %v7954 = vunpack.c.l.b16 %v1585
      %v7955 = vunpack.c.l.b16 %v1586
      %v7956 = vunpack.c.l.b16 %v1587
      %v7957 = vunpack.c.l.b16 %v1588
      %v7958 = vunpack.c.l.b16 %v1589
      %v7959 = vunpack.c.l.b16 %v1590
      %v7960 = vunpack.c.l.b16 %v1591
      %v7961 = vunpack.c.l.b16 %v1592
      %v7962 = vunpack.c.l.b16 %v1593
      %v7963 = vunpack.c.l.b16 %v1594
      %v7964 = vunpack.c.l.b16 %v1595
      %v7965 = vunpack.c.l.b16 %v1596
      %v7966 = vunpack.c.l.b16 %v1597
      %v7967 = vunpack.c.l.b16 %v1598
      %v7968 = vunpack.c.l.b16 %v1599
      %v7969 = vunpack.c.l.b16 %v1600
      %v7970 = vunpack.c.l.b16 %v1601
      %v7971 = vunpack.c.l.b16 %v1602
      %v7972 = vunpack.c.l.b16 %v1603
      %v7973 = vunpack.c.l.b16 %v1604
      %v7974 = vunpack.c.l.b16 %v1605
      %v7975 = vunpack.c.l.b16 %v1606
      %v7976 = vunpack.c.l.b16 %v1607
      %v7977 = vunpack.c.l.b16 %v1608
      %v7978 = vunpack.c.l.b16 %v1609
      %v7979 = vunpack.c.l.b16 %v1610
      %v7980 = vunpack.c.l.b16 %v1611
      %v7981 = vunpack.c.l.b16 %v1612
      %v7982 = vunpack.c.l.b16 %v1613
      %v7983 = vunpack.c.l.b16 %v1614
      %v7984 = vunpack.c.l.b16 %v1615
      %v7985 = vunpack.c.l.b16 %v1616
      %v7986 = vunpack.c.l.b16 %v1617
      %v7987 = vunpack.c.l.b16 %v1618
      %v7988 = vunpack.c.l.b16 %v1619
      %v7989 = vunpack.c.l.b16 %v1620
      %v7990 = vunpack.c.l.b16 %v1621
      %v7991 = vunpack.c.l.b16 %v1622
      %v7992 = vunpack.c.l.b16 %v1623
      %v7993 = vunpack.c.l.b16 %v1624
      %v7994 = vunpack.c.l.b16 %v1625
      %v7995 = vunpack.c.l.b16 %v1626
      %v7996 = vunpack.c.l.b16 %v1627
      %v7997 = vunpack.c.l.b16 %v1628
      %v7998 = vunpack.c.l.b16 %v1629
      %v7999 = vunpack.c.l.b16 %v1630
      %v8000 = vunpack.c.l.b16 %v1631
      %v8001 = vunpack.c.l.b16 %v1632
      %v8002 = vunpack.c.l.b16 %v1633
      %v8003 = vunpack.c.l.b16 %v1634
      %v8004 = vunpack.c.l.b16 %v1635
      %v8005 = vunpack.c.l.b16 %v1636
      %v8006 = vunpack.c.l.b16 %v1637
      %v8007 = vunpack.c.l.b16 %v1638
      %v8008 = vunpack.c.l.b16 %v1639
      %v8009 = vunpack.c.l.b16 %v1640
      %v8010 = vunpack.c.l.b16 %v1641
      %v8011 = vunpack.c.l.b16 %v1642
      %v8012 = vunpack.c.l.b16 %v1643
      %v8013 = vunpack.c.l.b16 %v1644
      %v8014 = vunpack.c.l.b16 %v1645
      %v8015 = vunpack.c.l.b16 %v1646
      %v8016 = vunpack.c.l.b16 %v1647
      %v8017 = vunpack.c.l.b16 %v1648
      %v8018 = vunpack.c.l.b16 %v1649
      %v8019 = vunpack.c.l.b16 %v1650
      %v8020 = vunpack.c.l.b16 %v1651
      %v8021 = vunpack.c.l.b16 %v1652
      %v8022 = vunpack.c.l.b16 %v1653
      %v8023 = vunpack.c.l.b16 %v1654
      %v8024 = vunpack.c.l.b16 %v1655
      %v8025 = vunpack.c.l.b16 %v1656
      %v8026 = vunpack.c.l.b16 %v1657
      %v8027 = vunpack.c.l.b16 %v1658
      %v8028 = vunpack.c.l.b16 %v1659
      %v8029 = vunpack.c.l.b16 %v1660
      %v8030 = vunpack.c.l.b16 %v1661
      %v8031 = vunpack.c.l.b16 %v1662
      %v8032 = vunpack.c.l.b16 %v1663
      %v8033 = vunpack.c.l.b16 %v1664
      %v8034 = vunpack.c.l.b16 %v1665
      %v8035 = vunpack.c.l.b16 %v1666
      %v8036 = vunpack.c.l.b16 %v1667
      %v8037 = vunpack.c.l.b16 %v1668
      %v8038 = vunpack.c.l.b16 %v1669
      %v8039 = vunpack.c.l.b16 %v1670
      %v8040 = vunpack.c.l.b16 %v1671
      %v8041 = vunpack.c.l.b16 %v1672
      %v8042 = vunpack.c.l.b16 %v1673
      %v8043 = vunpack.c.l.b16 %v1674
      %v8044 = vunpack.c.l.b16 %v1675
      %v8045 = vunpack.c.l.b16 %v1676
      %v8046 = vunpack.c.l.b16 %v1677
      %v8047 = vunpack.c.l.b16 %v1678
      %v8048 = vunpack.c.l.b16 %v1679
      %v8049 = vunpack.c.l.b16 %v1680
      %v8050 = vunpack.c.l.b16 %v1681
      %v8051 = vunpack.c.l.b16 %v1682
      %v8052 = vunpack.c.l.b16 %v1683
      %v8053 = vunpack.c.l.b16 %v1684
      %v8054 = vunpack.c.l.b16 %v1685
      %v8055 = vunpack.c.l.b16 %v1686
      %v8056 = vunpack.c.l.b16 %v1687
      %v8057 = vunpack.c.l.b16 %v1688
      %v8058 = vunpack.c.l.b16 %v1689
      %v8059 = vunpack.c.l.b16 %v1690
      %v8060 = vunpack.c.l.b16 %v1691
      %v8061 = vunpack.c.l.b16 %v1692
      %v8062 = vunpack.c.l.b16 %v1693
      %v8063 = vunpack.c.l.b16 %v1694
      %v8064 = vunpack.c.l.b16 %v1695
      %v8065 = vunpack.c.l.b16 %v1696
      %v8066 = vunpack.c.l.b16 %v1697
      %v8067 = vunpack.c.l.b16 %v1698
      %v8068 = vunpack.c.l.b16 %v1699
      %v8069 = vunpack.c.l.b16 %v1700
      %v8070 = vunpack.c.l.b16 %v1701
      %v8071 = vunpack.c.l.b16 %v1702
      %v8072 = vunpack.c.l.b16 %v1703
      %v8073 = vunpack.c.l.b16 %v1704
      %v8074 = vunpack.c.l.b16 %v1705
      %v8075 = vunpack.c.l.b16 %v1706
      %v8076 = vunpack.c.l.b16 %v1707
      %v8077 = vunpack.c.l.b16 %v1708
      %v8078 = vunpack.c.l.b16 %v1709
      %v8079 = vunpack.c.l.b16 %v1710
      %v8080 = vunpack.c.l.b16 %v1711
      %v8081 = vunpack.c.l.b16 %v1712
      %v8082 = vunpack.c.l.b16 %v1713
      %v8083 = vunpack.c.l.b16 %v1714
      %v8084 = vunpack.c.l.b16 %v1715
      %v8085 = vunpack.c.l.b16 %v1716
      %v8086 = vunpack.c.l.b16 %v1717
      %v8087 = vunpack.c.l.b16 %v1718
      %v8088 = vunpack.c.l.b16 %v1719
      %v8089 = vunpack.c.l.b16 %v1720
      %v8090 = vunpack.c.l.b16 %v1721
      %v8091 = vunpack.c.l.b16 %v1722
      %v8092 = vunpack.c.l.b16 %v1723
      %v8093 = vunpack.c.l.b16 %v1724
      %v8094 = vunpack.c.l.b16 %v1725
      %v8095 = vunpack.c.l.b16 %v1726
      %v8096 = vunpack.c.l.b16 %v1727
      %v8097 = vunpack.c.l.b16 %v1728
      %v8098 = vunpack.c.l.b16 %v1729
      %v8099 = vunpack.c.l.b16 %v1730
      %v8100 = vunpack.c.l.b16 %v1731
      %v8101 = vunpack.c.l.b16 %v1732
      %v8102 = vunpack.c.l.b16 %v1733
      %v8103 = vunpack.c.l.b16 %v1734
      %v8104 = vunpack.c.l.b16 %v1735
      %v8105 = vunpack.c.l.b16 %v1736
      %v8106 = vunpack.c.l.b16 %v1737
      %v8107 = vunpack.c.l.b16 %v1738
      %v8108 = vunpack.c.l.b16 %v1739
      %v8109 = vunpack.c.l.b16 %v1740
      %v8110 = vunpack.c.l.b16 %v1741
      %v8111 = vunpack.c.l.b16 %v1742
      %v8112 = vunpack.c.l.b16 %v1743
      %v8113 = vunpack.c.l.b16 %v1744
      %v8114 = vunpack.c.l.b16 %v1745
      %v8115 = vunpack.c.l.b16 %v1746
      %v8116 = vunpack.c.l.b16 %v1747
      %v8117 = vunpack.c.l.b16 %v1748
      %v8118 = vunpack.c.l.b16 %v1749
      %v8119 = vunpack.c.l.b16 %v1750
      %v8120 = vunpack.c.l.b16 %v1751
      %v8121 = vunpack.c.l.b16 %v1752
      %v8122 = vunpack.c.l.b16 %v1753
      %v8123 = vunpack.c.l.b16 %v1754
      %v8124 = vunpack.c.l.b16 %v1755
      %v8125 = vunpack.c.l.b16 %v1756
      %v8126 = vunpack.c.l.b16 %v1757
      %v8127 = vunpack.c.l.b16 %v1758
      %v8128 = vunpack.c.l.b16 %v1759
      %v8129 = vunpack.c.l.b16 %v1760
      %v8130 = vunpack.c.l.b16 %v1761
      %v8131 = vunpack.c.l.b16 %v1762
      %v8132 = vunpack.c.l.b16 %v1763
      %v8133 = vunpack.c.l.b16 %v1764
      %v8134 = vunpack.c.l.b16 %v1765
      %v8135 = vunpack.c.l.b16 %v1766
      %v8136 = vunpack.c.l.b16 %v1767
      %v8137 = vunpack.c.l.b16 %v1768
      %v8138 = vunpack.c.l.b16 %v1769
      %v8139 = vunpack.c.l.b16 %v1770
      %v8140 = vunpack.c.l.b16 %v1771
      %v8141 = vunpack.c.l.b16 %v1772
      %v8142 = vunpack.c.l.b16 %v1773
      %v8143 = vunpack.c.l.b16 %v1774
      %v8144 = vunpack.c.l.b16 %v1775
      %v8145 = vunpack.c.l.b16 %v1776
      %v8146 = vunpack.c.l.b16 %v1777
      %v8147 = vunpack.c.l.b16 %v1778
      %v8148 = vunpack.c.l.b16 %v1779
      %v8149 = vunpack.c.l.b16 %v1780
      %v8150 = vunpack.c.l.b16 %v1781
      %v8151 = vunpack.c.l.b16 %v1782
      %v8152 = vunpack.c.l.b16 %v1783
      %v8153 = vunpack.c.l.b16 %v1784
      %v8154 = vunpack.c.l.b16 %v1785
      %v8155 = vunpack.c.l.b16 %v1786
      %v8156 = vunpack.c.l.b16 %v1787
      %v8157 = vunpack.c.l.b16 %v1788
      %v8158 = vunpack.c.l.b16 %v1789
      %v8159 = vunpack.c.l.b16 %v1790
      %v8160 = vunpack.c.l.b16 %v1791
      %v8161 = vunpack.c.l.b16 %v1792
      %v8162 = vunpack.c.l.b16 %v1793
      %v8163 = vunpack.c.l.b16 %v1794
      %v8164 = vunpack.c.l.b16 %v1795
      %v8165 = vunpack.c.l.b16 %v1796
      %v8166 = vunpack.c.l.b16 %v1797
      %v8167 = vunpack.c.l.b16 %v1798
      %v8168 = vunpack.c.l.b16 %v1799
      %v8169 = vunpack.c.l.b16 %v1800
      %v8170 = vunpack.c.l.b16 %v1801
      %v8171 = vunpack.c.l.b16 %v1802
      %v8172 = vunpack.c.l.b16 %v1803
      %v8173 = vunpack.c.l.b16 %v1804
      %v8174 = vunpack.c.l.b16 %v1805
      %v8175 = vunpack.c.l.b16 %v1806
      %v8176 = vunpack.c.l.b16 %v1807
      %v8177 = vunpack.c.l.b16 %v1808
      %v8178 = vunpack.c.l.b16 %v1809
      %v8179 = vunpack.c.l.b16 %v1810
      %v8180 = vunpack.c.l.b16 %v1811
      %v8181 = vunpack.c.l.b16 %v1812
      %v8182 = vunpack.c.l.b16 %v1813
      %v8183 = vunpack.c.l.b16 %v1814
      %v8184 = vunpack.c.l.b16 %v1815
      %v8185 = vunpack.c.l.b16 %v1816
      %v8186 = vunpack.c.l.b16 %v1817
      %v8187 = vunpack.c.l.b16 %v1818
      %v8188 = vunpack.c.l.b16 %v1819
      %v8189 = vunpack.c.l.b16 %v1820
      %v8190 = vunpack.c.l.b16 %v1821
      %v8191 = vunpack.c.l.b16 %v1822
      %v8192 = vunpack.c.l.b16 %v1823
      %v8193 = vunpack.c.l.b16 %v1824
      %v8194 = vunpack.c.l.b16 %v1825
      %v8195 = vunpack.c.l.b16 %v1826
      %v8196 = vunpack.c.l.b16 %v1827
      %v8197 = vunpack.c.l.b16 %v1828
      %v8198 = vunpack.c.l.b16 %v1829
      %v8199 = vunpack.c.l.b16 %v1830
      %v8200 = vunpack.c.l.b16 %v1831
      %v8201 = vunpack.c.l.b16 %v1832
      %v8202 = vunpack.c.l.b16 %v1833
      %v8203 = vunpack.c.l.b16 %v1834
      %v8204 = vunpack.c.l.b16 %v1835
      %v8205 = vunpack.c.l.b16 %v1836
      %v8206 = vunpack.c.l.b16 %v1837
      %v8207 = vunpack.c.l.b16 %v1838
      %v8208 = vunpack.c.l.b16 %v1839
      %v8209 = vunpack.c.l.b16 %v1840
      %v8210 = vunpack.c.l.b16 %v1841
      %v8211 = vunpack.c.l.b16 %v1842
      %v8212 = vunpack.c.l.b16 %v1843
      %v8213 = vunpack.c.l.b16 %v1844
      %v8214 = vunpack.c.l.b16 %v1845
      %v8215 = vunpack.c.l.b16 %v1846
      %v8216 = vunpack.c.l.b16 %v1847
      %v8217 = vunpack.c.l.b16 %v1848
      %v8218 = vunpack.c.l.b16 %v1849
      %v8219 = vunpack.c.l.b16 %v1850
      %v8220 = vunpack.c.l.b16 %v1851
      %v8221 = vunpack.c.l.b16 %v1852
      %v8222 = vunpack.c.l.b16 %v1853
      %v8223 = vunpack.c.l.b16 %v1854
      %v8224 = vunpack.c.l.b16 %v1855
      %v8225 = vunpack.c.l.b16 %v1856
      %v8226 = vunpack.c.l.b16 %v1857
      %v8227 = vunpack.c.l.b16 %v1858
      %v8228 = vunpack.c.l.b16 %v1859
      %v8229 = vunpack.c.l.b16 %v1860
      %v8230 = vunpack.c.l.b16 %v1861
      %v8231 = vunpack.c.l.b16 %v1862
      %v8232 = vunpack.c.l.b16 %v1863
      %v8233 = vunpack.c.l.b16 %v1864
      %v8234 = vunpack.c.l.b16 %v1865
      %v8235 = vunpack.c.l.b16 %v1866
      %v8236 = vunpack.c.l.b16 %v1867
      %v8237 = vunpack.c.l.b16 %v1868
      %v8238 = vunpack.c.l.b16 %v1869
      %v8239 = vunpack.c.l.b16 %v1870
      %v8240 = vunpack.c.l.b16 %v1871
      %v8241 = vunpack.c.l.b16 %v1872
      %v8242 = vunpack.c.l.b16 %v1873
      %v8243 = vunpack.c.l.b16 %v1874
      %v8244 = vunpack.c.l.b16 %v1875
      %v8245 = vunpack.c.l.b16 %v1876
      %v8246 = vunpack.c.l.b16 %v1877
      %v8247 = vunpack.c.l.b16 %v1878
      %v8248 = vunpack.c.l.b16 %v1879
      %v8249 = vunpack.c.l.b16 %v1880
      %v8250 = vunpack.c.l.b16 %v1881
      %v8251 = vunpack.c.l.b16 %v1882
      %v8252 = vunpack.c.l.b16 %v1883
      %v8253 = vunpack.c.l.b16 %v1884
      %v8254 = vunpack.c.l.b16 %v1885
      %v8255 = vunpack.c.l.b16 %v1886
      %v8256 = vunpack.c.l.b16 %v1887
      %v8257 = vunpack.c.l.b16 %v1888
      %v8258 = vunpack.c.l.b16 %v1889
      %v8259 = vunpack.c.l.b16 %v1890
      %v8260 = vunpack.c.l.b16 %v1891
      %v8261 = vunpack.c.l.b16 %v1892
      %v8262 = vunpack.c.l.b16 %v1893
      %v8263 = vunpack.c.l.b16 %v1894
      %v8264 = vunpack.c.l.b16 %v1895
      %v8265 = vunpack.c.l.b16 %v1896
      %v8266 = vunpack.c.l.b16 %v1897
      %v8267 = vunpack.c.l.b16 %v1898
      %v8268 = vunpack.c.l.b16 %v1899
      %v8269 = vunpack.c.l.b16 %v1900
      %v8270 = vunpack.c.l.b16 %v1901
      %v8271 = vunpack.c.l.b16 %v1902
      %v8272 = vunpack.c.l.b16 %v1903
      %v8273 = vunpack.c.l.b16 %v1904
      %v8274 = vunpack.c.l.b16 %v1905
      %v8275 = vunpack.c.l.b16 %v1906
      %v8276 = vunpack.c.l.b16 %v1907
      %v8277 = vunpack.c.l.b16 %v1908
      %v8278 = vunpack.c.l.b16 %v1909
      %v8279 = vunpack.c.l.b16 %v1910
      %v8280 = vunpack.c.l.b16 %v1911
      %v8281 = vunpack.c.l.b16 %v1912
      %v8282 = vunpack.c.l.b16 %v1913
      %v8283 = vunpack.c.l.b16 %v1914
      %v8284 = vunpack.c.l.b16 %v1915
      %v8285 = vunpack.c.l.b16 %v1916
      %v8286 = vunpack.c.l.b16 %v1917
      %v8287 = vunpack.c.l.b16 %v1918
      %v8288 = vunpack.c.l.b16 %v1919
      %v8289 = vunpack.c.l.b16 %v1920
      %v8290 = vunpack.c.l.b16 %v1921
      %v8291 = vunpack.c.l.b16 %v1922
      %v8292 = vunpack.c.l.b16 %v1923
      %v8293 = vunpack.c.l.b16 %v1924
      %v8294 = vunpack.c.l.b16 %v1925
      %v8295 = vunpack.c.l.b16 %v1926
      %v8296 = vunpack.c.l.b16 %v1927
      %v8297 = vunpack.c.l.b16 %v1928
      %v8298 = vunpack.c.l.b16 %v1929
      %v8299 = vunpack.c.l.b16 %v1930
      %v8300 = vunpack.c.l.b16 %v1931
      %v8301 = vunpack.c.l.b16 %v1932
      %v8302 = vunpack.c.l.b16 %v1933
      %v8303 = vunpack.c.l.b16 %v1934
      %v8304 = vunpack.c.l.b16 %v1935
      %v8305 = vunpack.c.l.b16 %v1936
      %v8306 = vunpack.c.l.b16 %v1937
      %v8307 = vunpack.c.l.b16 %v1938
      %v8308 = vunpack.c.l.b16 %v1939
      %v8309 = vunpack.c.l.b16 %v1940
      %v8310 = vunpack.c.l.b16 %v1941
      %v8311 = vunpack.c.l.b16 %v1942
      %v8312 = vunpack.c.l.b16 %v1943
      %v8313 = vunpack.c.l.b16 %v1944
      %v8314 = vunpack.c.l.b16 %v1945
      %v8315 = vunpack.c.l.b16 %v1946
      %v8316 = vunpack.c.l.b16 %v1947
      %v8317 = vunpack.c.l.b16 %v1948
      %v8318 = vunpack.c.l.b16 %v1949
      %v8319 = vunpack.c.l.b16 %v1950
      %v8320 = vunpack.c.l.b16 %v1951
      %v8321 = vunpack.c.l.b16 %v1952
      %v8322 = vunpack.c.l.b16 %v1953
      %v8323 = vunpack.c.l.b16 %v1954
      %v8324 = vunpack.c.l.b16 %v1955
      %v8325 = vunpack.c.l.b16 %v1956
      %v8326 = vunpack.c.l.b16 %v1957
      %v8327 = vunpack.c.l.b16 %v1958
      %v8328 = vunpack.c.l.b16 %v1959
      %v8329 = vunpack.c.l.b16 %v1960
      %v8330 = vunpack.c.l.b16 %v1961
      %v8331 = vunpack.c.l.b16 %v1962
      %v8332 = vunpack.c.l.b16 %v1963
      %v8333 = vunpack.c.l.b16 %v1964
      %v8334 = vunpack.c.l.b16 %v1965
      %v8335 = vunpack.c.l.b16 %v1966
      %v8336 = vunpack.c.l.b16 %v1967
      %v8337 = vunpack.c.l.b16 %v1968
      %v8338 = vunpack.c.l.b16 %v1969
      %v8339 = vunpack.c.l.b16 %v1970
      %v8340 = vunpack.c.l.b16 %v1971
      %v8341 = vunpack.c.l.b16 %v1972
      %v8342 = vunpack.c.l.b16 %v1973
      %v8343 = vunpack.c.l.b16 %v1974
      %v8344 = vunpack.c.l.b16 %v1975
      %v8345 = vunpack.c.l.b16 %v1976
      %v8346 = vunpack.c.l.b16 %v1977
      %v8347 = vunpack.c.l.b16 %v1978
      %v8348 = vunpack.c.l.b16 %v1979
      %v8349 = vunpack.c.l.b16 %v1980
      %v8350 = vunpack.c.l.b16 %v1981
      %v8351 = vunpack.c.l.b16 %v1982
      %v8352 = vunpack.c.l.b16 %v1983
      %v8353 = vunpack.c.l.b16 %v1984
      %v8354 = vunpack.c.l.b16 %v1985
      %v8355 = vunpack.c.l.b16 %v1986
      %v8356 = vunpack.c.l.b16 %v1987
      %v8357 = vunpack.c.l.b16 %v1988
      %v8358 = vunpack.c.l.b16 %v1989
      %v8359 = vunpack.c.l.b16 %v1990
      %v8360 = vunpack.c.l.b16 %v1991
      %v8361 = vunpack.c.l.b16 %v1992
      %v8362 = vunpack.c.l.b16 %v1993
      %v8363 = vunpack.c.l.b16 %v1994
      %v8364 = vunpack.c.l.b16 %v1995
      %v8365 = vunpack.c.l.b16 %v1996
      %v8366 = vunpack.c.l.b16 %v1997
      %v8367 = vunpack.c.l.b16 %v1998
      %v8368 = vunpack.c.l.b16 %v1999
      %v8369 = vunpack.c.l.b16 %v2000
      %v8370 = vunpack.c.l.b16 %v2001
      %v8371 = vunpack.c.l.b16 %v2002
      %v8372 = vunpack.c.l.b16 %v2003
      %v8373 = vunpack.c.l.b16 %v2004
      %v8374 = vunpack.c.l.b16 %v2005
      %v8375 = vunpack.c.l.b16 %v2006
      %v8376 = vunpack.c.l.b16 %v2007
      %v8377 = vunpack.c.l.b16 %v2008
      %v8378 = vunpack.c.l.b16 %v2009
      %v8379 = vunpack.c.l.b16 %v2010
      %v8380 = vunpack.c.l.b16 %v2011
      %v8381 = vunpack.c.l.b16 %v2012
      %v8382 = vunpack.c.l.b16 %v2013
      %v8383 = vunpack.c.l.b16 %v2014
      %v8384 = vunpack.c.l.b16 %v2015
      %v8385 = vunpack.c.l.b16 %v2016
      %v8386 = vunpack.c.l.b16 %v2017
      %v8387 = vunpack.c.l.b16 %v2018
      %v8388 = vunpack.c.l.b16 %v2019
      %v8389 = vunpack.c.l.b16 %v2020
      %v8390 = vunpack.c.l.b16 %v2021
      %v8391 = vunpack.c.l.b16 %v2022
      %v8392 = vunpack.c.l.b16 %v2023
      %v8393 = vunpack.c.l.b16 %v2024
      %v8394 = vunpack.c.l.b16 %v2025
      %v8395 = vunpack.c.l.b16 %v2026
      %v8396 = vunpack.c.l.b16 %v2027
      %v8397 = vunpack.c.l.b16 %v2028
      %v8398 = vunpack.c.l.b16 %v2029
      %v8399 = vunpack.c.l.b16 %v2030
      %v8400 = vunpack.c.l.b16 %v2031
      %v8401 = vunpack.c.l.b16 %v2032
      %v8402 = vunpack.c.l.b16 %v2033
      %v8403 = vunpack.c.l.b16 %v2034
      %v8404 = vunpack.c.l.b16 %v2035
      %v8405 = vunpack.c.l.b16 %v2036
      %v8406 = vunpack.c.l.b16 %v2037
      %v8407 = vunpack.c.l.b16 %v2038
      %v8408 = vunpack.c.l.b16 %v2039
      %v8409 = vunpack.c.l.b16 %v2040
      %v8410 = vunpack.c.l.b16 %v2041
      %v8411 = vunpack.c.l.b16 %v2042
      %v8412 = vunpack.c.l.b16 %v2043
      %v8413 = vunpack.c.l.b16 %v2044
      %v8414 = vunpack.c.l.b16 %v2045
      %v8415 = vunpack.c.l.b16 %v2046
      %v8416 = vunpack.c.l.b16 %v2047
      %v8417 = vunpack.c.l.b16 %v2048
      %v8418 = vunpack.c.l.b16 %v2049
      %v8419 = vunpack.c.l.b16 %v2050
      %v8420 = vunpack.c.l.b16 %v2051
      %v8421 = vunpack.c.l.b16 %v2052
      %v8422 = vunpack.c.l.b16 %v2053
      %v8423 = vunpack.c.l.b16 %v2054
      %v8424 = vunpack.c.l.b16 %v2055
      %v8425 = vunpack.c.l.b16 %v2056
      %v8426 = vunpack.c.l.b16 %v2057
      %v8427 = vunpack.c.l.b16 %v2058
      %v8428 = vunpack.c.l.b16 %v2059
      %v8429 = vunpack.c.l.b16 %v2060
      %v8430 = vunpack.c.l.b16 %v2061
      %v8431 = vunpack.c.l.b16 %v2062
      %v8432 = vunpack.c.l.b16 %v2063
      %v8433 = vunpack.c.l.b16 %v2064
      %v8434 = vunpack.c.l.b16 %v2065
      %v8435 = vunpack.c.l.b16 %v2066
      %v8436 = vunpack.c.l.b16 %v2067
      %v8437 = vunpack.c.l.b16 %v2068
      %v8438 = vunpack.c.l.b16 %v2069
      %v8439 = vunpack.c.l.b16 %v2070
      %v8440 = vunpack.c.l.b16 %v2071
      %v8441 = vunpack.c.l.b16 %v2072
      %v8442 = vunpack.c.l.b16 %v2073
      %v8443 = vunpack.c.l.b16 %v2074
      %v8444 = vunpack.c.l.b16 %v2075
      %v8445 = vunpack.c.l.b16 %v2076
      %v8446 = vunpack.c.l.b16 %v2077
      %v8447 = vunpack.c.l.b16 %v2078
      %v8448 = vunpack.c.l.b16 %v2079
      %v8449 = vunpack.c.l.b16 %v2080
      %v8450 = vunpack.c.l.b16 %v2081
      %v8451 = vunpack.c.l.b16 %v2082
      %v8452 = vunpack.c.l.b16 %v2083
      %v8453 = vunpack.c.l.b16 %v2084
      %v8454 = vunpack.c.l.b16 %v2085
      %v8455 = vunpack.c.l.b16 %v2086
      %v8456 = vunpack.c.l.b16 %v2087
      %v8457 = vunpack.c.l.b16 %v2088
      %v8458 = vunpack.c.l.b16 %v2089
      %v8459 = vunpack.c.l.b16 %v2090
      %v8460 = vunpack.c.l.b16 %v2091
      %v8461 = vunpack.c.l.b16 %v2092
      %v8462 = vunpack.c.l.b16 %v2093
      %v8463 = vunpack.c.l.b16 %v2094
      %v8464 = vunpack.c.l.b16 %v2095
      %v8465 = vunpack.c.l.b16 %v2096
      %v8466 = vunpack.c.l.b16 %v2097
      %v8467 = vunpack.c.l.b16 %v2098
      %v8468 = vunpack.c.l.b16 %v2099
      %v8469 = vunpack.c.l.b16 %v2100
      %v8470 = vunpack.c.l.b16 %v2101
      %v8471 = vunpack.c.l.b16 %v2102
      %v8472 = vunpack.c.l.b16 %v2103
      %v8473 = vunpack.c.l.b16 %v2104
      %v8474 = vunpack.c.l.b16 %v2105
      %v8475 = vunpack.c.l.b16 %v2106
      %v8476 = vunpack.c.l.b16 %v2107
      %v8477 = vunpack.c.l.b16 %v2108
      %v8478 = vunpack.c.l.b16 %v2109
      %v8479 = vunpack.c.l.b16 %v2110
      %v8480 = vunpack.c.l.b16 %v2111
      %v8481 = vunpack.c.l.b16 %v2112
      %v8482 = vunpack.c.l.b16 %v2113
      %v8483 = vunpack.c.l.b16 %v2114
      %v8484 = vunpack.c.l.b16 %v2115
      %v8485 = vunpack.c.l.b16 %v2116
      %v8486 = vunpack.c.l.b16 %v2117
      %v8487 = vunpack.c.l.b16 %v2118
      %v8488 = vunpack.c.l.b16 %v2119
      %v8489 = vunpack.c.l.b16 %v2120
      %v8490 = vunpack.c.l.b16 %v2121
      %v8491 = vunpack.c.l.b16 %v2122
      %v8492 = vunpack.c.l.b16 %v2123
      %v8493 = vunpack.c.l.b16 %v2124
      %v8494 = vunpack.c.l.b16 %v2125
      %v8495 = vunpack.c.l.b16 %v2126
      %v8496 = vunpack.c.l.b16 %v2127
      %v8497 = vunpack.c.l.b16 %v2128
      %v8498 = vunpack.c.l.b16 %v2129
      %v8499 = vunpack.c.l.b16 %v2130
      %v8500 = vunpack.c.l.b16 %v2131
      %v8501 = vunpack.c.l.b16 %v2132
      %v8502 = vunpack.c.l.b16 %v2133
      %v8503 = vunpack.c.l.b16 %v2134
      %v8504 = vunpack.c.l.b16 %v2135
      %v8505 = vunpack.c.l.b16 %v2136
      %v8506 = vunpack.c.l.b16 %v2137
      %v8507 = vunpack.c.l.b16 %v2138
      %v8508 = vunpack.c.l.b16 %v2139
      %v8509 = vunpack.c.l.b16 %v2140
      %v8510 = vunpack.c.l.b16 %v2141
      %v8511 = vunpack.c.l.b16 %v2142
      %v8512 = vunpack.c.l.b16 %v2143
      %v8513 = vunpack.c.l.b16 %v2144
      %v8514 = vunpack.c.l.b16 %v2145
      %v8515 = vunpack.c.l.b16 %v2146
      %v8516 = vunpack.c.l.b16 %v2147
      %v8517 = vunpack.c.l.b16 %v2148
      %v8518 = vunpack.c.l.b16 %v2149
      %v8519 = vunpack.c.l.b16 %v2150
      %v8520 = vunpack.c.l.b16 %v2151
      %v8521 = vunpack.c.l.b16 %v2152
      %v8522 = vunpack.c.l.b16 %v2153
      %v8523 = vunpack.c.l.b16 %v2154
      %v8524 = vunpack.c.l.b16 %v2155
      %v8525 = vunpack.c.l.b16 %v2156
      %v8526 = vunpack.c.l.b16 %v2157
      %v8527 = vunpack.c.l.b16 %v2158
      %v8528 = vunpack.c.l.b16 %v2159
      %v8529 = vunpack.c.l.b16 %v2160
      %v8530 = vunpack.c.l.b16 %v2161
      %v8531 = vunpack.c.l.b16 %v2162
      %v8532 = vunpack.c.l.b16 %v2163
      %v8533 = vunpack.c.l.b16 %v2164
      %v8534 = vunpack.c.l.b16 %v2165
      %v8535 = vunpack.c.l.b16 %v2166
      %v8536 = vunpack.c.l.b16 %v2167
      %v8537 = vunpack.c.l.b16 %v2168
      %v8538 = vunpack.c.l.b16 %v2169
      %v8539 = vunpack.c.l.b16 %v2170
      %v8540 = vunpack.c.l.b16 %v2171
      %v8541 = vunpack.c.l.b16 %v2172
      %v8542 = vunpack.c.l.b16 %v2173
      %v8543 = vunpack.c.l.b16 %v2174
      %v8544 = vunpack.c.l.b16 %v2175
      %v8545 = vunpack.c.l.b16 %v2176
      %v8546 = vunpack.c.l.b16 %v2177
      %v8547 = vunpack.c.l.b16 %v2178
      %v8548 = vunpack.c.l.b16 %v2179
      %v8549 = vunpack.c.l.b16 %v2180
      %v8550 = vunpack.c.l.b16 %v2181
      %v8551 = vunpack.c.l.b16 %v2182
      %v8552 = vunpack.c.l.b16 %v2183
      %v8553 = vunpack.c.l.b16 %v2184
      %v8554 = vunpack.c.l.b16 %v2185
      %v8555 = vunpack.c.l.b16 %v2186
      %v8556 = vunpack.c.l.b16 %v2187
      %v8557 = vunpack.c.l.b16 %v2188
      %v8558 = vunpack.c.l.b16 %v2189
      %v8559 = vunpack.c.l.b16 %v2190
      %v8560 = vunpack.c.l.b16 %v2191
      %v8561 = vunpack.c.l.b16 %v2192
      %v8562 = vunpack.c.l.b16 %v2193
      %v8563 = vunpack.c.l.b16 %v2194
      %v8564 = vunpack.c.l.b16 %v2195
      %v8565 = vunpack.c.l.b16 %v2196
      %v8566 = vunpack.c.l.b16 %v2197
      %v8567 = vunpack.c.l.b16 %v2198
      %v8568 = vunpack.c.l.b16 %v2199
      %v8569 = vunpack.c.l.b16 %v2200
      %v8570 = vunpack.c.l.b16 %v2201
      %v8571 = vunpack.c.l.b16 %v2202
      %v8572 = vunpack.c.l.b16 %v2203
      %v8573 = vunpack.c.l.b16 %v2204
      %v8574 = vunpack.c.l.b16 %v2205
      %v8575 = vunpack.c.l.b16 %v2206
      %v8576 = vunpack.c.l.b16 %v2207
      %v8577 = vunpack.c.l.b16 %v2208
      %v8578 = vunpack.c.l.b16 %v2209
      %v8579 = vunpack.c.l.b16 %v2210
      %v8580 = vunpack.c.l.b16 %v2211
      %v8581 = vunpack.c.l.b16 %v2212
      %v8582 = vunpack.c.l.b16 %v2213
      %v8583 = vunpack.c.l.b16 %v2214
      %v8584 = vunpack.c.l.b16 %v2215
      %v8585 = vunpack.c.l.b16 %v2216
      %v8586 = vunpack.c.l.b16 %v2217
      %v8587 = vunpack.c.l.b16 %v2218
      %v8588 = vunpack.c.l.b16 %v2219
      %v8589 = vunpack.c.l.b16 %v2220
      %v8590 = vunpack.c.l.b16 %v2221
      %v8591 = vunpack.c.l.b16 %v2222
      %v8592 = vunpack.c.l.b16 %v2223
      %v8593 = vunpack.c.l.b16 %v2224
      %v8594 = vunpack.c.l.b16 %v2225
      %v8595 = vunpack.c.l.b16 %v2226
      %v8596 = vunpack.c.l.b16 %v2227
      %v8597 = vunpack.c.l.b16 %v2228
      %v8598 = vunpack.c.l.b16 %v2229
      %v8599 = vunpack.c.l.b16 %v2230
      %v8600 = vunpack.c.l.b16 %v2231
      %v8601 = vunpack.c.l.b16 %v2232
      %v8602 = vunpack.c.l.b16 %v2233
      %v8603 = vunpack.c.l.b16 %v2234
      %v8604 = vunpack.c.l.b16 %v2235
      %v8605 = vunpack.c.l.b16 %v2236
      %v8606 = vunpack.c.l.b16 %v2237
      %v8607 = vunpack.c.l.b16 %v2238
      %v8608 = vunpack.c.l.b16 %v2239
      %v8609 = vunpack.c.l.b16 %v2240
      %v8610 = vunpack.c.l.b16 %v2241
      %v8611 = vunpack.c.l.b16 %v2242
      %v8612 = vunpack.c.l.b16 %v2243
      %v8613 = vunpack.c.l.b16 %v2244
      %v8614 = vunpack.c.l.b16 %v2245
      %v8615 = vunpack.c.l.b16 %v2246
      %v8616 = vunpack.c.l.b16 %v2247
      %v8617 = vunpack.c.l.b16 %v2248
      %v8618 = vunpack.c.l.b16 %v2249
      %v8619 = vunpack.c.l.b16 %v2250
      %v8620 = vunpack.c.l.b16 %v2251
      %v8621 = vunpack.c.l.b16 %v2252
      %v8622 = vunpack.c.l.b16 %v2253
      %v8623 = vunpack.c.l.b16 %v2254
      %v8624 = vunpack.c.l.b16 %v2255
      %v8625 = vunpack.c.l.b16 %v2256
      %v8626 = vunpack.c.l.b16 %v2257
      %v8627 = vunpack.c.l.b16 %v2258
      %v8628 = vunpack.c.l.b16 %v2259
      %v8629 = vunpack.c.l.b16 %v2260
      %v8630 = vunpack.c.l.b16 %v2261
      %v8631 = vunpack.c.l.b16 %v2262
      %v8632 = vunpack.c.l.b16 %v2263
      %v8633 = vunpack.c.l.b16 %v2264
      %v8634 = vunpack.c.l.b16 %v2265
      %v8635 = vunpack.c.l.b16 %v2266
      %v8636 = vunpack.c.l.b16 %v2267
      %v8637 = vunpack.c.l.b16 %v2268
      %v8638 = vunpack.c.l.b16 %v2269
      %v8639 = vunpack.c.l.b16 %v2270
      %v8640 = vunpack.c.l.b16 %v2271
      %v8641 = vunpack.c.l.b16 %v2272
      %v8642 = vunpack.c.l.b16 %v2273
      %v8643 = vunpack.c.l.b16 %v2274
      %v8644 = vunpack.c.l.b16 %v2275
      %v8645 = vunpack.c.l.b16 %v2276
      %v8646 = vunpack.c.l.b16 %v2277
      %v8647 = vunpack.c.l.b16 %v2278
      %v8648 = vunpack.c.l.b16 %v2279
      %v8649 = vunpack.c.l.b16 %v2280
      %v8650 = vunpack.c.l.b16 %v2281
      %v8651 = vunpack.c.l.b16 %v2282
      %v8652 = vunpack.c.l.b16 %v2283
      %v8653 = vunpack.c.l.b16 %v2284
      %v8654 = vunpack.c.l.b16 %v2285
      %v8655 = vunpack.c.l.b16 %v2286
      %v8656 = vunpack.c.l.b16 %v2287
      %v8657 = vunpack.c.l.b16 %v2288
      %v8658 = vunpack.c.l.b16 %v2289
      %v8659 = vunpack.c.l.b16 %v2290
      %v8660 = vunpack.c.l.b16 %v2291
      %v8661 = vunpack.c.l.b16 %v2292
      %v8662 = vunpack.c.l.b16 %v2293
      %v8663 = vunpack.c.l.b16 %v2294
      %v8664 = vunpack.c.l.b16 %v2295
      %v8665 = vunpack.c.l.b16 %v2296
      %v8666 = vunpack.c.l.b16 %v2297
      %v8667 = vunpack.c.l.b16 %v2298
      %v8668 = vunpack.c.l.b16 %v2299
      %v8669 = vunpack.c.l.b16 %v2300
      %v8670 = vunpack.c.l.b16 %v2301
      %v8671 = vunpack.c.l.b16 %v2302
      %v8672 = vunpack.c.l.b16 %v2303
      %v8673 = vunpack.c.l.b16 %v2304
      %v8674 = vunpack.c.l.b16 %v2305
      %v8675 = vunpack.c.l.b16 %v2306
      %v8676 = vunpack.c.l.b16 %v2307
      %v8677 = vunpack.c.l.b16 %v2308
      %v8678 = vunpack.c.l.b16 %v2309
      %v8679 = vunpack.c.l.b16 %v2310
      %v8680 = vunpack.c.l.b16 %v2311
      %v8681 = vunpack.c.l.b16 %v2312
      %v8682 = vunpack.c.l.b16 %v2313
      %v8683 = vunpack.c.l.b16 %v2314
      %v8684 = vunpack.c.l.b16 %v2315
      %v8685 = vunpack.c.l.b16 %v2316
      %v8686 = vunpack.c.l.b16 %v2317
      %v8687 = vunpack.c.l.b16 %v2318
      %v8688 = vunpack.c.l.b16 %v2319
      %v8689 = vunpack.c.l.b16 %v2320
      %v8690 = vunpack.c.l.b16 %v2321
      %v8691 = vunpack.c.l.b16 %v2322
      %v8692 = vunpack.c.l.b16 %v2323
      %v8693 = vunpack.c.l.b16 %v2324
      %v8694 = vunpack.c.l.b16 %v2325
      %v8695 = vunpack.c.l.b16 %v2326
      %v8696 = vunpack.c.l.b16 %v2327
      %v8697 = vunpack.c.l.b16 %v2328
      %v8698 = vunpack.c.l.b16 %v2329
      %v8699 = vunpack.c.l.b16 %v2330
      %v8700 = vunpack.c.l.b16 %v2331
      %v8701 = vunpack.c.l.b16 %v2332
      %v8702 = vunpack.c.l.b16 %v2333
      %v8703 = vunpack.c.l.b16 %v2334
      %v8704 = vunpack.c.l.b16 %v2335
      %v8705 = vunpack.c.l.b16 %v2336
      %v8706 = vunpack.c.l.b16 %v2337
      %v8707 = vunpack.c.l.b16 %v2338
      %v8708 = vunpack.c.l.b16 %v2339
      %v8709 = vunpack.c.l.b16 %v2340
      %v8710 = vunpack.c.l.b16 %v2341
      %v8711 = vunpack.c.l.b16 %v2342
      %v8712 = vunpack.c.l.b16 %v2343
      %v8713 = vunpack.c.l.b16 %v2344
      %v8714 = vunpack.c.l.b16 %v2345
      %v8715 = vunpack.c.l.b16 %v2346
      %v8716 = vunpack.c.l.b16 %v2347
      %v8717 = vunpack.c.l.b16 %v2348
      %v8718 = vunpack.c.l.b16 %v2349
      %v8719 = vunpack.c.l.b16 %v2350
      %v8720 = vunpack.c.l.b16 %v2351
      %v8721 = vunpack.c.l.b16 %v2352
      %v8722 = vunpack.c.l.b16 %v2353
      %v8723 = vunpack.c.l.b16 %v2354
      %v8724 = vunpack.c.l.b16 %v2355
      %v8725 = vunpack.c.l.b16 %v2356
      %v8726 = vunpack.c.l.b16 %v2357
      %v8727 = vunpack.c.l.b16 %v2358
      %v8728 = vunpack.c.l.b16 %v2359
      %v8729 = vunpack.c.l.b16 %v2360
      %v8730 = vunpack.c.l.b16 %v2361
      %v8731 = vunpack.c.l.b16 %v2362
      %v8732 = vunpack.c.l.b16 %v2363
      %v8733 = vunpack.c.l.b16 %v2364
      %v8734 = vunpack.c.l.b16 %v2365
      %v8735 = vunpack.c.l.b16 %v2366
      %v8736 = vunpack.c.l.b16 %v2367
      %v8737 = vunpack.c.l.b16 %v2368
      %v8738 = vunpack.c.l.b16 %v2369
      %v8739 = vunpack.c.l.b16 %v2370
      %v8740 = vunpack.c.l.b16 %v2371
      %v8741 = vunpack.c.l.b16 %v2372
      %v8742 = vunpack.c.l.b16 %v2373
      %v8743 = vunpack.c.l.b16 %v2374
      %v8744 = vunpack.c.l.b16 %v2375
      %v8745 = vunpack.c.l.b16 %v2376
      %v8746 = vunpack.c.l.b16 %v2377
      %v8747 = vunpack.c.l.b16 %v2378
      %v8748 = vunpack.c.l.b16 %v2379
      %v8749 = vunpack.c.l.b16 %v2380
      %v8750 = vunpack.c.l.b16 %v2381
      %v8751 = vunpack.c.l.b16 %v2382
      %v8752 = vunpack.c.l.b16 %v2383
      %v8753 = vunpack.c.l.b16 %v2384
      %v8754 = vunpack.c.l.b16 %v2385
      %v8755 = vunpack.c.l.b16 %v2386
      %v8756 = vunpack.c.l.b16 %v2387
      %v8757 = vunpack.c.l.b16 %v2388
      %v8758 = vunpack.c.l.b16 %v2389
      %v8759 = vunpack.c.l.b16 %v2390
      %v8760 = vunpack.c.l.b16 %v2391
      %v8761 = vunpack.c.l.b16 %v2392
      %v8762 = vunpack.c.l.b16 %v2393
      %v8763 = vunpack.c.l.b16 %v2394
      %v8764 = vunpack.c.l.b16 %v2395
      %v8765 = vunpack.c.l.b16 %v2396
      %v8766 = vunpack.c.l.b16 %v2397
      %v8767 = vunpack.c.l.b16 %v2398
      %v8768 = vunpack.c.l.b16 %v2399
      %v8769 = vunpack.c.l.b16 %v2400
      %v8770 = vunpack.c.l.b16 %v2401
      %v8771 = vunpack.c.l.b16 %v2402
      %v8772 = vunpack.c.l.b16 %v2403
      %v8773 = vunpack.c.l.b16 %v2404
      %v8774 = vunpack.c.l.b16 %v2405
      %v8775 = vunpack.c.l.b16 %v2406
      %v8776 = vunpack.c.l.b16 %v2407
      %v8777 = vunpack.c.l.b16 %v2408
      %v8778 = vunpack.c.l.b16 %v2409
      %v8779 = vunpack.c.l.b16 %v2410
      %v8780 = vunpack.c.l.b16 %v2411
      %v8781 = vunpack.c.l.b16 %v2412
      %v8782 = vunpack.c.l.b16 %v2413
      %v8783 = vunpack.c.l.b16 %v2414
      %v8784 = vunpack.c.l.b16 %v2415
      %v8785 = vunpack.c.l.b16 %v2416
      %v8786 = vunpack.c.l.b16 %v2417
      %v8787 = vunpack.c.l.b16 %v2418
      %v8788 = vunpack.c.l.b16 %v2419
      %v8789 = vunpack.c.l.b16 %v2420
      %v8790 = vunpack.c.l.b16 %v2421
      %v8791 = vunpack.c.l.b16 %v2422
      %v8792 = vunpack.c.l.b16 %v2423
      %v8793 = vunpack.c.l.b16 %v2424
      %v8794 = vunpack.c.l.b16 %v2425
      %v8795 = vunpack.c.l.b16 %v2426
      %v8796 = vunpack.c.l.b16 %v2427
      %v8797 = vunpack.c.l.b16 %v2428
      %v8798 = vunpack.c.l.b16 %v2429
      %v8799 = vunpack.c.l.b16 %v2430
      %v8800 = vunpack.c.l.b16 %v2431
      %v8801 = vunpack.c.l.b16 %v2432
      %v8802 = vunpack.c.l.b16 %v2433
      %v8803 = vunpack.c.l.b16 %v2434
      %v8804 = vunpack.c.l.b16 %v2435
      %v8805 = vunpack.c.l.b16 %v2436
      %v8806 = vunpack.c.l.b16 %v2437
      %v8807 = vunpack.c.l.b16 %v2438
      %v8808 = vunpack.c.l.b16 %v2439
      %v8809 = vunpack.c.l.b16 %v2440
      %v8810 = vunpack.c.l.b16 %v2441
      %v8811 = vunpack.c.l.b16 %v2442
      %v8812 = vunpack.c.l.b16 %v2443
      %v8813 = vunpack.c.l.b16 %v2444
      %v8814 = vunpack.c.l.b16 %v2445
      %v8815 = vunpack.c.l.b16 %v2446
      %v8816 = vunpack.c.l.b16 %v2447
      %v8817 = vunpack.c.l.b16 %v2448
      %v8818 = vunpack.c.l.b16 %v2449
      %v8819 = vunpack.c.l.b16 %v2450
      %v8820 = vunpack.c.l.b16 %v2451
      %v8821 = vunpack.c.l.b16 %v2452
      %v8822 = vunpack.c.l.b16 %v2453
      %v8823 = vunpack.c.l.b16 %v2454
      %v8824 = vunpack.c.l.b16 %v2455
      %v8825 = vunpack.c.l.b16 %v2456
      %v8826 = vunpack.c.l.b16 %v2457
      %v8827 = vunpack.c.l.b16 %v2458
      %v8828 = vunpack.c.l.b16 %v2459
      %v8829 = vunpack.c.l.b16 %v2460
      %v8830 = vunpack.c.l.b16 %v2461
      %v8831 = vunpack.c.l.b16 %v2462
      %v8832 = vunpack.c.l.b16 %v2463
      %v8833 = vunpack.c.l.b16 %v2464
      %v8834 = vunpack.c.l.b16 %v2465
      %v8835 = vunpack.c.l.b16 %v2466
      %v8836 = vunpack.c.l.b16 %v2467
      %v8837 = vunpack.c.l.b16 %v2468
      %v8838 = vunpack.c.l.b16 %v2469
      %v8839 = vunpack.c.l.b16 %v2470
      %v8840 = vunpack.c.l.b16 %v2471
      %v8841 = vunpack.c.l.b16 %v2472
      %v8842 = vunpack.c.l.b16 %v2473
      %v8843 = vunpack.c.l.b16 %v2474
      %v8844 = vunpack.c.l.b16 %v2475
      %v8845 = vunpack.c.l.b16 %v2476
      %v8846 = vunpack.c.l.b16 %v2477
      %v8847 = vunpack.c.l.b16 %v2478
      %v8848 = vunpack.c.l.b16 %v2479
      %v8849 = vunpack.c.l.b16 %v2480
      %v8850 = vunpack.c.l.b16 %v2481
      %v8851 = vunpack.c.l.b16 %v2482
      %v8852 = vunpack.c.l.b16 %v2483
      %v8853 = vunpack.c.l.b16 %v2484
      %v8854 = vunpack.c.l.b16 %v2485
      %v8855 = vunpack.c.l.b16 %v2486
      %v8856 = vunpack.c.l.b16 %v2487
      %v8857 = vunpack.c.l.b16 %v2488
      %v8858 = vunpack.c.l.b16 %v2489
      %v8859 = vunpack.c.l.b16 %v2490
      %v8860 = vunpack.c.l.b16 %v2491
      %v8861 = vunpack.c.l.b16 %v2492
      %v8862 = vunpack.c.l.b16 %v2493
      %v8863 = vunpack.c.l.b16 %v2494
      %v8864 = vunpack.c.l.b16 %v2495
      %v8865 = vunpack.c.l.b16 %v2496
      %v8866 = vunpack.c.l.b16 %v2497
      %v8867 = vunpack.c.l.b16 %v2498
      %v8868 = vunpack.c.l.b16 %v2499
      %v8869 = vunpack.c.l.b16 %v2500
      %v8870 = vunpack.c.l.b16 %v2501
      %v8871 = vunpack.c.l.b16 %v2502
      %v8872 = vunpack.c.l.b16 %v2503
      %v8873 = vunpack.c.l.b16 %v2504
      %v8874 = vunpack.c.l.b16 %v2505
      %v8875 = vunpack.c.l.b16 %v2506
      %v8876 = vunpack.c.l.b16 %v2507
      %v8877 = vunpack.c.l.b16 %v2508
      %v8878 = vunpack.c.l.b16 %v2509
      %v8879 = vunpack.c.l.b16 %v2510
      %v8880 = vunpack.c.l.b16 %v2511
      %v8881 = vunpack.c.l.b16 %v2512
      %v8882 = vunpack.c.l.b16 %v2513
      %v8883 = vunpack.c.l.b16 %v2514
      %v8884 = vunpack.c.l.b16 %v2515
      %v8885 = vunpack.c.l.b16 %v2516
      %v8886 = vunpack.c.l.b16 %v2517
      %v8887 = vunpack.c.l.b16 %v2518
      %v8888 = vunpack.c.l.b16 %v2519
      %v8889 = vunpack.c.l.b16 %v2520
      %v8890 = vunpack.c.l.b16 %v2521
      %v8891 = vunpack.c.l.b16 %v2522
      %v8892 = vunpack.c.l.b16 %v2523
      %v8893 = vunpack.c.l.b16 %v2524
      %v8894 = vunpack.c.l.b16 %v2525
      %v8895 = vunpack.c.l.b16 %v2526
      %v8896 = vunpack.c.l.b16 %v2527
      %v8897 = vunpack.c.l.b16 %v2528
      %v8898 = vunpack.c.l.b16 %v2529
      %v8899 = vunpack.c.l.b16 %v2530
      %v8900 = vunpack.c.l.b16 %v2531
      %v8901 = vunpack.c.l.b16 %v2532
      %v8902 = vunpack.c.l.b16 %v2533
      %v8903 = vunpack.c.l.b16 %v2534
      %v8904 = vunpack.c.l.b16 %v2535
      %v8905 = vunpack.c.l.b16 %v2536
      %v8906 = vunpack.c.l.b16 %v2537
      %v8907 = vunpack.c.l.b16 %v2538
      %v8908 = vunpack.c.l.b16 %v2539
      %v8909 = vunpack.c.l.b16 %v2540
      %v8910 = vunpack.c.l.b16 %v2541
      %v8911 = vunpack.c.l.b16 %v2542
      %v8912 = vunpack.c.l.b16 %v2543
      %v8913 = vunpack.c.l.b16 %v2544
      %v8914 = vunpack.c.l.b16 %v2545
      %v8915 = vunpack.c.l.b16 %v2546
      %v8916 = vunpack.c.l.b16 %v2547
      %v8917 = vunpack.c.l.b16 %v2548
      %v8918 = vunpack.c.l.b16 %v2549
      %v8919 = vunpack.c.l.b16 %v2550
      %v8920 = vunpack.c.l.b16 %v2551
      %v8921 = vunpack.c.l.b16 %v2552
      %v8922 = vunpack.c.l.b16 %v2553
      %v8923 = vunpack.c.l.b16 %v2554
      %v8924 = vunpack.c.l.b16 %v2555
      %v8925 = vunpack.c.l.b16 %v2556
      %v8926 = vunpack.c.l.b16 %v2557
      %v8927 = vunpack.c.l.b16 %v2558
      %v8928 = vunpack.c.l.b16 %v2559
      %v8929 = vunpack.c.l.b16 %v2560
      %v8930 = vunpack.c.l.b16 %v2561
      %v8931 = vunpack.c.l.b16 %v2562
      %v8932 = vunpack.c.l.b16 %v2563
      %v8933 = vunpack.c.l.b16 %v2564
      %v8934 = vunpack.c.l.b16 %v2565
      %v8935 = vunpack.c.l.b16 %v2566
      %v8936 = vunpack.c.l.b16 %v2567
      %v8937 = vunpack.c.l.b16 %v2568
      %v8938 = vunpack.c.l.b16 %v2569
      %v8939 = vunpack.c.l.b16 %v2570
      %v8940 = vunpack.c.l.b16 %v2571
      %v8941 = vunpack.c.l.b16 %v2572
      %v8942 = vunpack.c.l.b16 %v2573
      %v8943 = vunpack.c.l.b16 %v2574
      %v8944 = vunpack.c.l.b16 %v2575
      %v8945 = vunpack.c.l.b16 %v2576
      %v8946 = vunpack.c.l.b16 %v2577
      %v8947 = vunpack.c.l.b16 %v2578
      %v8948 = vunpack.c.l.b16 %v2579
      %v8949 = vunpack.c.l.b16 %v2580
      %v8950 = vunpack.c.l.b16 %v2581
      %v8951 = vunpack.c.l.b16 %v2582
      %v8952 = vunpack.c.l.b16 %v2583
      %v8953 = vunpack.c.l.b16 %v2584
      %v8954 = vunpack.c.l.b16 %v2585
      %v8955 = vunpack.c.l.b16 %v2586
      %v8956 = vunpack.c.l.b16 %v2587
      %v8957 = vunpack.c.l.b16 %v2588
      %v8958 = vunpack.c.l.b16 %v2589
      %v8959 = vunpack.c.l.b16 %v2590
      %v8960 = vunpack.c.l.b16 %v2591
      %v8961 = vunpack.c.l.b16 %v2592
      %v8962 = vunpack.c.l.b16 %v2593
      %v8963 = vunpack.c.l.b16 %v2594
      %v8964 = vunpack.c.l.b16 %v2595
      %v8965 = vunpack.c.l.b16 %v2596
      %v8966 = vunpack.c.l.b16 %v2597
      %v8967 = vunpack.c.l.b16 %v2598
      %v8968 = vunpack.c.l.b16 %v2599
      %v8969 = vunpack.c.l.b16 %v2600
      %v8970 = vunpack.c.l.b16 %v2601
      %v8971 = vunpack.c.l.b16 %v2602
      %v8972 = vunpack.c.l.b16 %v2603
      %v8973 = vunpack.c.l.b16 %v2604
      %v8974 = vunpack.c.l.b16 %v2605
      %v8975 = vunpack.c.l.b16 %v2606
      %v8976 = vunpack.c.l.b16 %v2607
      %v8977 = vunpack.c.l.b16 %v2608
      %v8978 = vunpack.c.l.b16 %v2609
      %v8979 = vunpack.c.l.b16 %v2610
      %v8980 = vunpack.c.l.b16 %v2611
      %v8981 = vunpack.c.l.b16 %v2612
      %v8982 = vunpack.c.l.b16 %v2613
      %v8983 = vunpack.c.l.b16 %v2614
      %v8984 = vunpack.c.l.b16 %v2615
      %v8985 = vunpack.c.l.b16 %v2616
      %v8986 = vunpack.c.l.b16 %v2617
      %v8987 = vunpack.c.l.b16 %v2618
      %v8988 = vunpack.c.l.b16 %v2619
      %v8989 = vunpack.c.l.b16 %v2620
      %v8990 = vunpack.c.l.b16 %v2621
      %v8991 = vunpack.c.l.b16 %v2622
      %v8992 = vunpack.c.l.b16 %v2623
      %v8993 = vunpack.c.l.b16 %v2624
      %v8994 = vunpack.c.l.b16 %v2625
      %v8995 = vunpack.c.l.b16 %v2626
      %v8996 = vunpack.c.l.b16 %v2627
      %v8997 = vunpack.c.l.b16 %v2628
      %v8998 = vunpack.c.l.b16 %v2629
      %v8999 = vunpack.c.l.b16 %v2630
      %v9000 = vunpack.c.l.b16 %v2631
      %v9001 = vunpack.c.l.b16 %v2632
      %v9002 = vunpack.c.l.b16 %v2633
      %v9003 = vunpack.c.l.b16 %v2634
      %v9004 = vunpack.c.l.b16 %v2635
      %v9005 = vunpack.c.l.b16 %v2636
      %v9006 = vunpack.c.l.b16 %v2637
      %v9007 = vunpack.c.l.b16 %v2638
      %v9008 = vunpack.c.l.b16 %v2639
      %v9009 = vunpack.c.l.b16 %v2640
      %v9010 = vunpack.c.l.b16 %v2641
      %v9011 = vunpack.c.l.b16 %v2642
      %v9012 = vunpack.c.l.b16 %v2643
      %v9013 = vunpack.c.l.b16 %v2644
      %v9014 = vunpack.c.l.b16 %v2645
      %v9015 = vunpack.c.l.b16 %v2646
      %v9016 = vunpack.c.l.b16 %v2647
      %v9017 = vunpack.c.l.b16 %v2648
      %v9018 = vunpack.c.l.b16 %v2649
      %v9019 = vunpack.c.l.b16 %v2650
      %v9020 = vunpack.c.l.b16 %v2651
      %v9021 = vunpack.c.l.b16 %v2652
      %v9022 = vunpack.c.l.b16 %v2653
      %v9023 = vunpack.c.l.b16 %v2654
      %v9024 = vunpack.c.l.b16 %v2655
      %v9025 = vunpack.c.l.b16 %v2656
      %v9026 = vunpack.c.l.b16 %v2657
      %v9027 = vunpack.c.l.b16 %v2658
      %v9028 = vunpack.c.l.b16 %v2659
      %v9029 = vunpack.c.l.b16 %v2660
      %v9030 = vunpack.c.l.b16 %v2661
      %v9031 = vunpack.c.l.b16 %v2662
      %v9032 = vunpack.c.l.b16 %v2663
      %v9033 = vunpack.c.l.b16 %v2664
      %v9034 = vunpack.c.l.b16 %v2665
      %v9035 = vunpack.c.l.b16 %v2666
      %v9036 = vunpack.c.l.b16 %v2667
      %v9037 = vunpack.c.l.b16 %v2668
      %v9038 = vunpack.c.l.b16 %v2669
      %v9039 = vunpack.c.l.b16 %v2670
      %v9040 = vunpack.c.l.b16 %v2671
      %v9041 = vunpack.c.l.b16 %v2672
      %v9042 = vunpack.c.l.b16 %v2673
      %v9043 = vunpack.c.l.b16 %v2674
      %v9044 = vunpack.c.l.b16 %v2675
      %v9045 = vunpack.c.l.b16 %v2676
      %v9046 = vunpack.c.l.b16 %v2677
      %v9047 = vunpack.c.l.b16 %v2678
      %v9048 = vunpack.c.l.b16 %v2679
      %v9049 = vunpack.c.l.b16 %v2680
      %v9050 = vunpack.c.l.b16 %v2681
      %v9051 = vunpack.c.l.b16 %v2682
      %v9052 = vunpack.c.l.b16 %v2683
      %v9053 = vunpack.c.l.b16 %v2684
      %v9054 = vunpack.c.l.b16 %v2685
      %v9055 = vunpack.c.l.b16 %v2686
      %v9056 = vunpack.c.l.b16 %v2687
      %v9057 = vunpack.c.l.b16 %v2688
      %v9058 = vunpack.c.l.b16 %v2689
      %v9059 = vunpack.c.l.b16 %v2690
      %v9060 = vunpack.c.l.b16 %v2691
      %v9061 = vunpack.c.l.b16 %v2692
      %v9062 = vunpack.c.l.b16 %v2693
      %v9063 = vunpack.c.l.b16 %v2694
      %v9064 = vunpack.c.l.b16 %v2695
      %v9065 = vunpack.c.l.b16 %v2696
      %v9066 = vunpack.c.l.b16 %v2697
      %v9067 = vunpack.c.l.b16 %v2698
      %v9068 = vunpack.c.l.b16 %v2699
      %v9069 = vunpack.c.l.b16 %v2700
      %v9070 = vunpack.c.l.b16 %v2701
      %v9071 = vunpack.c.l.b16 %v2702
      %v9072 = vunpack.c.l.b16 %v2703
      %v9073 = vunpack.c.l.b16 %v2704
      %v9074 = vunpack.c.l.b16 %v2705
      %v9075 = vunpack.c.l.b16 %v2706
      %v9076 = vunpack.c.l.b16 %v2707
      %v9077 = vunpack.c.l.b16 %v2708
      %v9078 = vunpack.c.l.b16 %v2709
      %v9079 = vunpack.c.l.b16 %v2710
      %v9080 = vunpack.c.l.b16 %v2711
      %v9081 = vunpack.c.l.b16 %v2712
      %v9082 = vunpack.c.l.b16 %v2713
      %v9083 = vunpack.c.l.b16 %v2714
      %v9084 = vunpack.c.l.b16 %v2715
      %v9085 = vunpack.c.l.b16 %v2716
      %v9086 = vunpack.c.l.b16 %v2717
      %v9087 = vunpack.c.l.b16 %v2718
      %v9088 = vunpack.c.l.b16 %v2719
      %v9089 = vunpack.c.l.b16 %v2720
      %v9090 = vunpack.c.l.b16 %v2721
      %v9091 = vunpack.c.l.b16 %v2722
      %v9092 = vunpack.c.l.b16 %v2723
      %v9093 = vunpack.c.l.b16 %v2724
      %v9094 = vunpack.c.l.b16 %v2725
      %v9095 = vunpack.c.l.b16 %v2726
      %v9096 = vunpack.c.l.b16 %v2727
      %v9097 = vunpack.c.l.b16 %v2728
      %v9098 = vunpack.c.l.b16 %v2729
      %v9099 = vunpack.c.l.b16 %v2730
      %v9100 = vunpack.c.l.b16 %v2731
      %v9101 = vunpack.c.l.b16 %v2732
      %v9102 = vunpack.c.l.b16 %v2733
      %v9103 = vunpack.c.l.b16 %v2734
      %v9104 = vunpack.c.l.b16 %v2735
      %v9105 = vunpack.c.l.b16 %v2736
      %v9106 = vunpack.c.l.b16 %v2737
      %v9107 = vunpack.c.l.b16 %v2738
      %v9108 = vunpack.c.l.b16 %v2739
      %v9109 = vunpack.c.l.b16 %v2740
      %v9110 = vunpack.c.l.b16 %v2741
      %v9111 = vunpack.c.l.b16 %v2742
      %v9112 = vunpack.c.l.b16 %v2743
      %v9113 = vunpack.c.l.b16 %v2744
      %v9114 = vunpack.c.l.b16 %v2745
      %v9115 = vunpack.c.l.b16 %v2746
      %v9116 = vunpack.c.l.b16 %v2747
      %v9117 = vunpack.c.l.b16 %v2748
      %v9118 = vunpack.c.l.b16 %v2749
      %v9119 = vunpack.c.l.b16 %v2750
      %v9120 = vunpack.c.l.b16 %v2751
      %v9121 = vunpack.c.l.b16 %v2752
      %v9122 = vunpack.c.l.b16 %v2753
      %v9123 = vunpack.c.l.b16 %v2754
      %v9124 = vunpack.c.l.b16 %v2755
      %v9125 = vunpack.c.l.b16 %v2756
      %v9126 = vunpack.c.l.b16 %v2757
      %v9127 = vunpack.c.l.b16 %v2758
      %v9128 = vunpack.c.l.b16 %v2759
      %v9129 = vunpack.c.l.b16 %v2760
      %v9130 = vunpack.c.l.b16 %v2761
      %v9131 = vunpack.c.l.b16 %v2762
      %v9132 = vunpack.c.l.b16 %v2763
      %v9133 = vunpack.c.l.b16 %v2764
      %v9134 = vunpack.c.l.b16 %v2765
      %v9135 = vunpack.c.l.b16 %v2766
      %v9136 = vunpack.c.l.b16 %v2767
      %v9137 = vunpack.c.l.b16 %v2768
      %v9138 = vunpack.c.l.b16 %v2769
      %v9139 = vunpack.c.l.b16 %v2770
      %v9140 = vunpack.c.l.b16 %v2771
      %v9141 = vunpack.c.l.b16 %v2772
      %v9142 = vunpack.c.l.b16 %v2773
      %v9143 = vunpack.c.l.b16 %v2774
      %v9144 = vunpack.c.l.b16 %v2775
      %v9145 = vunpack.c.l.b16 %v2776
      %v9146 = vunpack.c.l.b16 %v2777
      %v9147 = vunpack.c.l.b16 %v2778
      %v9148 = vunpack.c.l.b16 %v2779
      %v9149 = vunpack.c.l.b16 %v2780
      %v9150 = vunpack.c.l.b16 %v2781
      %v9151 = vunpack.c.l.b16 %v2782
      %v9152 = vunpack.c.l.b16 %v2783
      %v9153 = vunpack.c.l.b16 %v2784
      %v9154 = vunpack.c.l.b16 %v2785
      %v9155 = vunpack.c.l.b16 %v2786
      %v9156 = vunpack.c.l.b16 %v2787
      %v9157 = vunpack.c.l.b16 %v2788
      %v9158 = vunpack.c.l.b16 %v2789
      %v9159 = vunpack.c.l.b16 %v2790
      %v9160 = vunpack.c.l.b16 %v2791
      %v9161 = vunpack.c.l.b16 %v2792
      %v9162 = vunpack.c.l.b16 %v2793
      %v9163 = vunpack.c.l.b16 %v2794
      %v9164 = vunpack.c.l.b16 %v2795
      %v9165 = vunpack.c.l.b16 %v2796
      %v9166 = vunpack.c.l.b16 %v2797
      %v9167 = vunpack.c.l.b16 %v2798
      %v9168 = vunpack.c.l.b16 %v2799
      %v9169 = vunpack.c.l.b16 %v2800
      %v9170 = vunpack.c.l.b16 %v2801
      %v9171 = vunpack.c.l.b16 %v2802
      %v9172 = vunpack.c.l.b16 %v2803
      %v9173 = vunpack.c.l.b16 %v2804
      %v9174 = vunpack.c.l.b16 %v2805
      %v9175 = vunpack.c.l.b16 %v2806
      %v9176 = vunpack.c.l.b16 %v2807
      %v9177 = vunpack.c.l.b16 %v2808
      %v9178 = vunpack.c.l.b16 %v2809
      %v9179 = vunpack.c.l.b16 %v2810
      %v9180 = vunpack.c.l.b16 %v2811
      %v9181 = vunpack.c.l.b16 %v2812
      %v9182 = vunpack.c.l.b16 %v2813
      %v9183 = vunpack.c.l.b16 %v2814
      %v9184 = vunpack.c.l.b16 %v2815
      %v9185 = vunpack.c.l.b16 %v2816
      %v9186 = vunpack.c.l.b16 %v2817
      %v9187 = vunpack.c.l.b16 %v2818
      %v9188 = vunpack.c.l.b16 %v2819
      %v9189 = vunpack.c.l.b16 %v2820
      %v9190 = vunpack.c.l.b16 %v2821
      %v9191 = vunpack.c.l.b16 %v2822
      %v9192 = vunpack.c.l.b16 %v2823
      %v9193 = vunpack.c.l.b16 %v2824
      %v9194 = vunpack.c.l.b16 %v2825
      %v9195 = vunpack.c.l.b16 %v2826
      %v9196 = vunpack.c.l.b16 %v2827
      %v9197 = vunpack.c.l.b16 %v2828
      %v9198 = vunpack.c.l.b16 %v2829
      %v9199 = vunpack.c.l.b16 %v2830
      %v9200 = vunpack.c.l.b16 %v2831
      %v9201 = vunpack.c.l.b16 %v2832
      %v9202 = vunpack.c.l.b16 %v2833
      %v9203 = vunpack.c.l.b16 %v2834
      %v9204 = vunpack.c.l.b16 %v2835
      %v9205 = vunpack.c.l.b16 %v2836
      %v9206 = vunpack.c.l.b16 %v2837
      %v9207 = vunpack.c.l.b16 %v2838
      %v9208 = vunpack.c.l.b16 %v2839
      %v9209 = vunpack.c.l.b16 %v2840
      %v9210 = vunpack.c.l.b16 %v2841
      %v9211 = vunpack.c.l.b16 %v2842
      %v9212 = vunpack.c.l.b16 %v2843
      %v9213 = vunpack.c.l.b16 %v2844
      %v9214 = vunpack.c.l.b16 %v2845
      %v9215 = vunpack.c.l.b16 %v2846
      %v9216 = vunpack.c.l.b16 %v2847
      %v9217 = vunpack.c.l.b16 %v2848
      %v9218 = vunpack.c.l.b16 %v2849
      %v9219 = vunpack.c.l.b16 %v2850
      %v9220 = vunpack.c.l.b16 %v2851
      %v9221 = vunpack.c.l.b16 %v2852
      %v9222 = vunpack.c.l.b16 %v2853
      %v9223 = vunpack.c.l.b16 %v2854
      %v9224 = vunpack.c.l.b16 %v2855
      %v9225 = vunpack.c.l.b16 %v2856
      %v9226 = vunpack.c.l.b16 %v2857
      %v9227 = vunpack.c.l.b16 %v2858
      %v9228 = vunpack.c.l.b16 %v2859
      %v9229 = vunpack.c.l.b16 %v2860
      %v9230 = vunpack.c.l.b16 %v2861
      %v9231 = vunpack.c.l.b16 %v2862
      %v9232 = vunpack.c.l.b16 %v2863
      %v9233 = vunpack.c.l.b16 %v2864
      %v9234 = vunpack.c.l.b16 %v2865
      %v9235 = vunpack.c.l.b16 %v2866
      %v9236 = vunpack.c.l.b16 %v2867
      %v9237 = vunpack.c.l.b16 %v2868
      %v9238 = vunpack.c.l.b16 %v2869
      %v9239 = vunpack.c.l.b16 %v2870
      %v9240 = vunpack.c.l.b16 %v2871
      %v9241 = vunpack.c.l.b16 %v2872
      %v9242 = vunpack.c.l.b16 %v2873
      %v9243 = vunpack.c.l.b16 %v2874
      %v9244 = vunpack.c.l.b16 %v2875
      %v9245 = vunpack.c.l.b16 %v2876
      %v9246 = vunpack.c.l.b16 %v2877
      %v9247 = vunpack.c.l.b16 %v2878
      %v9248 = vunpack.c.l.b16 %v2879
      %v9249 = vunpack.c.l.b16 %v2880
      %v9250 = vunpack.c.l.b16 %v2881
      %v9251 = vunpack.c.l.b16 %v2882
      %v9252 = vunpack.c.l.b16 %v2883
      %v9253 = vunpack.c.l.b16 %v2884
      %v9254 = vpack.c.b16 %v6663, %v6662
      %v9255 = vpack.c.b16 %v6665, %v6664
      %v9256 = vpack.c.b16 %v6667, %v6666
      %v9257 = vpack.c.b16 %v6669, %v6668
      %v9258 = vpack.c.b16 %v6671, %v6670
      %v9259 = vpack.c.b16 %v6673, %v6672
      %v9260 = vpack.c.b16 %v6675, %v6674
      %v9261 = vpack.c.b16 %v6677, %v6676
      %v9262 = vpack.c.b16 %v6679, %v6678
      %v9263 = vpack.c.b16 %v6681, %v6680
      %v9264 = vpack.c.b16 %v6683, %v6682
      %v9265 = vpack.c.b16 %v6685, %v6684
      %v9266 = vpack.c.b16 %v6687, %v6686
      %v9267 = vpack.c.b16 %v6689, %v6688
      %v9268 = vpack.c.b16 %v6691, %v6690
      %v9269 = vpack.c.b16 %v6693, %v6692
      %v9270 = vpack.c.b16 %v6695, %v6694
      %v9271 = vpack.c.b16 %v6697, %v6696
      %v9272 = vpack.c.b16 %v6699, %v6698
      %v9273 = vpack.c.b16 %v6701, %v6700
      %v9274 = vpack.c.b16 %v6703, %v6702
      %v9275 = vpack.c.b16 %v6705, %v6704
      %v9276 = vpack.c.b16 %v6707, %v6706
      %v9277 = vpack.c.b16 %v6709, %v6708
      %v9278 = vpack.c.b16 %v6711, %v6710
      %v9279 = vpack.c.b16 %v6713, %v6712
      %v9280 = vpack.c.b16 %v6715, %v6714
      %v9281 = vpack.c.b16 %v6717, %v6716
      %v9282 = vpack.c.b16 %v6719, %v6718
      %v9283 = vpack.c.b16 %v6721, %v6720
      %v9284 = vpack.c.b16 %v6723, %v6722
      %v9285 = vpack.c.b16 %v6725, %v6724
      %v9286 = vpack.c.b16 %v6727, %v6726
      %v9287 = vpack.c.b16 %v6729, %v6728
      %v9288 = vpack.c.b16 %v6731, %v6730
      %v9289 = vpack.c.b16 %v6733, %v6732
      %v9290 = vpack.c.b16 %v6735, %v6734
      %v9291 = vpack.c.b16 %v6737, %v6736
      %v9292 = vpack.c.b16 %v6739, %v6738
      %v9293 = vpack.c.b16 %v6741, %v6740
      %v9294 = vpack.c.b16 %v6743, %v6742
      %v9295 = vpack.c.b16 %v6745, %v6744
      %v9296 = vpack.c.b16 %v6747, %v6746
      %v9297 = vpack.c.b16 %v6749, %v6748
      %v9298 = vpack.c.b16 %v6751, %v6750
      %v9299 = vpack.c.b16 %v6753, %v6752
      %v9300 = vpack.c.b16 %v6755, %v6754
      %v9301 = vpack.c.b16 %v6757, %v6756
      %v9302 = vpack.c.b16 %v6759, %v6758
      %v9303 = vpack.c.b16 %v6761, %v6760
      %v9304 = vpack.c.b16 %v6763, %v6762
      %v9305 = vpack.c.b16 %v6765, %v6764
      %v9306 = vpack.c.b16 %v6767, %v6766
      %v9307 = vpack.c.b16 %v6769, %v6768
      %v9308 = vpack.c.b16 %v6771, %v6770
      %v9309 = vpack.c.b16 %v6773, %v6772
      %v9310 = vpack.c.b16 %v6775, %v6774
      %v9311 = vpack.c.b16 %v6777, %v6776
      %v9312 = vpack.c.b16 %v6779, %v6778
      %v9313 = vpack.c.b16 %v6781, %v6780
      %v9314 = vpack.c.b16 %v6783, %v6782
      %v9315 = vpack.c.b16 %v6785, %v6784
      %v9316 = vpack.c.b16 %v6787, %v6786
      %v9317 = vpack.c.b16 %v6789, %v6788
      %v9318 = vpack.c.b16 %v6791, %v6790
      %v9319 = vpack.c.b16 %v6793, %v6792
      %v9320 = vpack.c.b16 %v6795, %v6794
      %v9321 = vpack.c.b16 %v6797, %v6796
      %v9322 = vpack.c.b16 %v6799, %v6798
      %v9323 = vpack.c.b16 %v6801, %v6800
      %v9324 = vpack.c.b16 %v6803, %v6802
      %v9325 = vpack.c.b16 %v6805, %v6804
      %v9326 = vpack.c.b16 %v6807, %v6806
      %v9327 = vpack.c.b16 %v6809, %v6808
      %v9328 = vpack.c.b16 %v6811, %v6810
      %v9329 = vpack.c.b16 %v6813, %v6812
      %v9330 = vpack.c.b16 %v6815, %v6814
      %v9331 = vpack.c.b16 %v6817, %v6816
      %v9332 = vpack.c.b16 %v6819, %v6818
      %v9333 = vpack.c.b16 %v6821, %v6820
      %v9334 = vpack.c.b16 %v6823, %v6822
      %v9335 = vpack.c.b16 %v6825, %v6824
      %v9336 = vpack.c.b16 %v6827, %v6826
      %v9337 = vpack.c.b16 %v6829, %v6828
      %v9338 = vpack.c.b16 %v6831, %v6830
      %v9339 = vpack.c.b16 %v6833, %v6832
      %v9340 = vpack.c.b16 %v6835, %v6834
      %v9341 = vpack.c.b16 %v6837, %v6836
      %v9342 = vpack.c.b16 %v6839, %v6838
      %v9343 = vpack.c.b16 %v6841, %v6840
      %v9344 = vpack.c.b16 %v6843, %v6842
      %v9345 = vpack.c.b16 %v6845, %v6844
      %v9346 = vpack.c.b16 %v6847, %v6846
      %v9347 = vpack.c.b16 %v6849, %v6848
      %v9348 = vpack.c.b16 %v6851, %v6850
      %v9349 = vpack.c.b16 %v6853, %v6852
      %v9350 = vpack.c.b16 %v6855, %v6854
      %v9351 = vpack.c.b16 %v6857, %v6856
      %v9352 = vpack.c.b16 %v6859, %v6858
      %v9353 = vpack.c.b16 %v6861, %v6860
      %v9354 = vpack.c.b16 %v6863, %v6862
      %v9355 = vpack.c.b16 %v6865, %v6864
      %v9356 = vpack.c.b16 %v6867, %v6866
      %v9357 = vpack.c.b16 %v6869, %v6868
      %v9358 = vpack.c.b16 %v6871, %v6870
      %v9359 = vpack.c.b16 %v6873, %v6872
      %v9360 = vpack.c.b16 %v6875, %v6874
      %v9361 = vpack.c.b16 %v6877, %v6876
      %v9362 = vpack.c.b16 %v6879, %v6878
      %v9363 = vpack.c.b16 %v6881, %v6880
      %v9364 = vpack.c.b16 %v6883, %v6882
      %v9365 = vpack.c.b16 %v6885, %v6884
      %v9366 = vpack.c.b16 %v6887, %v6886
      %v9367 = vpack.c.b16 %v6889, %v6888
      %v9368 = vpack.c.b16 %v6891, %v6890
      %v9369 = vpack.c.b16 %v6893, %v6892
      %v9370 = vpack.c.b16 %v6895, %v6894
      %v9371 = vpack.c.b16 %v6897, %v6896
      %v9372 = vpack.c.b16 %v6899, %v6898
      %v9373 = vpack.c.b16 %v6901, %v6900
      %v9374 = vpack.c.b16 %v6903, %v6902
      %v9375 = vpack.c.b16 %v6905, %v6904
      %v9376 = vpack.c.b16 %v6907, %v6906
      %v9377 = vpack.c.b16 %v6909, %v6908
      %v9378 = vpack.c.b16 %v6911, %v6910
      %v9379 = vpack.c.b16 %v6913, %v6912
      %v9380 = vpack.c.b16 %v6915, %v6914
      %v9381 = vpack.c.b16 %v6917, %v6916
      %v9382 = vpack.c.b16 %v6919, %v6918
      %v9383 = vpack.c.b16 %v6921, %v6920
      %v9384 = vpack.c.b16 %v6923, %v6922
      %v9385 = vpack.c.b16 %v6925, %v6924
      %v9386 = vpack.c.b16 %v6927, %v6926
      %v9387 = vpack.c.b16 %v6929, %v6928
      %v9388 = vpack.c.b16 %v6931, %v6930
      %v9389 = vpack.c.b16 %v6933, %v6932
      %v9390 = vpack.c.b16 %v6935, %v6934
      %v9391 = vpack.c.b16 %v6937, %v6936
      %v9392 = vpack.c.b16 %v6939, %v6938
      %v9393 = vpack.c.b16 %v6941, %v6940
      %v9394 = vpack.c.b16 %v6943, %v6942
      %v9395 = vpack.c.b16 %v6945, %v6944
      %v9396 = vpack.c.b16 %v6947, %v6946
      %v9397 = vpack.c.b16 %v6949, %v6948
      %v9398 = vpack.c.b16 %v6951, %v6950
      %v9399 = vpack.c.b16 %v6953, %v6952
      %v9400 = vpack.c.b16 %v6955, %v6954
      %v9401 = vpack.c.b16 %v6957, %v6956
      %v9402 = vpack.c.b16 %v6959, %v6958
      %v9403 = vpack.c.b16 %v6961, %v6960
      %v9404 = vpack.c.b16 %v6963, %v6962
      %v9405 = vpack.c.b16 %v6965, %v6964
      %v9406 = vpack.c.b16 %v6967, %v6966
      %v9407 = vpack.c.b16 %v6969, %v6968
      %v9408 = vpack.c.b16 %v6971, %v6970
      %v9409 = vpack.c.b16 %v6973, %v6972
      %v9410 = vpack.c.b16 %v6975, %v6974
      %v9411 = vpack.c.b16 %v6977, %v6976
      %v9412 = vpack.c.b16 %v6979, %v6978
      %v9413 = vpack.c.b16 %v6981, %v6980
      %v9414 = vpack.c.b16 %v6983, %v6982
      %v9415 = vpack.c.b16 %v6985, %v6984
      %v9416 = vpack.c.b16 %v6987, %v6986
      %v9417 = vpack.c.b16 %v6989, %v6988
      %v9418 = vpack.c.b16 %v6991, %v6990
      %v9419 = vpack.c.b16 %v6993, %v6992
      %v9420 = vpack.c.b16 %v6995, %v6994
      %v9421 = vpack.c.b16 %v6997, %v6996
      %v9422 = vpack.c.b16 %v6999, %v6998
      %v9423 = vpack.c.b16 %v7001, %v7000
      %v9424 = vpack.c.b16 %v7003, %v7002
      %v9425 = vpack.c.b16 %v7005, %v7004
      %v9426 = vpack.c.b16 %v7007, %v7006
      %v9427 = vpack.c.b16 %v7009, %v7008
      %v9428 = vpack.c.b16 %v7011, %v7010
      %v9429 = vpack.c.b16 %v7013, %v7012
      %v9430 = vpack.c.b16 %v7015, %v7014
      %v9431 = vpack.c.b16 %v7017, %v7016
      %v9432 = vpack.c.b16 %v7019, %v7018
      %v9433 = vpack.c.b16 %v7021, %v7020
      %v9434 = vpack.c.b16 %v7023, %v7022
      %v9435 = vpack.c.b16 %v7025, %v7024
      %v9436 = vpack.c.b16 %v7027, %v7026
      %v9437 = vpack.c.b16 %v7029, %v7028
      %v9438 = vpack.c.b16 %v7031, %v7030
      %v9439 = vpack.c.b16 %v7033, %v7032
      %v9440 = vpack.c.b16 %v7035, %v7034
      %v9441 = vpack.c.b16 %v7037, %v7036
      %v9442 = vpack.c.b16 %v7039, %v7038
      %v9443 = vpack.c.b16 %v7041, %v7040
      %v9444 = vpack.c.b16 %v7043, %v7042
      %v9445 = vpack.c.b16 %v7045, %v7044
      %v9446 = vpack.c.b16 %v7047, %v7046
      %v9447 = vpack.c.b16 %v7049, %v7048
      %v9448 = vpack.c.b16 %v7051, %v7050
      %v9449 = vpack.c.b16 %v7053, %v7052
      %v9450 = vpack.c.b16 %v7055, %v7054
      %v9451 = vpack.c.b16 %v7057, %v7056
      %v9452 = vpack.c.b16 %v7059, %v7058
      %v9453 = vpack.c.b16 %v7061, %v7060
      %v9454 = vpack.c.b16 %v7063, %v7062
      %v9455 = vpack.c.b16 %v7065, %v7064
      %v9456 = vpack.c.b16 %v7067, %v7066
      %v9457 = vpack.c.b16 %v7069, %v7068
      %v9458 = vpack.c.b16 %v7071, %v7070
      %v9459 = vpack.c.b16 %v7073, %v7072
      %v9460 = vpack.c.b16 %v7075, %v7074
      %v9461 = vpack.c.b16 %v7077, %v7076
      %v9462 = vpack.c.b16 %v7079, %v7078
      %v9463 = vpack.c.b16 %v7081, %v7080
      %v9464 = vpack.c.b16 %v7083, %v7082
      %v9465 = vpack.c.b16 %v7085, %v7084
      %v9466 = vpack.c.b16 %v7087, %v7086
      %v9467 = vpack.c.b16 %v7089, %v7088
      %v9468 = vpack.c.b16 %v7091, %v7090
      %v9469 = vpack.c.b16 %v7093, %v7092
      %v9470 = vpack.c.b16 %v7095, %v7094
      %v9471 = vpack.c.b16 %v7097, %v7096
      %v9472 = vpack.c.b16 %v7099, %v7098
      %v9473 = vpack.c.b16 %v7101, %v7100
      %v9474 = vpack.c.b16 %v7103, %v7102
      %v9475 = vpack.c.b16 %v7105, %v7104
      %v9476 = vpack.c.b16 %v7107, %v7106
      %v9477 = vpack.c.b16 %v7109, %v7108
      %v9478 = vpack.c.b16 %v7111, %v7110
      %v9479 = vpack.c.b16 %v7113, %v7112
      %v9480 = vpack.c.b16 %v7115, %v7114
      %v9481 = vpack.c.b16 %v7117, %v7116
      %v9482 = vpack.c.b16 %v7119, %v7118
      %v9483 = vpack.c.b16 %v7121, %v7120
      %v9484 = vpack.c.b16 %v7123, %v7122
      %v9485 = vpack.c.b16 %v7125, %v7124
      %v9486 = vpack.c.b16 %v7127, %v7126
      %v9487 = vpack.c.b16 %v7129, %v7128
      %v9488 = vpack.c.b16 %v7131, %v7130
      %v9489 = vpack.c.b16 %v7133, %v7132
      %v9490 = vpack.c.b16 %v7135, %v7134
      %v9491 = vpack.c.b16 %v7137, %v7136
      %v9492 = vpack.c.b16 %v7139, %v7138
      %v9493 = vpack.c.b16 %v7141, %v7140
      %v9494 = vpack.c.b16 %v7143, %v7142
      %v9495 = vpack.c.b16 %v7145, %v7144
      %v9496 = vpack.c.b16 %v7147, %v7146
      %v9497 = vpack.c.b16 %v7149, %v7148
      %v9498 = vpack.c.b16 %v7151, %v7150
      %v9499 = vpack.c.b16 %v7153, %v7152
      %v9500 = vpack.c.b16 %v7155, %v7154
      %v9501 = vpack.c.b16 %v7157, %v7156
      %v9502 = vpack.c.b16 %v7159, %v7158
      %v9503 = vpack.c.b16 %v7161, %v7160
      %v9504 = vpack.c.b16 %v7163, %v7162
      %v9505 = vpack.c.b16 %v7165, %v7164
      %v9506 = vpack.c.b16 %v7167, %v7166
      %v9507 = vpack.c.b16 %v7169, %v7168
      %v9508 = vpack.c.b16 %v7171, %v7170
      %v9509 = vpack.c.b16 %v7173, %v7172
      %v9510 = vpack.c.b16 %v7175, %v7174
      %v9511 = vpack.c.b16 %v7177, %v7176
      %v9512 = vpack.c.b16 %v7179, %v7178
      %v9513 = vpack.c.b16 %v7181, %v7180
      %v9514 = vpack.c.b16 %v7183, %v7182
      %v9515 = vpack.c.b16 %v7185, %v7184
      %v9516 = vpack.c.b16 %v7187, %v7186
      %v9517 = vpack.c.b16 %v7189, %v7188
      %v9518 = vpack.c.b16 %v7191, %v7190
      %v9519 = vpack.c.b16 %v7193, %v7192
      %v9520 = vpack.c.b16 %v7195, %v7194
      %v9521 = vpack.c.b16 %v7197, %v7196
      %v9522 = vpack.c.b16 %v7199, %v7198
      %v9523 = vpack.c.b16 %v7201, %v7200
      %v9524 = vpack.c.b16 %v7203, %v7202
      %v9525 = vpack.c.b16 %v7205, %v7204
      %v9526 = vpack.c.b16 %v7207, %v7206
      %v9527 = vpack.c.b16 %v7209, %v7208
      %v9528 = vpack.c.b16 %v7211, %v7210
      %v9529 = vpack.c.b16 %v7213, %v7212
      %v9530 = vpack.c.b16 %v7215, %v7214
      %v9531 = vpack.c.b16 %v7217, %v7216
      %v9532 = vpack.c.b16 %v7219, %v7218
      %v9533 = vpack.c.b16 %v7221, %v7220
      %v9534 = vpack.c.b16 %v7223, %v7222
      %v9535 = vpack.c.b16 %v7225, %v7224
      %v9536 = vpack.c.b16 %v7227, %v7226
      %v9537 = vpack.c.b16 %v7229, %v7228
      %v9538 = vpack.c.b16 %v7231, %v7230
      %v9539 = vpack.c.b16 %v7233, %v7232
      %v9540 = vpack.c.b16 %v7235, %v7234
      %v9541 = vpack.c.b16 %v7237, %v7236
      %v9542 = vpack.c.b16 %v7239, %v7238
      %v9543 = vpack.c.b16 %v7241, %v7240
      %v9544 = vpack.c.b16 %v7243, %v7242
      %v9545 = vpack.c.b16 %v7245, %v7244
      %v9546 = vpack.c.b16 %v7247, %v7246
      %v9547 = vpack.c.b16 %v7249, %v7248
      %v9548 = vpack.c.b16 %v7251, %v7250
      %v9549 = vpack.c.b16 %v7253, %v7252
      %v9550 = vpack.c.b16 %v7255, %v7254
      %v9551 = vpack.c.b16 %v7257, %v7256
      %v9552 = vpack.c.b16 %v7259, %v7258
      %v9553 = vpack.c.b16 %v7261, %v7260
      %v9554 = vpack.c.b16 %v7263, %v7262
      %v9555 = vpack.c.b16 %v7265, %v7264
      %v9556 = vpack.c.b16 %v7267, %v7266
      %v9557 = vpack.c.b16 %v7269, %v7268
      %v9558 = vpack.c.b16 %v7271, %v7270
      %v9559 = vpack.c.b16 %v7273, %v7272
      %v9560 = vpack.c.b16 %v7275, %v7274
      %v9561 = vpack.c.b16 %v7277, %v7276
      %v9562 = vpack.c.b16 %v7279, %v7278
      %v9563 = vpack.c.b16 %v7281, %v7280
      %v9564 = vpack.c.b16 %v7283, %v7282
      %v9565 = vpack.c.b16 %v7285, %v7284
      %v9566 = vpack.c.b16 %v7287, %v7286
      %v9567 = vpack.c.b16 %v7289, %v7288
      %v9568 = vpack.c.b16 %v7291, %v7290
      %v9569 = vpack.c.b16 %v7293, %v7292
      %v9570 = vpack.c.b16 %v7295, %v7294
      %v9571 = vpack.c.b16 %v7297, %v7296
      %v9572 = vpack.c.b16 %v7299, %v7298
      %v9573 = vpack.c.b16 %v7301, %v7300
      %v9574 = vpack.c.b16 %v7303, %v7302
      %v9575 = vpack.c.b16 %v7305, %v7304
      %v9576 = vpack.c.b16 %v7307, %v7306
      %v9577 = vpack.c.b16 %v7309, %v7308
      %v9578 = vpack.c.b16 %v7311, %v7310
      %v9579 = vpack.c.b16 %v7313, %v7312
      %v9580 = vpack.c.b16 %v7315, %v7314
      %v9581 = vpack.c.b16 %v7317, %v7316
      %v9582 = vpack.c.b16 %v7319, %v7318
      %v9583 = vpack.c.b16 %v7321, %v7320
      %v9584 = vpack.c.b16 %v7323, %v7322
      %v9585 = vpack.c.b16 %v7325, %v7324
      %v9586 = vpack.c.b16 %v7327, %v7326
      %v9587 = vpack.c.b16 %v7329, %v7328
      %v9588 = vpack.c.b16 %v7331, %v7330
      %v9589 = vpack.c.b16 %v7333, %v7332
      %v9590 = vpack.c.b16 %v7335, %v7334
      %v9591 = vpack.c.b16 %v7337, %v7336
      %v9592 = vpack.c.b16 %v7339, %v7338
      %v9593 = vpack.c.b16 %v7341, %v7340
      %v9594 = vpack.c.b16 %v7343, %v7342
      %v9595 = vpack.c.b16 %v7345, %v7344
      %v9596 = vpack.c.b16 %v7347, %v7346
      %v9597 = vpack.c.b16 %v7349, %v7348
      %v9598 = vpack.c.b16 %v7351, %v7350
      %v9599 = vpack.c.b16 %v7353, %v7352
      %v9600 = vpack.c.b16 %v7355, %v7354
      %v9601 = vpack.c.b16 %v7357, %v7356
      %v9602 = vpack.c.b16 %v7359, %v7358
      %v9603 = vpack.c.b16 %v7361, %v7360
      %v9604 = vpack.c.b16 %v7363, %v7362
      %v9605 = vpack.c.b16 %v7365, %v7364
      %v9606 = vpack.c.b16 %v7367, %v7366
      %v9607 = vpack.c.b16 %v7369, %v7368
      %v9608 = vpack.c.b16 %v7371, %v7370
      %v9609 = vpack.c.b16 %v7373, %v7372
      %v9610 = vpack.c.b16 %v7375, %v7374
      %v9611 = vpack.c.b16 %v7377, %v7376
      %v9612 = vpack.c.b16 %v7379, %v7378
      %v9613 = vpack.c.b16 %v7381, %v7380
      %v9614 = vpack.c.b16 %v7383, %v7382
      %v9615 = vpack.c.b16 %v7385, %v7384
      %v9616 = vpack.c.b16 %v7387, %v7386
      %v9617 = vpack.c.b16 %v7389, %v7388
      %v9618 = vpack.c.b16 %v7391, %v7390
      %v9619 = vpack.c.b16 %v7393, %v7392
      %v9620 = vpack.c.b16 %v7395, %v7394
      %v9621 = vpack.c.b16 %v7397, %v7396
      %v9622 = vpack.c.b16 %v7399, %v7398
      %v9623 = vpack.c.b16 %v7401, %v7400
      %v9624 = vpack.c.b16 %v7403, %v7402
      %v9625 = vpack.c.b16 %v7405, %v7404
      %v9626 = vpack.c.b16 %v7407, %v7406
      %v9627 = vpack.c.b16 %v7409, %v7408
      %v9628 = vpack.c.b16 %v7411, %v7410
      %v9629 = vpack.c.b16 %v7413, %v7412
      %v9630 = vpack.c.b16 %v7415, %v7414
      %v9631 = vpack.c.b16 %v7417, %v7416
      %v9632 = vpack.c.b16 %v7419, %v7418
      %v9633 = vpack.c.b16 %v7421, %v7420
      %v9634 = vpack.c.b16 %v7423, %v7422
      %v9635 = vpack.c.b16 %v7425, %v7424
      %v9636 = vpack.c.b16 %v7427, %v7426
      %v9637 = vpack.c.b16 %v7429, %v7428
      %v9638 = vpack.c.b16 %v7431, %v7430
      %v9639 = vpack.c.b16 %v7433, %v7432
      %v9640 = vpack.c.b16 %v7435, %v7434
      %v9641 = vpack.c.b16 %v7437, %v7436
      %v9642 = vpack.c.b16 %v7439, %v7438
      %v9643 = vpack.c.b16 %v7441, %v7440
      %v9644 = vpack.c.b16 %v7443, %v7442
      %v9645 = vpack.c.b16 %v7445, %v7444
      %v9646 = vpack.c.b16 %v7447, %v7446
      %v9647 = vpack.c.b16 %v7449, %v7448
      %v9648 = vpack.c.b16 %v7451, %v7450
      %v9649 = vpack.c.b16 %v7453, %v7452
      %v9650 = vpack.c.b16 %v7455, %v7454
      %v9651 = vpack.c.b16 %v7457, %v7456
      %v9652 = vpack.c.b16 %v7459, %v7458
      %v9653 = vpack.c.b16 %v7461, %v7460
      %v9654 = vpack.c.b16 %v7463, %v7462
      %v9655 = vpack.c.b16 %v7465, %v7464
      %v9656 = vpack.c.b16 %v7467, %v7466
      %v9657 = vpack.c.b16 %v7469, %v7468
      %v9658 = vpack.c.b16 %v7471, %v7470
      %v9659 = vpack.c.b16 %v7473, %v7472
      %v9660 = vpack.c.b16 %v7475, %v7474
      %v9661 = vpack.c.b16 %v7477, %v7476
      %v9662 = vpack.c.b16 %v7479, %v7478
      %v9663 = vpack.c.b16 %v7481, %v7480
      %v9664 = vpack.c.b16 %v7483, %v7482
      %v9665 = vpack.c.b16 %v7485, %v7484
      %v9666 = vpack.c.b16 %v7487, %v7486
      %v9667 = vpack.c.b16 %v7489, %v7488
      %v9668 = vpack.c.b16 %v7491, %v7490
      %v9669 = vpack.c.b16 %v7493, %v7492
      %v9670 = vpack.c.b16 %v7495, %v7494
      %v9671 = vpack.c.b16 %v7497, %v7496
      %v9672 = vpack.c.b16 %v7499, %v7498
      %v9673 = vpack.c.b16 %v7501, %v7500
      %v9674 = vpack.c.b16 %v7503, %v7502
      %v9675 = vpack.c.b16 %v7505, %v7504
      %v9676 = vpack.c.b16 %v7507, %v7506
      %v9677 = vpack.c.b16 %v7509, %v7508
      %v9678 = vpack.c.b16 %v7511, %v7510
      %v9679 = vpack.c.b16 %v7513, %v7512
      %v9680 = vpack.c.b16 %v7515, %v7514
      %v9681 = vpack.c.b16 %v7517, %v7516
      %v9682 = vpack.c.b16 %v7519, %v7518
      %v9683 = vpack.c.b16 %v7521, %v7520
      %v9684 = vpack.c.b16 %v7523, %v7522
      %v9685 = vpack.c.b16 %v7525, %v7524
      %v9686 = vpack.c.b16 %v7527, %v7526
      %v9687 = vpack.c.b16 %v7529, %v7528
      %v9688 = vpack.c.b16 %v7531, %v7530
      %v9689 = vpack.c.b16 %v7533, %v7532
      %v9690 = vpack.c.b16 %v7535, %v7534
      %v9691 = vpack.c.b16 %v7537, %v7536
      %v9692 = vpack.c.b16 %v7539, %v7538
      %v9693 = vpack.c.b16 %v7541, %v7540
      %v9694 = vpack.c.b16 %v7543, %v7542
      %v9695 = vpack.c.b16 %v7545, %v7544
      %v9696 = vpack.c.b16 %v7547, %v7546
      %v9697 = vpack.c.b16 %v7549, %v7548
      %v9698 = vpack.c.b16 %v7551, %v7550
      %v9699 = vpack.c.b16 %v7553, %v7552
      %v9700 = vpack.c.b16 %v7555, %v7554
      %v9701 = vpack.c.b16 %v7557, %v7556
      %v9702 = vpack.c.b16 %v7559, %v7558
      %v9703 = vpack.c.b16 %v7561, %v7560
      %v9704 = vpack.c.b16 %v7563, %v7562
      %v9705 = vpack.c.b16 %v7565, %v7564
      %v9706 = vpack.c.b16 %v7567, %v7566
      %v9707 = vpack.c.b16 %v7569, %v7568
      %v9708 = vpack.c.b16 %v7571, %v7570
      %v9709 = vpack.c.b16 %v7573, %v7572
      %v9710 = vpack.c.b16 %v7575, %v7574
      %v9711 = vpack.c.b16 %v7577, %v7576
      %v9712 = vpack.c.b16 %v7579, %v7578
      %v9713 = vpack.c.b16 %v7581, %v7580
      %v9714 = vpack.c.b16 %v7583, %v7582
      %v9715 = vpack.c.b16 %v7585, %v7584
      %v9716 = vpack.c.b16 %v7587, %v7586
      %v9717 = vpack.c.b16 %v7589, %v7588
      %v9718 = vpack.c.b16 %v7591, %v7590
      %v9719 = vpack.c.b16 %v7593, %v7592
      %v9720 = vpack.c.b16 %v7595, %v7594
      %v9721 = vpack.c.b16 %v7597, %v7596
      %v9722 = vpack.c.b16 %v7599, %v7598
      %v9723 = vpack.c.b16 %v7601, %v7600
      %v9724 = vpack.c.b16 %v7603, %v7602
      %v9725 = vpack.c.b16 %v7605, %v7604
      %v9726 = vpack.c.b16 %v7607, %v7606
      %v9727 = vpack.c.b16 %v7609, %v7608
      %v9728 = vpack.c.b16 %v7611, %v7610
      %v9729 = vpack.c.b16 %v7613, %v7612
      %v9730 = vpack.c.b16 %v7615, %v7614
      %v9731 = vpack.c.b16 %v7617, %v7616
      %v9732 = vpack.c.b16 %v7619, %v7618
      %v9733 = vpack.c.b16 %v7621, %v7620
      %v9734 = vpack.c.b16 %v7623, %v7622
      %v9735 = vpack.c.b16 %v7625, %v7624
      %v9736 = vpack.c.b16 %v7627, %v7626
      %v9737 = vpack.c.b16 %v7629, %v7628
      %v9738 = vpack.c.b16 %v7631, %v7630
      %v9739 = vpack.c.b16 %v7633, %v7632
      %v9740 = vpack.c.b16 %v7635, %v7634
      %v9741 = vpack.c.b16 %v7637, %v7636
      %v9742 = vpack.c.b16 %v7639, %v7638
      %v9743 = vpack.c.b16 %v7641, %v7640
      %v9744 = vpack.c.b16 %v7643, %v7642
      %v9745 = vpack.c.b16 %v7645, %v7644
      %v9746 = vpack.c.b16 %v7647, %v7646
      %v9747 = vpack.c.b16 %v7649, %v7648
      %v9748 = vpack.c.b16 %v7651, %v7650
      %v9749 = vpack.c.b16 %v7653, %v7652
      %v9750 = vpack.c.b16 %v7655, %v7654
      %v9751 = vpack.c.b16 %v7657, %v7656
      %v9752 = vpack.c.b16 %v7659, %v7658
      %v9753 = vpack.c.b16 %v7661, %v7660
      %v9754 = vpack.c.b16 %v7663, %v7662
      %v9755 = vpack.c.b16 %v7665, %v7664
      %v9756 = vpack.c.b16 %v7667, %v7666
      %v9757 = vpack.c.b16 %v7669, %v7668
      %v9758 = vpack.c.b16 %v7671, %v7670
      %v9759 = vpack.c.b16 %v7673, %v7672
      %v9760 = vpack.c.b16 %v7675, %v7674
      %v9761 = vpack.c.b16 %v7677, %v7676
      %v9762 = vpack.c.b16 %v7679, %v7678
      %v9763 = vpack.c.b16 %v7681, %v7680
      %v9764 = vpack.c.b16 %v7683, %v7682
      %v9765 = vpack.c.b16 %v7685, %v7684
      %v9766 = vpack.c.b16 %v7687, %v7686
      %v9767 = vpack.c.b16 %v7689, %v7688
      %v9768 = vpack.c.b16 %v7691, %v7690
      %v9769 = vpack.c.b16 %v7693, %v7692
      %v9770 = vpack.c.b16 %v7695, %v7694
      %v9771 = vpack.c.b16 %v7697, %v7696
      %v9772 = vpack.c.b16 %v7699, %v7698
      %v9773 = vpack.c.b16 %v7701, %v7700
      %v9774 = vpack.c.b16 %v7703, %v7702
      %v9775 = vpack.c.b16 %v7705, %v7704
      %v9776 = vpack.c.b16 %v7707, %v7706
      %v9777 = vpack.c.b16 %v7709, %v7708
      %v9778 = vpack.c.b16 %v7711, %v7710
      %v9779 = vpack.c.b16 %v7713, %v7712
      %v9780 = vpack.c.b16 %v7715, %v7714
      %v9781 = vpack.c.b16 %v7717, %v7716
      %v9782 = vpack.c.b16 %v7719, %v7718
      %v9783 = vpack.c.b16 %v7721, %v7720
      %v9784 = vpack.c.b16 %v7723, %v7722
      %v9785 = vpack.c.b16 %v7725, %v7724
      %v9786 = vpack.c.b16 %v7727, %v7726
      %v9787 = vpack.c.b16 %v7729, %v7728
      %v9788 = vpack.c.b16 %v7731, %v7730
      %v9789 = vpack.c.b16 %v7733, %v7732
      %v9790 = vpack.c.b16 %v7735, %v7734
      %v9791 = vpack.c.b16 %v7737, %v7736
      %v9792 = vpack.c.b16 %v7739, %v7738
      %v9793 = vpack.c.b16 %v7741, %v7740
      %v9794 = vpack.c.b16 %v7743, %v7742
      %v9795 = vpack.c.b16 %v7745, %v7744
      %v9796 = vpack.c.b16 %v7747, %v7746
      %v9797 = vpack.c.b16 %v7749, %v7748
      %v9798 = vpack.c.b16 %v7751, %v7750
      %v9799 = vpack.c.b16 %v7753, %v7752
      %v9800 = vpack.c.b16 %v7755, %v7754
      %v9801 = vpack.c.b16 %v7757, %v7756
      %v9802 = vpack.c.b16 %v7759, %v7758
      %v9803 = vpack.c.b16 %v7761, %v7760
      %v9804 = vpack.c.b16 %v7763, %v7762
      %v9805 = vpack.c.b16 %v7765, %v7764
      %v9806 = vpack.c.b16 %v7767, %v7766
      %v9807 = vpack.c.b16 %v7769, %v7768
      %v9808 = vpack.c.b16 %v7771, %v7770
      %v9809 = vpack.c.b16 %v7773, %v7772
      %v9810 = vpack.c.b16 %v7775, %v7774
      %v9811 = vpack.c.b16 %v7777, %v7776
      %v9812 = vpack.c.b16 %v7779, %v7778
      %v9813 = vpack.c.b16 %v7781, %v7780
      %v9814 = vpack.c.b16 %v7783, %v7782
      %v9815 = vpack.c.b16 %v7785, %v7784
      %v9816 = vpack.c.b16 %v7787, %v7786
      %v9817 = vpack.c.b16 %v7789, %v7788
      %v9818 = vpack.c.b16 %v7791, %v7790
      %v9819 = vpack.c.b16 %v7793, %v7792
      %v9820 = vpack.c.b16 %v7795, %v7794
      %v9821 = vpack.c.b16 %v7797, %v7796
      %v9822 = vpack.c.b16 %v7799, %v7798
      %v9823 = vpack.c.b16 %v7801, %v7800
      %v9824 = vpack.c.b16 %v7803, %v7802
      %v9825 = vpack.c.b16 %v7805, %v7804
      %v9826 = vpack.c.b16 %v7807, %v7806
      %v9827 = vpack.c.b16 %v7809, %v7808
      %v9828 = vpack.c.b16 %v7811, %v7810
      %v9829 = vpack.c.b16 %v7813, %v7812
      %v9830 = vpack.c.b16 %v7815, %v7814
      %v9831 = vpack.c.b16 %v7817, %v7816
      %v9832 = vpack.c.b16 %v7819, %v7818
      %v9833 = vpack.c.b16 %v7821, %v7820
      %v9834 = vpack.c.b16 %v7823, %v7822
      %v9835 = vpack.c.b16 %v7825, %v7824
      %v9836 = vpack.c.b16 %v7827, %v7826
      %v9837 = vpack.c.b16 %v7829, %v7828
      %v9838 = vpack.c.b16 %v7831, %v7830
      %v9839 = vpack.c.b16 %v7833, %v7832
      %v9840 = vpack.c.b16 %v7835, %v7834
      %v9841 = vpack.c.b16 %v7837, %v7836
      %v9842 = vpack.c.b16 %v7839, %v7838
      %v9843 = vpack.c.b16 %v7841, %v7840
      %v9844 = vpack.c.b16 %v7843, %v7842
      %v9845 = vpack.c.b16 %v7845, %v7844
      %v9846 = vpack.c.b16 %v7847, %v7846
      %v9847 = vpack.c.b16 %v7849, %v7848
      %v9848 = vpack.c.b16 %v7851, %v7850
      %v9849 = vpack.c.b16 %v7853, %v7852
      %v9850 = vpack.c.b16 %v7855, %v7854
      %v9851 = vpack.c.b16 %v7857, %v7856
      %v9852 = vpack.c.b16 %v7859, %v7858
      %v9853 = vpack.c.b16 %v7861, %v7860
      %v9854 = vpack.c.b16 %v7863, %v7862
      %v9855 = vpack.c.b16 %v7865, %v7864
      %v9856 = vpack.c.b16 %v7867, %v7866
      %v9857 = vpack.c.b16 %v7869, %v7868
      %v9858 = vpack.c.b16 %v7871, %v7870
      %v9859 = vpack.c.b16 %v7873, %v7872
      %v9860 = vpack.c.b16 %v7875, %v7874
      %v9861 = vpack.c.b16 %v7877, %v7876
      %v9862 = vpack.c.b16 %v7879, %v7878
      %v9863 = vpack.c.b16 %v7881, %v7880
      %v9864 = vpack.c.b16 %v7883, %v7882
      %v9865 = vpack.c.b16 %v7885, %v7884
      %v9866 = vpack.c.b16 %v7887, %v7886
      %v9867 = vpack.c.b16 %v7889, %v7888
      %v9868 = vpack.c.b16 %v7891, %v7890
      %v9869 = vpack.c.b16 %v7893, %v7892
      %v9870 = vpack.c.b16 %v7895, %v7894
      %v9871 = vpack.c.b16 %v7897, %v7896
      %v9872 = vpack.c.b16 %v7899, %v7898
      %v9873 = vpack.c.b16 %v7901, %v7900
      %v9874 = vpack.c.b16 %v7903, %v7902
      %v9875 = vpack.c.b16 %v7905, %v7904
      %v9876 = vpack.c.b16 %v7907, %v7906
      %v9877 = vpack.c.b16 %v7909, %v7908
      %v9878 = vpack.c.b16 %v7911, %v7910
      %v9879 = vpack.c.b16 %v7913, %v7912
      %v9880 = vpack.c.b16 %v7915, %v7914
      %v9881 = vpack.c.b16 %v7917, %v7916
      %v9882 = vpack.c.b16 %v7919, %v7918
      %v9883 = vpack.c.b16 %v7921, %v7920
      %v9884 = vpack.c.b16 %v7923, %v7922
      %v9885 = vpack.c.b16 %v7925, %v7924
      %v9886 = vpack.c.b16 %v7927, %v7926
      %v9887 = vpack.c.b16 %v7929, %v7928
      %v9888 = vpack.c.b16 %v7931, %v7930
      %v9889 = vpack.c.b16 %v7933, %v7932
      %v9890 = vpack.c.b16 %v7935, %v7934
      %v9891 = vpack.c.b16 %v7937, %v7936
      %v9892 = vpack.c.b16 %v7939, %v7938
      %v9893 = vpack.c.b16 %v7941, %v7940
      %v9894 = vpack.c.b16 %v7943, %v7942
      %v9895 = vpack.c.b16 %v7945, %v7944
      %v9896 = vpack.c.b16 %v7947, %v7946
      %v9897 = vpack.c.b16 %v7949, %v7948
      %v9898 = vpack.c.b16 %v7951, %v7950
      %v9899 = vpack.c.b16 %v7953, %v7952
      %v9900 = vpack.c.b16 %v7955, %v7954
      %v9901 = vpack.c.b16 %v7957, %v7956
      %v9902 = vpack.c.b16 %v7959, %v7958
      %v9903 = vpack.c.b16 %v7961, %v7960
      %v9904 = vpack.c.b16 %v7963, %v7962
      %v9905 = vpack.c.b16 %v7965, %v7964
      %v9906 = vpack.c.b16 %v7967, %v7966
      %v9907 = vpack.c.b16 %v7969, %v7968
      %v9908 = vpack.c.b16 %v7971, %v7970
      %v9909 = vpack.c.b16 %v7973, %v7972
      %v9910 = vpack.c.b16 %v7975, %v7974
      %v9911 = vpack.c.b16 %v7977, %v7976
      %v9912 = vpack.c.b16 %v7979, %v7978
      %v9913 = vpack.c.b16 %v7981, %v7980
      %v9914 = vpack.c.b16 %v7983, %v7982
      %v9915 = vpack.c.b16 %v7985, %v7984
      %v9916 = vpack.c.b16 %v7987, %v7986
      %v9917 = vpack.c.b16 %v7989, %v7988
      %v9918 = vpack.c.b16 %v7991, %v7990
      %v9919 = vpack.c.b16 %v7993, %v7992
      %v9920 = vpack.c.b16 %v7995, %v7994
      %v9921 = vpack.c.b16 %v7997, %v7996
      %v9922 = vpack.c.b16 %v7999, %v7998
      %v9923 = vpack.c.b16 %v8001, %v8000
      %v9924 = vpack.c.b16 %v8003, %v8002
      %v9925 = vpack.c.b16 %v8005, %v8004
      %v9926 = vpack.c.b16 %v8007, %v8006
      %v9927 = vpack.c.b16 %v8009, %v8008
      %v9928 = vpack.c.b16 %v8011, %v8010
      %v9929 = vpack.c.b16 %v8013, %v8012
      %v9930 = vpack.c.b16 %v8015, %v8014
      %v9931 = vpack.c.b16 %v8017, %v8016
      %v9932 = vpack.c.b16 %v8019, %v8018
      %v9933 = vpack.c.b16 %v8021, %v8020
      %v9934 = vpack.c.b16 %v8023, %v8022
      %v9935 = vpack.c.b16 %v8025, %v8024
      %v9936 = vpack.c.b16 %v8027, %v8026
      %v9937 = vpack.c.b16 %v8029, %v8028
      %v9938 = vpack.c.b16 %v8031, %v8030
      %v9939 = vpack.c.b16 %v8033, %v8032
      %v9940 = vpack.c.b16 %v8035, %v8034
      %v9941 = vpack.c.b16 %v8037, %v8036
      %v9942 = vpack.c.b16 %v8039, %v8038
      %v9943 = vpack.c.b16 %v8041, %v8040
      %v9944 = vpack.c.b16 %v8043, %v8042
      %v9945 = vpack.c.b16 %v8045, %v8044
      %v9946 = vpack.c.b16 %v8047, %v8046
      %v9947 = vpack.c.b16 %v8049, %v8048
      %v9948 = vpack.c.b16 %v8051, %v8050
      %v9949 = vpack.c.b16 %v8053, %v8052
      %v9950 = vpack.c.b16 %v8055, %v8054
      %v9951 = vpack.c.b16 %v8057, %v8056
      %v9952 = vpack.c.b16 %v8059, %v8058
      %v9953 = vpack.c.b16 %v8061, %v8060
      %v9954 = vpack.c.b16 %v8063, %v8062
      %v9955 = vpack.c.b16 %v8065, %v8064
      %v9956 = vpack.c.b16 %v8067, %v8066
      %v9957 = vpack.c.b16 %v8069, %v8068
      %v9958 = vpack.c.b16 %v8071, %v8070
      %v9959 = vpack.c.b16 %v8073, %v8072
      %v9960 = vpack.c.b16 %v8075, %v8074
      %v9961 = vpack.c.b16 %v8077, %v8076
      %v9962 = vpack.c.b16 %v8079, %v8078
      %v9963 = vpack.c.b16 %v8081, %v8080
      %v9964 = vpack.c.b16 %v8083, %v8082
      %v9965 = vpack.c.b16 %v8085, %v8084
      %v9966 = vpack.c.b16 %v8087, %v8086
      %v9967 = vpack.c.b16 %v8089, %v8088
      %v9968 = vpack.c.b16 %v8091, %v8090
      %v9969 = vpack.c.b16 %v8093, %v8092
      %v9970 = vpack.c.b16 %v8095, %v8094
      %v9971 = vpack.c.b16 %v8097, %v8096
      %v9972 = vpack.c.b16 %v8099, %v8098
      %v9973 = vpack.c.b16 %v8101, %v8100
      %v9974 = vpack.c.b16 %v8103, %v8102
      %v9975 = vpack.c.b16 %v8105, %v8104
      %v9976 = vpack.c.b16 %v8107, %v8106
      %v9977 = vpack.c.b16 %v8109, %v8108
      %v9978 = vpack.c.b16 %v8111, %v8110
      %v9979 = vpack.c.b16 %v8113, %v8112
      %v9980 = vpack.c.b16 %v8115, %v8114
      %v9981 = vpack.c.b16 %v8117, %v8116
      %v9982 = vpack.c.b16 %v8119, %v8118
      %v9983 = vpack.c.b16 %v8121, %v8120
      %v9984 = vpack.c.b16 %v8123, %v8122
      %v9985 = vpack.c.b16 %v8125, %v8124
      %v9986 = vpack.c.b16 %v8127, %v8126
      %v9987 = vpack.c.b16 %v8129, %v8128
      %v9988 = vpack.c.b16 %v8131, %v8130
      %v9989 = vpack.c.b16 %v8133, %v8132
      %v9990 = vpack.c.b16 %v8135, %v8134
      %v9991 = vpack.c.b16 %v8137, %v8136
      %v9992 = vpack.c.b16 %v8139, %v8138
      %v9993 = vpack.c.b16 %v8141, %v8140
      %v9994 = vpack.c.b16 %v8143, %v8142
      %v9995 = vpack.c.b16 %v8145, %v8144
      %v9996 = vpack.c.b16 %v8147, %v8146
      %v9997 = vpack.c.b16 %v8149, %v8148
      %v9998 = vpack.c.b16 %v8151, %v8150
      %v9999 = vpack.c.b16 %v8153, %v8152
      %v10000 = vpack.c.b16 %v8155, %v8154
      %v10001 = vpack.c.b16 %v8157, %v8156
      %v10002 = vpack.c.b16 %v8159, %v8158
      %v10003 = vpack.c.b16 %v8161, %v8160
      %v10004 = vpack.c.b16 %v8163, %v8162
      %v10005 = vpack.c.b16 %v8165, %v8164
      %v10006 = vpack.c.b16 %v8167, %v8166
      %v10007 = vpack.c.b16 %v8169, %v8168
      %v10008 = vpack.c.b16 %v8171, %v8170
      %v10009 = vpack.c.b16 %v8173, %v8172
      %v10010 = vpack.c.b16 %v8175, %v8174
      %v10011 = vpack.c.b16 %v8177, %v8176
      %v10012 = vpack.c.b16 %v8179, %v8178
      %v10013 = vpack.c.b16 %v8181, %v8180
      %v10014 = vpack.c.b16 %v8183, %v8182
      %v10015 = vpack.c.b16 %v8185, %v8184
      %v10016 = vpack.c.b16 %v8187, %v8186
      %v10017 = vpack.c.b16 %v8189, %v8188
      %v10018 = vpack.c.b16 %v8191, %v8190
      %v10019 = vpack.c.b16 %v8193, %v8192
      %v10020 = vpack.c.b16 %v8195, %v8194
      %v10021 = vpack.c.b16 %v8197, %v8196
      %v10022 = vpack.c.b16 %v8199, %v8198
      %v10023 = vpack.c.b16 %v8201, %v8200
      %v10024 = vpack.c.b16 %v8203, %v8202
      %v10025 = vpack.c.b16 %v8205, %v8204
      %v10026 = vpack.c.b16 %v8207, %v8206
      %v10027 = vpack.c.b16 %v8209, %v8208
      %v10028 = vpack.c.b16 %v8211, %v8210
      %v10029 = vpack.c.b16 %v8213, %v8212
      %v10030 = vpack.c.b16 %v8215, %v8214
      %v10031 = vpack.c.b16 %v8217, %v8216
      %v10032 = vpack.c.b16 %v8219, %v8218
      %v10033 = vpack.c.b16 %v8221, %v8220
      %v10034 = vpack.c.b16 %v8223, %v8222
      %v10035 = vpack.c.b16 %v8225, %v8224
      %v10036 = vpack.c.b16 %v8227, %v8226
      %v10037 = vpack.c.b16 %v8229, %v8228
      %v10038 = vpack.c.b16 %v8231, %v8230
      %v10039 = vpack.c.b16 %v8233, %v8232
      %v10040 = vpack.c.b16 %v8235, %v8234
      %v10041 = vpack.c.b16 %v8237, %v8236
      %v10042 = vpack.c.b16 %v8239, %v8238
      %v10043 = vpack.c.b16 %v8241, %v8240
      %v10044 = vpack.c.b16 %v8243, %v8242
      %v10045 = vpack.c.b16 %v8245, %v8244
      %v10046 = vpack.c.b16 %v8247, %v8246
      %v10047 = vpack.c.b16 %v8249, %v8248
      %v10048 = vpack.c.b16 %v8251, %v8250
      %v10049 = vpack.c.b16 %v8253, %v8252
      %v10050 = vpack.c.b16 %v8255, %v8254
      %v10051 = vpack.c.b16 %v8257, %v8256
      %v10052 = vpack.c.b16 %v8259, %v8258
      %v10053 = vpack.c.b16 %v8261, %v8260
      %v10054 = vpack.c.b16 %v8263, %v8262
      %v10055 = vpack.c.b16 %v8265, %v8264
      %v10056 = vpack.c.b16 %v8267, %v8266
      %v10057 = vpack.c.b16 %v8269, %v8268
      %v10058 = vpack.c.b16 %v8271, %v8270
      %v10059 = vpack.c.b16 %v8273, %v8272
      %v10060 = vpack.c.b16 %v8275, %v8274
      %v10061 = vpack.c.b16 %v8277, %v8276
      %v10062 = vpack.c.b16 %v8279, %v8278
      %v10063 = vpack.c.b16 %v8281, %v8280
      %v10064 = vpack.c.b16 %v8283, %v8282
      %v10065 = vpack.c.b16 %v8285, %v8284
      %v10066 = vpack.c.b16 %v8287, %v8286
      %v10067 = vpack.c.b16 %v8289, %v8288
      %v10068 = vpack.c.b16 %v8291, %v8290
      %v10069 = vpack.c.b16 %v8293, %v8292
      %v10070 = vpack.c.b16 %v8295, %v8294
      %v10071 = vpack.c.b16 %v8297, %v8296
      %v10072 = vpack.c.b16 %v8299, %v8298
      %v10073 = vpack.c.b16 %v8301, %v8300
      %v10074 = vpack.c.b16 %v8303, %v8302
      %v10075 = vpack.c.b16 %v8305, %v8304
      %v10076 = vpack.c.b16 %v8307, %v8306
      %v10077 = vpack.c.b16 %v8309, %v8308
      %v10078 = vpack.c.b16 %v8311, %v8310
      %v10079 = vpack.c.b16 %v8313, %v8312
      %v10080 = vpack.c.b16 %v8315, %v8314
      %v10081 = vpack.c.b16 %v8317, %v8316
      %v10082 = vpack.c.b16 %v8319, %v8318
      %v10083 = vpack.c.b16 %v8321, %v8320
      %v10084 = vpack.c.b16 %v8323, %v8322
      %v10085 = vpack.c.b16 %v8325, %v8324
      %v10086 = vpack.c.b16 %v8327, %v8326
      %v10087 = vpack.c.b16 %v8329, %v8328
      %v10088 = vpack.c.b16 %v8331, %v8330
      %v10089 = vpack.c.b16 %v8333, %v8332
      %v10090 = vpack.c.b16 %v8335, %v8334
      %v10091 = vpack.c.b16 %v8337, %v8336
      %v10092 = vpack.c.b16 %v8339, %v8338
      %v10093 = vpack.c.b16 %v8341, %v8340
      %v10094 = vpack.c.b16 %v8343, %v8342
      %v10095 = vpack.c.b16 %v8345, %v8344
      %v10096 = vpack.c.b16 %v8347, %v8346
      %v10097 = vpack.c.b16 %v8349, %v8348
      %v10098 = vpack.c.b16 %v8351, %v8350
      %v10099 = vpack.c.b16 %v8353, %v8352
      %v10100 = vpack.c.b16 %v8355, %v8354
      %v10101 = vpack.c.b16 %v8357, %v8356
      %v10102 = vpack.c.b16 %v8359, %v8358
      %v10103 = vpack.c.b16 %v8361, %v8360
      %v10104 = vpack.c.b16 %v8363, %v8362
      %v10105 = vpack.c.b16 %v8365, %v8364
      %v10106 = vpack.c.b16 %v8367, %v8366
      %v10107 = vpack.c.b16 %v8369, %v8368
      %v10108 = vpack.c.b16 %v8371, %v8370
      %v10109 = vpack.c.b16 %v8373, %v8372
      %v10110 = vpack.c.b16 %v8375, %v8374
      %v10111 = vpack.c.b16 %v8377, %v8376
      %v10112 = vpack.c.b16 %v8379, %v8378
      %v10113 = vpack.c.b16 %v8381, %v8380
      %v10114 = vpack.c.b16 %v8383, %v8382
      %v10115 = vpack.c.b16 %v8385, %v8384
      %v10116 = vpack.c.b16 %v8387, %v8386
      %v10117 = vpack.c.b16 %v8389, %v8388
      %v10118 = vpack.c.b16 %v8391, %v8390
      %v10119 = vpack.c.b16 %v8393, %v8392
      %v10120 = vpack.c.b16 %v8395, %v8394
      %v10121 = vpack.c.b16 %v8397, %v8396
      %v10122 = vpack.c.b16 %v8399, %v8398
      %v10123 = vpack.c.b16 %v8401, %v8400
      %v10124 = vpack.c.b16 %v8403, %v8402
      %v10125 = vpack.c.b16 %v8405, %v8404
      %v10126 = vpack.c.b16 %v8407, %v8406
      %v10127 = vpack.c.b16 %v8409, %v8408
      %v10128 = vpack.c.b16 %v8411, %v8410
      %v10129 = vpack.c.b16 %v8413, %v8412
      %v10130 = vpack.c.b16 %v8415, %v8414
      %v10131 = vpack.c.b16 %v8417, %v8416
      %v10132 = vpack.c.b16 %v8419, %v8418
      %v10133 = vpack.c.b16 %v8421, %v8420
      %v10134 = vpack.c.b16 %v8423, %v8422
      %v10135 = vpack.c.b16 %v8425, %v8424
      %v10136 = vpack.c.b16 %v8427, %v8426
      %v10137 = vpack.c.b16 %v8429, %v8428
      %v10138 = vpack.c.b16 %v8431, %v8430
      %v10139 = vpack.c.b16 %v8433, %v8432
      %v10140 = vpack.c.b16 %v8435, %v8434
      %v10141 = vpack.c.b16 %v8437, %v8436
      %v10142 = vpack.c.b16 %v8439, %v8438
      %v10143 = vpack.c.b16 %v8441, %v8440
      %v10144 = vpack.c.b16 %v8443, %v8442
      %v10145 = vpack.c.b16 %v8445, %v8444
      %v10146 = vpack.c.b16 %v8447, %v8446
      %v10147 = vpack.c.b16 %v8449, %v8448
      %v10148 = vpack.c.b16 %v8451, %v8450
      %v10149 = vpack.c.b16 %v8453, %v8452
      %v10150 = vpack.c.b16 %v8455, %v8454
      %v10151 = vpack.c.b16 %v8457, %v8456
      %v10152 = vpack.c.b16 %v8459, %v8458
      %v10153 = vpack.c.b16 %v8461, %v8460
      %v10154 = vpack.c.b16 %v8463, %v8462
      %v10155 = vpack.c.b16 %v8465, %v8464
      %v10156 = vpack.c.b16 %v8467, %v8466
      %v10157 = vpack.c.b16 %v8469, %v8468
      %v10158 = vpack.c.b16 %v8471, %v8470
      %v10159 = vpack.c.b16 %v8473, %v8472
      %v10160 = vpack.c.b16 %v8475, %v8474
      %v10161 = vpack.c.b16 %v8477, %v8476
      %v10162 = vpack.c.b16 %v8479, %v8478
      %v10163 = vpack.c.b16 %v8481, %v8480
      %v10164 = vpack.c.b16 %v8483, %v8482
      %v10165 = vpack.c.b16 %v8485, %v8484
      %v10166 = vpack.c.b16 %v8487, %v8486
      %v10167 = vpack.c.b16 %v8489, %v8488
      %v10168 = vpack.c.b16 %v8491, %v8490
      %v10169 = vpack.c.b16 %v8493, %v8492
      %v10170 = vpack.c.b16 %v8495, %v8494
      %v10171 = vpack.c.b16 %v8497, %v8496
      %v10172 = vpack.c.b16 %v8499, %v8498
      %v10173 = vpack.c.b16 %v8501, %v8500
      %v10174 = vpack.c.b16 %v8503, %v8502
      %v10175 = vpack.c.b16 %v8505, %v8504
      %v10176 = vpack.c.b16 %v8507, %v8506
      %v10177 = vpack.c.b16 %v8509, %v8508
      %v10178 = vpack.c.b16 %v8511, %v8510
      %v10179 = vpack.c.b16 %v8513, %v8512
      %v10180 = vpack.c.b16 %v8515, %v8514
      %v10181 = vpack.c.b16 %v8517, %v8516
      %v10182 = vpack.c.b16 %v8519, %v8518
      %v10183 = vpack.c.b16 %v8521, %v8520
      %v10184 = vpack.c.b16 %v8523, %v8522
      %v10185 = vpack.c.b16 %v8525, %v8524
      %v10186 = vpack.c.b16 %v8527, %v8526
      %v10187 = vpack.c.b16 %v8529, %v8528
      %v10188 = vpack.c.b16 %v8531, %v8530
      %v10189 = vpack.c.b16 %v8533, %v8532
      %v10190 = vpack.c.b16 %v8535, %v8534
      %v10191 = vpack.c.b16 %v8537, %v8536
      %v10192 = vpack.c.b16 %v8539, %v8538
      %v10193 = vpack.c.b16 %v8541, %v8540
      %v10194 = vpack.c.b16 %v8543, %v8542
      %v10195 = vpack.c.b16 %v8545, %v8544
      %v10196 = vpack.c.b16 %v8547, %v8546
      %v10197 = vpack.c.b16 %v8549, %v8548
      %v10198 = vpack.c.b16 %v8551, %v8550
      %v10199 = vpack.c.b16 %v8553, %v8552
      %v10200 = vpack.c.b16 %v8555, %v8554
      %v10201 = vpack.c.b16 %v8557, %v8556
      %v10202 = vpack.c.b16 %v8559, %v8558
      %v10203 = vpack.c.b16 %v8561, %v8560
      %v10204 = vpack.c.b16 %v8563, %v8562
      %v10205 = vpack.c.b16 %v8565, %v8564
      %v10206 = vpack.c.b16 %v8567, %v8566
      %v10207 = vpack.c.b16 %v8569, %v8568
      %v10208 = vpack.c.b16 %v8571, %v8570
      %v10209 = vpack.c.b16 %v8573, %v8572
      %v10210 = vpack.c.b16 %v8575, %v8574
      %v10211 = vpack.c.b16 %v8577, %v8576
      %v10212 = vpack.c.b16 %v8579, %v8578
      %v10213 = vpack.c.b16 %v8581, %v8580
      %v10214 = vpack.c.b16 %v8583, %v8582
      %v10215 = vpack.c.b16 %v8585, %v8584
      %v10216 = vpack.c.b16 %v8587, %v8586
      %v10217 = vpack.c.b16 %v8589, %v8588
      %v10218 = vpack.c.b16 %v8591, %v8590
      %v10219 = vpack.c.b16 %v8593, %v8592
      %v10220 = vpack.c.b16 %v8595, %v8594
      %v10221 = vpack.c.b16 %v8597, %v8596
      %v10222 = vpack.c.b16 %v8599, %v8598
      %v10223 = vpack.c.b16 %v8601, %v8600
      %v10224 = vpack.c.b16 %v8603, %v8602
      %v10225 = vpack.c.b16 %v8605, %v8604
      %v10226 = vpack.c.b16 %v8607, %v8606
      %v10227 = vpack.c.b16 %v8609, %v8608
      %v10228 = vpack.c.b16 %v8611, %v8610
      %v10229 = vpack.c.b16 %v8613, %v8612
      %v10230 = vpack.c.b16 %v8615, %v8614
      %v10231 = vpack.c.b16 %v8617, %v8616
      %v10232 = vpack.c.b16 %v8619, %v8618
      %v10233 = vpack.c.b16 %v8621, %v8620
      %v10234 = vpack.c.b16 %v8623, %v8622
      %v10235 = vpack.c.b16 %v8625, %v8624
      %v10236 = vpack.c.b16 %v8627, %v8626
      %v10237 = vpack.c.b16 %v8629, %v8628
      %v10238 = vpack.c.b16 %v8631, %v8630
      %v10239 = vpack.c.b16 %v8633, %v8632
      %v10240 = vpack.c.b16 %v8635, %v8634
      %v10241 = vpack.c.b16 %v8637, %v8636
      %v10242 = vpack.c.b16 %v8639, %v8638
      %v10243 = vpack.c.b16 %v8641, %v8640
      %v10244 = vpack.c.b16 %v8643, %v8642
      %v10245 = vpack.c.b16 %v8645, %v8644
      %v10246 = vpack.c.b16 %v8647, %v8646
      %v10247 = vpack.c.b16 %v8649, %v8648
      %v10248 = vpack.c.b16 %v8651, %v8650
      %v10249 = vpack.c.b16 %v8653, %v8652
      %v10250 = vpack.c.b16 %v8655, %v8654
      %v10251 = vpack.c.b16 %v8657, %v8656
      %v10252 = vpack.c.b16 %v8659, %v8658
      %v10253 = vpack.c.b16 %v8661, %v8660
      %v10254 = vpack.c.b16 %v8663, %v8662
      %v10255 = vpack.c.b16 %v8665, %v8664
      %v10256 = vpack.c.b16 %v8667, %v8666
      %v10257 = vpack.c.b16 %v8669, %v8668
      %v10258 = vpack.c.b16 %v8671, %v8670
      %v10259 = vpack.c.b16 %v8673, %v8672
      %v10260 = vpack.c.b16 %v8675, %v8674
      %v10261 = vpack.c.b16 %v8677, %v8676
      %v10262 = vpack.c.b16 %v8679, %v8678
      %v10263 = vpack.c.b16 %v8681, %v8680
      %v10264 = vpack.c.b16 %v8683, %v8682
      %v10265 = vpack.c.b16 %v8685, %v8684
      %v10266 = vpack.c.b16 %v8687, %v8686
      %v10267 = vpack.c.b16 %v8689, %v8688
      %v10268 = vpack.c.b16 %v8691, %v8690
      %v10269 = vpack.c.b16 %v8693, %v8692
      %v10270 = vpack.c.b16 %v8695, %v8694
      %v10271 = vpack.c.b16 %v8697, %v8696
      %v10272 = vpack.c.b16 %v8699, %v8698
      %v10273 = vpack.c.b16 %v8701, %v8700
      %v10274 = vpack.c.b16 %v8703, %v8702
      %v10275 = vpack.c.b16 %v8705, %v8704
      %v10276 = vpack.c.b16 %v8707, %v8706
      %v10277 = vpack.c.b16 %v8709, %v8708
      %v10278 = vpack.c.b16 %v8711, %v8710
      %v10279 = vpack.c.b16 %v8713, %v8712
      %v10280 = vpack.c.b16 %v8715, %v8714
      %v10281 = vpack.c.b16 %v8717, %v8716
      %v10282 = vpack.c.b16 %v8719, %v8718
      %v10283 = vpack.c.b16 %v8721, %v8720
      %v10284 = vpack.c.b16 %v8723, %v8722
      %v10285 = vpack.c.b16 %v8725, %v8724
      %v10286 = vpack.c.b16 %v8727, %v8726
      %v10287 = vpack.c.b16 %v8729, %v8728
      %v10288 = vpack.c.b16 %v8731, %v8730
      %v10289 = vpack.c.b16 %v8733, %v8732
      %v10290 = vpack.c.b16 %v8735, %v8734
      %v10291 = vpack.c.b16 %v8737, %v8736
      %v10292 = vpack.c.b16 %v8739, %v8738
      %v10293 = vpack.c.b16 %v8741, %v8740
      %v10294 = vpack.c.b16 %v8743, %v8742
      %v10295 = vpack.c.b16 %v8745, %v8744
      %v10296 = vpack.c.b16 %v8747, %v8746
      %v10297 = vpack.c.b16 %v8749, %v8748
      %v10298 = vpack.c.b16 %v8751, %v8750
      %v10299 = vpack.c.b16 %v8753, %v8752
      %v10300 = vpack.c.b16 %v8755, %v8754
      %v10301 = vpack.c.b16 %v8757, %v8756
      %v10302 = vpack.c.b16 %v8759, %v8758
      %v10303 = vpack.c.b16 %v8761, %v8760
      %v10304 = vpack.c.b16 %v8763, %v8762
      %v10305 = vpack.c.b16 %v8765, %v8764
      %v10306 = vpack.c.b16 %v8767, %v8766
      %v10307 = vpack.c.b16 %v8769, %v8768
      %v10308 = vpack.c.b16 %v8771, %v8770
      %v10309 = vpack.c.b16 %v8773, %v8772
      %v10310 = vpack.c.b16 %v8775, %v8774
      %v10311 = vpack.c.b16 %v8777, %v8776
      %v10312 = vpack.c.b16 %v8779, %v8778
      %v10313 = vpack.c.b16 %v8781, %v8780
      %v10314 = vpack.c.b16 %v8783, %v8782
      %v10315 = vpack.c.b16 %v8785, %v8784
      %v10316 = vpack.c.b16 %v8787, %v8786
      %v10317 = vpack.c.b16 %v8789, %v8788
      %v10318 = vpack.c.b16 %v8791, %v8790
      %v10319 = vpack.c.b16 %v8793, %v8792
      %v10320 = vpack.c.b16 %v8795, %v8794
      %v10321 = vpack.c.b16 %v8797, %v8796
      %v10322 = vpack.c.b16 %v8799, %v8798
      %v10323 = vpack.c.b16 %v8801, %v8800
      %v10324 = vpack.c.b16 %v8803, %v8802
      %v10325 = vpack.c.b16 %v8805, %v8804
      %v10326 = vpack.c.b16 %v8807, %v8806
      %v10327 = vpack.c.b16 %v8809, %v8808
      %v10328 = vpack.c.b16 %v8811, %v8810
      %v10329 = vpack.c.b16 %v8813, %v8812
      %v10330 = vpack.c.b16 %v8815, %v8814
      %v10331 = vpack.c.b16 %v8817, %v8816
      %v10332 = vpack.c.b16 %v8819, %v8818
      %v10333 = vpack.c.b16 %v8821, %v8820
      %v10334 = vpack.c.b16 %v8823, %v8822
      %v10335 = vpack.c.b16 %v8825, %v8824
      %v10336 = vpack.c.b16 %v8827, %v8826
      %v10337 = vpack.c.b16 %v8829, %v8828
      %v10338 = vpack.c.b16 %v8831, %v8830
      %v10339 = vpack.c.b16 %v8833, %v8832
      %v10340 = vpack.c.b16 %v8835, %v8834
      %v10341 = vpack.c.b16 %v8837, %v8836
      %v10342 = vpack.c.b16 %v8839, %v8838
      %v10343 = vpack.c.b16 %v8841, %v8840
      %v10344 = vpack.c.b16 %v8843, %v8842
      %v10345 = vpack.c.b16 %v8845, %v8844
      %v10346 = vpack.c.b16 %v8847, %v8846
      %v10347 = vpack.c.b16 %v8849, %v8848
      %v10348 = vpack.c.b16 %v8851, %v8850
      %v10349 = vpack.c.b16 %v8853, %v8852
      %v10350 = vpack.c.b16 %v8855, %v8854
      %v10351 = vpack.c.b16 %v8857, %v8856
      %v10352 = vpack.c.b16 %v8859, %v8858
      %v10353 = vpack.c.b16 %v8861, %v8860
      %v10354 = vpack.c.b16 %v8863, %v8862
      %v10355 = vpack.c.b16 %v8865, %v8864
      %v10356 = vpack.c.b16 %v8867, %v8866
      %v10357 = vpack.c.b16 %v8869, %v8868
      %v10358 = vpack.c.b16 %v8871, %v8870
      %v10359 = vpack.c.b16 %v8873, %v8872
      %v10360 = vpack.c.b16 %v8875, %v8874
      %v10361 = vpack.c.b16 %v8877, %v8876
      %v10362 = vpack.c.b16 %v8879, %v8878
      %v10363 = vpack.c.b16 %v8881, %v8880
      %v10364 = vpack.c.b16 %v8883, %v8882
      %v10365 = vpack.c.b16 %v8885, %v8884
      %v10366 = vpack.c.b16 %v8887, %v8886
      %v10367 = vpack.c.b16 %v8889, %v8888
      %v10368 = vpack.c.b16 %v8891, %v8890
      %v10369 = vpack.c.b16 %v8893, %v8892
      %v10370 = vpack.c.b16 %v8895, %v8894
      %v10371 = vpack.c.b16 %v8897, %v8896
      %v10372 = vpack.c.b16 %v8899, %v8898
      %v10373 = vpack.c.b16 %v8901, %v8900
      %v10374 = vpack.c.b16 %v8903, %v8902
      %v10375 = vpack.c.b16 %v8905, %v8904
      %v10376 = vpack.c.b16 %v8907, %v8906
      %v10377 = vpack.c.b16 %v8909, %v8908
      %v10378 = vpack.c.b16 %v8911, %v8910
      %v10379 = vpack.c.b16 %v8913, %v8912
      %v10380 = vpack.c.b16 %v8915, %v8914
      %v10381 = vpack.c.b16 %v8917, %v8916
      %v10382 = vpack.c.b16 %v8919, %v8918
      %v10383 = vpack.c.b16 %v8921, %v8920
      %v10384 = vpack.c.b16 %v8923, %v8922
      %v10385 = vpack.c.b16 %v8925, %v8924
      %v10386 = vpack.c.b16 %v8927, %v8926
      %v10387 = vpack.c.b16 %v8929, %v8928
      %v10388 = vpack.c.b16 %v8931, %v8930
      %v10389 = vpack.c.b16 %v8933, %v8932
      %v10390 = vpack.c.b16 %v8935, %v8934
      %v10391 = vpack.c.b16 %v8937, %v8936
      %v10392 = vpack.c.b16 %v8939, %v8938
      %v10393 = vpack.c.b16 %v8941, %v8940
      %v10394 = vpack.c.b16 %v8943, %v8942
      %v10395 = vpack.c.b16 %v8945, %v8944
      %v10396 = vpack.c.b16 %v8947, %v8946
      %v10397 = vpack.c.b16 %v8949, %v8948
      %v10398 = vpack.c.b16 %v8951, %v8950
      %v10399 = vpack.c.b16 %v8953, %v8952
      %v10400 = vpack.c.b16 %v8955, %v8954
      %v10401 = vpack.c.b16 %v8957, %v8956
      %v10402 = vpack.c.b16 %v8959, %v8958
      %v10403 = vpack.c.b16 %v8961, %v8960
      %v10404 = vpack.c.b16 %v8963, %v8962
      %v10405 = vpack.c.b16 %v8965, %v8964
      %v10406 = vpack.c.b16 %v8967, %v8966
      %v10407 = vpack.c.b16 %v8969, %v8968
      %v10408 = vpack.c.b16 %v8971, %v8970
      %v10409 = vpack.c.b16 %v8973, %v8972
      %v10410 = vpack.c.b16 %v8975, %v8974
      %v10411 = vpack.c.b16 %v8977, %v8976
      %v10412 = vpack.c.b16 %v8979, %v8978
      %v10413 = vpack.c.b16 %v8981, %v8980
      %v10414 = vpack.c.b16 %v8983, %v8982
      %v10415 = vpack.c.b16 %v8985, %v8984
      %v10416 = vpack.c.b16 %v8987, %v8986
      %v10417 = vpack.c.b16 %v8989, %v8988
      %v10418 = vpack.c.b16 %v8991, %v8990
      %v10419 = vpack.c.b16 %v8993, %v8992
      %v10420 = vpack.c.b16 %v8995, %v8994
      %v10421 = vpack.c.b16 %v8997, %v8996
      %v10422 = vpack.c.b16 %v8999, %v8998
      %v10423 = vpack.c.b16 %v9001, %v9000
      %v10424 = vpack.c.b16 %v9003, %v9002
      %v10425 = vpack.c.b16 %v9005, %v9004
      %v10426 = vpack.c.b16 %v9007, %v9006
      %v10427 = vpack.c.b16 %v9009, %v9008
      %v10428 = vpack.c.b16 %v9011, %v9010
      %v10429 = vpack.c.b16 %v9013, %v9012
      %v10430 = vpack.c.b16 %v9015, %v9014
      %v10431 = vpack.c.b16 %v9017, %v9016
      %v10432 = vpack.c.b16 %v9019, %v9018
      %v10433 = vpack.c.b16 %v9021, %v9020
      %v10434 = vpack.c.b16 %v9023, %v9022
      %v10435 = vpack.c.b16 %v9025, %v9024
      %v10436 = vpack.c.b16 %v9027, %v9026
      %v10437 = vpack.c.b16 %v9029, %v9028
      %v10438 = vpack.c.b16 %v9031, %v9030
      %v10439 = vpack.c.b16 %v9033, %v9032
      %v10440 = vpack.c.b16 %v9035, %v9034
      %v10441 = vpack.c.b16 %v9037, %v9036
      %v10442 = vpack.c.b16 %v9039, %v9038
      %v10443 = vpack.c.b16 %v9041, %v9040
      %v10444 = vpack.c.b16 %v9043, %v9042
      %v10445 = vpack.c.b16 %v9045, %v9044
      %v10446 = vpack.c.b16 %v9047, %v9046
      %v10447 = vpack.c.b16 %v9049, %v9048
      %v10448 = vpack.c.b16 %v9051, %v9050
      %v10449 = vpack.c.b16 %v9053, %v9052
      %v10450 = vpack.c.b16 %v9055, %v9054
      %v10451 = vpack.c.b16 %v9057, %v9056
      %v10452 = vpack.c.b16 %v9059, %v9058
      %v10453 = vpack.c.b16 %v9061, %v9060
      %v10454 = vpack.c.b16 %v9063, %v9062
      %v10455 = vpack.c.b16 %v9065, %v9064
      %v10456 = vpack.c.b16 %v9067, %v9066
      %v10457 = vpack.c.b16 %v9069, %v9068
      %v10458 = vpack.c.b16 %v9071, %v9070
      %v10459 = vpack.c.b16 %v9073, %v9072
      %v10460 = vpack.c.b16 %v9075, %v9074
      %v10461 = vpack.c.b16 %v9077, %v9076
      %v10462 = vpack.c.b16 %v9079, %v9078
      %v10463 = vpack.c.b16 %v9081, %v9080
      %v10464 = vpack.c.b16 %v9083, %v9082
      %v10465 = vpack.c.b16 %v9085, %v9084
      %v10466 = vpack.c.b16 %v9087, %v9086
      %v10467 = vpack.c.b16 %v9089, %v9088
      %v10468 = vpack.c.b16 %v9091, %v9090
      %v10469 = vpack.c.b16 %v9093, %v9092
      %v10470 = vpack.c.b16 %v9095, %v9094
      %v10471 = vpack.c.b16 %v9097, %v9096
      %v10472 = vpack.c.b16 %v9099, %v9098
      %v10473 = vpack.c.b16 %v9101, %v9100
      %v10474 = vpack.c.b16 %v9103, %v9102
      %v10475 = vpack.c.b16 %v9105, %v9104
      %v10476 = vpack.c.b16 %v9107, %v9106
      %v10477 = vpack.c.b16 %v9109, %v9108
      %v10478 = vpack.c.b16 %v9111, %v9110
      %v10479 = vpack.c.b16 %v9113, %v9112
      %v10480 = vpack.c.b16 %v9115, %v9114
      %v10481 = vpack.c.b16 %v9117, %v9116
      %v10482 = vpack.c.b16 %v9119, %v9118
      %v10483 = vpack.c.b16 %v9121, %v9120
      %v10484 = vpack.c.b16 %v9123, %v9122
      %v10485 = vpack.c.b16 %v9125, %v9124
      %v10486 = vpack.c.b16 %v9127, %v9126
      %v10487 = vpack.c.b16 %v9129, %v9128
      %v10488 = vpack.c.b16 %v9131, %v9130
      %v10489 = vpack.c.b16 %v9133, %v9132
      %v10490 = vpack.c.b16 %v9135, %v9134
      %v10491 = vpack.c.b16 %v9137, %v9136
      %v10492 = vpack.c.b16 %v9139, %v9138
      %v10493 = vpack.c.b16 %v9141, %v9140
      %v10494 = vpack.c.b16 %v9143, %v9142
      %v10495 = vpack.c.b16 %v9145, %v9144
      %v10496 = vpack.c.b16 %v9147, %v9146
      %v10497 = vpack.c.b16 %v9149, %v9148
      %v10498 = vpack.c.b16 %v9151, %v9150
      %v10499 = vpack.c.b16 %v9153, %v9152
      %v10500 = vpack.c.b16 %v9155, %v9154
      %v10501 = vpack.c.b16 %v9157, %v9156
      %v10502 = vpack.c.b16 %v9159, %v9158
      %v10503 = vpack.c.b16 %v9161, %v9160
      %v10504 = vpack.c.b16 %v9163, %v9162
      %v10505 = vpack.c.b16 %v9165, %v9164
      %v10506 = vpack.c.b16 %v9167, %v9166
      %v10507 = vpack.c.b16 %v9169, %v9168
      %v10508 = vpack.c.b16 %v9171, %v9170
      %v10509 = vpack.c.b16 %v9173, %v9172
      %v10510 = vpack.c.b16 %v9175, %v9174
      %v10511 = vpack.c.b16 %v9177, %v9176
      %v10512 = vpack.c.b16 %v9179, %v9178
      %v10513 = vpack.c.b16 %v9181, %v9180
      %v10514 = vpack.c.b16 %v9183, %v9182
      %v10515 = vpack.c.b16 %v9185, %v9184
      %v10516 = vpack.c.b16 %v9187, %v9186
      %v10517 = vpack.c.b16 %v9189, %v9188
      %v10518 = vpack.c.b16 %v9191, %v9190
      %v10519 = vpack.c.b16 %v9193, %v9192
      %v10520 = vpack.c.b16 %v9195, %v9194
      %v10521 = vpack.c.b16 %v9197, %v9196
      %v10522 = vpack.c.b16 %v9199, %v9198
      %v10523 = vpack.c.b16 %v9201, %v9200
      %v10524 = vpack.c.b16 %v9203, %v9202
      %v10525 = vpack.c.b16 %v9205, %v9204
      %v10526 = vpack.c.b16 %v9207, %v9206
      %v10527 = vpack.c.b16 %v9209, %v9208
      %v10528 = vpack.c.b16 %v9211, %v9210
      %v10529 = vpack.c.b16 %v9213, %v9212
      %v10530 = vpack.c.b16 %v9215, %v9214
      %v10531 = vpack.c.b16 %v9217, %v9216
      %v10532 = vpack.c.b16 %v9219, %v9218
      %v10533 = vpack.c.b16 %v9221, %v9220
      %v10534 = vpack.c.b16 %v9223, %v9222
      %v10535 = vpack.c.b16 %v9225, %v9224
      %v10536 = vpack.c.b16 %v9227, %v9226
      %v10537 = vpack.c.b16 %v9229, %v9228
      %v10538 = vpack.c.b16 %v9231, %v9230
      %v10539 = vpack.c.b16 %v9233, %v9232
      %v10540 = vpack.c.b16 %v9235, %v9234
      %v10541 = vpack.c.b16 %v9237, %v9236
      %v10542 = vpack.c.b16 %v9239, %v9238
      %v10543 = vpack.c.b16 %v9241, %v9240
      %v10544 = vpack.c.b16 %v9243, %v9242
      %v10545 = vpack.c.b16 %v9245, %v9244
      %v10546 = vpack.c.b16 %v9247, %v9246
      %v10547 = vpack.c.b16 %v9249, %v9248
      %v10548 = vpack.c.b16 %v9251, %v9250
      %v10549 = vpack.c.b16 %v9253, %v9252
      %11846 = vmatprep.subr.bf16.mxu0 0
      %11847 = vmatpush1.bf16.msra.mxu0 %v9254
      %11848 = vmatprep.subr.bf16.mxu0 0
      %11849 = vmatpush1.bf16.msra.mxu0 %v9255
      %11850 = vmatprep.subr.bf16.mxu0 0
      %11851 = vmatpush1.bf16.msra.mxu0 %v9256
      %11852 = vmatprep.subr.bf16.mxu0 0
      %11853 = vmatpush1.bf16.msra.mxu0 %v9257
      %11854 = vmatprep.subr.bf16.mxu0 0
      %11855 = vmatpush1.bf16.msra.mxu0 %v9258
      %11856 = vmatprep.subr.bf16.mxu0 0
      %11857 = vmatpush1.bf16.msra.mxu0 %v9259
      %11858 = vmatprep.subr.bf16.mxu0 0
      %11859 = vmatpush1.bf16.msra.mxu0 %v9260
      %11860 = vmatprep.subr.bf16.mxu0 0
      %11861 = vmatpush1.bf16.msra.mxu0 %v9261
      %11862 = vmatprep.subr.bf16.mxu0 0
      %11863 = vmatpush1.bf16.msra.mxu0 %v9262
      %11864 = vmatprep.subr.bf16.mxu0 0
      %11865 = vmatpush1.bf16.msra.mxu0 %v9263
      %11866 = vmatprep.subr.bf16.mxu0 0
      %11867 = vmatpush1.bf16.msra.mxu0 %v9264
      %11868 = vmatprep.subr.bf16.mxu0 0
      %11869 = vmatpush1.bf16.msra.mxu0 %v9265
      %11870 = vmatprep.subr.bf16.mxu0 0
      %11871 = vmatpush1.bf16.msra.mxu0 %v9266
      %11872 = vmatprep.subr.bf16.mxu0 0
      %11873 = vmatpush1.bf16.msra.mxu0 %v9267
      %11874 = vmatprep.subr.bf16.mxu0 0
      %11875 = vmatpush1.bf16.msra.mxu0 %v9268
      %11876 = vmatprep.subr.bf16.mxu0 0
      %11877 = vmatpush1.bf16.msra.mxu0 %v9269
      %11878 = vmatprep.mubr.bf16.mxu0 %v2943
      %11879 = vmatmul.mubr.bf16.gmra.mrb[0].mxu0 %v2929
      %v11880 = vpop.f32.mrb[0].mxu0
      %v11881 = vadd.f32 0.0, %v11880
      %v11882 = vpop.f32.mrb[0].mxu0
      %v11883 = vpop.f32.mrb[0].mxu0
      %v11884 = vpop.f32.mrb[0].mxu0
      %11885 = vdwg.mxu0
      %11886 = vmatprep.subr.bf16.mxu0 0
      %11887 = vmatpush1.bf16.msra.mxu0 %v9270
      %11888 = vmatprep.subr.bf16.mxu0 0
      %11889 = vmatpush1.bf16.msra.mxu0 %v9271
      %11890 = vmatprep.subr.bf16.mxu0 0
      %11891 = vmatpush1.bf16.msra.mxu0 %v9272
      %11892 = vmatprep.subr.bf16.mxu0 0
      %11893 = vmatpush1.bf16.msra.mxu0 %v9273
      %11894 = vmatprep.subr.bf16.mxu0 0
      %11895 = vmatpush1.bf16.msra.mxu0 %v9274
      %11896 = vmatprep.subr.bf16.mxu0 0
      %11897 = vmatpush1.bf16.msra.mxu0 %v9275
      %11898 = vmatprep.subr.bf16.mxu0 0
      %11899 = vmatpush1.bf16.msra.mxu0 %v9276
      %11900 = vmatprep.subr.bf16.mxu0 0
      %11901 = vmatpush1.bf16.msra.mxu0 %v9277
      %11902 = vmatprep.subr.bf16.mxu0 0
      %11903 = vmatpush1.bf16.msra.mxu0 %v9278
      %11904 = vmatprep.subr.bf16.mxu0 0
      %11905 = vmatpush1.bf16.msra.mxu0 %v9279
      %11906 = vmatprep.subr.bf16.mxu0 0
      %11907 = vmatpush1.bf16.msra.mxu0 %v9280
      %11908 = vmatprep.subr.bf16.mxu0 0
      %11909 = vmatpush1.bf16.msra.mxu0 %v9281
      %11910 = vmatprep.subr.bf16.mxu0 0
      %11911 = vmatpush1.bf16.msra.mxu0 %v9282
      %11912 = vmatprep.subr.bf16.mxu0 0
      %11913 = vmatpush1.bf16.msra.mxu0 %v9283
      %11914 = vmatprep.subr.bf16.mxu0 0
      %11915 = vmatpush1.bf16.msra.mxu0 %v9284
      %11916 = vmatprep.subr.bf16.mxu0 0
      %11917 = vmatpush1.bf16.msra.mxu0 %v9285
      %11918 = vmatprep.mubr.bf16.mxu0 %v2953
      %11919 = vmatmul.mubr.bf16.gmra.mrb[0].mxu0 %v2951
      %v11920 = vpop.f32.mrb[0].mxu0
      %v11921 = vadd.f32 %v11881, %v11920
      %v11922 = vpop.f32.mrb[0].mxu0
      %v11923 = vpop.f32.mrb[0].mxu0
      %v11924 = vpop.f32.mrb[0].mxu0
      %11925 = vdwg.mxu0
      %11926 = vmatprep.subr.bf16.mxu0 0
      %11927 = vmatpush1.bf16.msra.mxu0 %v9286
      %11928 = vmatprep.subr.bf16.mxu0 0
      %11929 = vmatpush1.bf16.msra.mxu0 %v9287
      %11930 = vmatprep.subr.bf16.mxu0 0
      %11931 = vmatpush1.bf16.msra.mxu0 %v9288
      %11932 = vmatprep.subr.bf16.mxu0 0
      %11933 = vmatpush1.bf16.msra.mxu0 %v9289
      %11934 = vmatprep.subr.bf16.mxu0 0
      %11935 = vmatpush1.bf16.msra.mxu0 %v9290
      %11936 = vmatprep.subr.bf16.mxu0 0
      %11937 = vmatpush1.bf16.msra.mxu0 %v9291
      %11938 = vmatprep.subr.bf16.mxu0 0
      %11939 = vmatpush1.bf16.msra.mxu0 %v9292
      %11940 = vmatprep.subr.bf16.mxu0 0
      %11941 = vmatpush1.bf16.msra.mxu0 %v9293
      %11942 = vmatprep.subr.bf16.mxu0 0
      %11943 = vmatpush1.bf16.msra.mxu0 %v9294
      %11944 = vmatprep.subr.bf16.mxu0 0
      %11945 = vmatpush1.bf16.msra.mxu0 %v9295
      %11946 = vmatprep.subr.bf16.mxu0 0
      %11947 = vmatpush1.bf16.msra.mxu0 %v9296
      %11948 = vmatprep.subr.bf16.mxu0 0
      %11949 = vmatpush1.bf16.msra.mxu0 %v9297
      %11950 = vmatprep.subr.bf16.mxu0 0
      %11951 = vmatpush1.bf16.msra.mxu0 %v9298
      %11952 = vmatprep.subr.bf16.mxu0 0
      %11953 = vmatpush1.bf16.msra.mxu0 %v9299
      %11954 = vmatprep.subr.bf16.mxu0 0
      %11955 = vmatpush1.bf16.msra.mxu0 %v9300
      %11956 = vmatprep.subr.bf16.mxu0 0
      %11957 = vmatpush1.bf16.msra.mxu0 %v9301
      %11958 = vmatprep.mubr.bf16.mxu0 %v2950
      %11959 = vmatmul.mubr.bf16.gmra.mrb[0].mxu0 %v2936
      %v11960 = vpop.f32.mrb[0].mxu0
      %v11961 = vadd.f32 %v11921, %v11960
      %v11962 = vpop.f32.mrb[0].mxu0
      %v11963 = vpop.f32.mrb[0].mxu0
      %v11964 = vpop.f32.mrb[0].mxu0
      %11965 = vdwg.mxu0
      %11966 = vmatprep.subr.bf16.mxu0 0
      %11967 = vmatpush1.bf16.msra.mxu0 %v9302
      %11968 = vmatprep.subr.bf16.mxu0 0
      %11969 = vmatpush1.bf16.msra.mxu0 %v9303
      %11970 = vmatprep.subr.bf16.mxu0 0
      %11971 = vmatpush1.bf16.msra.mxu0 %v9304
      %11972 = vmatprep.subr.bf16.mxu0 0
      %11973 = vmatpush1.bf16.msra.mxu0 %v9305
      %11974 = vmatprep.subr.bf16.mxu0 0
      %11975 = vmatpush1.bf16.msra.mxu0 %v9306
      %11976 = vmatprep.subr.bf16.mxu0 0
      %11977 = vmatpush1.bf16.msra.mxu0 %v9307
      %11978 = vmatprep.subr.bf16.mxu0 0
      %11979 = vmatpush1.bf16.msra.mxu0 %v9308
      %11980 = vmatprep.subr.bf16.mxu0 0
      %11981 = vmatpush1.bf16.msra.mxu0 %v9309
      %11982 = vmatprep.subr.bf16.mxu0 0
      %11983 = vmatpush1.bf16.msra.mxu0 %v9310
      %11984 = vmatprep.subr.bf16.mxu0 0
      %11985 = vmatpush1.bf16.msra.mxu0 %v9311
      %11986 = vmatprep.subr.bf16.mxu0 0
      %11987 = vmatpush1.bf16.msra.mxu0 %v9312
      %11988 = vmatprep.subr.bf16.mxu0 0
      %11989 = vmatpush1.bf16.msra.mxu0 %v9313
      %11990 = vmatprep.subr.bf16.mxu0 0
      %11991 = vmatpush1.bf16.msra.mxu0 %v9314
      %11992 = vmatprep.subr.bf16.mxu0 0
      %11993 = vmatpush1.bf16.msra.mxu0 %v9315
      %11994 = vmatprep.subr.bf16.mxu0 0
      %11995 = vmatpush1.bf16.msra.mxu0 %v9316
      %11996 = vmatprep.subr.bf16.mxu0 0
      %11997 = vmatpush1.bf16.msra.mxu0 %v9317
      %11998 = vmatprep.mubr.bf16.mxu0 %v2954
      %11999 = vmatmul.mubr.bf16.gmra.mrb[0].mxu0 %v2952
      %v12000 = vpop.f32.mrb[0].mxu0
      %v12001 = vadd.f32 %v11961, %v12000
      %v12002 = vpop.f32.mrb[0].mxu0
      %v12003 = vpop.f32.mrb[0].mxu0
      %v12004 = vpop.f32.mrb[0].mxu0
      %12005 = vdwg.mxu0
      %12006 = vmatprep.subr.bf16.mxu0 0
      %12007 = vmatpush1.bf16.msra.mxu0 %v9318
      %12008 = vmatprep.subr.bf16.mxu0 0
      %12009 = vmatpush1.bf16.msra.mxu0 %v9319
      %12010 = vmatprep.subr.bf16.mxu0 0
      %12011 = vmatpush1.bf16.msra.mxu0 %v9320
      %12012 = vmatprep.subr.bf16.mxu0 0
      %12013 = vmatpush1.bf16.msra.mxu0 %v9321
      %12014 = vmatprep.subr.bf16.mxu0 0
      %12015 = vmatpush1.bf16.msra.mxu0 %v9322
      %12016 = vmatprep.subr.bf16.mxu0 0
      %12017 = vmatpush1.bf16.msra.mxu0 %v9323
      %12018 = vmatprep.subr.bf16.mxu0 0
      %12019 = vmatpush1.bf16.msra.mxu0 %v9324
      %12020 = vmatprep.subr.bf16.mxu0 0
      %12021 = vmatpush1.bf16.msra.mxu0 %v9325
      %12022 = vmatprep.subr.bf16.mxu0 0
      %12023 = vmatpush1.bf16.msra.mxu0 %v9326
      %12024 = vmatprep.subr.bf16.mxu0 0
      %12025 = vmatpush1.bf16.msra.mxu0 %v9327
      %12026 = vmatprep.subr.bf16.mxu0 0
      %12027 = vmatpush1.bf16.msra.mxu0 %v9328
      %12028 = vmatprep.subr.bf16.mxu0 0
      %12029 = vmatpush1.bf16.msra.mxu0 %v9329
      %12030 = vmatprep.subr.bf16.mxu0 0
      %12031 = vmatpush1.bf16.msra.mxu0 %v9330
      %12032 = vmatprep.subr.bf16.mxu0 0
      %12033 = vmatpush1.bf16.msra.mxu0 %v9331
      %12034 = vmatprep.subr.bf16.mxu0 0
      %12035 = vmatpush1.bf16.msra.mxu0 %v9332
      %12036 = vmatprep.subr.bf16.mxu0 0
      %12037 = vmatpush1.bf16.msra.mxu0 %v9333
      %12038 = vmatprep.mubr.bf16.mxu0 %v2992
      %12039 = vmatmul.mubr.bf16.gmra.mrb[0].mxu0 %v2978
      %v12040 = vpop.f32.mrb[0].mxu0
      %v12041 = vadd.f32 %v12001, %v12040
      %v12042 = vpop.f32.mrb[0].mxu0
      %v12043 = vpop.f32.mrb[0].mxu0
      %v12044 = vpop.f32.mrb[0].mxu0
      %12045 = vdwg.mxu0
      %12046 = vmatprep.subr.bf16.mxu0 0
      %12047 = vmatpush1.bf16.msra.mxu0 %v9334
      %12048 = vmatprep.subr.bf16.mxu0 0
      %12049 = vmatpush1.bf16.msra.mxu0 %v9335
      %12050 = vmatprep.subr.bf16.mxu0 0
      %12051 = vmatpush1.bf16.msra.mxu0 %v9336
      %12052 = vmatprep.subr.bf16.mxu0 0
      %12053 = vmatpush1.bf16.msra.mxu0 %v9337
      %12054 = vmatprep.subr.bf16.mxu0 0
      %12055 = vmatpush1.bf16.msra.mxu0 %v9338
      %12056 = vmatprep.subr.bf16.mxu0 0
      %12057 = vmatpush1.bf16.msra.mxu0 %v9339
      %12058 = vmatprep.subr.bf16.mxu0 0
      %12059 = vmatpush1.bf16.msra.mxu0 %v9340
      %12060 = vmatprep.subr.bf16.mxu0 0
      %12061 = vmatpush1.bf16.msra.mxu0 %v9341
      %12062 = vmatprep.subr.bf16.mxu0 0
      %12063 = vmatpush1.bf16.msra.mxu0 %v9342
      %12064 = vmatprep.subr.bf16.mxu0 0
      %12065 = vmatpush1.bf16.msra.mxu0 %v9343
      %12066 = vmatprep.subr.bf16.mxu0 0
      %12067 = vmatpush1.bf16.msra.mxu0 %v9344
      %12068 = vmatprep.subr.bf16.mxu0 0
      %12069 = vmatpush1.bf16.msra.mxu0 %v9345
      %12070 = vmatprep.subr.bf16.mxu0 0
      %12071 = vmatpush1.bf16.msra.mxu0 %v9346
      %12072 = vmatprep.subr.bf16.mxu0 0
      %12073 = vmatpush1.bf16.msra.mxu0 %v9347
      %12074 = vmatprep.subr.bf16.mxu0 0
      %12075 = vmatpush1.bf16.msra.mxu0 %v9348
      %12076 = vmatprep.subr.bf16.mxu0 0
      %12077 = vmatpush1.bf16.msra.mxu0 %v9349
      %12078 = vmatprep.mubr.bf16.mxu0 %v3002
      %12079 = vmatmul.mubr.bf16.gmra.mrb[0].mxu0 %v3000
      %v12080 = vpop.f32.mrb[0].mxu0
      %v12081 = vadd.f32 %v12041, %v12080
      %v12082 = vpop.f32.mrb[0].mxu0
      %v12083 = vpop.f32.mrb[0].mxu0
      %v12084 = vpop.f32.mrb[0].mxu0
      %12085 = vdwg.mxu0
      %12086 = vmatprep.subr.bf16.mxu0 0
      %12087 = vmatpush1.bf16.msra.mxu0 %v9350
      %12088 = vmatprep.subr.bf16.mxu0 0
      %12089 = vmatpush1.bf16.msra.mxu0 %v9351
      %12090 = vmatprep.subr.bf16.mxu0 0
      %12091 = vmatpush1.bf16.msra.mxu0 %v9352
      %12092 = vmatprep.subr.bf16.mxu0 0
      %12093 = vmatpush1.bf16.msra.mxu0 %v9353
      %12094 = vmatprep.subr.bf16.mxu0 0
      %12095 = vmatpush1.bf16.msra.mxu0 %v9354
      %12096 = vmatprep.subr.bf16.mxu0 0
      %12097 = vmatpush1.bf16.msra.mxu0 %v9355
      %12098 = vmatprep.subr.bf16.mxu0 0
      %12099 = vmatpush1.bf16.msra.mxu0 %v9356
      %12100 = vmatprep.subr.bf16.mxu0 0
      %12101 = vmatpush1.bf16.msra.mxu0 %v9357
      %12102 = vmatprep.subr.bf16.mxu0 0
      %12103 = vmatpush1.bf16.msra.mxu0 %v9358
      %12104 = vmatprep.subr.bf16.mxu0 0
      %12105 = vmatpush1.bf16.msra.mxu0 %v9359
      %12106 = vmatprep.subr.bf16.mxu0 0
      %12107 = vmatpush1.bf16.msra.mxu0 %v9360
      %12108 = vmatprep.subr.bf16.mxu0 0
      %12109 = vmatpush1.bf16.msra.mxu0 %v9361
      %12110 = vmatprep.subr.bf16.mxu0 0
      %12111 = vmatpush1.bf16.msra.mxu0 %v9362
      %12112 = vmatprep.subr.bf16.mxu0 0
      %12113 = vmatpush1.bf16.msra.mxu0 %v9363
      %12114 = vmatprep.subr.bf16.mxu0 0
      %12115 = vmatpush1.bf16.msra.mxu0 %v9364
      %12116 = vmatprep.subr.bf16.mxu0 0
      %12117 = vmatpush1.bf16.msra.mxu0 %v9365
      %12118 = vmatprep.mubr.bf16.mxu0 %v2999
      %12119 = vmatmul.mubr.bf16.gmra.mrb[0].mxu0 %v2985
      %v12120 = vpop.f32.mrb[0].mxu0
      %v12121 = vadd.f32 %v12081, %v12120
      %v12122 = vpop.f32.mrb[0].mxu0
      %v12123 = vpop.f32.mrb[0].mxu0
      %v12124 = vpop.f32.mrb[0].mxu0
      %12125 = vdwg.mxu0
      %12126 = vmatprep.subr.bf16.mxu0 0
      %12127 = vmatpush1.bf16.msra.mxu0 %v9366
      %12128 = vmatprep.subr.bf16.mxu0 0
      %12129 = vmatpush1.bf16.msra.mxu0 %v9367
      %12130 = vmatprep.subr.bf16.mxu0 0
      %12131 = vmatpush1.bf16.msra.mxu0 %v9368
      %12132 = vmatprep.subr.bf16.mxu0 0
      %12133 = vmatpush1.bf16.msra.mxu0 %v9369
      %12134 = vmatprep.subr.bf16.mxu0 0
      %12135 = vmatpush1.bf16.msra.mxu0 %v9370
      %12136 = vmatprep.subr.bf16.mxu0 0
      %12137 = vmatpush1.bf16.msra.mxu0 %v9371
      %12138 = vmatprep.subr.bf16.mxu0 0
      %12139 = vmatpush1.bf16.msra.mxu0 %v9372
      %12140 = vmatprep.subr.bf16.mxu0 0
      %12141 = vmatpush1.bf16.msra.mxu0 %v9373
      %12142 = vmatprep.subr.bf16.mxu0 0
      %12143 = vmatpush1.bf16.msra.mxu0 %v9374
      %12144 = vmatprep.subr.bf16.mxu0 0
      %12145 = vmatpush1.bf16.msra.mxu0 %v9375
      %12146 = vmatprep.subr.bf16.mxu0 0
      %12147 = vmatpush1.bf16.msra.mxu0 %v9376
      %12148 = vmatprep.subr.bf16.mxu0 0
      %12149 = vmatpush1.bf16.msra.mxu0 %v9377
      %12150 = vmatprep.subr.bf16.mxu0 0
      %12151 = vmatpush1.bf16.msra.mxu0 %v9378
      %12152 = vmatprep.subr.bf16.mxu0 0
      %12153 = vmatpush1.bf16.msra.mxu0 %v9379
      %12154 = vmatprep.subr.bf16.mxu0 0
      %12155 = vmatpush1.bf16.msra.mxu0 %v9380
      %12156 = vmatprep.subr.bf16.mxu0 0
      %12157 = vmatpush1.bf16.msra.mxu0 %v9381
      %12158 = vmatprep.mubr.bf16.mxu0 %v3003
      %12159 = vmatmul.mubr.bf16.gmra.mrb[0].mxu0 %v3001
      %v12160 = vpop.f32.mrb[0].mxu0
      %v12161 = vadd.f32 %v12121, %v12160
      %v12162 = vpop.f32.mrb[0].mxu0
      %v12163 = vpop.f32.mrb[0].mxu0
      %v12164 = vpop.f32.mrb[0].mxu0
      %12165 = vdwg.mxu0
      %12166 = vmatprep.subr.bf16.mxu0 0
      %12167 = vmatpush1.bf16.msra.mxu0 %v9382
      %12168 = vmatprep.subr.bf16.mxu0 0
      %12169 = vmatpush1.bf16.msra.mxu0 %v9383
      %12170 = vmatprep.subr.bf16.mxu0 0
      %12171 = vmatpush1.bf16.msra.mxu0 %v9384
      %12172 = vmatprep.subr.bf16.mxu0 0
      %12173 = vmatpush1.bf16.msra.mxu0 %v9385
      %12174 = vmatprep.subr.bf16.mxu0 0
      %12175 = vmatpush1.bf16.msra.mxu0 %v9386
      %12176 = vmatprep.subr.bf16.mxu0 0
      %12177 = vmatpush1.bf16.msra.mxu0 %v9387
      %12178 = vmatprep.subr.bf16.mxu0 0
      %12179 = vmatpush1.bf16.msra.mxu0 %v9388
      %12180 = vmatprep.subr.bf16.mxu0 0
      %12181 = vmatpush1.bf16.msra.mxu0 %v9389
      %12182 = vmatprep.subr.bf16.mxu0 0
      %12183 = vmatpush1.bf16.msra.mxu0 %v9390
      %12184 = vmatprep.subr.bf16.mxu0 0
      %12185 = vmatpush1.bf16.msra.mxu0 %v9391
      %12186 = vmatprep.subr.bf16.mxu0 0
      %12187 = vmatpush1.bf16.msra.mxu0 %v9392
      %12188 = vmatprep.subr.bf16.mxu0 0
      %12189 = vmatpush1.bf16.msra.mxu0 %v9393
      %12190 = vmatprep.subr.bf16.mxu0 0
      %12191 = vmatpush1.bf16.msra.mxu0 %v9394
      %12192 = vmatprep.subr.bf16.mxu0 0
      %12193 = vmatpush1.bf16.msra.mxu0 %v9395
      %12194 = vmatprep.subr.bf16.mxu0 0
      %12195 = vmatpush1.bf16.msra.mxu0 %v9396
      %12196 = vmatprep.subr.bf16.mxu0 0
      %12197 = vmatpush1.bf16.msra.mxu0 %v9397
      %12198 = vmatprep.mubr.bf16.mxu0 %v3041
      %12199 = vmatmul.mubr.bf16.gmra.mrb[0].mxu0 %v3027
      %v12200 = vpop.f32.mrb[0].mxu0
      %v12201 = vadd.f32 %v12161, %v12200
      %v12202 = vpop.f32.mrb[0].mxu0
      %v12203 = vpop.f32.mrb[0].mxu0
      %v12204 = vpop.f32.mrb[0].mxu0
      %12205 = vdwg.mxu0
      %12206 = vmatprep.subr.bf16.mxu0 0
      %12207 = vmatpush1.bf16.msra.mxu0 %v9398
      %12208 = vmatprep.subr.bf16.mxu0 0
      %12209 = vmatpush1.bf16.msra.mxu0 %v9399
      %12210 = vmatprep.subr.bf16.mxu0 0
      %12211 = vmatpush1.bf16.msra.mxu0 %v9400
      %12212 = vmatprep.subr.bf16.mxu0 0
      %12213 = vmatpush1.bf16.msra.mxu0 %v9401
      %12214 = vmatprep.subr.bf16.mxu0 0
      %12215 = vmatpush1.bf16.msra.mxu0 %v9402
      %12216 = vmatprep.subr.bf16.mxu0 0
      %12217 = vmatpush1.bf16.msra.mxu0 %v9403
      %12218 = vmatprep.subr.bf16.mxu0 0
      %12219 = vmatpush1.bf16.msra.mxu0 %v9404
      %12220 = vmatprep.subr.bf16.mxu0 0
      %12221 = vmatpush1.bf16.msra.mxu0 %v9405
      %12222 = vmatprep.subr.bf16.mxu0 0
      %12223 = vmatpush1.bf16.msra.mxu0 %v9406
      %12224 = vmatprep.subr.bf16.mxu0 0
      %12225 = vmatpush1.bf16.msra.mxu0 %v9407
      %12226 = vmatprep.subr.bf16.mxu0 0
      %12227 = vmatpush1.bf16.msra.mxu0 %v9408
      %12228 = vmatprep.subr.bf16.mxu0 0
      %12229 = vmatpush1.bf16.msra.mxu0 %v9409
      %12230 = vmatprep.subr.bf16.mxu0 0
      %12231 = vmatpush1.bf16.msra.mxu0 %v9410
      %12232 = vmatprep.subr.bf16.mxu0 0
      %12233 = vmatpush1.bf16.msra.mxu0 %v9411
      %12234 = vmatprep.subr.bf16.mxu0 0
      %12235 = vmatpush1.bf16.msra.mxu0 %v9412
      %12236 = vmatprep.subr.bf16.mxu0 0
      %12237 = vmatpush1.bf16.msra.mxu0 %v9413
      %12238 = vmatprep.mubr.bf16.mxu0 %v3051
      %12239 = vmatmul.mubr.bf16.gmra.mrb[0].mxu0 %v3049
      %v12240 = vpop.f32.mrb[0].mxu0
      %v12241 = vadd.f32 %v12201, %v12240
      %v12242 = vpop.f32.mrb[0].mxu0
      %v12243 = vpop.f32.mrb[0].mxu0
      %v12244 = vpop.f32.mrb[0].mxu0
      %12245 = vdwg.mxu0
      %12246 = vmatprep.subr.bf16.mxu0 0
      %12247 = vmatpush1.bf16.msra.mxu0 %v9414
      %12248 = vmatprep.subr.bf16.mxu0 0
      %12249 = vmatpush1.bf16.msra.mxu0 %v9415
      %12250 = vmatprep.subr.bf16.mxu0 0
      %12251 = vmatpush1.bf16.msra.mxu0 %v9416
      %12252 = vmatprep.subr.bf16.mxu0 0
      %12253 = vmatpush1.bf16.msra.mxu0 %v9417
      %12254 = vmatprep.subr.bf16.mxu0 0
      %12255 = vmatpush1.bf16.msra.mxu0 %v9418
      %12256 = vmatprep.subr.bf16.mxu0 0
      %12257 = vmatpush1.bf16.msra.mxu0 %v9419
      %12258 = vmatprep.subr.bf16.mxu0 0
      %12259 = vmatpush1.bf16.msra.mxu0 %v9420
      %12260 = vmatprep.subr.bf16.mxu0 0
      %12261 = vmatpush1.bf16.msra.mxu0 %v9421
      %12262 = vmatprep.subr.bf16.mxu0 0
      %12263 = vmatpush1.bf16.msra.mxu0 %v9422
      %12264 = vmatprep.subr.bf16.mxu0 0
      %12265 = vmatpush1.bf16.msra.mxu0 %v9423
      %12266 = vmatprep.subr.bf16.mxu0 0
      %12267 = vmatpush1.bf16.msra.mxu0 %v9424
      %12268 = vmatprep.subr.bf16.mxu0 0
      %12269 = vmatpush1.bf16.msra.mxu0 %v9425
      %12270 = vmatprep.subr.bf16.mxu0 0
      %12271 = vmatpush1.bf16.msra.mxu0 %v9426
      %12272 = vmatprep.subr.bf16.mxu0 0
      %12273 = vmatpush1.bf16.msra.mxu0 %v9427
      %12274 = vmatprep.subr.bf16.mxu0 0
      %12275 = vmatpush1.bf16.msra.mxu0 %v9428
      %12276 = vmatprep.subr.bf16.mxu0 0
      %12277 = vmatpush1.bf16.msra.mxu0 %v9429
      %12278 = vmatprep.mubr.bf16.mxu0 %v3048
      %12279 = vmatmul.mubr.bf16.gmra.mrb[0].mxu0 %v3034
      %v12280 = vpop.f32.mrb[0].mxu0
      %v12281 = vadd.f32 %v12241, %v12280
      %v12282 = vpop.f32.mrb[0].mxu0
      %v12283 = vpop.f32.mrb[0].mxu0
      %v12284 = vpop.f32.mrb[0].mxu0
      %12285 = vdwg.mxu0
      %12286 = vmatprep.subr.bf16.mxu0 0
      %12287 = vmatpush1.bf16.msra.mxu0 %v9430
      %12288 = vmatprep.subr.bf16.mxu0 0
      %12289 = vmatpush1.bf16.msra.mxu0 %v9431
      %12290 = vmatprep.subr.bf16.mxu0 0
      %12291 = vmatpush1.bf16.msra.mxu0 %v9432
      %12292 = vmatprep.subr.bf16.mxu0 0
      %12293 = vmatpush1.bf16.msra.mxu0 %v9433
      %12294 = vmatprep.subr.bf16.mxu0 0
      %12295 = vmatpush1.bf16.msra.mxu0 %v9434
      %12296 = vmatprep.subr.bf16.mxu0 0
      %12297 = vmatpush1.bf16.msra.mxu0 %v9435
      %12298 = vmatprep.subr.bf16.mxu0 0
      %12299 = vmatpush1.bf16.msra.mxu0 %v9436
      %12300 = vmatprep.subr.bf16.mxu0 0
      %12301 = vmatpush1.bf16.msra.mxu0 %v9437
      %12302 = vmatprep.subr.bf16.mxu0 0
      %12303 = vmatpush1.bf16.msra.mxu0 %v9438
      %12304 = vmatprep.subr.bf16.mxu0 0
      %12305 = vmatpush1.bf16.msra.mxu0 %v9439
      %12306 = vmatprep.subr.bf16.mxu0 0
      %12307 = vmatpush1.bf16.msra.mxu0 %v9440
      %12308 = vmatprep.subr.bf16.mxu0 0
      %12309 = vmatpush1.bf16.msra.mxu0 %v9441
      %12310 = vmatprep.subr.bf16.mxu0 0
      %12311 = vmatpush1.bf16.msra.mxu0 %v9442
      %12312 = vmatprep.subr.bf16.mxu0 0
      %12313 = vmatpush1.bf16.msra.mxu0 %v9443
      %12314 = vmatprep.subr.bf16.mxu0 0
      %12315 = vmatpush1.bf16.msra.mxu0 %v9444
      %12316 = vmatprep.subr.bf16.mxu0 0
      %12317 = vmatpush1.bf16.msra.mxu0 %v9445
      %12318 = vmatprep.mubr.bf16.mxu0 %v3052
      %12319 = vmatmul.mubr.bf16.gmra.mrb[0].mxu0 %v3050
      %v12320 = vpop.f32.mrb[0].mxu0
      %v12321 = vadd.f32 %v12281, %v12320
      %v12322 = vpop.f32.mrb[0].mxu0
      %v12323 = vpop.f32.mrb[0].mxu0
      %v12324 = vpop.f32.mrb[0].mxu0
      %12325 = vdwg.mxu0
      %12326 = vmatprep.subr.bf16.mxu0 0
      %12327 = vmatpush1.bf16.msra.mxu0 %v9446
      %12328 = vmatprep.subr.bf16.mxu0 0
      %12329 = vmatpush1.bf16.msra.mxu0 %v9447
      %12330 = vmatprep.subr.bf16.mxu0 0
      %12331 = vmatpush1.bf16.msra.mxu0 %v9448
      %12332 = vmatprep.subr.bf16.mxu0 0
      %12333 = vmatpush1.bf16.msra.mxu0 %v9449
      %12334 = vmatprep.subr.bf16.mxu0 0
      %12335 = vmatpush1.bf16.msra.mxu0 %v9450
      %12336 = vmatprep.subr.bf16.mxu0 0
      %12337 = vmatpush1.bf16.msra.mxu0 %v9451
      %12338 = vmatprep.subr.bf16.mxu0 0
      %12339 = vmatpush1.bf16.msra.mxu0 %v9452
      %12340 = vmatprep.subr.bf16.mxu0 0
      %12341 = vmatpush1.bf16.msra.mxu0 %v9453
      %12342 = vmatprep.subr.bf16.mxu0 0
      %12343 = vmatpush1.bf16.msra.mxu0 %v9454
      %12344 = vmatprep.subr.bf16.mxu0 0
      %12345 = vmatpush1.bf16.msra.mxu0 %v9455
      %12346 = vmatprep.subr.bf16.mxu0 0
      %12347 = vmatpush1.bf16.msra.mxu0 %v9456
      %12348 = vmatprep.subr.bf16.mxu0 0
      %12349 = vmatpush1.bf16.msra.mxu0 %v9457
      %12350 = vmatprep.subr.bf16.mxu0 0
      %12351 = vmatpush1.bf16.msra.mxu0 %v9458
      %12352 = vmatprep.subr.bf16.mxu0 0
      %12353 = vmatpush1.bf16.msra.mxu0 %v9459
      %12354 = vmatprep.subr.bf16.mxu0 0
      %12355 = vmatpush1.bf16.msra.mxu0 %v9460
      %12356 = vmatprep.subr.bf16.mxu0 0
      %12357 = vmatpush1.bf16.msra.mxu0 %v9461
      %12358 = vmatprep.mubr.bf16.mxu0 %v3090
      %12359 = vmatmul.mubr.bf16.gmra.mrb[0].mxu0 %v3076
      %v12360 = vpop.f32.mrb[0].mxu0
      %v12361 = vadd.f32 %v12321, %v12360
      %v12362 = vpop.f32.mrb[0].mxu0
      %v12363 = vpop.f32.mrb[0].mxu0
      %v12364 = vpop.f32.mrb[0].mxu0
      %12365 = vdwg.mxu0
      %12366 = vmatprep.subr.bf16.mxu0 0
      %12367 = vmatpush1.bf16.msra.mxu0 %v9462
      %12368 = vmatprep.subr.bf16.mxu0 0
      %12369 = vmatpush1.bf16.msra.mxu0 %v9463
      %12370 = vmatprep.subr.bf16.mxu0 0
      %12371 = vmatpush1.bf16.msra.mxu0 %v9464
      %12372 = vmatprep.subr.bf16.mxu0 0
      %12373 = vmatpush1.bf16.msra.mxu0 %v9465
      %12374 = vmatprep.subr.bf16.mxu0 0
      %12375 = vmatpush1.bf16.msra.mxu0 %v9466
      %12376 = vmatprep.subr.bf16.mxu0 0
      %12377 = vmatpush1.bf16.msra.mxu0 %v9467
      %12378 = vmatprep.subr.bf16.mxu0 0
      %12379 = vmatpush1.bf16.msra.mxu0 %v9468
      %12380 = vmatprep.subr.bf16.mxu0 0
      %12381 = vmatpush1.bf16.msra.mxu0 %v9469
      %12382 = vmatprep.subr.bf16.mxu0 0
      %12383 = vmatpush1.bf16.msra.mxu0 %v9470
      %12384 = vmatprep.subr.bf16.mxu0 0
      %12385 = vmatpush1.bf16.msra.mxu0 %v9471
      %12386 = vmatprep.subr.bf16.mxu0 0
      %12387 = vmatpush1.bf16.msra.mxu0 %v9472
      %12388 = vmatprep.subr.bf16.mxu0 0
      %12389 = vmatpush1.bf16.msra.mxu0 %v9473
      %12390 = vmatprep.subr.bf16.mxu0 0
      %12391 = vmatpush1.bf16.msra.mxu0 %v9474
      %12392 = vmatprep.subr.bf16.mxu0 0
      %12393 = vmatpush1.bf16.msra.mxu0 %v9475
      %12394 = vmatprep.subr.bf16.mxu0 0
      %12395 = vmatpush1.bf16.msra.mxu0 %v9476
      %12396 = vmatprep.subr.bf16.mxu0 0
      %12397 = vmatpush1.bf16.msra.mxu0 %v9477
      %12398 = vmatprep.mubr.bf16.mxu0 %v3100
      %12399 = vmatmul.mubr.bf16.gmra.mrb[0].mxu0 %v3098
      %v12400 = vpop.f32.mrb[0].mxu0
      %v12401 = vadd.f32 %v12361, %v12400
      %v12402 = vpop.f32.mrb[0].mxu0
      %v12403 = vpop.f32.mrb[0].mxu0
      %v12404 = vpop.f32.mrb[0].mxu0
      %12405 = vdwg.mxu0
      %12406 = vmatprep.subr.bf16.mxu0 0
      %12407 = vmatpush1.bf16.msra.mxu0 %v9478
      %12408 = vmatprep.subr.bf16.mxu0 0
      %12409 = vmatpush1.bf16.msra.mxu0 %v9479
      %12410 = vmatprep.subr.bf16.mxu0 0
      %12411 = vmatpush1.bf16.msra.mxu0 %v9480
      %12412 = vmatprep.subr.bf16.mxu0 0
      %12413 = vmatpush1.bf16.msra.mxu0 %v9481
      %12414 = vmatprep.subr.bf16.mxu0 0
      %12415 = vmatpush1.bf16.msra.mxu0 %v9482
      %12416 = vmatprep.subr.bf16.mxu0 0
      %12417 = vmatpush1.bf16.msra.mxu0 %v9483
      %12418 = vmatprep.subr.bf16.mxu0 0
      %12419 = vmatpush1.bf16.msra.mxu0 %v9484
      %12420 = vmatprep.subr.bf16.mxu0 0
      %12421 = vmatpush1.bf16.msra.mxu0 %v9485
      %12422 = vmatprep.subr.bf16.mxu0 0
      %12423 = vmatpush1.bf16.msra.mxu0 %v9486
      %12424 = vmatprep.subr.bf16.mxu0 0
      %12425 = vmatpush1.bf16.msra.mxu0 %v9487
      %12426 = vmatprep.subr.bf16.mxu0 0
      %12427 = vmatpush1.bf16.msra.mxu0 %v9488
      %12428 = vmatprep.subr.bf16.mxu0 0
      %12429 = vmatpush1.bf16.msra.mxu0 %v9489
      %12430 = vmatprep.subr.bf16.mxu0 0
      %12431 = vmatpush1.bf16.msra.mxu0 %v9490
      %12432 = vmatprep.subr.bf16.mxu0 0
      %12433 = vmatpush1.bf16.msra.mxu0 %v9491
      %12434 = vmatprep.subr.bf16.mxu0 0
      %12435 = vmatpush1.bf16.msra.mxu0 %v9492
      %12436 = vmatprep.subr.bf16.mxu0 0
      %12437 = vmatpush1.bf16.msra.mxu0 %v9493
      %12438 = vmatprep.mubr.bf16.mxu0 %v3097
      %12439 = vmatmul.mubr.bf16.gmra.mrb[0].mxu0 %v3083
      %v12440 = vpop.f32.mrb[0].mxu0
      %v12441 = vadd.f32 %v12401, %v12440
      %v12442 = vpop.f32.mrb[0].mxu0
      %v12443 = vpop.f32.mrb[0].mxu0
      %v12444 = vpop.f32.mrb[0].mxu0
      %12445 = vdwg.mxu0
      %12446 = vmatprep.subr.bf16.mxu0 0
      %12447 = vmatpush1.bf16.msra.mxu0 %v9494
      %12448 = vmatprep.subr.bf16.mxu0 0
      %12449 = vmatpush1.bf16.msra.mxu0 %v9495
      %12450 = vmatprep.subr.bf16.mxu0 0
      %12451 = vmatpush1.bf16.msra.mxu0 %v9496
      %12452 = vmatprep.subr.bf16.mxu0 0
      %12453 = vmatpush1.bf16.msra.mxu0 %v9497
      %12454 = vmatprep.subr.bf16.mxu0 0
      %12455 = vmatpush1.bf16.msra.mxu0 %v9498
      %12456 = vmatprep.subr.bf16.mxu0 0
      %12457 = vmatpush1.bf16.msra.mxu0 %v9499
      %12458 = vmatprep.subr.bf16.mxu0 0
      %12459 = vmatpush1.bf16.msra.mxu0 %v9500
      %12460 = vmatprep.subr.bf16.mxu0 0
      %12461 = vmatpush1.bf16.msra.mxu0 %v9501
      %12462 = vmatprep.subr.bf16.mxu0 0
      %12463 = vmatpush1.bf16.msra.mxu0 %v9502
      %12464 = vmatprep.subr.bf16.mxu0 0
      %12465 = vmatpush1.bf16.msra.mxu0 %v9503
      %12466 = vmatprep.subr.bf16.mxu0 0
      %12467 = vmatpush1.bf16.msra.mxu0 %v9504
      %12468 = vmatprep.subr.bf16.mxu0 0
      %12469 = vmatpush1.bf16.msra.mxu0 %v9505
      %12470 = vmatprep.subr.bf16.mxu0 0
      %12471 = vmatpush1.bf16.msra.mxu0 %v9506
      %12472 = vmatprep.subr.bf16.mxu0 0
      %12473 = vmatpush1.bf16.msra.mxu0 %v9507
      %12474 = vmatprep.subr.bf16.mxu0 0
      %12475 = vmatpush1.bf16.msra.mxu0 %v9508
      %12476 = vmatprep.subr.bf16.mxu0 0
      %12477 = vmatpush1.bf16.msra.mxu0 %v9509
      %12478 = vmatprep.mubr.bf16.mxu0 %v3101
      %12479 = vmatmul.mubr.bf16.gmra.mrb[0].mxu0 %v3099
      %v12480 = vpop.f32.mrb[0].mxu0
      %v12481 = vadd.f32 %v12441, %v12480
      %v12482 = vpop.f32.mrb[0].mxu0
      %v12483 = vpop.f32.mrb[0].mxu0
      %v12484 = vpop.f32.mrb[0].mxu0
      %12485 = vdwg.mxu0
      %12486 = vmatprep.subr.bf16.mxu0 0
      %12487 = vmatpush1.bf16.msra.mxu0 %v9510
      %12488 = vmatprep.subr.bf16.mxu0 0
      %12489 = vmatpush1.bf16.msra.mxu0 %v9511
      %12490 = vmatprep.subr.bf16.mxu0 0
      %12491 = vmatpush1.bf16.msra.mxu0 %v9512
      %12492 = vmatprep.subr.bf16.mxu0 0
      %12493 = vmatpush1.bf16.msra.mxu0 %v9513
      %12494 = vmatprep.subr.bf16.mxu0 0
      %12495 = vmatpush1.bf16.msra.mxu0 %v9514
      %12496 = vmatprep.subr.bf16.mxu0 0
      %12497 = vmatpush1.bf16.msra.mxu0 %v9515
      %12498 = vmatprep.subr.bf16.mxu0 0
      %12499 = vmatpush1.bf16.msra.mxu0 %v9516
      %12500 = vmatprep.subr.bf16.mxu0 0
      %12501 = vmatpush1.bf16.msra.mxu0 %v9517
      %12502 = vmatprep.subr.bf16.mxu0 0
      %12503 = vmatpush1.bf16.msra.mxu0 %v9518
      %12504 = vmatprep.subr.bf16.mxu0 0
      %12505 = vmatpush1.bf16.msra.mxu0 %v9519
      %12506 = vmatprep.subr.bf16.mxu0 0
      %12507 = vmatpush1.bf16.msra.mxu0 %v9520
      %12508 = vmatprep.subr.bf16.mxu0 0
      %12509 = vmatpush1.bf16.msra.mxu0 %v9521
      %12510 = vmatprep.subr.bf16.mxu0 0
      %12511 = vmatpush1.bf16.msra.mxu0 %v9522
      %12512 = vmatprep.subr.bf16.mxu0 0
      %12513 = vmatpush1.bf16.msra.mxu0 %v9523
      %12514 = vmatprep.subr.bf16.mxu0 0
      %12515 = vmatpush1.bf16.msra.mxu0 %v9524
      %12516 = vmatprep.subr.bf16.mxu0 0
      %12517 = vmatpush1.bf16.msra.mxu0 %v9525
      %12518 = vmatprep.mubr.bf16.mxu0 %v3139
      %12519 = vmatmul.mubr.bf16.gmra.mrb[0].mxu0 %v3125
      %v12520 = vpop.f32.mrb[0].mxu0
      %v12521 = vadd.f32 %v12481, %v12520
      %v12522 = vpop.f32.mrb[0].mxu0
      %v12523 = vpop.f32.mrb[0].mxu0
      %v12524 = vpop.f32.mrb[0].mxu0
      %12525 = vdwg.mxu0
      %12526 = vmatprep.subr.bf16.mxu0 0
      %12527 = vmatpush1.bf16.msra.mxu0 %v9526
      %12528 = vmatprep.subr.bf16.mxu0 0
      %12529 = vmatpush1.bf16.msra.mxu0 %v9527
      %12530 = vmatprep.subr.bf16.mxu0 0
      %12531 = vmatpush1.bf16.msra.mxu0 %v9528
      %12532 = vmatprep.subr.bf16.mxu0 0
      %12533 = vmatpush1.bf16.msra.mxu0 %v9529
      %12534 = vmatprep.subr.bf16.mxu0 0
      %12535 = vmatpush1.bf16.msra.mxu0 %v9530
      %12536 = vmatprep.subr.bf16.mxu0 0
      %12537 = vmatpush1.bf16.msra.mxu0 %v9531
      %12538 = vmatprep.subr.bf16.mxu0 0
      %12539 = vmatpush1.bf16.msra.mxu0 %v9532
      %12540 = vmatprep.subr.bf16.mxu0 0
      %12541 = vmatpush1.bf16.msra.mxu0 %v9533
      %12542 = vmatprep.subr.bf16.mxu0 0
      %12543 = vmatpush1.bf16.msra.mxu0 %v9534
      %12544 = vmatprep.subr.bf16.mxu0 0
      %12545 = vmatpush1.bf16.msra.mxu0 %v9535
      %12546 = vmatprep.subr.bf16.mxu0 0
      %12547 = vmatpush1.bf16.msra.mxu0 %v9536
      %12548 = vmatprep.subr.bf16.mxu0 0
      %12549 = vmatpush1.bf16.msra.mxu0 %v9537
      %12550 = vmatprep.subr.bf16.mxu0 0
      %12551 = vmatpush1.bf16.msra.mxu0 %v9538
      %12552 = vmatprep.subr.bf16.mxu0 0
      %12553 = vmatpush1.bf16.msra.mxu0 %v9539
      %12554 = vmatprep.subr.bf16.mxu0 0
      %12555 = vmatpush1.bf16.msra.mxu0 %v9540
      %12556 = vmatprep.subr.bf16.mxu0 0
      %12557 = vmatpush1.bf16.msra.mxu0 %v9541
      %12558 = vmatprep.mubr.bf16.mxu0 %v3149
      %12559 = vmatmul.mubr.bf16.gmra.mrb[0].mxu0 %v3147
      %v12560 = vpop.f32.mrb[0].mxu0
      %v12561 = vadd.f32 %v12521, %v12560
      %v12562 = vpop.f32.mrb[0].mxu0
      %v12563 = vpop.f32.mrb[0].mxu0
      %v12564 = vpop.f32.mrb[0].mxu0
      %12565 = vdwg.mxu0
      %12566 = vmatprep.subr.bf16.mxu0 0
      %12567 = vmatpush1.bf16.msra.mxu0 %v9542
      %12568 = vmatprep.subr.bf16.mxu0 0
      %12569 = vmatpush1.bf16.msra.mxu0 %v9543
      %12570 = vmatprep.subr.bf16.mxu0 0
      %12571 = vmatpush1.bf16.msra.mxu0 %v9544
      %12572 = vmatprep.subr.bf16.mxu0 0
      %12573 = vmatpush1.bf16.msra.mxu0 %v9545
      %12574 = vmatprep.subr.bf16.mxu0 0
      %12575 = vmatpush1.bf16.msra.mxu0 %v9546
      %12576 = vmatprep.subr.bf16.mxu0 0
      %12577 = vmatpush1.bf16.msra.mxu0 %v9547
      %12578 = vmatprep.subr.bf16.mxu0 0
      %12579 = vmatpush1.bf16.msra.mxu0 %v9548
      %12580 = vmatprep.subr.bf16.mxu0 0
      %12581 = vmatpush1.bf16.msra.mxu0 %v9549
      %12582 = vmatprep.subr.bf16.mxu0 0
      %12583 = vmatpush1.bf16.msra.mxu0 %v9550
      %12584 = vmatprep.subr.bf16.mxu0 0
      %12585 = vmatpush1.bf16.msra.mxu0 %v9551
      %12586 = vmatprep.subr.bf16.mxu0 0
      %12587 = vmatpush1.bf16.msra.mxu0 %v9552
      %12588 = vmatprep.subr.bf16.mxu0 0
      %12589 = vmatpush1.bf16.msra.mxu0 %v9553
      %12590 = vmatprep.subr.bf16.mxu0 0
      %12591 = vmatpush1.bf16.msra.mxu0 %v9554
      %12592 = vmatprep.subr.bf16.mxu0 0
      %12593 = vmatpush1.bf16.msra.mxu0 %v9555
      %12594 = vmatprep.subr.bf16.mxu0 0
      %12595 = vmatpush1.bf16.msra.mxu0 %v9556
      %12596 = vmatprep.subr.bf16.mxu0 0
      %12597 = vmatpush1.bf16.msra.mxu0 %v9557
      %12598 = vmatprep.mubr.bf16.mxu0 %v3146
      %12599 = vmatmul.mubr.bf16.gmra.mrb[0].mxu0 %v3132
      %v12600 = vpop.f32.mrb[0].mxu0
      %v12601 = vadd.f32 %v12561, %v12600
      %v12602 = vpop.f32.mrb[0].mxu0
      %v12603 = vpop.f32.mrb[0].mxu0
      %v12604 = vpop.f32.mrb[0].mxu0
      %12605 = vdwg.mxu0
      %12606 = vmatprep.subr.bf16.mxu0 0
      %12607 = vmatpush1.bf16.msra.mxu0 %v9558
      %12608 = vmatprep.subr.bf16.mxu0 0
      %12609 = vmatpush1.bf16.msra.mxu0 %v9559
      %12610 = vmatprep.subr.bf16.mxu0 0
      %12611 = vmatpush1.bf16.msra.mxu0 %v9560
      %12612 = vmatprep.subr.bf16.mxu0 0
      %12613 = vmatpush1.bf16.msra.mxu0 %v9561
      %12614 = vmatprep.subr.bf16.mxu0 0
      %12615 = vmatpush1.bf16.msra.mxu0 %v9562
      %12616 = vmatprep.subr.bf16.mxu0 0
      %12617 = vmatpush1.bf16.msra.mxu0 %v9563
      %12618 = vmatprep.subr.bf16.mxu0 0
      %12619 = vmatpush1.bf16.msra.mxu0 %v9564
      %12620 = vmatprep.subr.bf16.mxu0 0
      %12621 = vmatpush1.bf16.msra.mxu0 %v9565
      %12622 = vmatprep.subr.bf16.mxu0 0
      %12623 = vmatpush1.bf16.msra.mxu0 %v9566
      %12624 = vmatprep.subr.bf16.mxu0 0
      %12625 = vmatpush1.bf16.msra.mxu0 %v9567
      %12626 = vmatprep.subr.bf16.mxu0 0
      %12627 = vmatpush1.bf16.msra.mxu0 %v9568
      %12628 = vmatprep.subr.bf16.mxu0 0
      %12629 = vmatpush1.bf16.msra.mxu0 %v9569
      %12630 = vmatprep.subr.bf16.mxu0 0
      %12631 = vmatpush1.bf16.msra.mxu0 %v9570
      %12632 = vmatprep.subr.bf16.mxu0 0
      %12633 = vmatpush1.bf16.msra.mxu0 %v9571
      %12634 = vmatprep.subr.bf16.mxu0 0
      %12635 = vmatpush1.bf16.msra.mxu0 %v9572
      %12636 = vmatprep.subr.bf16.mxu0 0
      %12637 = vmatpush1.bf16.msra.mxu0 %v9573
      %12638 = vmatprep.mubr.bf16.mxu0 %v3150
      %12639 = vmatmul.mubr.bf16.gmra.mrb[0].mxu0 %v3148
      %v12640 = vpop.f32.mrb[0].mxu0
      %v12641 = vadd.f32 %v12601, %v12640
      %v12642 = vpop.f32.mrb[0].mxu0
      %v12643 = vpop.f32.mrb[0].mxu0
      %v12644 = vpop.f32.mrb[0].mxu0
      %12645 = vdwg.mxu0
      %12646 = vmatprep.subr.bf16.mxu0 0
      %12647 = vmatpush1.bf16.msra.mxu0 %v9574
      %12648 = vmatprep.subr.bf16.mxu0 0
      %12649 = vmatpush1.bf16.msra.mxu0 %v9575
      %12650 = vmatprep.subr.bf16.mxu0 0
      %12651 = vmatpush1.bf16.msra.mxu0 %v9576
      %12652 = vmatprep.subr.bf16.mxu0 0
      %12653 = vmatpush1.bf16.msra.mxu0 %v9577
      %12654 = vmatprep.subr.bf16.mxu0 0
      %12655 = vmatpush1.bf16.msra.mxu0 %v9578
      %12656 = vmatprep.subr.bf16.mxu0 0
      %12657 = vmatpush1.bf16.msra.mxu0 %v9579
      %12658 = vmatprep.subr.bf16.mxu0 0
      %12659 = vmatpush1.bf16.msra.mxu0 %v9580
      %12660 = vmatprep.subr.bf16.mxu0 0
      %12661 = vmatpush1.bf16.msra.mxu0 %v9581
      %12662 = vmatprep.subr.bf16.mxu0 0
      %12663 = vmatpush1.bf16.msra.mxu0 %v9582
      %12664 = vmatprep.subr.bf16.mxu0 0
      %12665 = vmatpush1.bf16.msra.mxu0 %v9583
      %12666 = vmatprep.subr.bf16.mxu0 0
      %12667 = vmatpush1.bf16.msra.mxu0 %v9584
      %12668 = vmatprep.subr.bf16.mxu0 0
      %12669 = vmatpush1.bf16.msra.mxu0 %v9585
      %12670 = vmatprep.subr.bf16.mxu0 0
      %12671 = vmatpush1.bf16.msra.mxu0 %v9586
      %12672 = vmatprep.subr.bf16.mxu0 0
      %12673 = vmatpush1.bf16.msra.mxu0 %v9587
      %12674 = vmatprep.subr.bf16.mxu0 0
      %12675 = vmatpush1.bf16.msra.mxu0 %v9588
      %12676 = vmatprep.subr.bf16.mxu0 0
      %12677 = vmatpush1.bf16.msra.mxu0 %v9589
      %12678 = vmatprep.mubr.bf16.mxu0 %v3188
      %12679 = vmatmul.mubr.bf16.gmra.mrb[0].mxu0 %v3174
      %v12680 = vpop.f32.mrb[0].mxu0
      %v12681 = vadd.f32 %v12641, %v12680
      %v12682 = vpop.f32.mrb[0].mxu0
      %v12683 = vpop.f32.mrb[0].mxu0
      %v12684 = vpop.f32.mrb[0].mxu0
      %12685 = vdwg.mxu0
      %12686 = vmatprep.subr.bf16.mxu0 0
      %12687 = vmatpush1.bf16.msra.mxu0 %v9590
      %12688 = vmatprep.subr.bf16.mxu0 0
      %12689 = vmatpush1.bf16.msra.mxu0 %v9591
      %12690 = vmatprep.subr.bf16.mxu0 0
      %12691 = vmatpush1.bf16.msra.mxu0 %v9592
      %12692 = vmatprep.subr.bf16.mxu0 0
      %12693 = vmatpush1.bf16.msra.mxu0 %v9593
      %12694 = vmatprep.subr.bf16.mxu0 0
      %12695 = vmatpush1.bf16.msra.mxu0 %v9594
      %12696 = vmatprep.subr.bf16.mxu0 0
      %12697 = vmatpush1.bf16.msra.mxu0 %v9595
      %12698 = vmatprep.subr.bf16.mxu0 0
      %12699 = vmatpush1.bf16.msra.mxu0 %v9596
      %12700 = vmatprep.subr.bf16.mxu0 0
      %12701 = vmatpush1.bf16.msra.mxu0 %v9597
      %12702 = vmatprep.subr.bf16.mxu0 0
      %12703 = vmatpush1.bf16.msra.mxu0 %v9598
      %12704 = vmatprep.subr.bf16.mxu0 0
      %12705 = vmatpush1.bf16.msra.mxu0 %v9599
      %12706 = vmatprep.subr.bf16.mxu0 0
      %12707 = vmatpush1.bf16.msra.mxu0 %v9600
      %12708 = vmatprep.subr.bf16.mxu0 0
      %12709 = vmatpush1.bf16.msra.mxu0 %v9601
      %12710 = vmatprep.subr.bf16.mxu0 0
      %12711 = vmatpush1.bf16.msra.mxu0 %v9602
      %12712 = vmatprep.subr.bf16.mxu0 0
      %12713 = vmatpush1.bf16.msra.mxu0 %v9603
      %12714 = vmatprep.subr.bf16.mxu0 0
      %12715 = vmatpush1.bf16.msra.mxu0 %v9604
      %12716 = vmatprep.subr.bf16.mxu0 0
      %12717 = vmatpush1.bf16.msra.mxu0 %v9605
      %12718 = vmatprep.mubr.bf16.mxu0 %v3198
      %12719 = vmatmul.mubr.bf16.gmra.mrb[0].mxu0 %v3196
      %v12720 = vpop.f32.mrb[0].mxu0
      %v12721 = vadd.f32 %v12681, %v12720
      %v12722 = vpop.f32.mrb[0].mxu0
      %v12723 = vpop.f32.mrb[0].mxu0
      %v12724 = vpop.f32.mrb[0].mxu0
      %12725 = vdwg.mxu0
      %12726 = vmatprep.subr.bf16.mxu0 0
      %12727 = vmatpush1.bf16.msra.mxu0 %v9606
      %12728 = vmatprep.subr.bf16.mxu0 0
      %12729 = vmatpush1.bf16.msra.mxu0 %v9607
      %12730 = vmatprep.subr.bf16.mxu0 0
      %12731 = vmatpush1.bf16.msra.mxu0 %v9608
      %12732 = vmatprep.subr.bf16.mxu0 0
      %12733 = vmatpush1.bf16.msra.mxu0 %v9609
      %12734 = vmatprep.subr.bf16.mxu0 0
      %12735 = vmatpush1.bf16.msra.mxu0 %v9610
      %12736 = vmatprep.subr.bf16.mxu0 0
      %12737 = vmatpush1.bf16.msra.mxu0 %v9611
      %12738 = vmatprep.subr.bf16.mxu0 0
      %12739 = vmatpush1.bf16.msra.mxu0 %v9612
      %12740 = vmatprep.subr.bf16.mxu0 0
      %12741 = vmatpush1.bf16.msra.mxu0 %v9613
      %12742 = vmatprep.subr.bf16.mxu0 0
      %12743 = vmatpush1.bf16.msra.mxu0 %v9614
      %12744 = vmatprep.subr.bf16.mxu0 0
      %12745 = vmatpush1.bf16.msra.mxu0 %v9615
      %12746 = vmatprep.subr.bf16.mxu0 0
      %12747 = vmatpush1.bf16.msra.mxu0 %v9616
      %12748 = vmatprep.subr.bf16.mxu0 0
      %12749 = vmatpush1.bf16.msra.mxu0 %v9617
      %12750 = vmatprep.subr.bf16.mxu0 0
      %12751 = vmatpush1.bf16.msra.mxu0 %v9618
      %12752 = vmatprep.subr.bf16.mxu0 0
      %12753 = vmatpush1.bf16.msra.mxu0 %v9619
      %12754 = vmatprep.subr.bf16.mxu0 0
      %12755 = vmatpush1.bf16.msra.mxu0 %v9620
      %12756 = vmatprep.subr.bf16.mxu0 0
      %12757 = vmatpush1.bf16.msra.mxu0 %v9621
      %12758 = vmatprep.mubr.bf16.mxu0 %v3195
      %12759 = vmatmul.mubr.bf16.gmra.mrb[0].mxu0 %v3181
      %v12760 = vpop.f32.mrb[0].mxu0
      %v12761 = vadd.f32 %v12721, %v12760
      %v12762 = vpop.f32.mrb[0].mxu0
      %v12763 = vpop.f32.mrb[0].mxu0
      %v12764 = vpop.f32.mrb[0].mxu0
      %12765 = vdwg.mxu0
      %12766 = vmatprep.subr.bf16.mxu0 0
      %12767 = vmatpush1.bf16.msra.mxu0 %v9622
      %12768 = vmatprep.subr.bf16.mxu0 0
      %12769 = vmatpush1.bf16.msra.mxu0 %v9623
      %12770 = vmatprep.subr.bf16.mxu0 0
      %12771 = vmatpush1.bf16.msra.mxu0 %v9624
      %12772 = vmatprep.subr.bf16.mxu0 0
      %12773 = vmatpush1.bf16.msra.mxu0 %v9625
      %12774 = vmatprep.subr.bf16.mxu0 0
      %12775 = vmatpush1.bf16.msra.mxu0 %v9626
      %12776 = vmatprep.subr.bf16.mxu0 0
      %12777 = vmatpush1.bf16.msra.mxu0 %v9627
      %12778 = vmatprep.subr.bf16.mxu0 0
      %12779 = vmatpush1.bf16.msra.mxu0 %v9628
      %12780 = vmatprep.subr.bf16.mxu0 0
      %12781 = vmatpush1.bf16.msra.mxu0 %v9629
      %12782 = vmatprep.subr.bf16.mxu0 0
      %12783 = vmatpush1.bf16.msra.mxu0 %v9630
      %12784 = vmatprep.subr.bf16.mxu0 0
      %12785 = vmatpush1.bf16.msra.mxu0 %v9631
      %12786 = vmatprep.subr.bf16.mxu0 0
      %12787 = vmatpush1.bf16.msra.mxu0 %v9632
      %12788 = vmatprep.subr.bf16.mxu0 0
      %12789 = vmatpush1.bf16.msra.mxu0 %v9633
      %12790 = vmatprep.subr.bf16.mxu0 0
      %12791 = vmatpush1.bf16.msra.mxu0 %v9634
      %12792 = vmatprep.subr.bf16.mxu0 0
      %12793 = vmatpush1.bf16.msra.mxu0 %v9635
      %12794 = vmatprep.subr.bf16.mxu0 0
      %12795 = vmatpush1.bf16.msra.mxu0 %v9636
      %12796 = vmatprep.subr.bf16.mxu0 0
      %12797 = vmatpush1.bf16.msra.mxu0 %v9637
      %12798 = vmatprep.mubr.bf16.mxu0 %v3199
      %12799 = vmatmul.mubr.bf16.gmra.mrb[0].mxu0 %v3197
      %v12800 = vpop.f32.mrb[0].mxu0
      %v12801 = vadd.f32 %v12761, %v12800
      %v12802 = vpop.f32.mrb[0].mxu0
      %v12803 = vpop.f32.mrb[0].mxu0
      %v12804 = vpop.f32.mrb[0].mxu0
      %12805 = vdwg.mxu0
      %12806 = vmatprep.subr.bf16.mxu0 0
      %12807 = vmatpush1.bf16.msra.mxu0 %v9638
      %12808 = vmatprep.subr.bf16.mxu0 0
      %12809 = vmatpush1.bf16.msra.mxu0 %v9639
      %12810 = vmatprep.subr.bf16.mxu0 0
      %12811 = vmatpush1.bf16.msra.mxu0 %v9640
      %12812 = vmatprep.subr.bf16.mxu0 0
      %12813 = vmatpush1.bf16.msra.mxu0 %v9641
      %12814 = vmatprep.subr.bf16.mxu0 0
      %12815 = vmatpush1.bf16.msra.mxu0 %v9642
      %12816 = vmatprep.subr.bf16.mxu0 0
      %12817 = vmatpush1.bf16.msra.mxu0 %v9643
      %12818 = vmatprep.subr.bf16.mxu0 0
      %12819 = vmatpush1.bf16.msra.mxu0 %v9644
      %12820 = vmatprep.subr.bf16.mxu0 0
      %12821 = vmatpush1.bf16.msra.mxu0 %v9645
      %12822 = vmatprep.subr.bf16.mxu0 0
      %12823 = vmatpush1.bf16.msra.mxu0 %v9646
      %12824 = vmatprep.subr.bf16.mxu0 0
      %12825 = vmatpush1.bf16.msra.mxu0 %v9647
      %12826 = vmatprep.subr.bf16.mxu0 0
      %12827 = vmatpush1.bf16.msra.mxu0 %v9648
      %12828 = vmatprep.subr.bf16.mxu0 0
      %12829 = vmatpush1.bf16.msra.mxu0 %v9649
      %12830 = vmatprep.subr.bf16.mxu0 0
      %12831 = vmatpush1.bf16.msra.mxu0 %v9650
      %12832 = vmatprep.subr.bf16.mxu0 0
      %12833 = vmatpush1.bf16.msra.mxu0 %v9651
      %12834 = vmatprep.subr.bf16.mxu0 0
      %12835 = vmatpush1.bf16.msra.mxu0 %v9652
      %12836 = vmatprep.subr.bf16.mxu0 0
      %12837 = vmatpush1.bf16.msra.mxu0 %v9653
      %12838 = vmatprep.mubr.bf16.mxu0 %v3237
      %12839 = vmatmul.mubr.bf16.gmra.mrb[0].mxu0 %v3223
      %v12840 = vpop.f32.mrb[0].mxu0
      %v12841 = vadd.f32 %v12801, %v12840
      %v12842 = vpop.f32.mrb[0].mxu0
      %v12843 = vpop.f32.mrb[0].mxu0
      %v12844 = vpop.f32.mrb[0].mxu0
      %12845 = vdwg.mxu0
      %12846 = vmatprep.subr.bf16.mxu0 0
      %12847 = vmatpush1.bf16.msra.mxu0 %v9654
      %12848 = vmatprep.subr.bf16.mxu0 0
      %12849 = vmatpush1.bf16.msra.mxu0 %v9655
      %12850 = vmatprep.subr.bf16.mxu0 0
      %12851 = vmatpush1.bf16.msra.mxu0 %v9656
      %12852 = vmatprep.subr.bf16.mxu0 0
      %12853 = vmatpush1.bf16.msra.mxu0 %v9657
      %12854 = vmatprep.subr.bf16.mxu0 0
      %12855 = vmatpush1.bf16.msra.mxu0 %v9658
      %12856 = vmatprep.subr.bf16.mxu0 0
      %12857 = vmatpush1.bf16.msra.mxu0 %v9659
      %12858 = vmatprep.subr.bf16.mxu0 0
      %12859 = vmatpush1.bf16.msra.mxu0 %v9660
      %12860 = vmatprep.subr.bf16.mxu0 0
      %12861 = vmatpush1.bf16.msra.mxu0 %v9661
      %12862 = vmatprep.subr.bf16.mxu0 0
      %12863 = vmatpush1.bf16.msra.mxu0 %v9662
      %12864 = vmatprep.subr.bf16.mxu0 0
      %12865 = vmatpush1.bf16.msra.mxu0 %v9663
      %12866 = vmatprep.subr.bf16.mxu0 0
      %12867 = vmatpush1.bf16.msra.mxu0 %v9664
      %12868 = vmatprep.subr.bf16.mxu0 0
      %12869 = vmatpush1.bf16.msra.mxu0 %v9665
      %12870 = vmatprep.subr.bf16.mxu0 0
      %12871 = vmatpush1.bf16.msra.mxu0 %v9666
      %12872 = vmatprep.subr.bf16.mxu0 0
      %12873 = vmatpush1.bf16.msra.mxu0 %v9667
      %12874 = vmatprep.subr.bf16.mxu0 0
      %12875 = vmatpush1.bf16.msra.mxu0 %v9668
      %12876 = vmatprep.subr.bf16.mxu0 0
      %12877 = vmatpush1.bf16.msra.mxu0 %v9669
      %12878 = vmatprep.mubr.bf16.mxu0 %v3247
      %12879 = vmatmul.mubr.bf16.gmra.mrb[0].mxu0 %v3245
      %v12880 = vpop.f32.mrb[0].mxu0
      %v12881 = vadd.f32 %v12841, %v12880
      %v12882 = vpop.f32.mrb[0].mxu0
      %v12883 = vpop.f32.mrb[0].mxu0
      %v12884 = vpop.f32.mrb[0].mxu0
      %12885 = vdwg.mxu0
      %12886 = vmatprep.subr.bf16.mxu0 0
      %12887 = vmatpush1.bf16.msra.mxu0 %v9670
      %12888 = vmatprep.subr.bf16.mxu0 0
      %12889 = vmatpush1.bf16.msra.mxu0 %v9671
      %12890 = vmatprep.subr.bf16.mxu0 0
      %12891 = vmatpush1.bf16.msra.mxu0 %v9672
      %12892 = vmatprep.subr.bf16.mxu0 0
      %12893 = vmatpush1.bf16.msra.mxu0 %v9673
      %12894 = vmatprep.subr.bf16.mxu0 0
      %12895 = vmatpush1.bf16.msra.mxu0 %v9674
      %12896 = vmatprep.subr.bf16.mxu0 0
      %12897 = vmatpush1.bf16.msra.mxu0 %v9675
      %12898 = vmatprep.subr.bf16.mxu0 0
      %12899 = vmatpush1.bf16.msra.mxu0 %v9676
      %12900 = vmatprep.subr.bf16.mxu0 0
      %12901 = vmatpush1.bf16.msra.mxu0 %v9677
      %12902 = vmatprep.subr.bf16.mxu0 0
      %12903 = vmatpush1.bf16.msra.mxu0 %v9678
      %12904 = vmatprep.subr.bf16.mxu0 0
      %12905 = vmatpush1.bf16.msra.mxu0 %v9679
      %12906 = vmatprep.subr.bf16.mxu0 0
      %12907 = vmatpush1.bf16.msra.mxu0 %v9680
      %12908 = vmatprep.subr.bf16.mxu0 0
      %12909 = vmatpush1.bf16.msra.mxu0 %v9681
      %12910 = vmatprep.subr.bf16.mxu0 0
      %12911 = vmatpush1.bf16.msra.mxu0 %v9682
      %12912 = vmatprep.subr.bf16.mxu0 0
      %12913 = vmatpush1.bf16.msra.mxu0 %v9683
      %12914 = vmatprep.subr.bf16.mxu0 0
      %12915 = vmatpush1.bf16.msra.mxu0 %v9684
      %12916 = vmatprep.subr.bf16.mxu0 0
      %12917 = vmatpush1.bf16.msra.mxu0 %v9685
      %12918 = vmatprep.mubr.bf16.mxu0 %v3244
      %12919 = vmatmul.mubr.bf16.gmra.mrb[0].mxu0 %v3230
      %v12920 = vpop.f32.mrb[0].mxu0
      %v12921 = vadd.f32 %v12881, %v12920
      %v12922 = vpop.f32.mrb[0].mxu0
      %v12923 = vpop.f32.mrb[0].mxu0
      %v12924 = vpop.f32.mrb[0].mxu0
      %12925 = vdwg.mxu0
      %12926 = vmatprep.subr.bf16.mxu0 0
      %12927 = vmatpush1.bf16.msra.mxu0 %v9686
      %12928 = vmatprep.subr.bf16.mxu0 0
      %12929 = vmatpush1.bf16.msra.mxu0 %v9687
      %12930 = vmatprep.subr.bf16.mxu0 0
      %12931 = vmatpush1.bf16.msra.mxu0 %v9688
      %12932 = vmatprep.subr.bf16.mxu0 0
      %12933 = vmatpush1.bf16.msra.mxu0 %v9689
      %12934 = vmatprep.subr.bf16.mxu0 0
      %12935 = vmatpush1.bf16.msra.mxu0 %v9690
      %12936 = vmatprep.subr.bf16.mxu0 0
      %12937 = vmatpush1.bf16.msra.mxu0 %v9691
      %12938 = vmatprep.subr.bf16.mxu0 0
      %12939 = vmatpush1.bf16.msra.mxu0 %v9692
      %12940 = vmatprep.subr.bf16.mxu0 0
      %12941 = vmatpush1.bf16.msra.mxu0 %v9693
      %12942 = vmatprep.subr.bf16.mxu0 0
      %12943 = vmatpush1.bf16.msra.mxu0 %v9694
      %12944 = vmatprep.subr.bf16.mxu0 0
      %12945 = vmatpush1.bf16.msra.mxu0 %v9695
      %12946 = vmatprep.subr.bf16.mxu0 0
      %12947 = vmatpush1.bf16.msra.mxu0 %v9696
      %12948 = vmatprep.subr.bf16.mxu0 0
      %12949 = vmatpush1.bf16.msra.mxu0 %v9697
      %12950 = vmatprep.subr.bf16.mxu0 0
      %12951 = vmatpush1.bf16.msra.mxu0 %v9698
      %12952 = vmatprep.subr.bf16.mxu0 0
      %12953 = vmatpush1.bf16.msra.mxu0 %v9699
      %12954 = vmatprep.subr.bf16.mxu0 0
      %12955 = vmatpush1.bf16.msra.mxu0 %v9700
      %12956 = vmatprep.subr.bf16.mxu0 0
      %12957 = vmatpush1.bf16.msra.mxu0 %v9701
      %12958 = vmatprep.mubr.bf16.mxu0 %v3248
      %12959 = vmatmul.mubr.bf16.gmra.mrb[0].mxu0 %v3246
      %v12960 = vpop.f32.mrb[0].mxu0
      %v12961 = vadd.f32 %v12921, %v12960
      %v12962 = vpop.f32.mrb[0].mxu0
      %v12963 = vpop.f32.mrb[0].mxu0
      %v12964 = vpop.f32.mrb[0].mxu0
      %12965 = vdwg.mxu0
      %12966 = vmatprep.subr.bf16.mxu0 0
      %12967 = vmatpush1.bf16.msra.mxu0 %v9702
      %12968 = vmatprep.subr.bf16.mxu0 0
      %12969 = vmatpush1.bf16.msra.mxu0 %v9703
      %12970 = vmatprep.subr.bf16.mxu0 0
      %12971 = vmatpush1.bf16.msra.mxu0 %v9704
      %12972 = vmatprep.subr.bf16.mxu0 0
      %12973 = vmatpush1.bf16.msra.mxu0 %v9705
      %12974 = vmatprep.subr.bf16.mxu0 0
      %12975 = vmatpush1.bf16.msra.mxu0 %v9706
      %12976 = vmatprep.subr.bf16.mxu0 0
      %12977 = vmatpush1.bf16.msra.mxu0 %v9707
      %12978 = vmatprep.subr.bf16.mxu0 0
      %12979 = vmatpush1.bf16.msra.mxu0 %v9708
      %12980 = vmatprep.subr.bf16.mxu0 0
      %12981 = vmatpush1.bf16.msra.mxu0 %v9709
      %12982 = vmatprep.subr.bf16.mxu0 0
      %12983 = vmatpush1.bf16.msra.mxu0 %v9710
      %12984 = vmatprep.subr.bf16.mxu0 0
      %12985 = vmatpush1.bf16.msra.mxu0 %v9711
      %12986 = vmatprep.subr.bf16.mxu0 0
      %12987 = vmatpush1.bf16.msra.mxu0 %v9712
      %12988 = vmatprep.subr.bf16.mxu0 0
      %12989 = vmatpush1.bf16.msra.mxu0 %v9713
      %12990 = vmatprep.subr.bf16.mxu0 0
      %12991 = vmatpush1.bf16.msra.mxu0 %v9714
      %12992 = vmatprep.subr.bf16.mxu0 0
      %12993 = vmatpush1.bf16.msra.mxu0 %v9715
      %12994 = vmatprep.subr.bf16.mxu0 0
      %12995 = vmatpush1.bf16.msra.mxu0 %v9716
      %12996 = vmatprep.subr.bf16.mxu0 0
      %12997 = vmatpush1.bf16.msra.mxu0 %v9717
      %12998 = vmatprep.mubr.bf16.mxu0 %v3286
      %12999 = vmatmul.mubr.bf16.gmra.mrb[0].mxu0 %v3272
      %v13000 = vpop.f32.mrb[0].mxu0
      %v13001 = vadd.f32 %v12961, %v13000
      %v13002 = vpop.f32.mrb[0].mxu0
      %v13003 = vpop.f32.mrb[0].mxu0
      %v13004 = vpop.f32.mrb[0].mxu0
      %13005 = vdwg.mxu0
      %13006 = vmatprep.subr.bf16.mxu0 0
      %13007 = vmatpush1.bf16.msra.mxu0 %v9718
      %13008 = vmatprep.subr.bf16.mxu0 0
      %13009 = vmatpush1.bf16.msra.mxu0 %v9719
      %13010 = vmatprep.subr.bf16.mxu0 0
      %13011 = vmatpush1.bf16.msra.mxu0 %v9720
      %13012 = vmatprep.subr.bf16.mxu0 0
      %13013 = vmatpush1.bf16.msra.mxu0 %v9721
      %13014 = vmatprep.subr.bf16.mxu0 0
      %13015 = vmatpush1.bf16.msra.mxu0 %v9722
      %13016 = vmatprep.subr.bf16.mxu0 0
      %13017 = vmatpush1.bf16.msra.mxu0 %v9723
      %13018 = vmatprep.subr.bf16.mxu0 0
      %13019 = vmatpush1.bf16.msra.mxu0 %v9724
      %13020 = vmatprep.subr.bf16.mxu0 0
      %13021 = vmatpush1.bf16.msra.mxu0 %v9725
      %13022 = vmatprep.subr.bf16.mxu0 0
      %13023 = vmatpush1.bf16.msra.mxu0 %v9726
      %13024 = vmatprep.subr.bf16.mxu0 0
      %13025 = vmatpush1.bf16.msra.mxu0 %v9727
      %13026 = vmatprep.subr.bf16.mxu0 0
      %13027 = vmatpush1.bf16.msra.mxu0 %v9728
      %13028 = vmatprep.subr.bf16.mxu0 0
      %13029 = vmatpush1.bf16.msra.mxu0 %v9729
      %13030 = vmatprep.subr.bf16.mxu0 0
      %13031 = vmatpush1.bf16.msra.mxu0 %v9730
      %13032 = vmatprep.subr.bf16.mxu0 0
      %13033 = vmatpush1.bf16.msra.mxu0 %v9731
      %13034 = vmatprep.subr.bf16.mxu0 0
      %13035 = vmatpush1.bf16.msra.mxu0 %v9732
      %13036 = vmatprep.subr.bf16.mxu0 0
      %13037 = vmatpush1.bf16.msra.mxu0 %v9733
      %13038 = vmatprep.mubr.bf16.mxu0 %v3296
      %13039 = vmatmul.mubr.bf16.gmra.mrb[0].mxu0 %v3294
      %v13040 = vpop.f32.mrb[0].mxu0
      %v13041 = vadd.f32 %v13001, %v13040
      %v13042 = vpop.f32.mrb[0].mxu0
      %v13043 = vpop.f32.mrb[0].mxu0
      %v13044 = vpop.f32.mrb[0].mxu0
      %13045 = vdwg.mxu0
      %13046 = vmatprep.subr.bf16.mxu0 0
      %13047 = vmatpush1.bf16.msra.mxu0 %v9734
      %13048 = vmatprep.subr.bf16.mxu0 0
      %13049 = vmatpush1.bf16.msra.mxu0 %v9735
      %13050 = vmatprep.subr.bf16.mxu0 0
      %13051 = vmatpush1.bf16.msra.mxu0 %v9736
      %13052 = vmatprep.subr.bf16.mxu0 0
      %13053 = vmatpush1.bf16.msra.mxu0 %v9737
      %13054 = vmatprep.subr.bf16.mxu0 0
      %13055 = vmatpush1.bf16.msra.mxu0 %v9738
      %13056 = vmatprep.subr.bf16.mxu0 0
      %13057 = vmatpush1.bf16.msra.mxu0 %v9739
      %13058 = vmatprep.subr.bf16.mxu0 0
      %13059 = vmatpush1.bf16.msra.mxu0 %v9740
      %13060 = vmatprep.subr.bf16.mxu0 0
      %13061 = vmatpush1.bf16.msra.mxu0 %v9741
      %13062 = vmatprep.subr.bf16.mxu0 0
      %13063 = vmatpush1.bf16.msra.mxu0 %v9742
      %13064 = vmatprep.subr.bf16.mxu0 0
      %13065 = vmatpush1.bf16.msra.mxu0 %v9743
      %13066 = vmatprep.subr.bf16.mxu0 0
      %13067 = vmatpush1.bf16.msra.mxu0 %v9744
      %13068 = vmatprep.subr.bf16.mxu0 0
      %13069 = vmatpush1.bf16.msra.mxu0 %v9745
      %13070 = vmatprep.subr.bf16.mxu0 0
      %13071 = vmatpush1.bf16.msra.mxu0 %v9746
      %13072 = vmatprep.subr.bf16.mxu0 0
      %13073 = vmatpush1.bf16.msra.mxu0 %v9747
      %13074 = vmatprep.subr.bf16.mxu0 0
      %13075 = vmatpush1.bf16.msra.mxu0 %v9748
      %13076 = vmatprep.subr.bf16.mxu0 0
      %13077 = vmatpush1.bf16.msra.mxu0 %v9749
      %13078 = vmatprep.mubr.bf16.mxu0 %v3293
      %13079 = vmatmul.mubr.bf16.gmra.mrb[0].mxu0 %v3279
      %v13080 = vpop.f32.mrb[0].mxu0
      %v13081 = vadd.f32 %v13041, %v13080
      %v13082 = vpop.f32.mrb[0].mxu0
      %v13083 = vpop.f32.mrb[0].mxu0
      %v13084 = vpop.f32.mrb[0].mxu0
      %13085 = vdwg.mxu0
      %13086 = vmatprep.subr.bf16.mxu0 0
      %13087 = vmatpush1.bf16.msra.mxu0 %v9750
      %13088 = vmatprep.subr.bf16.mxu0 0
      %13089 = vmatpush1.bf16.msra.mxu0 %v9751
      %13090 = vmatprep.subr.bf16.mxu0 0
      %13091 = vmatpush1.bf16.msra.mxu0 %v9752
      %13092 = vmatprep.subr.bf16.mxu0 0
      %13093 = vmatpush1.bf16.msra.mxu0 %v9753
      %13094 = vmatprep.subr.bf16.mxu0 0
      %13095 = vmatpush1.bf16.msra.mxu0 %v9754
      %13096 = vmatprep.subr.bf16.mxu0 0
      %13097 = vmatpush1.bf16.msra.mxu0 %v9755
      %13098 = vmatprep.subr.bf16.mxu0 0
      %13099 = vmatpush1.bf16.msra.mxu0 %v9756
      %13100 = vmatprep.subr.bf16.mxu0 0
      %13101 = vmatpush1.bf16.msra.mxu0 %v9757
      %13102 = vmatprep.subr.bf16.mxu0 0
      %13103 = vmatpush1.bf16.msra.mxu0 %v9758
      %13104 = vmatprep.subr.bf16.mxu0 0
      %13105 = vmatpush1.bf16.msra.mxu0 %v9759
      %13106 = vmatprep.subr.bf16.mxu0 0
      %13107 = vmatpush1.bf16.msra.mxu0 %v9760
      %13108 = vmatprep.subr.bf16.mxu0 0
      %13109 = vmatpush1.bf16.msra.mxu0 %v9761
      %13110 = vmatprep.subr.bf16.mxu0 0
      %13111 = vmatpush1.bf16.msra.mxu0 %v9762
      %13112 = vmatprep.subr.bf16.mxu0 0
      %13113 = vmatpush1.bf16.msra.mxu0 %v9763
      %13114 = vmatprep.subr.bf16.mxu0 0
      %13115 = vmatpush1.bf16.msra.mxu0 %v9764
      %13116 = vmatprep.subr.bf16.mxu0 0
      %13117 = vmatpush1.bf16.msra.mxu0 %v9765
      %13118 = vmatprep.mubr.bf16.mxu0 %v3297
      %13119 = vmatmul.mubr.bf16.gmra.mrb[0].mxu0 %v3295
      %v13120 = vpop.f32.mrb[0].mxu0
      %v13121 = vadd.f32 %v13081, %v13120
      %v13122 = vpop.f32.mrb[0].mxu0
      %v13123 = vpop.f32.mrb[0].mxu0
      %v13124 = vpop.f32.mrb[0].mxu0
      %13125 = vdwg.mxu0
      %13126 = vmatprep.subr.bf16.mxu0 0
      %13127 = vmatpush1.bf16.msra.mxu0 %v9766
      %13128 = vmatprep.subr.bf16.mxu0 0
      %13129 = vmatpush1.bf16.msra.mxu0 %v9767
      %13130 = vmatprep.subr.bf16.mxu0 0
      %13131 = vmatpush1.bf16.msra.mxu0 %v9768
      %13132 = vmatprep.subr.bf16.mxu0 0
      %13133 = vmatpush1.bf16.msra.mxu0 %v9769
      %13134 = vmatprep.subr.bf16.mxu0 0
      %13135 = vmatpush1.bf16.msra.mxu0 %v9770
      %13136 = vmatprep.subr.bf16.mxu0 0
      %13137 = vmatpush1.bf16.msra.mxu0 %v9771
      %13138 = vmatprep.subr.bf16.mxu0 0
      %13139 = vmatpush1.bf16.msra.mxu0 %v9772
      %13140 = vmatprep.subr.bf16.mxu0 0
      %13141 = vmatpush1.bf16.msra.mxu0 %v9773
      %13142 = vmatprep.subr.bf16.mxu0 0
      %13143 = vmatpush1.bf16.msra.mxu0 %v9774
      %13144 = vmatprep.subr.bf16.mxu0 0
      %13145 = vmatpush1.bf16.msra.mxu0 %v9775
      %13146 = vmatprep.subr.bf16.mxu0 0
      %13147 = vmatpush1.bf16.msra.mxu0 %v9776
      %13148 = vmatprep.subr.bf16.mxu0 0
      %13149 = vmatpush1.bf16.msra.mxu0 %v9777
      %13150 = vmatprep.subr.bf16.mxu0 0
      %13151 = vmatpush1.bf16.msra.mxu0 %v9778
      %13152 = vmatprep.subr.bf16.mxu0 0
      %13153 = vmatpush1.bf16.msra.mxu0 %v9779
      %13154 = vmatprep.subr.bf16.mxu0 0
      %13155 = vmatpush1.bf16.msra.mxu0 %v9780
      %13156 = vmatprep.subr.bf16.mxu0 0
      %13157 = vmatpush1.bf16.msra.mxu0 %v9781
      %13158 = vmatprep.mubr.bf16.mxu0 %v3335
      %13159 = vmatmul.mubr.bf16.gmra.mrb[0].mxu0 %v3321
      %v13160 = vpop.f32.mrb[0].mxu0
      %v13161 = vadd.f32 %v13121, %v13160
      %v13162 = vpop.f32.mrb[0].mxu0
      %v13163 = vpop.f32.mrb[0].mxu0
      %v13164 = vpop.f32.mrb[0].mxu0
      %13165 = vdwg.mxu0
      %13166 = vmatprep.subr.bf16.mxu0 0
      %13167 = vmatpush1.bf16.msra.mxu0 %v9782
      %13168 = vmatprep.subr.bf16.mxu0 0
      %13169 = vmatpush1.bf16.msra.mxu0 %v9783
      %13170 = vmatprep.subr.bf16.mxu0 0
      %13171 = vmatpush1.bf16.msra.mxu0 %v9784
      %13172 = vmatprep.subr.bf16.mxu0 0
      %13173 = vmatpush1.bf16.msra.mxu0 %v9785
      %13174 = vmatprep.subr.bf16.mxu0 0
      %13175 = vmatpush1.bf16.msra.mxu0 %v9786
      %13176 = vmatprep.subr.bf16.mxu0 0
      %13177 = vmatpush1.bf16.msra.mxu0 %v9787
      %13178 = vmatprep.subr.bf16.mxu0 0
      %13179 = vmatpush1.bf16.msra.mxu0 %v9788
      %13180 = vmatprep.subr.bf16.mxu0 0
      %13181 = vmatpush1.bf16.msra.mxu0 %v9789
      %13182 = vmatprep.subr.bf16.mxu0 0
      %13183 = vmatpush1.bf16.msra.mxu0 %v9790
      %13184 = vmatprep.subr.bf16.mxu0 0
      %13185 = vmatpush1.bf16.msra.mxu0 %v9791
      %13186 = vmatprep.subr.bf16.mxu0 0
      %13187 = vmatpush1.bf16.msra.mxu0 %v9792
      %13188 = vmatprep.subr.bf16.mxu0 0
      %13189 = vmatpush1.bf16.msra.mxu0 %v9793
      %13190 = vmatprep.subr.bf16.mxu0 0
      %13191 = vmatpush1.bf16.msra.mxu0 %v9794
      %13192 = vmatprep.subr.bf16.mxu0 0
      %13193 = vmatpush1.bf16.msra.mxu0 %v9795
      %13194 = vmatprep.subr.bf16.mxu0 0
      %13195 = vmatpush1.bf16.msra.mxu0 %v9796
      %13196 = vmatprep.subr.bf16.mxu0 0
      %13197 = vmatpush1.bf16.msra.mxu0 %v9797
      %13198 = vmatprep.mubr.bf16.mxu0 %v3345
      %13199 = vmatmul.mubr.bf16.gmra.mrb[0].mxu0 %v3343
      %v13200 = vpop.f32.mrb[0].mxu0
      %v13201 = vadd.f32 %v13161, %v13200
      %v13202 = vpop.f32.mrb[0].mxu0
      %v13203 = vpop.f32.mrb[0].mxu0
      %v13204 = vpop.f32.mrb[0].mxu0
      %13205 = vdwg.mxu0
      %13206 = vmatprep.subr.bf16.mxu0 0
      %13207 = vmatpush1.bf16.msra.mxu0 %v9798
      %13208 = vmatprep.subr.bf16.mxu0 0
      %13209 = vmatpush1.bf16.msra.mxu0 %v9799
      %13210 = vmatprep.subr.bf16.mxu0 0
      %13211 = vmatpush1.bf16.msra.mxu0 %v9800
      %13212 = vmatprep.subr.bf16.mxu0 0
      %13213 = vmatpush1.bf16.msra.mxu0 %v9801
      %13214 = vmatprep.subr.bf16.mxu0 0
      %13215 = vmatpush1.bf16.msra.mxu0 %v9802
      %13216 = vmatprep.subr.bf16.mxu0 0
      %13217 = vmatpush1.bf16.msra.mxu0 %v9803
      %13218 = vmatprep.subr.bf16.mxu0 0
      %13219 = vmatpush1.bf16.msra.mxu0 %v9804
      %13220 = vmatprep.subr.bf16.mxu0 0
      %13221 = vmatpush1.bf16.msra.mxu0 %v9805
      %13222 = vmatprep.subr.bf16.mxu0 0
      %13223 = vmatpush1.bf16.msra.mxu0 %v9806
      %13224 = vmatprep.subr.bf16.mxu0 0
      %13225 = vmatpush1.bf16.msra.mxu0 %v9807
      %13226 = vmatprep.subr.bf16.mxu0 0
      %13227 = vmatpush1.bf16.msra.mxu0 %v9808
      %13228 = vmatprep.subr.bf16.mxu0 0
      %13229 = vmatpush1.bf16.msra.mxu0 %v9809
      %13230 = vmatprep.subr.bf16.mxu0 0
      %13231 = vmatpush1.bf16.msra.mxu0 %v9810
      %13232 = vmatprep.subr.bf16.mxu0 0
      %13233 = vmatpush1.bf16.msra.mxu0 %v9811
      %13234 = vmatprep.subr.bf16.mxu0 0
      %13235 = vmatpush1.bf16.msra.mxu0 %v9812
      %13236 = vmatprep.subr.bf16.mxu0 0
      %13237 = vmatpush1.bf16.msra.mxu0 %v9813
      %13238 = vmatprep.mubr.bf16.mxu0 %v3342
      %13239 = vmatmul.mubr.bf16.gmra.mrb[0].mxu0 %v3328
      %v13240 = vpop.f32.mrb[0].mxu0
      %v13241 = vadd.f32 %v13201, %v13240
      %v13242 = vpop.f32.mrb[0].mxu0
      %v13243 = vpop.f32.mrb[0].mxu0
      %v13244 = vpop.f32.mrb[0].mxu0
      %13245 = vdwg.mxu0
      %13246 = vmatprep.subr.bf16.mxu0 0
      %13247 = vmatpush1.bf16.msra.mxu0 %v9814
      %13248 = vmatprep.subr.bf16.mxu0 0
      %13249 = vmatpush1.bf16.msra.mxu0 %v9815
      %13250 = vmatprep.subr.bf16.mxu0 0
      %13251 = vmatpush1.bf16.msra.mxu0 %v9816
      %13252 = vmatprep.subr.bf16.mxu0 0
      %13253 = vmatpush1.bf16.msra.mxu0 %v9817
      %13254 = vmatprep.subr.bf16.mxu0 0
      %13255 = vmatpush1.bf16.msra.mxu0 %v9818
      %13256 = vmatprep.subr.bf16.mxu0 0
      %13257 = vmatpush1.bf16.msra.mxu0 %v9819
      %13258 = vmatprep.subr.bf16.mxu0 0
      %13259 = vmatpush1.bf16.msra.mxu0 %v9820
      %13260 = vmatprep.subr.bf16.mxu0 0
      %13261 = vmatpush1.bf16.msra.mxu0 %v9821
      %13262 = vmatprep.subr.bf16.mxu0 0
      %13263 = vmatpush1.bf16.msra.mxu0 %v9822
      %13264 = vmatprep.subr.bf16.mxu0 0
      %13265 = vmatpush1.bf16.msra.mxu0 %v9823
      %13266 = vmatprep.subr.bf16.mxu0 0
      %13267 = vmatpush1.bf16.msra.mxu0 %v9824
      %13268 = vmatprep.subr.bf16.mxu0 0
      %13269 = vmatpush1.bf16.msra.mxu0 %v9825
      %13270 = vmatprep.subr.bf16.mxu0 0
      %13271 = vmatpush1.bf16.msra.mxu0 %v9826
      %13272 = vmatprep.subr.bf16.mxu0 0
      %13273 = vmatpush1.bf16.msra.mxu0 %v9827
      %13274 = vmatprep.subr.bf16.mxu0 0
      %13275 = vmatpush1.bf16.msra.mxu0 %v9828
      %13276 = vmatprep.subr.bf16.mxu0 0
      %13277 = vmatpush1.bf16.msra.mxu0 %v9829
      %13278 = vmatprep.mubr.bf16.mxu0 %v3346
      %13279 = vmatmul.mubr.bf16.gmra.mrb[0].mxu0 %v3344
      %v13280 = vpop.f32.mrb[0].mxu0
      %v13281 = vadd.f32 %v13241, %v13280
      %v13282 = vpop.f32.mrb[0].mxu0
      %v13283 = vpop.f32.mrb[0].mxu0
      %v13284 = vpop.f32.mrb[0].mxu0
      %13285 = vdwg.mxu0
      %13286 = vmatprep.subr.bf16.mxu0 0
      %13287 = vmatpush1.bf16.msra.mxu0 %v9830
      %13288 = vmatprep.subr.bf16.mxu0 0
      %13289 = vmatpush1.bf16.msra.mxu0 %v9831
      %13290 = vmatprep.subr.bf16.mxu0 0
      %13291 = vmatpush1.bf16.msra.mxu0 %v9832
      %13292 = vmatprep.subr.bf16.mxu0 0
      %13293 = vmatpush1.bf16.msra.mxu0 %v9833
      %13294 = vmatprep.subr.bf16.mxu0 0
      %13295 = vmatpush1.bf16.msra.mxu0 %v9834
      %13296 = vmatprep.subr.bf16.mxu0 0
      %13297 = vmatpush1.bf16.msra.mxu0 %v9835
      %13298 = vmatprep.subr.bf16.mxu0 0
      %13299 = vmatpush1.bf16.msra.mxu0 %v9836
      %13300 = vmatprep.subr.bf16.mxu0 0
      %13301 = vmatpush1.bf16.msra.mxu0 %v9837
      %13302 = vmatprep.subr.bf16.mxu0 0
      %13303 = vmatpush1.bf16.msra.mxu0 %v9838
      %13304 = vmatprep.subr.bf16.mxu0 0
      %13305 = vmatpush1.bf16.msra.mxu0 %v9839
      %13306 = vmatprep.subr.bf16.mxu0 0
      %13307 = vmatpush1.bf16.msra.mxu0 %v9840
      %13308 = vmatprep.subr.bf16.mxu0 0
      %13309 = vmatpush1.bf16.msra.mxu0 %v9841
      %13310 = vmatprep.subr.bf16.mxu0 0
      %13311 = vmatpush1.bf16.msra.mxu0 %v9842
      %13312 = vmatprep.subr.bf16.mxu0 0
      %13313 = vmatpush1.bf16.msra.mxu0 %v9843
      %13314 = vmatprep.subr.bf16.mxu0 0
      %13315 = vmatpush1.bf16.msra.mxu0 %v9844
      %13316 = vmatprep.subr.bf16.mxu0 0
      %13317 = vmatpush1.bf16.msra.mxu0 %v9845
      %13318 = vmatprep.mubr.bf16.mxu0 %v3384
      %13319 = vmatmul.mubr.bf16.gmra.mrb[0].mxu0 %v3370
      %v13320 = vpop.f32.mrb[0].mxu0
      %v13321 = vadd.f32 %v13281, %v13320
      %v13322 = vpop.f32.mrb[0].mxu0
      %v13323 = vpop.f32.mrb[0].mxu0
      %v13324 = vpop.f32.mrb[0].mxu0
      %13325 = vdwg.mxu0
      %13326 = vmatprep.subr.bf16.mxu0 0
      %13327 = vmatpush1.bf16.msra.mxu0 %v9846
      %13328 = vmatprep.subr.bf16.mxu0 0
      %13329 = vmatpush1.bf16.msra.mxu0 %v9847
      %13330 = vmatprep.subr.bf16.mxu0 0
      %13331 = vmatpush1.bf16.msra.mxu0 %v9848
      %13332 = vmatprep.subr.bf16.mxu0 0
      %13333 = vmatpush1.bf16.msra.mxu0 %v9849
      %13334 = vmatprep.subr.bf16.mxu0 0
      %13335 = vmatpush1.bf16.msra.mxu0 %v9850
      %13336 = vmatprep.subr.bf16.mxu0 0
      %13337 = vmatpush1.bf16.msra.mxu0 %v9851
      %13338 = vmatprep.subr.bf16.mxu0 0
      %13339 = vmatpush1.bf16.msra.mxu0 %v9852
      %13340 = vmatprep.subr.bf16.mxu0 0
      %13341 = vmatpush1.bf16.msra.mxu0 %v9853
      %13342 = vmatprep.subr.bf16.mxu0 0
      %13343 = vmatpush1.bf16.msra.mxu0 %v9854
      %13344 = vmatprep.subr.bf16.mxu0 0
      %13345 = vmatpush1.bf16.msra.mxu0 %v9855
      %13346 = vmatprep.subr.bf16.mxu0 0
      %13347 = vmatpush1.bf16.msra.mxu0 %v9856
      %13348 = vmatprep.subr.bf16.mxu0 0
      %13349 = vmatpush1.bf16.msra.mxu0 %v9857
      %13350 = vmatprep.subr.bf16.mxu0 0
      %13351 = vmatpush1.bf16.msra.mxu0 %v9858
      %13352 = vmatprep.subr.bf16.mxu0 0
      %13353 = vmatpush1.bf16.msra.mxu0 %v9859
      %13354 = vmatprep.subr.bf16.mxu0 0
      %13355 = vmatpush1.bf16.msra.mxu0 %v9860
      %13356 = vmatprep.subr.bf16.mxu0 0
      %13357 = vmatpush1.bf16.msra.mxu0 %v9861
      %13358 = vmatprep.mubr.bf16.mxu0 %v3394
      %13359 = vmatmul.mubr.bf16.gmra.mrb[0].mxu0 %v3392
      %v13360 = vpop.f32.mrb[0].mxu0
      %v13361 = vadd.f32 %v13321, %v13360
      %v13362 = vpop.f32.mrb[0].mxu0
      %v13363 = vpop.f32.mrb[0].mxu0
      %v13364 = vpop.f32.mrb[0].mxu0
      %13365 = vdwg.mxu0
      %13366 = vmatprep.subr.bf16.mxu0 0
      %13367 = vmatpush1.bf16.msra.mxu0 %v9862
      %13368 = vmatprep.subr.bf16.mxu0 0
      %13369 = vmatpush1.bf16.msra.mxu0 %v9863
      %13370 = vmatprep.subr.bf16.mxu0 0
      %13371 = vmatpush1.bf16.msra.mxu0 %v9864
      %13372 = vmatprep.subr.bf16.mxu0 0
      %13373 = vmatpush1.bf16.msra.mxu0 %v9865
      %13374 = vmatprep.subr.bf16.mxu0 0
      %13375 = vmatpush1.bf16.msra.mxu0 %v9866
      %13376 = vmatprep.subr.bf16.mxu0 0
      %13377 = vmatpush1.bf16.msra.mxu0 %v9867
      %13378 = vmatprep.subr.bf16.mxu0 0
      %13379 = vmatpush1.bf16.msra.mxu0 %v9868
      %13380 = vmatprep.subr.bf16.mxu0 0
      %13381 = vmatpush1.bf16.msra.mxu0 %v9869
      %13382 = vmatprep.subr.bf16.mxu0 0
      %13383 = vmatpush1.bf16.msra.mxu0 %v9870
      %13384 = vmatprep.subr.bf16.mxu0 0
      %13385 = vmatpush1.bf16.msra.mxu0 %v9871
      %13386 = vmatprep.subr.bf16.mxu0 0
      %13387 = vmatpush1.bf16.msra.mxu0 %v9872
      %13388 = vmatprep.subr.bf16.mxu0 0
      %13389 = vmatpush1.bf16.msra.mxu0 %v9873
      %13390 = vmatprep.subr.bf16.mxu0 0
      %13391 = vmatpush1.bf16.msra.mxu0 %v9874
      %13392 = vmatprep.subr.bf16.mxu0 0
      %13393 = vmatpush1.bf16.msra.mxu0 %v9875
      %13394 = vmatprep.subr.bf16.mxu0 0
      %13395 = vmatpush1.bf16.msra.mxu0 %v9876
      %13396 = vmatprep.subr.bf16.mxu0 0
      %13397 = vmatpush1.bf16.msra.mxu0 %v9877
      %13398 = vmatprep.mubr.bf16.mxu0 %v3391
      %13399 = vmatmul.mubr.bf16.gmra.mrb[0].mxu0 %v3377
      %v13400 = vpop.f32.mrb[0].mxu0
      %v13401 = vadd.f32 %v13361, %v13400
      %v13402 = vpop.f32.mrb[0].mxu0
      %v13403 = vpop.f32.mrb[0].mxu0
      %v13404 = vpop.f32.mrb[0].mxu0
      %13405 = vdwg.mxu0
      %13406 = vmatprep.subr.bf16.mxu0 0
      %13407 = vmatpush1.bf16.msra.mxu0 %v9878
      %13408 = vmatprep.subr.bf16.mxu0 0
      %13409 = vmatpush1.bf16.msra.mxu0 %v9879
      %13410 = vmatprep.subr.bf16.mxu0 0
      %13411 = vmatpush1.bf16.msra.mxu0 %v9880
      %13412 = vmatprep.subr.bf16.mxu0 0
      %13413 = vmatpush1.bf16.msra.mxu0 %v9881
      %13414 = vmatprep.subr.bf16.mxu0 0
      %13415 = vmatpush1.bf16.msra.mxu0 %v9882
      %13416 = vmatprep.subr.bf16.mxu0 0
      %13417 = vmatpush1.bf16.msra.mxu0 %v9883
      %13418 = vmatprep.subr.bf16.mxu0 0
      %13419 = vmatpush1.bf16.msra.mxu0 %v9884
      %13420 = vmatprep.subr.bf16.mxu0 0
      %13421 = vmatpush1.bf16.msra.mxu0 %v9885
      %13422 = vmatprep.subr.bf16.mxu0 0
      %13423 = vmatpush1.bf16.msra.mxu0 %v9886
      %13424 = vmatprep.subr.bf16.mxu0 0
      %13425 = vmatpush1.bf16.msra.mxu0 %v9887
      %13426 = vmatprep.subr.bf16.mxu0 0
      %13427 = vmatpush1.bf16.msra.mxu0 %v9888
      %13428 = vmatprep.subr.bf16.mxu0 0
      %13429 = vmatpush1.bf16.msra.mxu0 %v9889
      %13430 = vmatprep.subr.bf16.mxu0 0
      %13431 = vmatpush1.bf16.msra.mxu0 %v9890
      %13432 = vmatprep.subr.bf16.mxu0 0
      %13433 = vmatpush1.bf16.msra.mxu0 %v9891
      %13434 = vmatprep.subr.bf16.mxu0 0
      %13435 = vmatpush1.bf16.msra.mxu0 %v9892
      %13436 = vmatprep.subr.bf16.mxu0 0
      %13437 = vmatpush1.bf16.msra.mxu0 %v9893
      %13438 = vmatprep.mubr.bf16.mxu0 %v3395
      %13439 = vmatmul.mubr.bf16.gmra.mrb[0].mxu0 %v3393
      %v13440 = vpop.f32.mrb[0].mxu0
      %v13441 = vadd.f32 %v13401, %v13440
      %v13442 = vpop.f32.mrb[0].mxu0
      %v13443 = vpop.f32.mrb[0].mxu0
      %v13444 = vpop.f32.mrb[0].mxu0
      %13445 = vdwg.mxu0
      %13446 = vmatprep.subr.bf16.mxu0 0
      %13447 = vmatpush1.bf16.msra.mxu0 %v9894
      %13448 = vmatprep.subr.bf16.mxu0 0
      %13449 = vmatpush1.bf16.msra.mxu0 %v9895
      %13450 = vmatprep.subr.bf16.mxu0 0
      %13451 = vmatpush1.bf16.msra.mxu0 %v9896
      %13452 = vmatprep.subr.bf16.mxu0 0
      %13453 = vmatpush1.bf16.msra.mxu0 %v9897
      %13454 = vmatprep.subr.bf16.mxu0 0
      %13455 = vmatpush1.bf16.msra.mxu0 %v9898
      %13456 = vmatprep.subr.bf16.mxu0 0
      %13457 = vmatpush1.bf16.msra.mxu0 %v9899
      %13458 = vmatprep.subr.bf16.mxu0 0
      %13459 = vmatpush1.bf16.msra.mxu0 %v9900
      %13460 = vmatprep.subr.bf16.mxu0 0
      %13461 = vmatpush1.bf16.msra.mxu0 %v9901
      %13462 = vmatprep.subr.bf16.mxu0 0
      %13463 = vmatpush1.bf16.msra.mxu0 %v9902
      %13464 = vmatprep.subr.bf16.mxu0 0
      %13465 = vmatpush1.bf16.msra.mxu0 %v9903
      %13466 = vmatprep.subr.bf16.mxu0 0
      %13467 = vmatpush1.bf16.msra.mxu0 %v9904
      %13468 = vmatprep.subr.bf16.mxu0 0
      %13469 = vmatpush1.bf16.msra.mxu0 %v9905
      %13470 = vmatprep.subr.bf16.mxu0 0
      %13471 = vmatpush1.bf16.msra.mxu0 %v9906
      %13472 = vmatprep.subr.bf16.mxu0 0
      %13473 = vmatpush1.bf16.msra.mxu0 %v9907
      %13474 = vmatprep.subr.bf16.mxu0 0
      %13475 = vmatpush1.bf16.msra.mxu0 %v9908
      %13476 = vmatprep.subr.bf16.mxu0 0
      %13477 = vmatpush1.bf16.msra.mxu0 %v9909
      %13478 = vmatprep.mubr.bf16.mxu0 %v3433
      %13479 = vmatmul.mubr.bf16.gmra.mrb[0].mxu0 %v3419
      %v13480 = vpop.f32.mrb[0].mxu0
      %v13481 = vadd.f32 %v13441, %v13480
      %v13482 = vpop.f32.mrb[0].mxu0
      %v13483 = vpop.f32.mrb[0].mxu0
      %v13484 = vpop.f32.mrb[0].mxu0
      %13485 = vdwg.mxu0
      %13486 = vmatprep.subr.bf16.mxu0 0
      %13487 = vmatpush1.bf16.msra.mxu0 %v9910
      %13488 = vmatprep.subr.bf16.mxu0 0
      %13489 = vmatpush1.bf16.msra.mxu0 %v9911
      %13490 = vmatprep.subr.bf16.mxu0 0
      %13491 = vmatpush1.bf16.msra.mxu0 %v9912
      %13492 = vmatprep.subr.bf16.mxu0 0
      %13493 = vmatpush1.bf16.msra.mxu0 %v9913
      %13494 = vmatprep.subr.bf16.mxu0 0
      %13495 = vmatpush1.bf16.msra.mxu0 %v9914
      %13496 = vmatprep.subr.bf16.mxu0 0
      %13497 = vmatpush1.bf16.msra.mxu0 %v9915
      %13498 = vmatprep.subr.bf16.mxu0 0
      %13499 = vmatpush1.bf16.msra.mxu0 %v9916
      %13500 = vmatprep.subr.bf16.mxu0 0
      %13501 = vmatpush1.bf16.msra.mxu0 %v9917
      %13502 = vmatprep.subr.bf16.mxu0 0
      %13503 = vmatpush1.bf16.msra.mxu0 %v9918
      %13504 = vmatprep.subr.bf16.mxu0 0
      %13505 = vmatpush1.bf16.msra.mxu0 %v9919
      %13506 = vmatprep.subr.bf16.mxu0 0
      %13507 = vmatpush1.bf16.msra.mxu0 %v9920
      %13508 = vmatprep.subr.bf16.mxu0 0
      %13509 = vmatpush1.bf16.msra.mxu0 %v9921
      %13510 = vmatprep.subr.bf16.mxu0 0
      %13511 = vmatpush1.bf16.msra.mxu0 %v9922
      %13512 = vmatprep.subr.bf16.mxu0 0
      %13513 = vmatpush1.bf16.msra.mxu0 %v9923
      %13514 = vmatprep.subr.bf16.mxu0 0
      %13515 = vmatpush1.bf16.msra.mxu0 %v9924
      %13516 = vmatprep.subr.bf16.mxu0 0
      %13517 = vmatpush1.bf16.msra.mxu0 %v9925
      %13518 = vmatprep.mubr.bf16.mxu0 %v3443
      %13519 = vmatmul.mubr.bf16.gmra.mrb[0].mxu0 %v3441
      %v13520 = vpop.f32.mrb[0].mxu0
      %v13521 = vadd.f32 %v13481, %v13520
      %v13522 = vpop.f32.mrb[0].mxu0
      %v13523 = vpop.f32.mrb[0].mxu0
      %v13524 = vpop.f32.mrb[0].mxu0
      %13525 = vdwg.mxu0
      %13526 = vmatprep.subr.bf16.mxu0 0
      %13527 = vmatpush1.bf16.msra.mxu0 %v9926
      %13528 = vmatprep.subr.bf16.mxu0 0
      %13529 = vmatpush1.bf16.msra.mxu0 %v9927
      %13530 = vmatprep.subr.bf16.mxu0 0
      %13531 = vmatpush1.bf16.msra.mxu0 %v9928
      %13532 = vmatprep.subr.bf16.mxu0 0
      %13533 = vmatpush1.bf16.msra.mxu0 %v9929
      %13534 = vmatprep.subr.bf16.mxu0 0
      %13535 = vmatpush1.bf16.msra.mxu0 %v9930
      %13536 = vmatprep.subr.bf16.mxu0 0
      %13537 = vmatpush1.bf16.msra.mxu0 %v9931
      %13538 = vmatprep.subr.bf16.mxu0 0
      %13539 = vmatpush1.bf16.msra.mxu0 %v9932
      %13540 = vmatprep.subr.bf16.mxu0 0
      %13541 = vmatpush1.bf16.msra.mxu0 %v9933
      %13542 = vmatprep.subr.bf16.mxu0 0
      %13543 = vmatpush1.bf16.msra.mxu0 %v9934
      %13544 = vmatprep.subr.bf16.mxu0 0
      %13545 = vmatpush1.bf16.msra.mxu0 %v9935
      %13546 = vmatprep.subr.bf16.mxu0 0
      %13547 = vmatpush1.bf16.msra.mxu0 %v9936
      %13548 = vmatprep.subr.bf16.mxu0 0
      %13549 = vmatpush1.bf16.msra.mxu0 %v9937
      %13550 = vmatprep.subr.bf16.mxu0 0
      %13551 = vmatpush1.bf16.msra.mxu0 %v9938
      %13552 = vmatprep.subr.bf16.mxu0 0
      %13553 = vmatpush1.bf16.msra.mxu0 %v9939
      %13554 = vmatprep.subr.bf16.mxu0 0
      %13555 = vmatpush1.bf16.msra.mxu0 %v9940
      %13556 = vmatprep.subr.bf16.mxu0 0
      %13557 = vmatpush1.bf16.msra.mxu0 %v9941
      %13558 = vmatprep.mubr.bf16.mxu0 %v3440
      %13559 = vmatmul.mubr.bf16.gmra.mrb[0].mxu0 %v3426
      %v13560 = vpop.f32.mrb[0].mxu0
      %v13561 = vadd.f32 %v13521, %v13560
      %v13562 = vpop.f32.mrb[0].mxu0
      %v13563 = vpop.f32.mrb[0].mxu0
      %v13564 = vpop.f32.mrb[0].mxu0
      %13565 = vdwg.mxu0
      %13566 = vmatprep.subr.bf16.mxu0 0
      %13567 = vmatpush1.bf16.msra.mxu0 %v9942
      %13568 = vmatprep.subr.bf16.mxu0 0
      %13569 = vmatpush1.bf16.msra.mxu0 %v9943
      %13570 = vmatprep.subr.bf16.mxu0 0
      %13571 = vmatpush1.bf16.msra.mxu0 %v9944
      %13572 = vmatprep.subr.bf16.mxu0 0
      %13573 = vmatpush1.bf16.msra.mxu0 %v9945
      %13574 = vmatprep.subr.bf16.mxu0 0
      %13575 = vmatpush1.bf16.msra.mxu0 %v9946
      %13576 = vmatprep.subr.bf16.mxu0 0
      %13577 = vmatpush1.bf16.msra.mxu0 %v9947
      %13578 = vmatprep.subr.bf16.mxu0 0
      %13579 = vmatpush1.bf16.msra.mxu0 %v9948
      %13580 = vmatprep.subr.bf16.mxu0 0
      %13581 = vmatpush1.bf16.msra.mxu0 %v9949
      %13582 = vmatprep.subr.bf16.mxu0 0
      %13583 = vmatpush1.bf16.msra.mxu0 %v9950
      %13584 = vmatprep.subr.bf16.mxu0 0
      %13585 = vmatpush1.bf16.msra.mxu0 %v9951
      %13586 = vmatprep.subr.bf16.mxu0 0
      %13587 = vmatpush1.bf16.msra.mxu0 %v9952
      %13588 = vmatprep.subr.bf16.mxu0 0
      %13589 = vmatpush1.bf16.msra.mxu0 %v9953
      %13590 = vmatprep.subr.bf16.mxu0 0
      %13591 = vmatpush1.bf16.msra.mxu0 %v9954
      %13592 = vmatprep.subr.bf16.mxu0 0
      %13593 = vmatpush1.bf16.msra.mxu0 %v9955
      %13594 = vmatprep.subr.bf16.mxu0 0
      %13595 = vmatpush1.bf16.msra.mxu0 %v9956
      %13596 = vmatprep.subr.bf16.mxu0 0
      %13597 = vmatpush1.bf16.msra.mxu0 %v9957
      %13598 = vmatprep.mubr.bf16.mxu0 %v3444
      %13599 = vmatmul.mubr.bf16.gmra.mrb[0].mxu0 %v3442
      %v13600 = vpop.f32.mrb[0].mxu0
      %v13601 = vadd.f32 %v13561, %v13600
      %v13602 = vpop.f32.mrb[0].mxu0
      %v13603 = vpop.f32.mrb[0].mxu0
      %v13604 = vpop.f32.mrb[0].mxu0
      %13605 = vdwg.mxu0
      %13606 = vmatprep.subr.bf16.mxu0 0
      %13607 = vmatpush1.bf16.msra.mxu0 %v9958
      %13608 = vmatprep.subr.bf16.mxu0 0
      %13609 = vmatpush1.bf16.msra.mxu0 %v9959
      %13610 = vmatprep.subr.bf16.mxu0 0
      %13611 = vmatpush1.bf16.msra.mxu0 %v9960
      %13612 = vmatprep.subr.bf16.mxu0 0
      %13613 = vmatpush1.bf16.msra.mxu0 %v9961
      %13614 = vmatprep.subr.bf16.mxu0 0
      %13615 = vmatpush1.bf16.msra.mxu0 %v9962
      %13616 = vmatprep.subr.bf16.mxu0 0
      %13617 = vmatpush1.bf16.msra.mxu0 %v9963
      %13618 = vmatprep.subr.bf16.mxu0 0
      %13619 = vmatpush1.bf16.msra.mxu0 %v9964
      %13620 = vmatprep.subr.bf16.mxu0 0
      %13621 = vmatpush1.bf16.msra.mxu0 %v9965
      %13622 = vmatprep.subr.bf16.mxu0 0
      %13623 = vmatpush1.bf16.msra.mxu0 %v9966
      %13624 = vmatprep.subr.bf16.mxu0 0
      %13625 = vmatpush1.bf16.msra.mxu0 %v9967
      %13626 = vmatprep.subr.bf16.mxu0 0
      %13627 = vmatpush1.bf16.msra.mxu0 %v9968
      %13628 = vmatprep.subr.bf16.mxu0 0
      %13629 = vmatpush1.bf16.msra.mxu0 %v9969
      %13630 = vmatprep.subr.bf16.mxu0 0
      %13631 = vmatpush1.bf16.msra.mxu0 %v9970
      %13632 = vmatprep.subr.bf16.mxu0 0
      %13633 = vmatpush1.bf16.msra.mxu0 %v9971
      %13634 = vmatprep.subr.bf16.mxu0 0
      %13635 = vmatpush1.bf16.msra.mxu0 %v9972
      %13636 = vmatprep.subr.bf16.mxu0 0
      %13637 = vmatpush1.bf16.msra.mxu0 %v9973
      %13638 = vmatprep.mubr.bf16.mxu0 %v3482
      %13639 = vmatmul.mubr.bf16.gmra.mrb[0].mxu0 %v3468
      %v13640 = vpop.f32.mrb[0].mxu0
      %v13641 = vadd.f32 %v13601, %v13640
      %v13642 = vpop.f32.mrb[0].mxu0
      %v13643 = vpop.f32.mrb[0].mxu0
      %v13644 = vpop.f32.mrb[0].mxu0
      %13645 = vdwg.mxu0
      %13646 = vmatprep.subr.bf16.mxu0 0
      %13647 = vmatpush1.bf16.msra.mxu0 %v9974
      %13648 = vmatprep.subr.bf16.mxu0 0
      %13649 = vmatpush1.bf16.msra.mxu0 %v9975
      %13650 = vmatprep.subr.bf16.mxu0 0
      %13651 = vmatpush1.bf16.msra.mxu0 %v9976
      %13652 = vmatprep.subr.bf16.mxu0 0
      %13653 = vmatpush1.bf16.msra.mxu0 %v9977
      %13654 = vmatprep.subr.bf16.mxu0 0
      %13655 = vmatpush1.bf16.msra.mxu0 %v9978
      %13656 = vmatprep.subr.bf16.mxu0 0
      %13657 = vmatpush1.bf16.msra.mxu0 %v9979
      %13658 = vmatprep.subr.bf16.mxu0 0
      %13659 = vmatpush1.bf16.msra.mxu0 %v9980
      %13660 = vmatprep.subr.bf16.mxu0 0
      %13661 = vmatpush1.bf16.msra.mxu0 %v9981
      %13662 = vmatprep.subr.bf16.mxu0 0
      %13663 = vmatpush1.bf16.msra.mxu0 %v9982
      %13664 = vmatprep.subr.bf16.mxu0 0
      %13665 = vmatpush1.bf16.msra.mxu0 %v9983
      %13666 = vmatprep.subr.bf16.mxu0 0
      %13667 = vmatpush1.bf16.msra.mxu0 %v9984
      %13668 = vmatprep.subr.bf16.mxu0 0
      %13669 = vmatpush1.bf16.msra.mxu0 %v9985
      %13670 = vmatprep.subr.bf16.mxu0 0
      %13671 = vmatpush1.bf16.msra.mxu0 %v9986
      %13672 = vmatprep.subr.bf16.mxu0 0
      %13673 = vmatpush1.bf16.msra.mxu0 %v9987
      %13674 = vmatprep.subr.bf16.mxu0 0
      %13675 = vmatpush1.bf16.msra.mxu0 %v9988
      %13676 = vmatprep.subr.bf16.mxu0 0
      %13677 = vmatpush1.bf16.msra.mxu0 %v9989
      %13678 = vmatprep.mubr.bf16.mxu0 %v3492
      %13679 = vmatmul.mubr.bf16.gmra.mrb[0].mxu0 %v3490
      %v13680 = vpop.f32.mrb[0].mxu0
      %v13681 = vadd.f32 %v13641, %v13680
      %v13682 = vpop.f32.mrb[0].mxu0
      %v13683 = vpop.f32.mrb[0].mxu0
      %v13684 = vpop.f32.mrb[0].mxu0
      %13685 = vdwg.mxu0
      %13686 = vmatprep.subr.bf16.mxu0 0
      %13687 = vmatpush1.bf16.msra.mxu0 %v9990
      %13688 = vmatprep.subr.bf16.mxu0 0
      %13689 = vmatpush1.bf16.msra.mxu0 %v9991
      %13690 = vmatprep.subr.bf16.mxu0 0
      %13691 = vmatpush1.bf16.msra.mxu0 %v9992
      %13692 = vmatprep.subr.bf16.mxu0 0
      %13693 = vmatpush1.bf16.msra.mxu0 %v9993
      %13694 = vmatprep.subr.bf16.mxu0 0
      %13695 = vmatpush1.bf16.msra.mxu0 %v9994
      %13696 = vmatprep.subr.bf16.mxu0 0
      %13697 = vmatpush1.bf16.msra.mxu0 %v9995
      %13698 = vmatprep.subr.bf16.mxu0 0
      %13699 = vmatpush1.bf16.msra.mxu0 %v9996
      %13700 = vmatprep.subr.bf16.mxu0 0
      %13701 = vmatpush1.bf16.msra.mxu0 %v9997
      %13702 = vmatprep.subr.bf16.mxu0 0
      %13703 = vmatpush1.bf16.msra.mxu0 %v9998
      %13704 = vmatprep.subr.bf16.mxu0 0
      %13705 = vmatpush1.bf16.msra.mxu0 %v9999
      %13706 = vmatprep.subr.bf16.mxu0 0
      %13707 = vmatpush1.bf16.msra.mxu0 %v10000
      %13708 = vmatprep.subr.bf16.mxu0 0
      %13709 = vmatpush1.bf16.msra.mxu0 %v10001
      %13710 = vmatprep.subr.bf16.mxu0 0
      %13711 = vmatpush1.bf16.msra.mxu0 %v10002
      %13712 = vmatprep.subr.bf16.mxu0 0
      %13713 = vmatpush1.bf16.msra.mxu0 %v10003
      %13714 = vmatprep.subr.bf16.mxu0 0
      %13715 = vmatpush1.bf16.msra.mxu0 %v10004
      %13716 = vmatprep.subr.bf16.mxu0 0
      %13717 = vmatpush1.bf16.msra.mxu0 %v10005
      %13718 = vmatprep.mubr.bf16.mxu0 %v3489
      %13719 = vmatmul.mubr.bf16.gmra.mrb[0].mxu0 %v3475
      %v13720 = vpop.f32.mrb[0].mxu0
      %v13721 = vadd.f32 %v13681, %v13720
      %v13722 = vpop.f32.mrb[0].mxu0
      %v13723 = vpop.f32.mrb[0].mxu0
      %v13724 = vpop.f32.mrb[0].mxu0
      %13725 = vdwg.mxu0
      %13726 = vmatprep.subr.bf16.mxu0 0
      %13727 = vmatpush1.bf16.msra.mxu0 %v10006
      %13728 = vmatprep.subr.bf16.mxu0 0
      %13729 = vmatpush1.bf16.msra.mxu0 %v10007
      %13730 = vmatprep.subr.bf16.mxu0 0
      %13731 = vmatpush1.bf16.msra.mxu0 %v10008
      %13732 = vmatprep.subr.bf16.mxu0 0
      %13733 = vmatpush1.bf16.msra.mxu0 %v10009
      %13734 = vmatprep.subr.bf16.mxu0 0
      %13735 = vmatpush1.bf16.msra.mxu0 %v10010
      %13736 = vmatprep.subr.bf16.mxu0 0
      %13737 = vmatpush1.bf16.msra.mxu0 %v10011
      %13738 = vmatprep.subr.bf16.mxu0 0
      %13739 = vmatpush1.bf16.msra.mxu0 %v10012
      %13740 = vmatprep.subr.bf16.mxu0 0
      %13741 = vmatpush1.bf16.msra.mxu0 %v10013
      %13742 = vmatprep.subr.bf16.mxu0 0
      %13743 = vmatpush1.bf16.msra.mxu0 %v10014
      %13744 = vmatprep.subr.bf16.mxu0 0
      %13745 = vmatpush1.bf16.msra.mxu0 %v10015
      %13746 = vmatprep.subr.bf16.mxu0 0
      %13747 = vmatpush1.bf16.msra.mxu0 %v10016
      %13748 = vmatprep.subr.bf16.mxu0 0
      %13749 = vmatpush1.bf16.msra.mxu0 %v10017
      %13750 = vmatprep.subr.bf16.mxu0 0
      %13751 = vmatpush1.bf16.msra.mxu0 %v10018
      %13752 = vmatprep.subr.bf16.mxu0 0
      %13753 = vmatpush1.bf16.msra.mxu0 %v10019
      %13754 = vmatprep.subr.bf16.mxu0 0
      %13755 = vmatpush1.bf16.msra.mxu0 %v10020
      %13756 = vmatprep.subr.bf16.mxu0 0
      %13757 = vmatpush1.bf16.msra.mxu0 %v10021
      %13758 = vmatprep.mubr.bf16.mxu0 %v3493
      %13759 = vmatmul.mubr.bf16.gmra.mrb[0].mxu0 %v3491
      %v13760 = vpop.f32.mrb[0].mxu0
      %v13761 = vadd.f32 %v13721, %v13760
      %v13762 = vpop.f32.mrb[0].mxu0
      %v13763 = vpop.f32.mrb[0].mxu0
      %v13764 = vpop.f32.mrb[0].mxu0
      %13765 = vdwg.mxu0
      %13766 = vmatprep.subr.bf16.mxu0 0
      %13767 = vmatpush1.bf16.msra.mxu0 %v10022
      %13768 = vmatprep.subr.bf16.mxu0 0
      %13769 = vmatpush1.bf16.msra.mxu0 %v10023
      %13770 = vmatprep.subr.bf16.mxu0 0
      %13771 = vmatpush1.bf16.msra.mxu0 %v10024
      %13772 = vmatprep.subr.bf16.mxu0 0
      %13773 = vmatpush1.bf16.msra.mxu0 %v10025
      %13774 = vmatprep.subr.bf16.mxu0 0
      %13775 = vmatpush1.bf16.msra.mxu0 %v10026
      %13776 = vmatprep.subr.bf16.mxu0 0
      %13777 = vmatpush1.bf16.msra.mxu0 %v10027
      %13778 = vmatprep.subr.bf16.mxu0 0
      %13779 = vmatpush1.bf16.msra.mxu0 %v10028
      %13780 = vmatprep.subr.bf16.mxu0 0
      %13781 = vmatpush1.bf16.msra.mxu0 %v10029
      %13782 = vmatprep.subr.bf16.mxu0 0
      %13783 = vmatpush1.bf16.msra.mxu0 %v10030
      %13784 = vmatprep.subr.bf16.mxu0 0
      %13785 = vmatpush1.bf16.msra.mxu0 %v10031
      %13786 = vmatprep.subr.bf16.mxu0 0
      %13787 = vmatpush1.bf16.msra.mxu0 %v10032
      %13788 = vmatprep.subr.bf16.mxu0 0
      %13789 = vmatpush1.bf16.msra.mxu0 %v10033
      %13790 = vmatprep.subr.bf16.mxu0 0
      %13791 = vmatpush1.bf16.msra.mxu0 %v10034
      %13792 = vmatprep.subr.bf16.mxu0 0
      %13793 = vmatpush1.bf16.msra.mxu0 %v10035
      %13794 = vmatprep.subr.bf16.mxu0 0
      %13795 = vmatpush1.bf16.msra.mxu0 %v10036
      %13796 = vmatprep.subr.bf16.mxu0 0
      %13797 = vmatpush1.bf16.msra.mxu0 %v10037
      %13798 = vmatprep.mubr.bf16.mxu0 %v3531
      %13799 = vmatmul.mubr.bf16.gmra.mrb[0].mxu0 %v3517
      %v13800 = vpop.f32.mrb[0].mxu0
      %v13801 = vadd.f32 %v13761, %v13800
      %v13802 = vpop.f32.mrb[0].mxu0
      %v13803 = vpop.f32.mrb[0].mxu0
      %v13804 = vpop.f32.mrb[0].mxu0
      %13805 = vdwg.mxu0
      %13806 = vmatprep.subr.bf16.mxu0 0
      %13807 = vmatpush1.bf16.msra.mxu0 %v10038
      %13808 = vmatprep.subr.bf16.mxu0 0
      %13809 = vmatpush1.bf16.msra.mxu0 %v10039
      %13810 = vmatprep.subr.bf16.mxu0 0
      %13811 = vmatpush1.bf16.msra.mxu0 %v10040
      %13812 = vmatprep.subr.bf16.mxu0 0
      %13813 = vmatpush1.bf16.msra.mxu0 %v10041
      %13814 = vmatprep.subr.bf16.mxu0 0
      %13815 = vmatpush1.bf16.msra.mxu0 %v10042
      %13816 = vmatprep.subr.bf16.mxu0 0
      %13817 = vmatpush1.bf16.msra.mxu0 %v10043
      %13818 = vmatprep.subr.bf16.mxu0 0
      %13819 = vmatpush1.bf16.msra.mxu0 %v10044
      %13820 = vmatprep.subr.bf16.mxu0 0
      %13821 = vmatpush1.bf16.msra.mxu0 %v10045
      %13822 = vmatprep.subr.bf16.mxu0 0
      %13823 = vmatpush1.bf16.msra.mxu0 %v10046
      %13824 = vmatprep.subr.bf16.mxu0 0
      %13825 = vmatpush1.bf16.msra.mxu0 %v10047
      %13826 = vmatprep.subr.bf16.mxu0 0
      %13827 = vmatpush1.bf16.msra.mxu0 %v10048
      %13828 = vmatprep.subr.bf16.mxu0 0
      %13829 = vmatpush1.bf16.msra.mxu0 %v10049
      %13830 = vmatprep.subr.bf16.mxu0 0
      %13831 = vmatpush1.bf16.msra.mxu0 %v10050
      %13832 = vmatprep.subr.bf16.mxu0 0
      %13833 = vmatpush1.bf16.msra.mxu0 %v10051
      %13834 = vmatprep.subr.bf16.mxu0 0
      %13835 = vmatpush1.bf16.msra.mxu0 %v10052
      %13836 = vmatprep.subr.bf16.mxu0 0
      %13837 = vmatpush1.bf16.msra.mxu0 %v10053
      %13838 = vmatprep.mubr.bf16.mxu0 %v3541
      %13839 = vmatmul.mubr.bf16.gmra.mrb[0].mxu0 %v3539
      %v13840 = vpop.f32.mrb[0].mxu0
      %v13841 = vadd.f32 %v13801, %v13840
      %v13842 = vpop.f32.mrb[0].mxu0
      %v13843 = vpop.f32.mrb[0].mxu0
      %v13844 = vpop.f32.mrb[0].mxu0
      %13845 = vdwg.mxu0
      %13846 = vmatprep.subr.bf16.mxu0 0
      %13847 = vmatpush1.bf16.msra.mxu0 %v10054
      %13848 = vmatprep.subr.bf16.mxu0 0
      %13849 = vmatpush1.bf16.msra.mxu0 %v10055
      %13850 = vmatprep.subr.bf16.mxu0 0
      %13851 = vmatpush1.bf16.msra.mxu0 %v10056
      %13852 = vmatprep.subr.bf16.mxu0 0
      %13853 = vmatpush1.bf16.msra.mxu0 %v10057
      %13854 = vmatprep.subr.bf16.mxu0 0
      %13855 = vmatpush1.bf16.msra.mxu0 %v10058
      %13856 = vmatprep.subr.bf16.mxu0 0
      %13857 = vmatpush1.bf16.msra.mxu0 %v10059
      %13858 = vmatprep.subr.bf16.mxu0 0
      %13859 = vmatpush1.bf16.msra.mxu0 %v10060
      %13860 = vmatprep.subr.bf16.mxu0 0
      %13861 = vmatpush1.bf16.msra.mxu0 %v10061
      %13862 = vmatprep.subr.bf16.mxu0 0
      %13863 = vmatpush1.bf16.msra.mxu0 %v10062
      %13864 = vmatprep.subr.bf16.mxu0 0
      %13865 = vmatpush1.bf16.msra.mxu0 %v10063
      %13866 = vmatprep.subr.bf16.mxu0 0
      %13867 = vmatpush1.bf16.msra.mxu0 %v10064
      %13868 = vmatprep.subr.bf16.mxu0 0
      %13869 = vmatpush1.bf16.msra.mxu0 %v10065
      %13870 = vmatprep.subr.bf16.mxu0 0
      %13871 = vmatpush1.bf16.msra.mxu0 %v10066
      %13872 = vmatprep.subr.bf16.mxu0 0
      %13873 = vmatpush1.bf16.msra.mxu0 %v10067
      %13874 = vmatprep.subr.bf16.mxu0 0
      %13875 = vmatpush1.bf16.msra.mxu0 %v10068
      %13876 = vmatprep.subr.bf16.mxu0 0
      %13877 = vmatpush1.bf16.msra.mxu0 %v10069
      %13878 = vmatprep.mubr.bf16.mxu0 %v3538
      %13879 = vmatmul.mubr.bf16.gmra.mrb[0].mxu0 %v3524
      %v13880 = vpop.f32.mrb[0].mxu0
      %v13881 = vadd.f32 %v13841, %v13880
      %v13882 = vpop.f32.mrb[0].mxu0
      %v13883 = vpop.f32.mrb[0].mxu0
      %v13884 = vpop.f32.mrb[0].mxu0
      %13885 = vdwg.mxu0
      %13886 = vmatprep.subr.bf16.mxu0 0
      %13887 = vmatpush1.bf16.msra.mxu0 %v10070
      %13888 = vmatprep.subr.bf16.mxu0 0
      %13889 = vmatpush1.bf16.msra.mxu0 %v10071
      %13890 = vmatprep.subr.bf16.mxu0 0
      %13891 = vmatpush1.bf16.msra.mxu0 %v10072
      %13892 = vmatprep.subr.bf16.mxu0 0
      %13893 = vmatpush1.bf16.msra.mxu0 %v10073
      %13894 = vmatprep.subr.bf16.mxu0 0
      %13895 = vmatpush1.bf16.msra.mxu0 %v10074
      %13896 = vmatprep.subr.bf16.mxu0 0
      %13897 = vmatpush1.bf16.msra.mxu0 %v10075
      %13898 = vmatprep.subr.bf16.mxu0 0
      %13899 = vmatpush1.bf16.msra.mxu0 %v10076
      %13900 = vmatprep.subr.bf16.mxu0 0
      %13901 = vmatpush1.bf16.msra.mxu0 %v10077
      %13902 = vmatprep.subr.bf16.mxu0 0
      %13903 = vmatpush1.bf16.msra.mxu0 %v10078
      %13904 = vmatprep.subr.bf16.mxu0 0
      %13905 = vmatpush1.bf16.msra.mxu0 %v10079
      %13906 = vmatprep.subr.bf16.mxu0 0
      %13907 = vmatpush1.bf16.msra.mxu0 %v10080
      %13908 = vmatprep.subr.bf16.mxu0 0
      %13909 = vmatpush1.bf16.msra.mxu0 %v10081
      %13910 = vmatprep.subr.bf16.mxu0 0
      %13911 = vmatpush1.bf16.msra.mxu0 %v10082
      %13912 = vmatprep.subr.bf16.mxu0 0
      %13913 = vmatpush1.bf16.msra.mxu0 %v10083
      %13914 = vmatprep.subr.bf16.mxu0 0
      %13915 = vmatpush1.bf16.msra.mxu0 %v10084
      %13916 = vmatprep.subr.bf16.mxu0 0
      %13917 = vmatpush1.bf16.msra.mxu0 %v10085
      %13918 = vmatprep.mubr.bf16.mxu0 %v3542
      %13919 = vmatmul.mubr.bf16.gmra.mrb[0].mxu0 %v3540
      %v13920 = vpop.f32.mrb[0].mxu0
      %v13921 = vadd.f32 %v13881, %v13920
      %v13922 = vpop.f32.mrb[0].mxu0
      %v13923 = vpop.f32.mrb[0].mxu0
      %v13924 = vpop.f32.mrb[0].mxu0
      %13925 = vdwg.mxu0
      %13926 = vmatprep.subr.bf16.mxu0 0
      %13927 = vmatpush1.bf16.msra.mxu0 %v10086
      %13928 = vmatprep.subr.bf16.mxu0 0
      %13929 = vmatpush1.bf16.msra.mxu0 %v10087
      %13930 = vmatprep.subr.bf16.mxu0 0
      %13931 = vmatpush1.bf16.msra.mxu0 %v10088
      %13932 = vmatprep.subr.bf16.mxu0 0
      %13933 = vmatpush1.bf16.msra.mxu0 %v10089
      %13934 = vmatprep.subr.bf16.mxu0 0
      %13935 = vmatpush1.bf16.msra.mxu0 %v10090
      %13936 = vmatprep.subr.bf16.mxu0 0
      %13937 = vmatpush1.bf16.msra.mxu0 %v10091
      %13938 = vmatprep.subr.bf16.mxu0 0
      %13939 = vmatpush1.bf16.msra.mxu0 %v10092
      %13940 = vmatprep.subr.bf16.mxu0 0
      %13941 = vmatpush1.bf16.msra.mxu0 %v10093
      %13942 = vmatprep.subr.bf16.mxu0 0
      %13943 = vmatpush1.bf16.msra.mxu0 %v10094
      %13944 = vmatprep.subr.bf16.mxu0 0
      %13945 = vmatpush1.bf16.msra.mxu0 %v10095
      %13946 = vmatprep.subr.bf16.mxu0 0
      %13947 = vmatpush1.bf16.msra.mxu0 %v10096
      %13948 = vmatprep.subr.bf16.mxu0 0
      %13949 = vmatpush1.bf16.msra.mxu0 %v10097
      %13950 = vmatprep.subr.bf16.mxu0 0
      %13951 = vmatpush1.bf16.msra.mxu0 %v10098
      %13952 = vmatprep.subr.bf16.mxu0 0
      %13953 = vmatpush1.bf16.msra.mxu0 %v10099
      %13954 = vmatprep.subr.bf16.mxu0 0
      %13955 = vmatpush1.bf16.msra.mxu0 %v10100
      %13956 = vmatprep.subr.bf16.mxu0 0
      %13957 = vmatpush1.bf16.msra.mxu0 %v10101
      %13958 = vmatprep.mubr.bf16.mxu0 %v3580
      %13959 = vmatmul.mubr.bf16.gmra.mrb[0].mxu0 %v3566
      %v13960 = vpop.f32.mrb[0].mxu0
      %v13961 = vadd.f32 %v13921, %v13960
      %v13962 = vpop.f32.mrb[0].mxu0
      %v13963 = vpop.f32.mrb[0].mxu0
      %v13964 = vpop.f32.mrb[0].mxu0
      %13965 = vdwg.mxu0
      %13966 = vmatprep.subr.bf16.mxu0 0
      %13967 = vmatpush1.bf16.msra.mxu0 %v10102
      %13968 = vmatprep.subr.bf16.mxu0 0
      %13969 = vmatpush1.bf16.msra.mxu0 %v10103
      %13970 = vmatprep.subr.bf16.mxu0 0
      %13971 = vmatpush1.bf16.msra.mxu0 %v10104
      %13972 = vmatprep.subr.bf16.mxu0 0
      %13973 = vmatpush1.bf16.msra.mxu0 %v10105
      %13974 = vmatprep.subr.bf16.mxu0 0
      %13975 = vmatpush1.bf16.msra.mxu0 %v10106
      %13976 = vmatprep.subr.bf16.mxu0 0
      %13977 = vmatpush1.bf16.msra.mxu0 %v10107
      %13978 = vmatprep.subr.bf16.mxu0 0
      %13979 = vmatpush1.bf16.msra.mxu0 %v10108
      %13980 = vmatprep.subr.bf16.mxu0 0
      %13981 = vmatpush1.bf16.msra.mxu0 %v10109
      %13982 = vmatprep.subr.bf16.mxu0 0
      %13983 = vmatpush1.bf16.msra.mxu0 %v10110
      %13984 = vmatprep.subr.bf16.mxu0 0
      %13985 = vmatpush1.bf16.msra.mxu0 %v10111
      %13986 = vmatprep.subr.bf16.mxu0 0
      %13987 = vmatpush1.bf16.msra.mxu0 %v10112
      %13988 = vmatprep.subr.bf16.mxu0 0
      %13989 = vmatpush1.bf16.msra.mxu0 %v10113
      %13990 = vmatprep.subr.bf16.mxu0 0
      %13991 = vmatpush1.bf16.msra.mxu0 %v10114
      %13992 = vmatprep.subr.bf16.mxu0 0
      %13993 = vmatpush1.bf16.msra.mxu0 %v10115
      %13994 = vmatprep.subr.bf16.mxu0 0
      %13995 = vmatpush1.bf16.msra.mxu0 %v10116
      %13996 = vmatprep.subr.bf16.mxu0 0
      %13997 = vmatpush1.bf16.msra.mxu0 %v10117
      %13998 = vmatprep.mubr.bf16.mxu0 %v3590
      %13999 = vmatmul.mubr.bf16.gmra.mrb[0].mxu0 %v3588
      %v14000 = vpop.f32.mrb[0].mxu0
      %v14001 = vadd.f32 %v13961, %v14000
      %v14002 = vpop.f32.mrb[0].mxu0
      %v14003 = vpop.f32.mrb[0].mxu0
      %v14004 = vpop.f32.mrb[0].mxu0
      %14005 = vdwg.mxu0
      %14006 = vmatprep.subr.bf16.mxu0 0
      %14007 = vmatpush1.bf16.msra.mxu0 %v10118
      %14008 = vmatprep.subr.bf16.mxu0 0
      %14009 = vmatpush1.bf16.msra.mxu0 %v10119
      %14010 = vmatprep.subr.bf16.mxu0 0
      %14011 = vmatpush1.bf16.msra.mxu0 %v10120
      %14012 = vmatprep.subr.bf16.mxu0 0
      %14013 = vmatpush1.bf16.msra.mxu0 %v10121
      %14014 = vmatprep.subr.bf16.mxu0 0
      %14015 = vmatpush1.bf16.msra.mxu0 %v10122
      %14016 = vmatprep.subr.bf16.mxu0 0
      %14017 = vmatpush1.bf16.msra.mxu0 %v10123
      %14018 = vmatprep.subr.bf16.mxu0 0
      %14019 = vmatpush1.bf16.msra.mxu0 %v10124
      %14020 = vmatprep.subr.bf16.mxu0 0
      %14021 = vmatpush1.bf16.msra.mxu0 %v10125
      %14022 = vmatprep.subr.bf16.mxu0 0
      %14023 = vmatpush1.bf16.msra.mxu0 %v10126
      %14024 = vmatprep.subr.bf16.mxu0 0
      %14025 = vmatpush1.bf16.msra.mxu0 %v10127
      %14026 = vmatprep.subr.bf16.mxu0 0
      %14027 = vmatpush1.bf16.msra.mxu0 %v10128
      %14028 = vmatprep.subr.bf16.mxu0 0
      %14029 = vmatpush1.bf16.msra.mxu0 %v10129
      %14030 = vmatprep.subr.bf16.mxu0 0
      %14031 = vmatpush1.bf16.msra.mxu0 %v10130
      %14032 = vmatprep.subr.bf16.mxu0 0
      %14033 = vmatpush1.bf16.msra.mxu0 %v10131
      %14034 = vmatprep.subr.bf16.mxu0 0
      %14035 = vmatpush1.bf16.msra.mxu0 %v10132
      %14036 = vmatprep.subr.bf16.mxu0 0
      %14037 = vmatpush1.bf16.msra.mxu0 %v10133
      %14038 = vmatprep.mubr.bf16.mxu0 %v3587
      %14039 = vmatmul.mubr.bf16.gmra.mrb[0].mxu0 %v3573
      %v14040 = vpop.f32.mrb[0].mxu0
      %v14041 = vadd.f32 %v14001, %v14040
      %v14042 = vpop.f32.mrb[0].mxu0
      %v14043 = vpop.f32.mrb[0].mxu0
      %v14044 = vpop.f32.mrb[0].mxu0
      %14045 = vdwg.mxu0
      %14046 = vmatprep.subr.bf16.mxu0 0
      %14047 = vmatpush1.bf16.msra.mxu0 %v10134
      %14048 = vmatprep.subr.bf16.mxu0 0
      %14049 = vmatpush1.bf16.msra.mxu0 %v10135
      %14050 = vmatprep.subr.bf16.mxu0 0
      %14051 = vmatpush1.bf16.msra.mxu0 %v10136
      %14052 = vmatprep.subr.bf16.mxu0 0
      %14053 = vmatpush1.bf16.msra.mxu0 %v10137
      %14054 = vmatprep.subr.bf16.mxu0 0
      %14055 = vmatpush1.bf16.msra.mxu0 %v10138
      %14056 = vmatprep.subr.bf16.mxu0 0
      %14057 = vmatpush1.bf16.msra.mxu0 %v10139
      %14058 = vmatprep.subr.bf16.mxu0 0
      %14059 = vmatpush1.bf16.msra.mxu0 %v10140
      %14060 = vmatprep.subr.bf16.mxu0 0
      %14061 = vmatpush1.bf16.msra.mxu0 %v10141
      %14062 = vmatprep.subr.bf16.mxu0 0
      %14063 = vmatpush1.bf16.msra.mxu0 %v10142
      %14064 = vmatprep.subr.bf16.mxu0 0
      %14065 = vmatpush1.bf16.msra.mxu0 %v10143
      %14066 = vmatprep.subr.bf16.mxu0 0
      %14067 = vmatpush1.bf16.msra.mxu0 %v10144
      %14068 = vmatprep.subr.bf16.mxu0 0
      %14069 = vmatpush1.bf16.msra.mxu0 %v10145
      %14070 = vmatprep.subr.bf16.mxu0 0
      %14071 = vmatpush1.bf16.msra.mxu0 %v10146
      %14072 = vmatprep.subr.bf16.mxu0 0
      %14073 = vmatpush1.bf16.msra.mxu0 %v10147
      %14074 = vmatprep.subr.bf16.mxu0 0
      %14075 = vmatpush1.bf16.msra.mxu0 %v10148
      %14076 = vmatprep.subr.bf16.mxu0 0
      %14077 = vmatpush1.bf16.msra.mxu0 %v10149
      %14078 = vmatprep.mubr.bf16.mxu0 %v3591
      %14079 = vmatmul.mubr.bf16.gmra.mrb[0].mxu0 %v3589
      %v14080 = vpop.f32.mrb[0].mxu0
      %v14081 = vadd.f32 %v14041, %v14080
      %v14082 = vpop.f32.mrb[0].mxu0
      %v14083 = vpop.f32.mrb[0].mxu0
      %v14084 = vpop.f32.mrb[0].mxu0
      %14085 = vdwg.mxu0
      %14086 = vmatprep.subr.bf16.mxu0 0
      %14087 = vmatpush1.bf16.msra.mxu0 %v10150
      %14088 = vmatprep.subr.bf16.mxu0 0
      %14089 = vmatpush1.bf16.msra.mxu0 %v10151
      %14090 = vmatprep.subr.bf16.mxu0 0
      %14091 = vmatpush1.bf16.msra.mxu0 %v10152
      %14092 = vmatprep.subr.bf16.mxu0 0
      %14093 = vmatpush1.bf16.msra.mxu0 %v10153
      %14094 = vmatprep.subr.bf16.mxu0 0
      %14095 = vmatpush1.bf16.msra.mxu0 %v10154
      %14096 = vmatprep.subr.bf16.mxu0 0
      %14097 = vmatpush1.bf16.msra.mxu0 %v10155
      %14098 = vmatprep.subr.bf16.mxu0 0
      %14099 = vmatpush1.bf16.msra.mxu0 %v10156
      %14100 = vmatprep.subr.bf16.mxu0 0
      %14101 = vmatpush1.bf16.msra.mxu0 %v10157
      %14102 = vmatprep.subr.bf16.mxu0 0
      %14103 = vmatpush1.bf16.msra.mxu0 %v10158
      %14104 = vmatprep.subr.bf16.mxu0 0
      %14105 = vmatpush1.bf16.msra.mxu0 %v10159
      %14106 = vmatprep.subr.bf16.mxu0 0
      %14107 = vmatpush1.bf16.msra.mxu0 %v10160
      %14108 = vmatprep.subr.bf16.mxu0 0
      %14109 = vmatpush1.bf16.msra.mxu0 %v10161
      %14110 = vmatprep.subr.bf16.mxu0 0
      %14111 = vmatpush1.bf16.msra.mxu0 %v10162
      %14112 = vmatprep.subr.bf16.mxu0 0
      %14113 = vmatpush1.bf16.msra.mxu0 %v10163
      %14114 = vmatprep.subr.bf16.mxu0 0
      %14115 = vmatpush1.bf16.msra.mxu0 %v10164
      %14116 = vmatprep.subr.bf16.mxu0 0
      %14117 = vmatpush1.bf16.msra.mxu0 %v10165
      %14118 = vmatprep.mubr.bf16.mxu0 %v3629
      %14119 = vmatmul.mubr.bf16.gmra.mrb[0].mxu0 %v3615
      %v14120 = vpop.f32.mrb[0].mxu0
      %v14121 = vadd.f32 %v14081, %v14120
      %v14122 = vpop.f32.mrb[0].mxu0
      %v14123 = vpop.f32.mrb[0].mxu0
      %v14124 = vpop.f32.mrb[0].mxu0
      %14125 = vdwg.mxu0
      %14126 = vmatprep.subr.bf16.mxu0 0
      %14127 = vmatpush1.bf16.msra.mxu0 %v10166
      %14128 = vmatprep.subr.bf16.mxu0 0
      %14129 = vmatpush1.bf16.msra.mxu0 %v10167
      %14130 = vmatprep.subr.bf16.mxu0 0
      %14131 = vmatpush1.bf16.msra.mxu0 %v10168
      %14132 = vmatprep.subr.bf16.mxu0 0
      %14133 = vmatpush1.bf16.msra.mxu0 %v10169
      %14134 = vmatprep.subr.bf16.mxu0 0
      %14135 = vmatpush1.bf16.msra.mxu0 %v10170
      %14136 = vmatprep.subr.bf16.mxu0 0
      %14137 = vmatpush1.bf16.msra.mxu0 %v10171
      %14138 = vmatprep.subr.bf16.mxu0 0
      %14139 = vmatpush1.bf16.msra.mxu0 %v10172
      %14140 = vmatprep.subr.bf16.mxu0 0
      %14141 = vmatpush1.bf16.msra.mxu0 %v10173
      %14142 = vmatprep.subr.bf16.mxu0 0
      %14143 = vmatpush1.bf16.msra.mxu0 %v10174
      %14144 = vmatprep.subr.bf16.mxu0 0
      %14145 = vmatpush1.bf16.msra.mxu0 %v10175
      %14146 = vmatprep.subr.bf16.mxu0 0
      %14147 = vmatpush1.bf16.msra.mxu0 %v10176
      %14148 = vmatprep.subr.bf16.mxu0 0
      %14149 = vmatpush1.bf16.msra.mxu0 %v10177
      %14150 = vmatprep.subr.bf16.mxu0 0
      %14151 = vmatpush1.bf16.msra.mxu0 %v10178
      %14152 = vmatprep.subr.bf16.mxu0 0
      %14153 = vmatpush1.bf16.msra.mxu0 %v10179
      %14154 = vmatprep.subr.bf16.mxu0 0
      %14155 = vmatpush1.bf16.msra.mxu0 %v10180
      %14156 = vmatprep.subr.bf16.mxu0 0
      %14157 = vmatpush1.bf16.msra.mxu0 %v10181
      %14158 = vmatprep.mubr.bf16.mxu0 %v3639
      %14159 = vmatmul.mubr.bf16.gmra.mrb[0].mxu0 %v3637
      %v14160 = vpop.f32.mrb[0].mxu0
      %v14161 = vadd.f32 %v14121, %v14160
      %v14162 = vpop.f32.mrb[0].mxu0
      %v14163 = vpop.f32.mrb[0].mxu0
      %v14164 = vpop.f32.mrb[0].mxu0
      %14165 = vdwg.mxu0
      %14166 = vmatprep.subr.bf16.mxu0 0
      %14167 = vmatpush1.bf16.msra.mxu0 %v10182
      %14168 = vmatprep.subr.bf16.mxu0 0
      %14169 = vmatpush1.bf16.msra.mxu0 %v10183
      %14170 = vmatprep.subr.bf16.mxu0 0
      %14171 = vmatpush1.bf16.msra.mxu0 %v10184
      %14172 = vmatprep.subr.bf16.mxu0 0
      %14173 = vmatpush1.bf16.msra.mxu0 %v10185
      %14174 = vmatprep.subr.bf16.mxu0 0
      %14175 = vmatpush1.bf16.msra.mxu0 %v10186
      %14176 = vmatprep.subr.bf16.mxu0 0
      %14177 = vmatpush1.bf16.msra.mxu0 %v10187
      %14178 = vmatprep.subr.bf16.mxu0 0
      %14179 = vmatpush1.bf16.msra.mxu0 %v10188
      %14180 = vmatprep.subr.bf16.mxu0 0
      %14181 = vmatpush1.bf16.msra.mxu0 %v10189
      %14182 = vmatprep.subr.bf16.mxu0 0
      %14183 = vmatpush1.bf16.msra.mxu0 %v10190
      %14184 = vmatprep.subr.bf16.mxu0 0
      %14185 = vmatpush1.bf16.msra.mxu0 %v10191
      %14186 = vmatprep.subr.bf16.mxu0 0
      %14187 = vmatpush1.bf16.msra.mxu0 %v10192
      %14188 = vmatprep.subr.bf16.mxu0 0
      %14189 = vmatpush1.bf16.msra.mxu0 %v10193
      %14190 = vmatprep.subr.bf16.mxu0 0
      %14191 = vmatpush1.bf16.msra.mxu0 %v10194
      %14192 = vmatprep.subr.bf16.mxu0 0
      %14193 = vmatpush1.bf16.msra.mxu0 %v10195
      %14194 = vmatprep.subr.bf16.mxu0 0
      %14195 = vmatpush1.bf16.msra.mxu0 %v10196
      %14196 = vmatprep.subr.bf16.mxu0 0
      %14197 = vmatpush1.bf16.msra.mxu0 %v10197
      %14198 = vmatprep.mubr.bf16.mxu0 %v3636
      %14199 = vmatmul.mubr.bf16.gmra.mrb[0].mxu0 %v3622
      %v14200 = vpop.f32.mrb[0].mxu0
      %v14201 = vadd.f32 %v14161, %v14200
      %v14202 = vpop.f32.mrb[0].mxu0
      %v14203 = vpop.f32.mrb[0].mxu0
      %v14204 = vpop.f32.mrb[0].mxu0
      %14205 = vdwg.mxu0
      %14206 = vmatprep.subr.bf16.mxu0 0
      %14207 = vmatpush1.bf16.msra.mxu0 %v10198
      %14208 = vmatprep.subr.bf16.mxu0 0
      %14209 = vmatpush1.bf16.msra.mxu0 %v10199
      %14210 = vmatprep.subr.bf16.mxu0 0
      %14211 = vmatpush1.bf16.msra.mxu0 %v10200
      %14212 = vmatprep.subr.bf16.mxu0 0
      %14213 = vmatpush1.bf16.msra.mxu0 %v10201
      %14214 = vmatprep.subr.bf16.mxu0 0
      %14215 = vmatpush1.bf16.msra.mxu0 %v10202
      %14216 = vmatprep.subr.bf16.mxu0 0
      %14217 = vmatpush1.bf16.msra.mxu0 %v10203
      %14218 = vmatprep.subr.bf16.mxu0 0
      %14219 = vmatpush1.bf16.msra.mxu0 %v10204
      %14220 = vmatprep.subr.bf16.mxu0 0
      %14221 = vmatpush1.bf16.msra.mxu0 %v10205
      %14222 = vmatprep.subr.bf16.mxu0 0
      %14223 = vmatpush1.bf16.msra.mxu0 %v10206
      %14224 = vmatprep.subr.bf16.mxu0 0
      %14225 = vmatpush1.bf16.msra.mxu0 %v10207
      %14226 = vmatprep.subr.bf16.mxu0 0
      %14227 = vmatpush1.bf16.msra.mxu0 %v10208
      %14228 = vmatprep.subr.bf16.mxu0 0
      %14229 = vmatpush1.bf16.msra.mxu0 %v10209
      %14230 = vmatprep.subr.bf16.mxu0 0
      %14231 = vmatpush1.bf16.msra.mxu0 %v10210
      %14232 = vmatprep.subr.bf16.mxu0 0
      %14233 = vmatpush1.bf16.msra.mxu0 %v10211
      %14234 = vmatprep.subr.bf16.mxu0 0
      %14235 = vmatpush1.bf16.msra.mxu0 %v10212
      %14236 = vmatprep.subr.bf16.mxu0 0
      %14237 = vmatpush1.bf16.msra.mxu0 %v10213
      %14238 = vmatprep.mubr.bf16.mxu0 %v3640
      %14239 = vmatmul.mubr.bf16.gmra.mrb[0].mxu0 %v3638
      %v14240 = vpop.f32.mrb[0].mxu0
      %v14241 = vadd.f32 %v14201, %v14240
      %v14242 = vpop.f32.mrb[0].mxu0
      %v14243 = vpop.f32.mrb[0].mxu0
      %v14244 = vpop.f32.mrb[0].mxu0
      %14245 = vdwg.mxu0
      %14246 = vmatprep.subr.bf16.mxu0 0
      %14247 = vmatpush1.bf16.msra.mxu0 %v10214
      %14248 = vmatprep.subr.bf16.mxu0 0
      %14249 = vmatpush1.bf16.msra.mxu0 %v10215
      %14250 = vmatprep.subr.bf16.mxu0 0
      %14251 = vmatpush1.bf16.msra.mxu0 %v10216
      %14252 = vmatprep.subr.bf16.mxu0 0
      %14253 = vmatpush1.bf16.msra.mxu0 %v10217
      %14254 = vmatprep.subr.bf16.mxu0 0
      %14255 = vmatpush1.bf16.msra.mxu0 %v10218
      %14256 = vmatprep.subr.bf16.mxu0 0
      %14257 = vmatpush1.bf16.msra.mxu0 %v10219
      %14258 = vmatprep.subr.bf16.mxu0 0
      %14259 = vmatpush1.bf16.msra.mxu0 %v10220
      %14260 = vmatprep.subr.bf16.mxu0 0
      %14261 = vmatpush1.bf16.msra.mxu0 %v10221
      %14262 = vmatprep.subr.bf16.mxu0 0
      %14263 = vmatpush1.bf16.msra.mxu0 %v10222
      %14264 = vmatprep.subr.bf16.mxu0 0
      %14265 = vmatpush1.bf16.msra.mxu0 %v10223
      %14266 = vmatprep.subr.bf16.mxu0 0
      %14267 = vmatpush1.bf16.msra.mxu0 %v10224
      %14268 = vmatprep.subr.bf16.mxu0 0
      %14269 = vmatpush1.bf16.msra.mxu0 %v10225
      %14270 = vmatprep.subr.bf16.mxu0 0
      %14271 = vmatpush1.bf16.msra.mxu0 %v10226
      %14272 = vmatprep.subr.bf16.mxu0 0
      %14273 = vmatpush1.bf16.msra.mxu0 %v10227
      %14274 = vmatprep.subr.bf16.mxu0 0
      %14275 = vmatpush1.bf16.msra.mxu0 %v10228
      %14276 = vmatprep.subr.bf16.mxu0 0
      %14277 = vmatpush1.bf16.msra.mxu0 %v10229
      %14278 = vmatprep.mubr.bf16.mxu0 %v3678
      %14279 = vmatmul.mubr.bf16.gmra.mrb[0].mxu0 %v3664
      %v14280 = vpop.f32.mrb[0].mxu0
      %v14281 = vadd.f32 %v14241, %v14280
      %v14282 = vpop.f32.mrb[0].mxu0
      %v14283 = vpop.f32.mrb[0].mxu0
      %v14284 = vpop.f32.mrb[0].mxu0
      %14285 = vdwg.mxu0
      %14286 = vmatprep.subr.bf16.mxu0 0
      %14287 = vmatpush1.bf16.msra.mxu0 %v10230
      %14288 = vmatprep.subr.bf16.mxu0 0
      %14289 = vmatpush1.bf16.msra.mxu0 %v10231
      %14290 = vmatprep.subr.bf16.mxu0 0
      %14291 = vmatpush1.bf16.msra.mxu0 %v10232
      %14292 = vmatprep.subr.bf16.mxu0 0
      %14293 = vmatpush1.bf16.msra.mxu0 %v10233
      %14294 = vmatprep.subr.bf16.mxu0 0
      %14295 = vmatpush1.bf16.msra.mxu0 %v10234
      %14296 = vmatprep.subr.bf16.mxu0 0
      %14297 = vmatpush1.bf16.msra.mxu0 %v10235
      %14298 = vmatprep.subr.bf16.mxu0 0
      %14299 = vmatpush1.bf16.msra.mxu0 %v10236
      %14300 = vmatprep.subr.bf16.mxu0 0
      %14301 = vmatpush1.bf16.msra.mxu0 %v10237
      %14302 = vmatprep.subr.bf16.mxu0 0
      %14303 = vmatpush1.bf16.msra.mxu0 %v10238
      %14304 = vmatprep.subr.bf16.mxu0 0
      %14305 = vmatpush1.bf16.msra.mxu0 %v10239
      %14306 = vmatprep.subr.bf16.mxu0 0
      %14307 = vmatpush1.bf16.msra.mxu0 %v10240
      %14308 = vmatprep.subr.bf16.mxu0 0
      %14309 = vmatpush1.bf16.msra.mxu0 %v10241
      %14310 = vmatprep.subr.bf16.mxu0 0
      %14311 = vmatpush1.bf16.msra.mxu0 %v10242
      %14312 = vmatprep.subr.bf16.mxu0 0
      %14313 = vmatpush1.bf16.msra.mxu0 %v10243
      %14314 = vmatprep.subr.bf16.mxu0 0
      %14315 = vmatpush1.bf16.msra.mxu0 %v10244
      %14316 = vmatprep.subr.bf16.mxu0 0
      %14317 = vmatpush1.bf16.msra.mxu0 %v10245
      %14318 = vmatprep.mubr.bf16.mxu0 %v3688
      %14319 = vmatmul.mubr.bf16.gmra.mrb[0].mxu0 %v3686
      %v14320 = vpop.f32.mrb[0].mxu0
      %v14321 = vadd.f32 %v14281, %v14320
      %v14322 = vpop.f32.mrb[0].mxu0
      %v14323 = vpop.f32.mrb[0].mxu0
      %v14324 = vpop.f32.mrb[0].mxu0
      %14325 = vdwg.mxu0
      %14326 = vmatprep.subr.bf16.mxu0 0
      %14327 = vmatpush1.bf16.msra.mxu0 %v10246
      %14328 = vmatprep.subr.bf16.mxu0 0
      %14329 = vmatpush1.bf16.msra.mxu0 %v10247
      %14330 = vmatprep.subr.bf16.mxu0 0
      %14331 = vmatpush1.bf16.msra.mxu0 %v10248
      %14332 = vmatprep.subr.bf16.mxu0 0
      %14333 = vmatpush1.bf16.msra.mxu0 %v10249
      %14334 = vmatprep.subr.bf16.mxu0 0
      %14335 = vmatpush1.bf16.msra.mxu0 %v10250
      %14336 = vmatprep.subr.bf16.mxu0 0
      %14337 = vmatpush1.bf16.msra.mxu0 %v10251
      %14338 = vmatprep.subr.bf16.mxu0 0
      %14339 = vmatpush1.bf16.msra.mxu0 %v10252
      %14340 = vmatprep.subr.bf16.mxu0 0
      %14341 = vmatpush1.bf16.msra.mxu0 %v10253
      %14342 = vmatprep.subr.bf16.mxu0 0
      %14343 = vmatpush1.bf16.msra.mxu0 %v10254
      %14344 = vmatprep.subr.bf16.mxu0 0
      %14345 = vmatpush1.bf16.msra.mxu0 %v10255
      %14346 = vmatprep.subr.bf16.mxu0 0
      %14347 = vmatpush1.bf16.msra.mxu0 %v10256
      %14348 = vmatprep.subr.bf16.mxu0 0
      %14349 = vmatpush1.bf16.msra.mxu0 %v10257
      %14350 = vmatprep.subr.bf16.mxu0 0
      %14351 = vmatpush1.bf16.msra.mxu0 %v10258
      %14352 = vmatprep.subr.bf16.mxu0 0
      %14353 = vmatpush1.bf16.msra.mxu0 %v10259
      %14354 = vmatprep.subr.bf16.mxu0 0
      %14355 = vmatpush1.bf16.msra.mxu0 %v10260
      %14356 = vmatprep.subr.bf16.mxu0 0
      %14357 = vmatpush1.bf16.msra.mxu0 %v10261
      %14358 = vmatprep.mubr.bf16.mxu0 %v3685
      %14359 = vmatmul.mubr.bf16.gmra.mrb[0].mxu0 %v3671
      %v14360 = vpop.f32.mrb[0].mxu0
      %v14361 = vadd.f32 %v14321, %v14360
      %v14362 = vpop.f32.mrb[0].mxu0
      %v14363 = vpop.f32.mrb[0].mxu0
      %v14364 = vpop.f32.mrb[0].mxu0
      %14365 = vdwg.mxu0
      %14366 = vmatprep.subr.bf16.mxu0 0
      %14367 = vmatpush1.bf16.msra.mxu0 %v10262
      %14368 = vmatprep.subr.bf16.mxu0 0
      %14369 = vmatpush1.bf16.msra.mxu0 %v10263
      %14370 = vmatprep.subr.bf16.mxu0 0
      %14371 = vmatpush1.bf16.msra.mxu0 %v10264
      %14372 = vmatprep.subr.bf16.mxu0 0
      %14373 = vmatpush1.bf16.msra.mxu0 %v10265
      %14374 = vmatprep.subr.bf16.mxu0 0
      %14375 = vmatpush1.bf16.msra.mxu0 %v10266
      %14376 = vmatprep.subr.bf16.mxu0 0
      %14377 = vmatpush1.bf16.msra.mxu0 %v10267
      %14378 = vmatprep.subr.bf16.mxu0 0
      %14379 = vmatpush1.bf16.msra.mxu0 %v10268
      %14380 = vmatprep.subr.bf16.mxu0 0
      %14381 = vmatpush1.bf16.msra.mxu0 %v10269
      %14382 = vmatprep.subr.bf16.mxu0 0
      %14383 = vmatpush1.bf16.msra.mxu0 %v10270
      %14384 = vmatprep.subr.bf16.mxu0 0
      %14385 = vmatpush1.bf16.msra.mxu0 %v10271
      %14386 = vmatprep.subr.bf16.mxu0 0
      %14387 = vmatpush1.bf16.msra.mxu0 %v10272
      %14388 = vmatprep.subr.bf16.mxu0 0
      %14389 = vmatpush1.bf16.msra.mxu0 %v10273
      %14390 = vmatprep.subr.bf16.mxu0 0
      %14391 = vmatpush1.bf16.msra.mxu0 %v10274
      %14392 = vmatprep.subr.bf16.mxu0 0
      %14393 = vmatpush1.bf16.msra.mxu0 %v10275
      %14394 = vmatprep.subr.bf16.mxu0 0
      %14395 = vmatpush1.bf16.msra.mxu0 %v10276
      %14396 = vmatprep.subr.bf16.mxu0 0
      %14397 = vmatpush1.bf16.msra.mxu0 %v10277
      %14398 = vmatprep.mubr.bf16.mxu0 %v3689
      %14399 = vmatmul.mubr.bf16.gmra.mrb[0].mxu0 %v3687
      %v14400 = vpop.f32.mrb[0].mxu0
      %v14401 = vadd.f32 %v14361, %v14400
      %v14402 = vpop.f32.mrb[0].mxu0
      %v14403 = vpop.f32.mrb[0].mxu0
      %v14404 = vpop.f32.mrb[0].mxu0
      %14405 = vdwg.mxu0
      %14406 = vmatprep.subr.bf16.mxu0 0
      %14407 = vmatpush1.bf16.msra.mxu0 %v10278
      %14408 = vmatprep.subr.bf16.mxu0 0
      %14409 = vmatpush1.bf16.msra.mxu0 %v10279
      %14410 = vmatprep.subr.bf16.mxu0 0
      %14411 = vmatpush1.bf16.msra.mxu0 %v10280
      %14412 = vmatprep.subr.bf16.mxu0 0
      %14413 = vmatpush1.bf16.msra.mxu0 %v10281
      %14414 = vmatprep.subr.bf16.mxu0 0
      %14415 = vmatpush1.bf16.msra.mxu0 %v10282
      %14416 = vmatprep.subr.bf16.mxu0 0
      %14417 = vmatpush1.bf16.msra.mxu0 %v10283
      %14418 = vmatprep.subr.bf16.mxu0 0
      %14419 = vmatpush1.bf16.msra.mxu0 %v10284
      %14420 = vmatprep.subr.bf16.mxu0 0
      %14421 = vmatpush1.bf16.msra.mxu0 %v10285
      %14422 = vmatprep.subr.bf16.mxu0 0
      %14423 = vmatpush1.bf16.msra.mxu0 %v10286
      %14424 = vmatprep.subr.bf16.mxu0 0
      %14425 = vmatpush1.bf16.msra.mxu0 %v10287
      %14426 = vmatprep.subr.bf16.mxu0 0
      %14427 = vmatpush1.bf16.msra.mxu0 %v10288
      %14428 = vmatprep.subr.bf16.mxu0 0
      %14429 = vmatpush1.bf16.msra.mxu0 %v10289
      %14430 = vmatprep.subr.bf16.mxu0 0
      %14431 = vmatpush1.bf16.msra.mxu0 %v10290
      %14432 = vmatprep.subr.bf16.mxu0 0
      %14433 = vmatpush1.bf16.msra.mxu0 %v10291
      %14434 = vmatprep.subr.bf16.mxu0 0
      %14435 = vmatpush1.bf16.msra.mxu0 %v10292
      %14436 = vmatprep.subr.bf16.mxu0 0
      %14437 = vmatpush1.bf16.msra.mxu0 %v10293
      %14438 = vmatprep.mubr.bf16.mxu0 %v3727
      %14439 = vmatmul.mubr.bf16.gmra.mrb[0].mxu0 %v3713
      %v14440 = vpop.f32.mrb[0].mxu0
      %v14441 = vadd.f32 %v14401, %v14440
      %v14442 = vpop.f32.mrb[0].mxu0
      %v14443 = vpop.f32.mrb[0].mxu0
      %v14444 = vpop.f32.mrb[0].mxu0
      %14445 = vdwg.mxu0
      %14446 = vmatprep.subr.bf16.mxu0 0
      %14447 = vmatpush1.bf16.msra.mxu0 %v10294
      %14448 = vmatprep.subr.bf16.mxu0 0
      %14449 = vmatpush1.bf16.msra.mxu0 %v10295
      %14450 = vmatprep.subr.bf16.mxu0 0
      %14451 = vmatpush1.bf16.msra.mxu0 %v10296
      %14452 = vmatprep.subr.bf16.mxu0 0
      %14453 = vmatpush1.bf16.msra.mxu0 %v10297
      %14454 = vmatprep.subr.bf16.mxu0 0
      %14455 = vmatpush1.bf16.msra.mxu0 %v10298
      %14456 = vmatprep.subr.bf16.mxu0 0
      %14457 = vmatpush1.bf16.msra.mxu0 %v10299
      %14458 = vmatprep.subr.bf16.mxu0 0
      %14459 = vmatpush1.bf16.msra.mxu0 %v10300
      %14460 = vmatprep.subr.bf16.mxu0 0
      %14461 = vmatpush1.bf16.msra.mxu0 %v10301
      %14462 = vmatprep.subr.bf16.mxu0 0
      %14463 = vmatpush1.bf16.msra.mxu0 %v10302
      %14464 = vmatprep.subr.bf16.mxu0 0
      %14465 = vmatpush1.bf16.msra.mxu0 %v10303
      %14466 = vmatprep.subr.bf16.mxu0 0
      %14467 = vmatpush1.bf16.msra.mxu0 %v10304
      %14468 = vmatprep.subr.bf16.mxu0 0
      %14469 = vmatpush1.bf16.msra.mxu0 %v10305
      %14470 = vmatprep.subr.bf16.mxu0 0
      %14471 = vmatpush1.bf16.msra.mxu0 %v10306
      %14472 = vmatprep.subr.bf16.mxu0 0
      %14473 = vmatpush1.bf16.msra.mxu0 %v10307
      %14474 = vmatprep.subr.bf16.mxu0 0
      %14475 = vmatpush1.bf16.msra.mxu0 %v10308
      %14476 = vmatprep.subr.bf16.mxu0 0
      %14477 = vmatpush1.bf16.msra.mxu0 %v10309
      %14478 = vmatprep.mubr.bf16.mxu0 %v3737
      %14479 = vmatmul.mubr.bf16.gmra.mrb[0].mxu0 %v3735
      %v14480 = vpop.f32.mrb[0].mxu0
      %v14481 = vadd.f32 %v14441, %v14480
      %v14482 = vpop.f32.mrb[0].mxu0
      %v14483 = vpop.f32.mrb[0].mxu0
      %v14484 = vpop.f32.mrb[0].mxu0
      %14485 = vdwg.mxu0
      %14486 = vmatprep.subr.bf16.mxu0 0
      %14487 = vmatpush1.bf16.msra.mxu0 %v10310
      %14488 = vmatprep.subr.bf16.mxu0 0
      %14489 = vmatpush1.bf16.msra.mxu0 %v10311
      %14490 = vmatprep.subr.bf16.mxu0 0
      %14491 = vmatpush1.bf16.msra.mxu0 %v10312
      %14492 = vmatprep.subr.bf16.mxu0 0
      %14493 = vmatpush1.bf16.msra.mxu0 %v10313
      %14494 = vmatprep.subr.bf16.mxu0 0
      %14495 = vmatpush1.bf16.msra.mxu0 %v10314
      %14496 = vmatprep.subr.bf16.mxu0 0
      %14497 = vmatpush1.bf16.msra.mxu0 %v10315
      %14498 = vmatprep.subr.bf16.mxu0 0
      %14499 = vmatpush1.bf16.msra.mxu0 %v10316
      %14500 = vmatprep.subr.bf16.mxu0 0
      %14501 = vmatpush1.bf16.msra.mxu0 %v10317
      %14502 = vmatprep.subr.bf16.mxu0 0
      %14503 = vmatpush1.bf16.msra.mxu0 %v10318
      %14504 = vmatprep.subr.bf16.mxu0 0
      %14505 = vmatpush1.bf16.msra.mxu0 %v10319
      %14506 = vmatprep.subr.bf16.mxu0 0
      %14507 = vmatpush1.bf16.msra.mxu0 %v10320
      %14508 = vmatprep.subr.bf16.mxu0 0
      %14509 = vmatpush1.bf16.msra.mxu0 %v10321
      %14510 = vmatprep.subr.bf16.mxu0 0
      %14511 = vmatpush1.bf16.msra.mxu0 %v10322
      %14512 = vmatprep.subr.bf16.mxu0 0
      %14513 = vmatpush1.bf16.msra.mxu0 %v10323
      %14514 = vmatprep.subr.bf16.mxu0 0
      %14515 = vmatpush1.bf16.msra.mxu0 %v10324
      %14516 = vmatprep.subr.bf16.mxu0 0
      %14517 = vmatpush1.bf16.msra.mxu0 %v10325
      %14518 = vmatprep.mubr.bf16.mxu0 %v3734
      %14519 = vmatmul.mubr.bf16.gmra.mrb[0].mxu0 %v3720
      %v14520 = vpop.f32.mrb[0].mxu0
      %v14521 = vadd.f32 %v14481, %v14520
      %v14522 = vpop.f32.mrb[0].mxu0
      %v14523 = vpop.f32.mrb[0].mxu0
      %v14524 = vpop.f32.mrb[0].mxu0
      %14525 = vdwg.mxu0
      %14526 = vmatprep.subr.bf16.mxu0 0
      %14527 = vmatpush1.bf16.msra.mxu0 %v10326
      %14528 = vmatprep.subr.bf16.mxu0 0
      %14529 = vmatpush1.bf16.msra.mxu0 %v10327
      %14530 = vmatprep.subr.bf16.mxu0 0
      %14531 = vmatpush1.bf16.msra.mxu0 %v10328
      %14532 = vmatprep.subr.bf16.mxu0 0
      %14533 = vmatpush1.bf16.msra.mxu0 %v10329
      %14534 = vmatprep.subr.bf16.mxu0 0
      %14535 = vmatpush1.bf16.msra.mxu0 %v10330
      %14536 = vmatprep.subr.bf16.mxu0 0
      %14537 = vmatpush1.bf16.msra.mxu0 %v10331
      %14538 = vmatprep.subr.bf16.mxu0 0
      %14539 = vmatpush1.bf16.msra.mxu0 %v10332
      %14540 = vmatprep.subr.bf16.mxu0 0
      %14541 = vmatpush1.bf16.msra.mxu0 %v10333
      %14542 = vmatprep.subr.bf16.mxu0 0
      %14543 = vmatpush1.bf16.msra.mxu0 %v10334
      %14544 = vmatprep.subr.bf16.mxu0 0
      %14545 = vmatpush1.bf16.msra.mxu0 %v10335
      %14546 = vmatprep.subr.bf16.mxu0 0
      %14547 = vmatpush1.bf16.msra.mxu0 %v10336
      %14548 = vmatprep.subr.bf16.mxu0 0
      %14549 = vmatpush1.bf16.msra.mxu0 %v10337
      %14550 = vmatprep.subr.bf16.mxu0 0
      %14551 = vmatpush1.bf16.msra.mxu0 %v10338
      %14552 = vmatprep.subr.bf16.mxu0 0
      %14553 = vmatpush1.bf16.msra.mxu0 %v10339
      %14554 = vmatprep.subr.bf16.mxu0 0
      %14555 = vmatpush1.bf16.msra.mxu0 %v10340
      %14556 = vmatprep.subr.bf16.mxu0 0
      %14557 = vmatpush1.bf16.msra.mxu0 %v10341
      %14558 = vmatprep.mubr.bf16.mxu0 %v3738
      %14559 = vmatmul.mubr.bf16.gmra.mrb[0].mxu0 %v3736
      %v14560 = vpop.f32.mrb[0].mxu0
      %v14561 = vadd.f32 %v14521, %v14560
      %v14562 = vpop.f32.mrb[0].mxu0
      %v14563 = vpop.f32.mrb[0].mxu0
      %v14564 = vpop.f32.mrb[0].mxu0
      %14565 = vdwg.mxu0
      %14566 = vmatprep.subr.bf16.mxu0 0
      %14567 = vmatpush1.bf16.msra.mxu0 %v10342
      %14568 = vmatprep.subr.bf16.mxu0 0
      %14569 = vmatpush1.bf16.msra.mxu0 %v10343
      %14570 = vmatprep.subr.bf16.mxu0 0
      %14571 = vmatpush1.bf16.msra.mxu0 %v10344
      %14572 = vmatprep.subr.bf16.mxu0 0
      %14573 = vmatpush1.bf16.msra.mxu0 %v10345
      %14574 = vmatprep.subr.bf16.mxu0 0
      %14575 = vmatpush1.bf16.msra.mxu0 %v10346
      %14576 = vmatprep.subr.bf16.mxu0 0
      %14577 = vmatpush1.bf16.msra.mxu0 %v10347
      %14578 = vmatprep.subr.bf16.mxu0 0
      %14579 = vmatpush1.bf16.msra.mxu0 %v10348
      %14580 = vmatprep.subr.bf16.mxu0 0
      %14581 = vmatpush1.bf16.msra.mxu0 %v10349
      %14582 = vmatprep.subr.bf16.mxu0 0
      %14583 = vmatpush1.bf16.msra.mxu0 %v10350
      %14584 = vmatprep.subr.bf16.mxu0 0
      %14585 = vmatpush1.bf16.msra.mxu0 %v10351
      %14586 = vmatprep.subr.bf16.mxu0 0
      %14587 = vmatpush1.bf16.msra.mxu0 %v10352
      %14588 = vmatprep.subr.bf16.mxu0 0
      %14589 = vmatpush1.bf16.msra.mxu0 %v10353
      %14590 = vmatprep.subr.bf16.mxu0 0
      %14591 = vmatpush1.bf16.msra.mxu0 %v10354
      %14592 = vmatprep.subr.bf16.mxu0 0
      %14593 = vmatpush1.bf16.msra.mxu0 %v10355
      %14594 = vmatprep.subr.bf16.mxu0 0
      %14595 = vmatpush1.bf16.msra.mxu0 %v10356
      %14596 = vmatprep.subr.bf16.mxu0 0
      %14597 = vmatpush1.bf16.msra.mxu0 %v10357
      %14598 = vmatprep.mubr.bf16.mxu0 %v3776
      %14599 = vmatmul.mubr.bf16.gmra.mrb[0].mxu0 %v3762
      %v14600 = vpop.f32.mrb[0].mxu0
      %v14601 = vadd.f32 %v14561, %v14600
      %v14602 = vpop.f32.mrb[0].mxu0
      %v14603 = vpop.f32.mrb[0].mxu0
      %v14604 = vpop.f32.mrb[0].mxu0
      %14605 = vdwg.mxu0
      %14606 = vmatprep.subr.bf16.mxu0 0
      %14607 = vmatpush1.bf16.msra.mxu0 %v10358
      %14608 = vmatprep.subr.bf16.mxu0 0
      %14609 = vmatpush1.bf16.msra.mxu0 %v10359
      %14610 = vmatprep.subr.bf16.mxu0 0
      %14611 = vmatpush1.bf16.msra.mxu0 %v10360
      %14612 = vmatprep.subr.bf16.mxu0 0
      %14613 = vmatpush1.bf16.msra.mxu0 %v10361
      %14614 = vmatprep.subr.bf16.mxu0 0
      %14615 = vmatpush1.bf16.msra.mxu0 %v10362
      %14616 = vmatprep.subr.bf16.mxu0 0
      %14617 = vmatpush1.bf16.msra.mxu0 %v10363
      %14618 = vmatprep.subr.bf16.mxu0 0
      %14619 = vmatpush1.bf16.msra.mxu0 %v10364
      %14620 = vmatprep.subr.bf16.mxu0 0
      %14621 = vmatpush1.bf16.msra.mxu0 %v10365
      %14622 = vmatprep.subr.bf16.mxu0 0
      %14623 = vmatpush1.bf16.msra.mxu0 %v10366
      %14624 = vmatprep.subr.bf16.mxu0 0
      %14625 = vmatpush1.bf16.msra.mxu0 %v10367
      %14626 = vmatprep.subr.bf16.mxu0 0
      %14627 = vmatpush1.bf16.msra.mxu0 %v10368
      %14628 = vmatprep.subr.bf16.mxu0 0
      %14629 = vmatpush1.bf16.msra.mxu0 %v10369
      %14630 = vmatprep.subr.bf16.mxu0 0
      %14631 = vmatpush1.bf16.msra.mxu0 %v10370
      %14632 = vmatprep.subr.bf16.mxu0 0
      %14633 = vmatpush1.bf16.msra.mxu0 %v10371
      %14634 = vmatprep.subr.bf16.mxu0 0
      %14635 = vmatpush1.bf16.msra.mxu0 %v10372
      %14636 = vmatprep.subr.bf16.mxu0 0
      %14637 = vmatpush1.bf16.msra.mxu0 %v10373
      %14638 = vmatprep.mubr.bf16.mxu0 %v3786
      %14639 = vmatmul.mubr.bf16.gmra.mrb[0].mxu0 %v3784
      %v14640 = vpop.f32.mrb[0].mxu0
      %v14641 = vadd.f32 %v14601, %v14640
      %v14642 = vpop.f32.mrb[0].mxu0
      %v14643 = vpop.f32.mrb[0].mxu0
      %v14644 = vpop.f32.mrb[0].mxu0
      %14645 = vdwg.mxu0
      %14646 = vmatprep.subr.bf16.mxu0 0
      %14647 = vmatpush1.bf16.msra.mxu0 %v10374
      %14648 = vmatprep.subr.bf16.mxu0 0
      %14649 = vmatpush1.bf16.msra.mxu0 %v10375
      %14650 = vmatprep.subr.bf16.mxu0 0
      %14651 = vmatpush1.bf16.msra.mxu0 %v10376
      %14652 = vmatprep.subr.bf16.mxu0 0
      %14653 = vmatpush1.bf16.msra.mxu0 %v10377
      %14654 = vmatprep.subr.bf16.mxu0 0
      %14655 = vmatpush1.bf16.msra.mxu0 %v10378
      %14656 = vmatprep.subr.bf16.mxu0 0
      %14657 = vmatpush1.bf16.msra.mxu0 %v10379
      %14658 = vmatprep.subr.bf16.mxu0 0
      %14659 = vmatpush1.bf16.msra.mxu0 %v10380
      %14660 = vmatprep.subr.bf16.mxu0 0
      %14661 = vmatpush1.bf16.msra.mxu0 %v10381
      %14662 = vmatprep.subr.bf16.mxu0 0
      %14663 = vmatpush1.bf16.msra.mxu0 %v10382
      %14664 = vmatprep.subr.bf16.mxu0 0
      %14665 = vmatpush1.bf16.msra.mxu0 %v10383
      %14666 = vmatprep.subr.bf16.mxu0 0
      %14667 = vmatpush1.bf16.msra.mxu0 %v10384
      %14668 = vmatprep.subr.bf16.mxu0 0
      %14669 = vmatpush1.bf16.msra.mxu0 %v10385
      %14670 = vmatprep.subr.bf16.mxu0 0
      %14671 = vmatpush1.bf16.msra.mxu0 %v10386
      %14672 = vmatprep.subr.bf16.mxu0 0
      %14673 = vmatpush1.bf16.msra.mxu0 %v10387
      %14674 = vmatprep.subr.bf16.mxu0 0
      %14675 = vmatpush1.bf16.msra.mxu0 %v10388
      %14676 = vmatprep.subr.bf16.mxu0 0
      %14677 = vmatpush1.bf16.msra.mxu0 %v10389
      %14678 = vmatprep.mubr.bf16.mxu0 %v3783
      %14679 = vmatmul.mubr.bf16.gmra.mrb[0].mxu0 %v3769
      %v14680 = vpop.f32.mrb[0].mxu0
      %v14681 = vadd.f32 %v14641, %v14680
      %v14682 = vpop.f32.mrb[0].mxu0
      %v14683 = vpop.f32.mrb[0].mxu0
      %v14684 = vpop.f32.mrb[0].mxu0
      %14685 = vdwg.mxu0
      %14686 = vmatprep.subr.bf16.mxu0 0
      %14687 = vmatpush1.bf16.msra.mxu0 %v10390
      %14688 = vmatprep.subr.bf16.mxu0 0
      %14689 = vmatpush1.bf16.msra.mxu0 %v10391
      %14690 = vmatprep.subr.bf16.mxu0 0
      %14691 = vmatpush1.bf16.msra.mxu0 %v10392
      %14692 = vmatprep.subr.bf16.mxu0 0
      %14693 = vmatpush1.bf16.msra.mxu0 %v10393
      %14694 = vmatprep.subr.bf16.mxu0 0
      %14695 = vmatpush1.bf16.msra.mxu0 %v10394
      %14696 = vmatprep.subr.bf16.mxu0 0
      %14697 = vmatpush1.bf16.msra.mxu0 %v10395
      %14698 = vmatprep.subr.bf16.mxu0 0
      %14699 = vmatpush1.bf16.msra.mxu0 %v10396
      %14700 = vmatprep.subr.bf16.mxu0 0
      %14701 = vmatpush1.bf16.msra.mxu0 %v10397
      %14702 = vmatprep.subr.bf16.mxu0 0
      %14703 = vmatpush1.bf16.msra.mxu0 %v10398
      %14704 = vmatprep.subr.bf16.mxu0 0
      %14705 = vmatpush1.bf16.msra.mxu0 %v10399
      %14706 = vmatprep.subr.bf16.mxu0 0
      %14707 = vmatpush1.bf16.msra.mxu0 %v10400
      %14708 = vmatprep.subr.bf16.mxu0 0
      %14709 = vmatpush1.bf16.msra.mxu0 %v10401
      %14710 = vmatprep.subr.bf16.mxu0 0
      %14711 = vmatpush1.bf16.msra.mxu0 %v10402
      %14712 = vmatprep.subr.bf16.mxu0 0
      %14713 = vmatpush1.bf16.msra.mxu0 %v10403
      %14714 = vmatprep.subr.bf16.mxu0 0
      %14715 = vmatpush1.bf16.msra.mxu0 %v10404
      %14716 = vmatprep.subr.bf16.mxu0 0
      %14717 = vmatpush1.bf16.msra.mxu0 %v10405
      %14718 = vmatprep.mubr.bf16.mxu0 %v3787
      %14719 = vmatmul.mubr.bf16.gmra.mrb[0].mxu0 %v3785
      %v14720 = vpop.f32.mrb[0].mxu0
      %v14721 = vadd.f32 %v14681, %v14720
      %v14722 = vpop.f32.mrb[0].mxu0
      %v14723 = vpop.f32.mrb[0].mxu0
      %v14724 = vpop.f32.mrb[0].mxu0
      %14725 = vdwg.mxu0
      %14726 = vmatprep.subr.bf16.mxu0 0
      %14727 = vmatpush1.bf16.msra.mxu0 %v10406
      %14728 = vmatprep.subr.bf16.mxu0 0
      %14729 = vmatpush1.bf16.msra.mxu0 %v10407
      %14730 = vmatprep.subr.bf16.mxu0 0
      %14731 = vmatpush1.bf16.msra.mxu0 %v10408
      %14732 = vmatprep.subr.bf16.mxu0 0
      %14733 = vmatpush1.bf16.msra.mxu0 %v10409
      %14734 = vmatprep.subr.bf16.mxu0 0
      %14735 = vmatpush1.bf16.msra.mxu0 %v10410
      %14736 = vmatprep.subr.bf16.mxu0 0
      %14737 = vmatpush1.bf16.msra.mxu0 %v10411
      %14738 = vmatprep.subr.bf16.mxu0 0
      %14739 = vmatpush1.bf16.msra.mxu0 %v10412
      %14740 = vmatprep.subr.bf16.mxu0 0
      %14741 = vmatpush1.bf16.msra.mxu0 %v10413
      %14742 = vmatprep.subr.bf16.mxu0 0
      %14743 = vmatpush1.bf16.msra.mxu0 %v10414
      %14744 = vmatprep.subr.bf16.mxu0 0
      %14745 = vmatpush1.bf16.msra.mxu0 %v10415
      %14746 = vmatprep.subr.bf16.mxu0 0
      %14747 = vmatpush1.bf16.msra.mxu0 %v10416
      %14748 = vmatprep.subr.bf16.mxu0 0
      %14749 = vmatpush1.bf16.msra.mxu0 %v10417
      %14750 = vmatprep.subr.bf16.mxu0 0
      %14751 = vmatpush1.bf16.msra.mxu0 %v10418
      %14752 = vmatprep.subr.bf16.mxu0 0
      %14753 = vmatpush1.bf16.msra.mxu0 %v10419
      %14754 = vmatprep.subr.bf16.mxu0 0
      %14755 = vmatpush1.bf16.msra.mxu0 %v10420
      %14756 = vmatprep.subr.bf16.mxu0 0
      %14757 = vmatpush1.bf16.msra.mxu0 %v10421
      %14758 = vmatprep.mubr.bf16.mxu0 %v3825
      %14759 = vmatmul.mubr.bf16.gmra.mrb[0].mxu0 %v3811
      %v14760 = vpop.f32.mrb[0].mxu0
      %v14761 = vadd.f32 %v14721, %v14760
      %v14762 = vpop.f32.mrb[0].mxu0
      %v14763 = vpop.f32.mrb[0].mxu0
      %v14764 = vpop.f32.mrb[0].mxu0
      %14765 = vdwg.mxu0
      %14766 = vmatprep.subr.bf16.mxu0 0
      %14767 = vmatpush1.bf16.msra.mxu0 %v10422
      %14768 = vmatprep.subr.bf16.mxu0 0
      %14769 = vmatpush1.bf16.msra.mxu0 %v10423
      %14770 = vmatprep.subr.bf16.mxu0 0
      %14771 = vmatpush1.bf16.msra.mxu0 %v10424
      %14772 = vmatprep.subr.bf16.mxu0 0
      %14773 = vmatpush1.bf16.msra.mxu0 %v10425
      %14774 = vmatprep.subr.bf16.mxu0 0
      %14775 = vmatpush1.bf16.msra.mxu0 %v10426
      %14776 = vmatprep.subr.bf16.mxu0 0
      %14777 = vmatpush1.bf16.msra.mxu0 %v10427
      %14778 = vmatprep.subr.bf16.mxu0 0
      %14779 = vmatpush1.bf16.msra.mxu0 %v10428
      %14780 = vmatprep.subr.bf16.mxu0 0
      %14781 = vmatpush1.bf16.msra.mxu0 %v10429
      %14782 = vmatprep.subr.bf16.mxu0 0
      %14783 = vmatpush1.bf16.msra.mxu0 %v10430
      %14784 = vmatprep.subr.bf16.mxu0 0
      %14785 = vmatpush1.bf16.msra.mxu0 %v10431
      %14786 = vmatprep.subr.bf16.mxu0 0
      %14787 = vmatpush1.bf16.msra.mxu0 %v10432
      %14788 = vmatprep.subr.bf16.mxu0 0
      %14789 = vmatpush1.bf16.msra.mxu0 %v10433
      %14790 = vmatprep.subr.bf16.mxu0 0
      %14791 = vmatpush1.bf16.msra.mxu0 %v10434
      %14792 = vmatprep.subr.bf16.mxu0 0
      %14793 = vmatpush1.bf16.msra.mxu0 %v10435
      %14794 = vmatprep.subr.bf16.mxu0 0
      %14795 = vmatpush1.bf16.msra.mxu0 %v10436
      %14796 = vmatprep.subr.bf16.mxu0 0
      %14797 = vmatpush1.bf16.msra.mxu0 %v10437
      %14798 = vmatprep.mubr.bf16.mxu0 %v3835
      %14799 = vmatmul.mubr.bf16.gmra.mrb[0].mxu0 %v3833
      %v14800 = vpop.f32.mrb[0].mxu0
      %v14801 = vadd.f32 %v14761, %v14800
      %v14802 = vpop.f32.mrb[0].mxu0
      %v14803 = vpop.f32.mrb[0].mxu0
      %v14804 = vpop.f32.mrb[0].mxu0
      %14805 = vdwg.mxu0
      %14806 = vmatprep.subr.bf16.mxu0 0
      %14807 = vmatpush1.bf16.msra.mxu0 %v10438
      %14808 = vmatprep.subr.bf16.mxu0 0
      %14809 = vmatpush1.bf16.msra.mxu0 %v10439
      %14810 = vmatprep.subr.bf16.mxu0 0
      %14811 = vmatpush1.bf16.msra.mxu0 %v10440
      %14812 = vmatprep.subr.bf16.mxu0 0
      %14813 = vmatpush1.bf16.msra.mxu0 %v10441
      %14814 = vmatprep.subr.bf16.mxu0 0
      %14815 = vmatpush1.bf16.msra.mxu0 %v10442
      %14816 = vmatprep.subr.bf16.mxu0 0
      %14817 = vmatpush1.bf16.msra.mxu0 %v10443
      %14818 = vmatprep.subr.bf16.mxu0 0
      %14819 = vmatpush1.bf16.msra.mxu0 %v10444
      %14820 = vmatprep.subr.bf16.mxu0 0
      %14821 = vmatpush1.bf16.msra.mxu0 %v10445
      %14822 = vmatprep.subr.bf16.mxu0 0
      %14823 = vmatpush1.bf16.msra.mxu0 %v10446
      %14824 = vmatprep.subr.bf16.mxu0 0
      %14825 = vmatpush1.bf16.msra.mxu0 %v10447
      %14826 = vmatprep.subr.bf16.mxu0 0
      %14827 = vmatpush1.bf16.msra.mxu0 %v10448
      %14828 = vmatprep.subr.bf16.mxu0 0
      %14829 = vmatpush1.bf16.msra.mxu0 %v10449
      %14830 = vmatprep.subr.bf16.mxu0 0
      %14831 = vmatpush1.bf16.msra.mxu0 %v10450
      %14832 = vmatprep.subr.bf16.mxu0 0
      %14833 = vmatpush1.bf16.msra.mxu0 %v10451
      %14834 = vmatprep.subr.bf16.mxu0 0
      %14835 = vmatpush1.bf16.msra.mxu0 %v10452
      %14836 = vmatprep.subr.bf16.mxu0 0
      %14837 = vmatpush1.bf16.msra.mxu0 %v10453
      %14838 = vmatprep.mubr.bf16.mxu0 %v3832
      %14839 = vmatmul.mubr.bf16.gmra.mrb[0].mxu0 %v3818
      %v14840 = vpop.f32.mrb[0].mxu0
      %v14841 = vadd.f32 %v14801, %v14840
      %v14842 = vpop.f32.mrb[0].mxu0
      %v14843 = vpop.f32.mrb[0].mxu0
      %v14844 = vpop.f32.mrb[0].mxu0
      %14845 = vdwg.mxu0
      %14846 = vmatprep.subr.bf16.mxu0 0
      %14847 = vmatpush1.bf16.msra.mxu0 %v10454
      %14848 = vmatprep.subr.bf16.mxu0 0
      %14849 = vmatpush1.bf16.msra.mxu0 %v10455
      %14850 = vmatprep.subr.bf16.mxu0 0
      %14851 = vmatpush1.bf16.msra.mxu0 %v10456
      %14852 = vmatprep.subr.bf16.mxu0 0
      %14853 = vmatpush1.bf16.msra.mxu0 %v10457
      %14854 = vmatprep.subr.bf16.mxu0 0
      %14855 = vmatpush1.bf16.msra.mxu0 %v10458
      %14856 = vmatprep.subr.bf16.mxu0 0
      %14857 = vmatpush1.bf16.msra.mxu0 %v10459
      %14858 = vmatprep.subr.bf16.mxu0 0
      %14859 = vmatpush1.bf16.msra.mxu0 %v10460
      %14860 = vmatprep.subr.bf16.mxu0 0
      %14861 = vmatpush1.bf16.msra.mxu0 %v10461
      %14862 = vmatprep.subr.bf16.mxu0 0
      %14863 = vmatpush1.bf16.msra.mxu0 %v10462
      %14864 = vmatprep.subr.bf16.mxu0 0
      %14865 = vmatpush1.bf16.msra.mxu0 %v10463
      %14866 = vmatprep.subr.bf16.mxu0 0
      %14867 = vmatpush1.bf16.msra.mxu0 %v10464
      %14868 = vmatprep.subr.bf16.mxu0 0
      %14869 = vmatpush1.bf16.msra.mxu0 %v10465
      %14870 = vmatprep.subr.bf16.mxu0 0
      %14871 = vmatpush1.bf16.msra.mxu0 %v10466
      %14872 = vmatprep.subr.bf16.mxu0 0
      %14873 = vmatpush1.bf16.msra.mxu0 %v10467
      %14874 = vmatprep.subr.bf16.mxu0 0
      %14875 = vmatpush1.bf16.msra.mxu0 %v10468
      %14876 = vmatprep.subr.bf16.mxu0 0
      %14877 = vmatpush1.bf16.msra.mxu0 %v10469
      %14878 = vmatprep.mubr.bf16.mxu0 %v3836
      %14879 = vmatmul.mubr.bf16.gmra.mrb[0].mxu0 %v3834
      %v14880 = vpop.f32.mrb[0].mxu0
      %v14881 = vadd.f32 %v14841, %v14880
      %v14882 = vpop.f32.mrb[0].mxu0
      %v14883 = vpop.f32.mrb[0].mxu0
      %v14884 = vpop.f32.mrb[0].mxu0
      %14885 = vdwg.mxu0
      %14886 = vmatprep.subr.bf16.mxu0 0
      %14887 = vmatpush1.bf16.msra.mxu0 %v10470
      %14888 = vmatprep.subr.bf16.mxu0 0
      %14889 = vmatpush1.bf16.msra.mxu0 %v10471
      %14890 = vmatprep.subr.bf16.mxu0 0
      %14891 = vmatpush1.bf16.msra.mxu0 %v10472
      %14892 = vmatprep.subr.bf16.mxu0 0
      %14893 = vmatpush1.bf16.msra.mxu0 %v10473
      %14894 = vmatprep.subr.bf16.mxu0 0
      %14895 = vmatpush1.bf16.msra.mxu0 %v10474
      %14896 = vmatprep.subr.bf16.mxu0 0
      %14897 = vmatpush1.bf16.msra.mxu0 %v10475
      %14898 = vmatprep.subr.bf16.mxu0 0
      %14899 = vmatpush1.bf16.msra.mxu0 %v10476
      %14900 = vmatprep.subr.bf16.mxu0 0
      %14901 = vmatpush1.bf16.msra.mxu0 %v10477
      %14902 = vmatprep.subr.bf16.mxu0 0
      %14903 = vmatpush1.bf16.msra.mxu0 %v10478
      %14904 = vmatprep.subr.bf16.mxu0 0
      %14905 = vmatpush1.bf16.msra.mxu0 %v10479
      %14906 = vmatprep.subr.bf16.mxu0 0
      %14907 = vmatpush1.bf16.msra.mxu0 %v10480
      %14908 = vmatprep.subr.bf16.mxu0 0
      %14909 = vmatpush1.bf16.msra.mxu0 %v10481
      %14910 = vmatprep.subr.bf16.mxu0 0
      %14911 = vmatpush1.bf16.msra.mxu0 %v10482
      %14912 = vmatprep.subr.bf16.mxu0 0
      %14913 = vmatpush1.bf16.msra.mxu0 %v10483
      %14914 = vmatprep.subr.bf16.mxu0 0
      %14915 = vmatpush1.bf16.msra.mxu0 %v10484
      %14916 = vmatprep.subr.bf16.mxu0 0
      %14917 = vmatpush1.bf16.msra.mxu0 %v10485
      %14918 = vmatprep.mubr.bf16.mxu0 %v3874
      %14919 = vmatmul.mubr.bf16.gmra.mrb[0].mxu0 %v3860
      %v14920 = vpop.f32.mrb[0].mxu0
      %v14921 = vadd.f32 %v14881, %v14920
      %v14922 = vpop.f32.mrb[0].mxu0
      %v14923 = vpop.f32.mrb[0].mxu0
      %v14924 = vpop.f32.mrb[0].mxu0
      %14925 = vdwg.mxu0
      %14926 = vmatprep.subr.bf16.mxu0 0
      %14927 = vmatpush1.bf16.msra.mxu0 %v10486
      %14928 = vmatprep.subr.bf16.mxu0 0
      %14929 = vmatpush1.bf16.msra.mxu0 %v10487
      %14930 = vmatprep.subr.bf16.mxu0 0
      %14931 = vmatpush1.bf16.msra.mxu0 %v10488
      %14932 = vmatprep.subr.bf16.mxu0 0
      %14933 = vmatpush1.bf16.msra.mxu0 %v10489
      %14934 = vmatprep.subr.bf16.mxu0 0
      %14935 = vmatpush1.bf16.msra.mxu0 %v10490
      %14936 = vmatprep.subr.bf16.mxu0 0
      %14937 = vmatpush1.bf16.msra.mxu0 %v10491
      %14938 = vmatprep.subr.bf16.mxu0 0
      %14939 = vmatpush1.bf16.msra.mxu0 %v10492
      %14940 = vmatprep.subr.bf16.mxu0 0
      %14941 = vmatpush1.bf16.msra.mxu0 %v10493
      %14942 = vmatprep.subr.bf16.mxu0 0
      %14943 = vmatpush1.bf16.msra.mxu0 %v10494
      %14944 = vmatprep.subr.bf16.mxu0 0
      %14945 = vmatpush1.bf16.msra.mxu0 %v10495
      %14946 = vmatprep.subr.bf16.mxu0 0
      %14947 = vmatpush1.bf16.msra.mxu0 %v10496
      %14948 = vmatprep.subr.bf16.mxu0 0
      %14949 = vmatpush1.bf16.msra.mxu0 %v10497
      %14950 = vmatprep.subr.bf16.mxu0 0
      %14951 = vmatpush1.bf16.msra.mxu0 %v10498
      %14952 = vmatprep.subr.bf16.mxu0 0
      %14953 = vmatpush1.bf16.msra.mxu0 %v10499
      %14954 = vmatprep.subr.bf16.mxu0 0
      %14955 = vmatpush1.bf16.msra.mxu0 %v10500
      %14956 = vmatprep.subr.bf16.mxu0 0
      %14957 = vmatpush1.bf16.msra.mxu0 %v10501
      %14958 = vmatprep.mubr.bf16.mxu0 %v3884
      %14959 = vmatmul.mubr.bf16.gmra.mrb[0].mxu0 %v3882
      %v14960 = vpop.f32.mrb[0].mxu0
      %v14961 = vadd.f32 %v14921, %v14960
      %v14962 = vpop.f32.mrb[0].mxu0
      %v14963 = vpop.f32.mrb[0].mxu0
      %v14964 = vpop.f32.mrb[0].mxu0
      %14965 = vdwg.mxu0
      %14966 = vmatprep.subr.bf16.mxu0 0
      %14967 = vmatpush1.bf16.msra.mxu0 %v10502
      %14968 = vmatprep.subr.bf16.mxu0 0
      %14969 = vmatpush1.bf16.msra.mxu0 %v10503
      %14970 = vmatprep.subr.bf16.mxu0 0
      %14971 = vmatpush1.bf16.msra.mxu0 %v10504
      %14972 = vmatprep.subr.bf16.mxu0 0
      %14973 = vmatpush1.bf16.msra.mxu0 %v10505
      %14974 = vmatprep.subr.bf16.mxu0 0
      %14975 = vmatpush1.bf16.msra.mxu0 %v10506
      %14976 = vmatprep.subr.bf16.mxu0 0
      %14977 = vmatpush1.bf16.msra.mxu0 %v10507
      %14978 = vmatprep.subr.bf16.mxu0 0
      %14979 = vmatpush1.bf16.msra.mxu0 %v10508
      %14980 = vmatprep.subr.bf16.mxu0 0
      %14981 = vmatpush1.bf16.msra.mxu0 %v10509
      %14982 = vmatprep.subr.bf16.mxu0 0
      %14983 = vmatpush1.bf16.msra.mxu0 %v10510
      %14984 = vmatprep.subr.bf16.mxu0 0
      %14985 = vmatpush1.bf16.msra.mxu0 %v10511
      %14986 = vmatprep.subr.bf16.mxu0 0
      %14987 = vmatpush1.bf16.msra.mxu0 %v10512
      %14988 = vmatprep.subr.bf16.mxu0 0
      %14989 = vmatpush1.bf16.msra.mxu0 %v10513
      %14990 = vmatprep.subr.bf16.mxu0 0
      %14991 = vmatpush1.bf16.msra.mxu0 %v10514
      %14992 = vmatprep.subr.bf16.mxu0 0
      %14993 = vmatpush1.bf16.msra.mxu0 %v10515
      %14994 = vmatprep.subr.bf16.mxu0 0
      %14995 = vmatpush1.bf16.msra.mxu0 %v10516
      %14996 = vmatprep.subr.bf16.mxu0 0
      %14997 = vmatpush1.bf16.msra.mxu0 %v10517
      %14998 = vmatprep.mubr.bf16.mxu0 %v3881
      %14999 = vmatmul.mubr.bf16.gmra.mrb[0].mxu0 %v3867
      %v15000 = vpop.f32.mrb[0].mxu0
      %v15001 = vadd.f32 %v14961, %v15000
      %v15002 = vpop.f32.mrb[0].mxu0
      %v15003 = vpop.f32.mrb[0].mxu0
      %v15004 = vpop.f32.mrb[0].mxu0
      %15005 = vdwg.mxu0
      %15006 = vmatprep.subr.bf16.mxu0 0
      %15007 = vmatpush1.bf16.msra.mxu0 %v10518
      %15008 = vmatprep.subr.bf16.mxu0 0
      %15009 = vmatpush1.bf16.msra.mxu0 %v10519
      %15010 = vmatprep.subr.bf16.mxu0 0
      %15011 = vmatpush1.bf16.msra.mxu0 %v10520
      %15012 = vmatprep.subr.bf16.mxu0 0
      %15013 = vmatpush1.bf16.msra.mxu0 %v10521
      %15014 = vmatprep.subr.bf16.mxu0 0
      %15015 = vmatpush1.bf16.msra.mxu0 %v10522
      %15016 = vmatprep.subr.bf16.mxu0 0
      %15017 = vmatpush1.bf16.msra.mxu0 %v10523
      %15018 = vmatprep.subr.bf16.mxu0 0
      %15019 = vmatpush1.bf16.msra.mxu0 %v10524
      %15020 = vmatprep.subr.bf16.mxu0 0
      %15021 = vmatpush1.bf16.msra.mxu0 %v10525
      %15022 = vmatprep.subr.bf16.mxu0 0
      %15023 = vmatpush1.bf16.msra.mxu0 %v10526
      %15024 = vmatprep.subr.bf16.mxu0 0
      %15025 = vmatpush1.bf16.msra.mxu0 %v10527
      %15026 = vmatprep.subr.bf16.mxu0 0
      %15027 = vmatpush1.bf16.msra.mxu0 %v10528
      %15028 = vmatprep.subr.bf16.mxu0 0
      %15029 = vmatpush1.bf16.msra.mxu0 %v10529
      %15030 = vmatprep.subr.bf16.mxu0 0
      %15031 = vmatpush1.bf16.msra.mxu0 %v10530
      %15032 = vmatprep.subr.bf16.mxu0 0
      %15033 = vmatpush1.bf16.msra.mxu0 %v10531
      %15034 = vmatprep.subr.bf16.mxu0 0
      %15035 = vmatpush1.bf16.msra.mxu0 %v10532
      %15036 = vmatprep.subr.bf16.mxu0 0
      %15037 = vmatpush1.bf16.msra.mxu0 %v10533
      %15038 = vmatprep.mubr.bf16.mxu0 %v3885
      %15039 = vmatmul.mubr.bf16.gmra.mrb[0].mxu0 %v3883
      %v15040 = vpop.f32.mrb[0].mxu0
      %v15041 = vadd.f32 %v15001, %v15040
      %v15042 = vpop.f32.mrb[0].mxu0
      %v15043 = vpop.f32.mrb[0].mxu0
      %v15044 = vpop.f32.mrb[0].mxu0
      %15045 = vdwg.mxu0
      %15046 = vmatprep.subr.bf16.mxu0 0
      %15047 = vmatpush1.bf16.msra.mxu0 %v10534
      %15048 = vmatprep.subr.bf16.mxu0 0
      %15049 = vmatpush1.bf16.msra.mxu0 %v10535
      %15050 = vmatprep.subr.bf16.mxu0 0
      %15051 = vmatpush1.bf16.msra.mxu0 %v10536
      %15052 = vmatprep.subr.bf16.mxu0 0
      %15053 = vmatpush1.bf16.msra.mxu0 %v10537
      %15054 = vmatprep.subr.bf16.mxu0 0
      %15055 = vmatpush1.bf16.msra.mxu0 %v10538
      %15056 = vmatprep.subr.bf16.mxu0 0
      %15057 = vmatpush1.bf16.msra.mxu0 %v10539
      %15058 = vmatprep.subr.bf16.mxu0 0
      %15059 = vmatpush1.bf16.msra.mxu0 %v10540
      %15060 = vmatprep.subr.bf16.mxu0 0
      %15061 = vmatpush1.bf16.msra.mxu0 %v10541
      %15062 = vmatprep.subr.bf16.mxu0 0
      %15063 = vmatpush1.bf16.msra.mxu0 %v10542
      %15064 = vmatprep.subr.bf16.mxu0 0
      %15065 = vmatpush1.bf16.msra.mxu0 %v10543
      %15066 = vmatprep.subr.bf16.mxu0 0
      %15067 = vmatpush1.bf16.msra.mxu0 %v10544
      %15068 = vmatprep.subr.bf16.mxu0 0
      %15069 = vmatpush1.bf16.msra.mxu0 %v10545
      %15070 = vmatprep.subr.bf16.mxu0 0
      %15071 = vmatpush1.bf16.msra.mxu0 %v10546
      %15072 = vmatprep.subr.bf16.mxu0 0
      %15073 = vmatpush1.bf16.msra.mxu0 %v10547
      %15074 = vmatprep.subr.bf16.mxu0 0
      %15075 = vmatpush1.bf16.msra.mxu0 %v10548
      %15076 = vmatprep.subr.bf16.mxu0 0
      %15077 = vmatpush1.bf16.msra.mxu0 %v10549
      %15078 = vmatprep.mubr.bf16.mxu0 %v3907
      %15079 = vmatmul.mubr.bf16.gmra.mrb[0].mxu0 %v3900
      %v15080 = vpop.f32.mrb[0].mxu0
      %v15081 = vadd.f32 %v15041, %v15080
      %v15082 = vpop.f32.mrb[0].mxu0
      %v15083 = vpop.f32.mrb[0].mxu0
      %v15084 = vpop.f32.mrb[0].mxu0
      %15085 = vdwg.mxu0
      %vm15086 = vcmask 517120
      %v15087 = vsel %vm15086, %v15081, 0.0
      %v15088 = vrot.slane %v15087, 4
      %v15089 = vadd.f32 %v15087, %v15088
      %v15090 = vrot.slane %v15089, 2
      %v15091 = vadd.f32 %v15089, %v15090
      %v15092 = vrot.slane %v15091, 1
      %v15093 = vadd.f32 %v15091, %v15092
      %v15094 = vrcp.pop 2.0
      %v15095 = vmul.f32 %v15093, %v15094
      %v15096 = vsub.f32 %v15081, %v15095
      %v15097 = vmul.f32 %v15096, %v15096
      %v15098 = vsel %vm15086, %v15097, 0.0
      %v15099 = vrot.slane %v15098, 4
      %v15100 = vadd.f32 %v15098, %v15099
      %v15101 = vrot.slane %v15100, 2
      %v15102 = vadd.f32 %v15100, %v15101
      %v15103 = vrot.slane %v15102, 1
      %v15104 = vadd.f32 %v15102, %v15103
      %v15105 = vmul.f32 %v15104, %v15094
      %v15106 = vadd.f32 %v15105, 1e-05
      %v15107 = vrsqrt.pop %v15106
      %v15108 = vmul.f32 %v15096, %v15107
      %v15109 = vld [vmem:[%s258] sm:$0x1]
      %v15111 = vlaneseq
      %v15112 = vshrl.u32 %v15111, 7
      %v15113 = vsub.s32 0, %v15112
      %v15114 = vrot.slane %v15109, %v15113
      %v15116 = vmul.f32 %v15108, %v15114
      %v15117 = vld [vmem:[%s261] sm:$0x1]
      %v15119 = vlaneseq
      %v15120 = vshrl.u32 %v15119, 7
      %v15121 = vsub.s32 0, %v15120
      %v15122 = vrot.slane %v15117, %v15121
      %v15124 = vadd.f32 %v15116, %v15122
      %vm15125 = vcmp.gt.f32.partialorder %v15124, 0.0
      %v15126 = vmul.f32 %v15124, 0.1
      %v15127 = vsel %vm15125, %v15124, %v15126
      %v15128 = vld [vmem:[%s266] sm:$0xff]
      %v15129 = vld [vmem:[%s266 + $0x8] sm:$0xff]
      %v15130 = vld [vmem:[%s266 + $0x10] sm:$0xff]
      %v15131 = vld [vmem:[%s266 + $0x18] sm:$0xff]
      %v15132 = vld [vmem:[%s266 + $0x20] sm:$0xff]
      %v15133 = vld [vmem:[%s266 + $0x28] sm:$0xff]
      %v15134 = vld [vmem:[%s266 + $0x30] sm:$0xff]
      %v15135 = vld [vmem:[%s266 + $0x38] sm:$0xff]
      %vm15136 = vcmask 523264
      %v15138 = vsel %vm15136, %v15127, 0
      %15140 = vmatprep.subr.mxu0 0.0
      %15141 = vmatpush1.msra.mxu0 %v15128
      %15142 = vmatprep.subr.mxu0 0.0
      %15143 = vmatpush1.msra.mxu0 %v15129
      %15144 = vmatprep.subr.mxu0 0.0
      %15145 = vmatpush1.msra.mxu0 %v15130
      %15146 = vmatprep.subr.mxu0 0.0
      %15147 = vmatpush1.msra.mxu0 %v15131
      %15148 = vmatprep.subr.mxu0 0.0
      %15149 = vmatpush1.msra.mxu0 %v15132
      %15150 = vmatprep.subr.mxu0 0.0
      %15151 = vmatpush1.msra.mxu0 %v15133
      %15152 = vmatprep.subr.mxu0 0.0
      %15153 = vmatpush1.msra.mxu0 %v15134
      %15154 = vmatprep.subr.mxu0 0.0
      %15155 = vmatpush1.msra.mxu0 %v15135
      %15156 = vmatprep.subr.mxu0 0.0
      %15157 = vmatpush1.msra.mxu0 0.0
      %15158 = vmatprep.subr.mxu0 0.0
      %15159 = vmatpush1.msra.mxu0 0.0
      %15160 = vmatprep.subr.mxu0 0.0
      %15161 = vmatpush1.msra.mxu0 0.0
      %15162 = vmatprep.subr.mxu0 0.0
      %15163 = vmatpush1.msra.mxu0 0.0
      %15164 = vmatprep.subr.mxu0 0.0
      %15165 = vmatpush1.msra.mxu0 0.0
      %15166 = vmatprep.subr.mxu0 0.0
      %15167 = vmatpush1.msra.mxu0 0.0
      %15168 = vmatprep.subr.mxu0 0.0
      %15169 = vmatpush1.msra.mxu0 0.0
      %15170 = vmatprep.subr.mxu0 0.0
      %15171 = vmatpush1.msra.mxu0 0.0
      %15172 = vmatprep.subr.mxu0 0.0
      %15173 = vmatpush1.msra.mxu0 0.0
      %15174 = vmatprep.subr.mxu0 0.0
      %15175 = vmatpush1.msra.mxu0 0.0
      %15176 = vmatprep.subr.mxu0 0.0
      %15177 = vmatpush1.msra.mxu0 0.0
      %15178 = vmatprep.subr.mxu0 0.0
      %15179 = vmatpush1.msra.mxu0 0.0
      %15180 = vmatprep.subr.mxu0 0.0
      %15181 = vmatpush1.msra.mxu0 0.0
      %15182 = vmatprep.subr.mxu0 0.0
      %15183 = vmatpush1.msra.mxu0 0.0
      %15184 = vmatprep.subr.mxu0 0.0
      %15185 = vmatpush1.msra.mxu0 0.0
      %15186 = vmatprep.subr.mxu0 0.0
      %15187 = vmatpush1.msra.mxu0 0.0
      %15188 = vmatprep.subr.mxu0 0.0
      %15189 = vmatpush1.msra.mxu0 0.0
      %15190 = vmatprep.subr.mxu0 0.0
      %15191 = vmatpush1.msra.mxu0 0.0
      %15192 = vmatprep.subr.mxu0 0.0
      %15193 = vmatpush1.msra.mxu0 0.0
      %15194 = vmatprep.subr.mxu0 0.0
      %15195 = vmatpush1.msra.mxu0 0.0
      %15196 = vmatprep.subr.mxu0 0.0
      %15197 = vmatpush1.msra.mxu0 0.0
      %15198 = vmatprep.subr.mxu0 0.0
      %15199 = vmatpush1.msra.mxu0 0.0
      %15200 = vmatprep.subr.mxu0 0.0
      %15201 = vmatpush1.msra.mxu0 0.0
      %15202 = vmatprep.subr.mxu0 0.0
      %15203 = vmatpush1.msra.mxu0 0.0
      %15204 = vmatprep.mubr.f32.mxu0 0.0
      %15205 = vmatmul.mubr.f32.gmra.mrb[0].mxu0 %v15138
      %v15206 = vpop.f32.mrb[0].mxu0
      %v15207 = vadd.f32 0.0, %v15206
      %v15208 = vpop.f32.mrb[0].mxu0
      %15209 = vdwg.mxu0
      %15210 = vst [vmem:[%s270] sm:$0x3] %v15207
      %p15211 = scmp.lt.s32.totalorder %s16, 1
      %s15212 = scalar_select %p15211, %s16, 1
      %s15213 = smul.addr %s15212, 2
      %s15214 = scalar_lea.vmem %s5, %s15213
      // Predicated region
      $region41: #{qhead_forward.1} parent=39 // pred_check
        %p15215 = pneg %p159
      $region42: #{qhead_forward.1} parent=39 // pred_check_branch
        %15217 = sbr.rel (%p15215) target = $region44
      $region43: #{qhead_forward.1} parent=39 // pred_region
        _
      $region44: #{qhead_forward.1} parent=39 // pred_fallthru
        _
    $region40: #{qhead_forward.1} parent=5 // pred_fallthru
      _
    %p15218 = scmp.le.s32.totalorder 2, %s11
    // Predicated region
    $region45: #{qhead_forward.1} parent=5 // pred_check
      %p15219 = pneg %p15218
    $region46: #{qhead_forward.1} parent=5 // pred_check_branch
      %15221 = sbr.rel (%p15219) target = $region48
    $region47: #{qhead_forward.1} parent=5 // pred_region
      %s15222 = ssub.s32 %s11, 2
      // Predicated region
      $region49: #{qhead_forward.1} parent=47 // pred_check
        %p15223 = pneg %p165
      $region50: #{qhead_forward.1} parent=47 // pred_check_branch
        %15225 = sbr.rel (%p15223) target = $region52
      $region51: #{qhead_forward.1} parent=47 // pred_region
        %p15226 = scmp.lt.s32.totalorder %s17, 1
        %s15227 = scalar_select %p15226, %s17, 1
        %s15228 = smul.addr %s15227, 2
        %s15229 = scalar_lea.vmem %s5, %s15228
      $region52: #{qhead_forward.1} parent=47 // pred_fallthru
        _
    $region48: #{qhead_forward.1} parent=5 // pred_fallthru
      _
  $region6: #{qhead_forward.1} parent=0 // loop_footer
    %s15 = sadd.s32 1, %s11
  $region7: #{qhead_forward.1} parent=0 // loop_footer_branch
    %10 = sbr.rel target = $region3
  $region8: #{qhead_forward.1} parent=0 // loop_exit
    _

</llo_original>
